<compile_context>
chip_gen: v7x
topology: tpu7x:2x2x1
jax: 0.10.0
libtpu: 0.0.40
codegen_flags: <defaults>
</compile_context>

<pallas_src>
from functools import partial

import jax
import jax.numpy as jnp
from jax.experimental import pallas as pl
from jax.experimental.pallas import tpu as pltpu


def _round_up(x, m):
    return (x + m - 1) // m * m


# ---------------------------------------------------------------------------
# Pallas kernels
# ---------------------------------------------------------------------------

def _make_lstm_kernel(nd, TC):
    """Fused (bi)directional LSTM layer, one time-chunk per grid step.

    Ref order (inputs, outputs, scratch):
      x_fwd[, x_rev]   : (TC, Bp, Dp)   bf16   fwd chunk i / rev chunk NC-1-i
      wih              : (nd, Dp, G)    bf16   input-projection weights
      whh              : (nd*Hp, nd*G)  bf16   block-diagonal recurrent weights
      b                : (nd, 1, G)     f32    combined b_ih + b_hh
      lens             : (Bp, 1)        i32    per-row valid length
      y_fwd[, y_rev]   : (TC, Bp, Hp)   bf16   outputs (original time order)
      hN, cN           : (Bp, nd*Hp)    f32    final states (last chunk only)
      gx_fwd[, gx_rev] : (TC, Bp, G)    bf16   hoisted input-projection scratch
      h_sc, c_sc       : (Bp, nd*Hp)    f32    recurrent carry across chunks
    """

    def kernel(*refs):
        n_in = nd + 4
        n_out = nd + 2
        x_refs = refs[0:nd]
        wih_ref, whh_ref, b_ref, len_ref = refs[nd:n_in]
        y_refs = refs[n_in:n_in + nd]
        hN_ref, cN_ref = refs[n_in + nd:n_in + n_out]
        gx_refs = refs[n_in + n_out:n_in + n_out + nd]
        h_sc, c_sc = refs[n_in + n_out + nd:]

        chunk = pl.program_id(0)
        nchunks = pl.num_programs(0)
        _, Bp, Dp = x_refs[0].shape
        Hp = whh_ref.shape[0] // nd
        G = 4 * Hp

        @pl.when(chunk == 0)
        def _init():
            h_sc[...] = jnp.zeros_like(h_sc)
            c_sc[...] = jnp.zeros_like(c_sc)

        # Hoisted input projection: one big MXU matmul per direction per chunk,
        # fed straight from the block refs (no value-slice copies).
        for d in range(nd):
            g2 = jnp.dot(x_refs[d][...].reshape(TC * Bp, Dp), wih_ref[d],
                         preferred_element_type=jnp.float32) + b_ref[d]
            gx_refs[d][...] = g2.reshape(TC, Bp, G).astype(jnp.bfloat16)

        whh = whh_ref[...]                    # (nd*Hp, nd*G) bf16, resident
        lens = len_ref[...]                   # (Bp, 1) int32
        t0_fwd = chunk * TC
        t0_rev = (nchunks - 1 - chunk) * TC

        def step(u, carry):
            h, c = carry                      # (Bp, nd*Hp) f32
            # both directions' h @ W_hh as a single block-diagonal MXU matmul
            rec = jnp.dot(h.astype(jnp.bfloat16), whh,
                          preferred_element_type=jnp.float32)     # (Bp, nd*G)
            h_parts, c_parts = [], []
            for d in range(nd):               # static unroll (nd <= 2)
                row = u if d == 0 else TC - 1 - u
                t = t0_fwd + u if d == 0 else t0_rev + (TC - 1 - u)
                gates = gx_refs[d][row].astype(jnp.float32) + rec[:, d * G:(d + 1) * G]
                i_g = jax.nn.sigmoid(gates[:, 0 * Hp:1 * Hp])
                f_g = jax.nn.sigmoid(gates[:, 1 * Hp:2 * Hp])
                g_g = jnp.tanh(gates[:, 2 * Hp:3 * Hp])
                o_g = jax.nn.sigmoid(gates[:, 3 * Hp:4 * Hp])
                c_old = c[:, d * Hp:(d + 1) * Hp]
                c_new = f_g * c_old + i_g * g_g
                h_new = o_g * jnp.tanh(c_new)
                valid = t < lens              # (Bp, 1) bool; packed-sequence window
                # padded steps keep state, emit zeros (pack/pad_packed semantics)
                y_refs[d][row] = jnp.where(valid, h_new, 0.0).astype(jnp.bfloat16)
                h_parts.append(jnp.where(valid, h_new, h[:, d * Hp:(d + 1) * Hp]))
                c_parts.append(jnp.where(valid, c_new, c_old))
            h = h_parts[0] if nd == 1 else jnp.concatenate(h_parts, axis=-1)
            c = c_parts[0] if nd == 1 else jnp.concatenate(c_parts, axis=-1)
            return h, c

        unroll = TC if TC <= 16 else 8
        hT, cT = jax.lax.fori_loop(0, TC, step, (h_sc[...], c_sc[...]),
                                   unroll=unroll)
        h_sc[...] = hT
        c_sc[...] = cT

        @pl.when(chunk == nchunks - 1)        # explicit "last chunk wins"
        def _fin():
            hN_ref[...] = hT
            cN_ref[...] = cT

    return kernel


def _linear_kernel(x_ref, w_ref, b_ref, o_ref):
    # x: (TM, K) bf16   w: (K, TN) bf16   b: (1, TN) f32   o: (TM, TN) f32
    o_ref[...] = (jnp.dot(x_ref[...], w_ref[...],
                          preferred_element_type=jnp.float32) + b_ref[...])


# ---------------------------------------------------------------------------
# pallas_call wrappers
# ---------------------------------------------------------------------------

def _run_bilstm(x, wih, whh, b, lens, *, TC, nd):
    T_pad, Bp, Dp = x.shape
    Hp = whh.shape[0] // nd
    G = 4 * Hp
    NC = T_pad // TC

    x_specs = [pl.BlockSpec((TC, Bp, Dp), lambda i: (i, 0, 0))]
    y_specs = [pl.BlockSpec((TC, Bp, Hp), lambda i: (i, 0, 0))]
    if nd == 2:
        # reverse direction streams chunks back-to-front; y written in original order
        x_specs.append(pl.BlockSpec((TC, Bp, Dp), lambda i: (NC - 1 - i, 0, 0)))
        y_specs.append(pl.BlockSpec((TC, Bp, Hp), lambda i: (NC - 1 - i, 0, 0)))

    in_specs = x_specs + [
        pl.BlockSpec((nd, Dp, G), lambda i: (0, 0, 0)),      # wih (grid-invariant)
        pl.BlockSpec((nd * Hp, nd * G), lambda i: (0, 0)),   # whh (grid-invariant)
        pl.BlockSpec((nd, 1, G), lambda i: (0, 0, 0)),       # bias
        pl.BlockSpec((Bp, 1), lambda i: (0, 0)),             # lengths
    ]
    out_specs = tuple(y_specs) + (
        pl.BlockSpec((Bp, nd * Hp), lambda i: (0, 0)),
        pl.BlockSpec((Bp, nd * Hp), lambda i: (0, 0)),
    )
    out_shape = tuple(
        [jax.ShapeDtypeStruct((T_pad, Bp, Hp), jnp.bfloat16) for _ in range(nd)]
        + [jax.ShapeDtypeStruct((Bp, nd * Hp), jnp.float32) for _ in range(2)])
    scratch_shapes = (
        [pltpu.VMEM((TC, Bp, G), jnp.bfloat16) for _ in range(nd)]
        + [pltpu.VMEM((Bp, nd * Hp), jnp.float32) for _ in range(2)])

    xs = (x, x) if nd == 2 else (x,)
    outs = pl.pallas_call(
        _make_lstm_kernel(nd, TC),
        grid=(NC,),
        in_specs=in_specs,
        out_specs=out_specs,
        out_shape=out_shape,
        scratch_shapes=scratch_shapes,
        compiler_params=pltpu.CompilerParams(
            dimension_semantics=("arbitrary",),      # serial time recurrence
            vmem_limit_bytes=64 * 1024 * 1024),
    )(*xs, wih, whh, b, lens)

    if nd == 2:
        yf, yr, hN, cN = outs
    else:
        yf, hN, cN = outs
        yr = None
    return yf, yr, hN, cN


def _run_linear(x2d, w_pad, b_pad):
    M, K = x2d.shape
    Op = w_pad.shape[1]
    TM = 256
    Mp = _round_up(M, TM)
    xp = jnp.pad(x2d, ((0, Mp - M), (0, 0)))
    TN = 512 if (Op > 2048 and Op % 512 == 0) else Op
    out = pl.pallas_call(
        _linear_kernel,
        grid=(Mp // TM, Op // TN),
        in_specs=[pl.BlockSpec((TM, K), lambda i, j: (i, 0)),
                  pl.BlockSpec((K, TN), lambda i, j: (0, j)),
                  pl.BlockSpec((1, TN), lambda i, j: (0, j))],
        out_specs=pl.BlockSpec((TM, TN), lambda i, j: (i, j)),
        out_shape=jax.ShapeDtypeStruct((Mp, Op), jnp.float32),
        compiler_params=pltpu.CompilerParams(
            dimension_semantics=("parallel", "parallel"),
            vmem_limit_bytes=64 * 1024 * 1024),
    )(xp, w_pad, b_pad)
    return out[:M]


# ---------------------------------------------------------------------------
# Pure-JAX references (same math: bf16-rounded operands, f32 dots -> CPU/TPU safe)
# ---------------------------------------------------------------------------

def _run_bilstm_ref(x, wih, whh, b, lens, *, TC, nd):
    del TC
    T_pad, Bp, Dp = x.shape
    Hp = whh.shape[0] // nd
    G = 4 * Hp
    xf = x.astype(jnp.float32)
    ys, hNs, cNs = [], [], []
    for d in range(nd):
        wihd = wih[d].astype(jnp.float32)
        whhd = whh.astype(jnp.float32)[d * Hp:(d + 1) * Hp, d * G:(d + 1) * G]
        gx = (jnp.einsum("tbi,ig->tbg", xf, wihd) + b[d]).astype(jnp.bfloat16)
        if d == 0:
            gx_proc, times = gx, jnp.arange(T_pad, dtype=jnp.int32)
        else:
            gx_proc, times = gx[::-1], jnp.arange(T_pad - 1, -1, -1, dtype=jnp.int32)

        def step(carry, inp):
            h, c = carry
            g_t, t = inp
            rec = jnp.dot(h.astype(jnp.bfloat16).astype(jnp.float32), whhd)
            gates = g_t.astype(jnp.float32) + rec
            i_g = jax.nn.sigmoid(gates[:, 0 * Hp:1 * Hp])
            f_g = jax.nn.sigmoid(gates[:, 1 * Hp:2 * Hp])
            g_g = jnp.tanh(gates[:, 2 * Hp:3 * Hp])
            o_g = jax.nn.sigmoid(gates[:, 3 * Hp:4 * Hp])
            c_new = f_g * c + i_g * g_g
            h_new = o_g * jnp.tanh(c_new)
            valid = t < lens
            y = jnp.where(valid, h_new, 0.0).astype(jnp.bfloat16)
            return (jnp.where(valid, h_new, h), jnp.where(valid, c_new, c)), y

        h0 = jnp.zeros((Bp, Hp), jnp.float32)
        (hT, cT), y_proc = jax.lax.scan(step, (h0, jnp.zeros_like(h0)),
                                        (gx_proc, times))
        ys.append(y_proc if d == 0 else y_proc[::-1])
        hNs.append(hT)
        cNs.append(cT)
    yf = ys[0]
    yr = ys[1] if nd == 2 else None
    hN = jnp.concatenate(hNs, axis=-1) if nd == 2 else hNs[0]
    cN = jnp.concatenate(cNs, axis=-1) if nd == 2 else cNs[0]
    return yf, yr, hN, cN


def _run_linear_ref(x2d, w_pad, b_pad):
    return jnp.dot(x2d.astype(jnp.float32), w_pad.astype(jnp.float32)) + b_pad


# ---------------------------------------------------------------------------
# BaseEncoder forward
# ---------------------------------------------------------------------------

@partial(jax.jit, static_argnames=("hidden_size", "output_size", "n_layers",
                                   "bidirectional", "use_pallas", "time_chunk"))
def encoder_forward(prep, inputs, input_lengths, *, hidden_size, output_size,
                    n_layers, bidirectional=True, use_pallas=True, time_chunk=128):
    # time_chunk guidance: ~128-256 on v5e/v6e (128 MiB VMEM), ~32-64 on v7x (64 MiB).
    assert inputs.ndim == 3
    B, T, Din0 = inputs.shape
    nd = 2 if bidirectional else 1
    H = hidden_size
    Hp = _round_up(H, 128)          # lane-aligned gate / hidden blocks
    Bp = _round_up(B, 16)           # 16 sublanes -> bf16 tile packed
    TC = min(time_chunk, T)
    T_pad = _round_up(T, TC)
    Dp0 = _round_up(Din0, 128)      # lane-dense layer-0 input

    if input_lengths is not None:
        indices = jnp.argsort(-input_lengths)          # descending (stable)
        desorted = jnp.argsort(indices)
        lengths = input_lengths[indices].astype(jnp.int32)
        x_sorted = inputs[indices]
    else:
        desorted = None
        lengths = jnp.full((B,), T, jnp.int32)
        x_sorted = inputs

    lens = jnp.zeros((Bp, 1), jnp.int32).at[:B, 0].set(lengths)

    run_lstm = _run_bilstm if use_pallas else _run_bilstm_ref
    run_lin = _run_linear if use_pallas else _run_linear_ref

    # Time-major, padded, bf16 once for layer 0; later layers come out already padded.
    cur = jnp.transpose(x_sorted, (1, 0, 2))
    cur = jnp.pad(cur, ((0, T_pad - T), (0, Bp - B), (0, Dp0 - Din0)))
    cur = cur.astype(jnp.bfloat16)

    h_list, c_list = [], []
    for layer in range(n_layers):
        lp = prep["layers"][layer]
        yf, yr, hN, cN = run_lstm(cur, lp["wih"], lp["whh"], lp["b"], lens,
                                  TC=TC, nd=nd)
        cur = jnp.concatenate([yf, yr], axis=-1) if nd == 2 else yf   # (T_pad,Bp,nd*Hp)
        for d in range(nd):
            h_list.append(hN[:B, d * Hp:d * Hp + H])
            c_list.append(cN[:B, d * Hp:d * Hp + H])

    flat = cur.reshape(T_pad * Bp, nd * Hp)
    logits_full = run_lin(flat, prep["proj_w"], prep["proj_b"])       # (T_pad*Bp, Op)
    logits = logits_full.reshape(T_pad, Bp, -1)[:T, :B, :output_size]
    logits = jnp.transpose(logits, (1, 0, 2))                         # (B, T, O)
    if input_lengths is not None:
        logits = logits[desorted]            # de-sort batch; padded rows give bias only

    # PyTorch returns `hidden` without de-sorting (sorted-batch order) — replicate.
    h_n = jnp.stack(h_list, axis=0)
    c_n = jnp.stack(c_list, axis=0)
    return logits, (h_n, c_n)


# ---------------------------------------------------------------------------
# Parameter init (PyTorch-style) and one-time MXU-ready preparation
# ---------------------------------------------------------------------------

def init_params(key, input_size, hidden_size, output_size, n_layers,
                bidirectional=True):
    num_dir = 2 if bidirectional else 1
    k = 1.0 / (hidden_size ** 0.5)
    params = {'lstm': {}}
    for layer in range(n_layers):
        layer_in = input_size if layer == 0 else hidden_size * num_dir
        for d in range(num_dir):
            key, k1, k2, k3, k4 = jax.random.split(key, 5)
            params['lstm'][(layer, d)] = (
                jax.random.uniform(k1, (4 * hidden_size, layer_in), jnp.float32, -k, k),
                jax.random.uniform(k2, (4 * hidden_size, hidden_size), jnp.float32, -k, k),
                jax.random.uniform(k3, (4 * hidden_size,), jnp.float32, -k, k),
                jax.random.uniform(k4, (4 * hidden_size,), jnp.float32, -k, k),
            )
    kp = 1.0 / ((num_dir * hidden_size) ** 0.5)
    key, k1, k2 = jax.random.split(key, 3)
    params['proj_w'] = jax.random.uniform(
        k1, (output_size, num_dir * hidden_size), jnp.float32, -kp, kp)
    params['proj_b'] = jax.random.uniform(k2, (output_size,), jnp.float32, -kp, kp)
    return params


def _pad_gates_matrix(w, H, Hp):
    # PyTorch layout (4H, K), gates i,f,g,o stacked on dim 0 ->
    # (K, 4*Hp) with every gate block starting on a 128-lane boundary.
    K = w.shape[1]
    wg = jnp.transpose(w.reshape(4, H, K), (2, 0, 1))        # (K, 4, H)
    wg = jnp.pad(wg, ((0, 0), (0, 0), (0, Hp - H)))
    return wg.reshape(K, 4 * Hp)


def _pad_gates_bias(b, H, Hp):
    bg = jnp.pad(b.reshape(4, H), ((0, 0), (0, Hp - H)))
    return bg.reshape(1, 4 * Hp)


def prepare_params(raw, input_size, hidden_size, output_size, n_layers,
                   bidirectional=True):
    nd = 2 if bidirectional else 1
    H = hidden_size
    Hp = _round_up(H, 128)
    G = 4 * Hp
    Dp0 = _round_up(input_size, 128)
    layers = []
    for layer in range(n_layers):
        Dp = Dp0 if layer == 0 else nd * Hp
        wih_d, b_d = [], []
        whh_bd = jnp.zeros((nd * Hp, nd * G), jnp.float32)   # block-diagonal recurrent W
        for d in range(nd):
            w_ih, w_hh, b_ih, b_hh = raw['lstm'][(layer, d)]
            w_kg = _pad_gates_matrix(w_ih, H, Hp)            # (layer_in, G)
            wih_full = jnp.zeros((Dp, G), jnp.float32)
            if layer == 0:
                wih_full = wih_full.at[:input_size].set(w_kg)
            else:
                # previous layer's features live at [d_in*Hp : d_in*Hp + H]
                for di in range(nd):
                    wih_full = wih_full.at[di * Hp:di * Hp + H].set(
                        w_kg[di * H:(di + 1) * H])
            wih_d.append(wih_full)
            whh_pad = _pad_gates_matrix(w_hh, H, Hp)          # (H, G)
            whh_pad = jnp.pad(whh_pad, ((0, Hp - H), (0, 0))) # (Hp, G)
            whh_bd = whh_bd.at[d * Hp:(d + 1) * Hp, d * G:(d + 1) * G].set(whh_pad)
            b_d.append(_pad_gates_bias(b_ih + b_hh, H, Hp))   # (1, G)
        layers.append({
            'wih': jnp.stack(wih_d, 0).astype(jnp.bfloat16),  # (nd, Dp, G)
            'whh': whh_bd.astype(jnp.bfloat16),               # (nd*Hp, nd*G)
            'b': jnp.stack(b_d, 0).astype(jnp.float32),       # (nd, 1, G)
        })
    Op = _round_up(output_size, 128)
    w_t = raw['proj_w'].T                                     # (nd*H, O)
    proj_w = jnp.zeros((nd * Hp, Op), jnp.float32)
    for d in range(nd):
        proj_w = proj_w.at[d * Hp:d * Hp + H, :output_size].set(
            w_t[d * H:(d + 1) * H])
    proj_b = jnp.pad(raw['proj_b'], (0, Op - output_size)).reshape(1, Op)
    return {'layers': layers,
            'proj_w': proj_w.astype(jnp.bfloat16),
            'proj_b': proj_b.astype(jnp.float32)}


# ---------------------------------------------------------------------------

if __name__ == "__main__":
    B, T = 2, 8
    input_size, hidden_size, output_size, n_layers = 32, 32, 16, 2
    bidirectional = True

    key = jax.random.PRNGKey(0)
    pkey, xkey = jax.random.split(key)
    raw_params = init_params(pkey, input_size, hidden_size, output_size,
                             n_layers, bidirectional)
    prep = prepare_params(raw_params, input_size, hidden_size, output_size,
                          n_layers, bidirectional)
    inputs = jax.random.normal(xkey, (B, T, input_size), jnp.float32)
    input_lengths = jnp.array([6, 8], jnp.int32)

    cfg = dict(hidden_size=hidden_size, output_size=output_size,
               n_layers=n_layers, bidirectional=bidirectional, time_chunk=4)

    logits, (h_n, c_n) = encoder_forward(prep, inputs, input_lengths,
                                         use_pallas=True, **cfg)
    jax.block_until_ready((logits, h_n, c_n))

    num_dir = 2 if bidirectional else 1
    assert logits.shape == (B, T, output_size)
    assert h_n.shape == (n_layers * num_dir, B, hidden_size)
    assert c_n.shape == (n_layers * num_dir, B, hidden_size)

    # Cross-check against a pure-JAX reference of the same (bf16-rounded) math.
    logits_r, (h_r, c_r) = encoder_forward(prep, inputs, input_lengths,
                                           use_pallas=False, **cfg)
    ok = (bool(jnp.allclose(logits, logits_r, atol=2e-2, rtol=2e-2))
          and bool(jnp.allclose(h_n, h_r, atol=2e-2, rtol=2e-2))
          and bool(jnp.allclose(c_n, c_r, atol=2e-2, rtol=2e-2)))
    if not ok:
        raise SystemExit("Pallas kernel mismatch vs pure-JAX reference")
    print("KERNEL_OK")
</pallas_src>

<mosaic_0001>
module attributes {stable_mosaic.version = 11 : i64} {
  func.func @kernel(%arg0: i32, %arg1: memref<4x16x256xbf16, #tpu.memory_space<vmem>>, %arg2: memref<4x16x256xbf16, #tpu.memory_space<vmem>>, %arg3: memref<2x256x512xbf16, #tpu.memory_space<vmem>>, %arg4: memref<256x1024xbf16, #tpu.memory_space<vmem>>, %arg5: memref<2x1x512xf32, #tpu.memory_space<vmem>>, %arg6: memref<16x1xi32, #tpu.memory_space<vmem>>, %arg7: memref<4x16x128xbf16, #tpu.memory_space<vmem>>, %arg8: memref<4x16x128xbf16, #tpu.memory_space<vmem>>, %arg9: memref<16x256xf32, #tpu.memory_space<vmem>>, %arg10: memref<16x256xf32, #tpu.memory_space<vmem>>, %arg11: memref<4x16x512xbf16, #tpu.memory_space<vmem>>, %arg12: memref<4x16x512xbf16, #tpu.memory_space<vmem>>, %arg13: memref<16x256xf32, #tpu.memory_space<vmem>>, %arg14: memref<16x256xf32, #tpu.memory_space<vmem>>) attributes {dimension_semantics = [#tpu.dimension_semantics<arbitrary>], iteration_bounds = array<i64: 2>, scalar_prefetch = 0 : i64, scratch_operands = 4 : i64, tpu.core_type = #tpu.core_type<tc>, window_params = [{transform_indices = @transform_0, window_bounds = array<i64: 4, 16, 256>}, {transform_indices = @transform_1, window_bounds = array<i64: 4, 16, 256>}, {pipeline_mode = #tpu.pipeline_mode<synchronous>, transform_indices = @transform_2, window_bounds = array<i64: 2, 256, 512>}, {pipeline_mode = #tpu.pipeline_mode<synchronous>, transform_indices = @transform_3, window_bounds = array<i64: 256, 1024>}, {pipeline_mode = #tpu.pipeline_mode<synchronous>, transform_indices = @transform_4, window_bounds = array<i64: 2, 1, 512>}, {pipeline_mode = #tpu.pipeline_mode<synchronous>, transform_indices = @transform_5, window_bounds = array<i64: 16, 1>}, {transform_indices = @transform_6, window_bounds = array<i64: 4, 16, 128>}, {transform_indices = @transform_7, window_bounds = array<i64: 4, 16, 128>}, {pipeline_mode = #tpu.pipeline_mode<synchronous>, transform_indices = @transform_8, window_bounds = array<i64: 16, 256>}, {pipeline_mode = #tpu.pipeline_mode<synchronous>, transform_indices = @transform_9, window_bounds = array<i64: 16, 256>}]} {
    %c0_i32 = arith.constant 0 : i32
    %0 = arith.cmpi eq, %arg0, %c0_i32 : i32
    %1 = arith.extui %0 : i1 to i32
    %c0_i32_0 = arith.constant 0 : i32
    %2 = arith.cmpi ne, %1, %c0_i32_0 : i32
    scf.if %2 {
      %cst_118 = arith.constant 0.000000e+00 : f32
      %471 = vector.broadcast %cst_118 : f32 to vector<16x256xf32>
      %c0_119 = arith.constant 0 : index
      %c0_120 = arith.constant 0 : index
      %472 = vector.load %arg13[%c0_119, %c0_120] : memref<16x256xf32, #tpu.memory_space<vmem>>, vector<16x256xf32>
      tpu.vector_store %arg13[%c0_119, %c0_120], %471 {strides = array<i32>} : memref<16x256xf32, #tpu.memory_space<vmem>>, vector<16x256xf32>,
      %cst_121 = arith.constant 0.000000e+00 : f32
      %473 = vector.broadcast %cst_121 : f32 to vector<16x256xf32>
      %c0_122 = arith.constant 0 : index
      %c0_123 = arith.constant 0 : index
      %474 = vector.load %arg14[%c0_122, %c0_123] : memref<16x256xf32, #tpu.memory_space<vmem>>, vector<16x256xf32>
      tpu.vector_store %arg14[%c0_122, %c0_123], %473 {strides = array<i32>} : memref<16x256xf32, #tpu.memory_space<vmem>>, vector<16x256xf32>,
    } else {
    }
    %c0 = arith.constant 0 : index
    %c0_1 = arith.constant 0 : index
    %c0_2 = arith.constant 0 : index
    %3 = vector.load %arg1[%c0, %c0_1, %c0_2] : memref<4x16x256xbf16, #tpu.memory_space<vmem>>, vector<4x16x256xbf16>
    %4 = vector.shape_cast %3 : vector<4x16x256xbf16> to vector<64x256xbf16>
    %c0_3 = arith.constant 0 : index
    %c0_4 = arith.constant 0 : index
    %c0_5 = arith.constant 0 : index
    %5 = vector.load %arg3[%c0_3, %c0_4, %c0_5] : memref<2x256x512xbf16, #tpu.memory_space<vmem>>, vector<1x256x512xbf16>
    %6 = vector.shape_cast %5 : vector<1x256x512xbf16> to vector<256x512xbf16>
    %cst = arith.constant dense<0.000000e+00> : vector<64x512xf32>
    %7 = tpu.matmul %4, %6, %cst {dimension_numbers = #tpu.dot_dimension_numbers<[1], [0], [0], [1], [0, 0, 1, 1], [], []>} : vector<64x256xbf16>, vector<256x512xbf16>, vector<64x512xf32> -> vector<64x512xf32>
    %c0_6 = arith.constant 0 : index
    %c0_7 = arith.constant 0 : index
    %c0_8 = arith.constant 0 : index
    %8 = vector.load %arg5[%c0_6, %c0_7, %c0_8] : memref<2x1x512xf32, #tpu.memory_space<vmem>>, vector<1x1x512xf32>
    %9 = vector.shape_cast %8 : vector<1x1x512xf32> to vector<1x512xf32>
    %10 = vector.broadcast %9 : vector<1x512xf32> to vector<64x512xf32>
    %11 = arith.addf %7, %10 : vector<64x512xf32>
    %12 = vector.shape_cast %11 : vector<64x512xf32> to vector<4x16x512xf32>
    %13 = arith.truncf %12 : vector<4x16x512xf32> to vector<4x16x512xbf16>
    %c0_9 = arith.constant 0 : index
    %c0_10 = arith.constant 0 : index
    %c0_11 = arith.constant 0 : index
    %14 = vector.load %arg11[%c0_9, %c0_10, %c0_11] : memref<4x16x512xbf16, #tpu.memory_space<vmem>>, vector<4x16x512xbf16>
    tpu.vector_store %arg11[%c0_9, %c0_10, %c0_11], %13 {strides = array<i32>} : memref<4x16x512xbf16, #tpu.memory_space<vmem>>, vector<4x16x512xbf16>,
    %c0_12 = arith.constant 0 : index
    %c0_13 = arith.constant 0 : index
    %c0_14 = arith.constant 0 : index
    %15 = vector.load %arg2[%c0_12, %c0_13, %c0_14] : memref<4x16x256xbf16, #tpu.memory_space<vmem>>, vector<4x16x256xbf16>
    %16 = vector.shape_cast %15 : vector<4x16x256xbf16> to vector<64x256xbf16>
    %c1 = arith.constant 1 : index
    %c0_15 = arith.constant 0 : index
    %c0_16 = arith.constant 0 : index
    %17 = vector.load %arg3[%c1, %c0_15, %c0_16] : memref<2x256x512xbf16, #tpu.memory_space<vmem>>, vector<1x256x512xbf16>
    %18 = vector.shape_cast %17 : vector<1x256x512xbf16> to vector<256x512xbf16>
    %cst_17 = arith.constant dense<0.000000e+00> : vector<64x512xf32>
    %19 = tpu.matmul %16, %18, %cst_17 {dimension_numbers = #tpu.dot_dimension_numbers<[1], [0], [0], [1], [0, 0, 1, 1], [], []>} : vector<64x256xbf16>, vector<256x512xbf16>, vector<64x512xf32> -> vector<64x512xf32>
    %c1_18 = arith.constant 1 : index
    %c0_19 = arith.constant 0 : index
    %c0_20 = arith.constant 0 : index
    %20 = vector.load %arg5[%c1_18, %c0_19, %c0_20] : memref<2x1x512xf32, #tpu.memory_space<vmem>>, vector<1x1x512xf32>
    %21 = vector.shape_cast %20 : vector<1x1x512xf32> to vector<1x512xf32>
    %22 = vector.broadcast %21 : vector<1x512xf32> to vector<64x512xf32>
    %23 = arith.addf %19, %22 : vector<64x512xf32>
    %24 = vector.shape_cast %23 : vector<64x512xf32> to vector<4x16x512xf32>
    %25 = arith.truncf %24 : vector<4x16x512xf32> to vector<4x16x512xbf16>
    %c0_21 = arith.constant 0 : index
    %c0_22 = arith.constant 0 : index
    %c0_23 = arith.constant 0 : index
    %26 = vector.load %arg12[%c0_21, %c0_22, %c0_23] : memref<4x16x512xbf16, #tpu.memory_space<vmem>>, vector<4x16x512xbf16>
    tpu.vector_store %arg12[%c0_21, %c0_22, %c0_23], %25 {strides = array<i32>} : memref<4x16x512xbf16, #tpu.memory_space<vmem>>, vector<4x16x512xbf16>,
    %c0_24 = arith.constant 0 : index
    %c0_25 = arith.constant 0 : index
    %27 = vector.load %arg4[%c0_24, %c0_25] : memref<256x1024xbf16, #tpu.memory_space<vmem>>, vector<256x1024xbf16>
    %c0_26 = arith.constant 0 : index
    %c0_27 = arith.constant 0 : index
    %28 = vector.load %arg6[%c0_26, %c0_27] : memref<16x1xi32, #tpu.memory_space<vmem>>, vector<16x1xi32>
    %c4_i32 = arith.constant 4 : i32
    %29 = arith.muli %arg0, %c4_i32 : i32
    %c1_i32 = arith.constant 1 : i32
    %30 = arith.subi %c1_i32, %arg0 : i32
    %c4_i32_28 = arith.constant 4 : i32
    %31 = arith.muli %30, %c4_i32_28 : i32
    %c0_29 = arith.constant 0 : index
    %c0_30 = arith.constant 0 : index
    %32 = vector.load %arg13[%c0_29, %c0_30] : memref<16x256xf32, #tpu.memory_space<vmem>>, vector<16x256xf32>
    %c0_31 = arith.constant 0 : index
    %c0_32 = arith.constant 0 : index
    %33 = vector.load %arg14[%c0_31, %c0_32] : memref<16x256xf32, #tpu.memory_space<vmem>>, vector<16x256xf32>
    %c0_i32_33 = arith.constant 0 : i32
    %34 = arith.truncf %32 : vector<16x256xf32> to vector<16x256xbf16>
    %cst_34 = arith.constant dense<0.000000e+00> : vector<16x1024xf32>
    %35 = tpu.matmul %34, %27, %cst_34 {dimension_numbers = #tpu.dot_dimension_numbers<[1], [0], [0], [1], [0, 0, 1, 1], [], []>} : vector<16x256xbf16>, vector<256x1024xbf16>, vector<16x1024xf32> -> vector<16x1024xf32>
    %36 = arith.addi %29, %c0_i32_33 : i32
    %37 = arith.index_cast %c0_i32_33 : i32 to index
    %c0_35 = arith.constant 0 : index
    %c0_36 = arith.constant 0 : index
    %38 = vector.load %arg11[%37, %c0_35, %c0_36] : memref<4x16x512xbf16, #tpu.memory_space<vmem>>, vector<1x16x512xbf16>
    %39 = vector.shape_cast %38 : vector<1x16x512xbf16> to vector<16x512xbf16>
    %40 = arith.extf %39 : vector<16x512xbf16> to vector<16x512xf32>
    %41 = vector.extract_strided_slice %35 {offsets = [0, 0], sizes = [16, 512], strides = [1, 1]} : vector<16x1024xf32> to vector<16x512xf32>
    %42 = arith.addf %40, %41 : vector<16x512xf32>
    %43 = vector.extract_strided_slice %42 {offsets = [0, 0], sizes = [16, 128], strides = [1, 1]} : vector<16x512xf32> to vector<16x128xf32>
    %44 = arith.negf %43 : vector<16x128xf32>
    %45 = math.exp %44 : vector<16x128xf32>
    %cst_37 = arith.constant 1.000000e+00 : f32
    %46 = vector.broadcast %cst_37 : f32 to vector<16x128xf32>
    %47 = arith.addf %46, %45 : vector<16x128xf32>
    %48 = arith.divf %46, %47 : vector<16x128xf32>
    %49 = vector.extract_strided_slice %42 {offsets = [0, 128], sizes = [16, 128], strides = [1, 1]} : vector<16x512xf32> to vector<16x128xf32>
    %50 = arith.negf %49 : vector<16x128xf32>
    %51 = math.exp %50 : vector<16x128xf32>
    %cst_38 = arith.constant 1.000000e+00 : f32
    %52 = vector.broadcast %cst_38 : f32 to vector<16x128xf32>
    %53 = arith.addf %52, %51 : vector<16x128xf32>
    %54 = arith.divf %52, %53 : vector<16x128xf32>
    %55 = vector.extract_strided_slice %42 {offsets = [0, 256], sizes = [16, 128], strides = [1, 1]} : vector<16x512xf32> to vector<16x128xf32>
    %56 = math.tanh %55 : vector<16x128xf32>
    %57 = vector.extract_strided_slice %42 {offsets = [0, 384], sizes = [16, 128], strides = [1, 1]} : vector<16x512xf32> to vector<16x128xf32>
    %58 = arith.negf %57 : vector<16x128xf32>
    %59 = math.exp %58 : vector<16x128xf32>
    %cst_39 = arith.constant 1.000000e+00 : f32
    %60 = vector.broadcast %cst_39 : f32 to vector<16x128xf32>
    %61 = arith.addf %60, %59 : vector<16x128xf32>
    %62 = arith.divf %60, %61 : vector<16x128xf32>
    %63 = vector.extract_strided_slice %33 {offsets = [0, 0], sizes = [16, 128], strides = [1, 1]} : vector<16x256xf32> to vector<16x128xf32>
    %64 = arith.mulf %54, %63 : vector<16x128xf32>
    %65 = arith.mulf %48, %56 : vector<16x128xf32>
    %66 = arith.addf %64, %65 : vector<16x128xf32>
    %67 = math.tanh %66 : vector<16x128xf32>
    %68 = arith.mulf %62, %67 : vector<16x128xf32>
    %69 = vector.broadcast %36 : i32 to vector<16x1xi32>
    %70 = arith.cmpi slt, %69, %28 : vector<16x1xi32>
    %cst_40 = arith.constant 0.000000e+00 : f32
    %71 = vector.shape_cast %70 : vector<16x1xi1> to vector<16x1xi1>
    %72 = vector.broadcast %71 : vector<16x1xi1> to vector<16x128xi1>
    %73 = vector.broadcast %cst_40 : f32 to vector<16x128xf32>
    %74 = arith.select %72, %68, %73 : vector<16x128xi1>, vector<16x128xf32>
    %75 = arith.truncf %74 : vector<16x128xf32> to vector<16x128xbf16>
    %76 = arith.index_cast %c0_i32_33 : i32 to index
    %c0_41 = arith.constant 0 : index
    %c0_42 = arith.constant 0 : index
    %77 = vector.load %arg7[%76, %c0_41, %c0_42] : memref<4x16x128xbf16, #tpu.memory_space<vmem>>, vector<1x16x128xbf16>
    %78 = vector.shape_cast %77 : vector<1x16x128xbf16> to vector<16x128xbf16>
    %79 = vector.shape_cast %75 : vector<16x128xbf16> to vector<1x16x128xbf16>
    tpu.vector_store %arg7[%76, %c0_41, %c0_42], %79 {strides = array<i32>} : memref<4x16x128xbf16, #tpu.memory_space<vmem>>, vector<1x16x128xbf16>,
    %80 = vector.extract_strided_slice %32 {offsets = [0, 0], sizes = [16, 128], strides = [1, 1]} : vector<16x256xf32> to vector<16x128xf32>
    %81 = vector.shape_cast %70 : vector<16x1xi1> to vector<16x1xi1>
    %82 = vector.broadcast %81 : vector<16x1xi1> to vector<16x128xi1>
    %83 = arith.select %82, %68, %80 : vector<16x128xi1>, vector<16x128xf32>
    %84 = vector.shape_cast %70 : vector<16x1xi1> to vector<16x1xi1>
    %85 = vector.broadcast %84 : vector<16x1xi1> to vector<16x128xi1>
    %86 = arith.select %85, %66, %63 : vector<16x128xi1>, vector<16x128xf32>
    %c3_i32 = arith.constant 3 : i32
    %87 = arith.subi %c3_i32, %c0_i32_33 : i32
    %c3_i32_43 = arith.constant 3 : i32
    %88 = arith.subi %c3_i32_43, %c0_i32_33 : i32
    %89 = arith.addi %31, %88 : i32
    %90 = arith.index_cast %87 : i32 to index
    %c0_44 = arith.constant 0 : index
    %c0_45 = arith.constant 0 : index
    %91 = vector.load %arg12[%90, %c0_44, %c0_45] : memref<4x16x512xbf16, #tpu.memory_space<vmem>>, vector<1x16x512xbf16>
    %92 = vector.shape_cast %91 : vector<1x16x512xbf16> to vector<16x512xbf16>
    %93 = arith.extf %92 : vector<16x512xbf16> to vector<16x512xf32>
    %94 = vector.extract_strided_slice %35 {offsets = [0, 512], sizes = [16, 512], strides = [1, 1]} : vector<16x1024xf32> to vector<16x512xf32>
    %95 = arith.addf %93, %94 : vector<16x512xf32>
    %96 = vector.extract_strided_slice %95 {offsets = [0, 0], sizes = [16, 128], strides = [1, 1]} : vector<16x512xf32> to vector<16x128xf32>
    %97 = arith.negf %96 : vector<16x128xf32>
    %98 = math.exp %97 : vector<16x128xf32>
    %cst_46 = arith.constant 1.000000e+00 : f32
    %99 = vector.broadcast %cst_46 : f32 to vector<16x128xf32>
    %100 = arith.addf %99, %98 : vector<16x128xf32>
    %101 = arith.divf %99, %100 : vector<16x128xf32>
    %102 = vector.extract_strided_slice %95 {offsets = [0, 128], sizes = [16, 128], strides = [1, 1]} : vector<16x512xf32> to vector<16x128xf32>
    %103 = arith.negf %102 : vector<16x128xf32>
    %104 = math.exp %103 : vector<16x128xf32>
    %cst_47 = arith.constant 1.000000e+00 : f32
    %105 = vector.broadcast %cst_47 : f32 to vector<16x128xf32>
    %106 = arith.addf %105, %104 : vector<16x128xf32>
    %107 = arith.divf %105, %106 : vector<16x128xf32>
    %108 = vector.extract_strided_slice %95 {offsets = [0, 256], sizes = [16, 128], strides = [1, 1]} : vector<16x512xf32> to vector<16x128xf32>
    %109 = math.tanh %108 : vector<16x128xf32>
    %110 = vector.extract_strided_slice %95 {offsets = [0, 384], sizes = [16, 128], strides = [1, 1]} : vector<16x512xf32> to vector<16x128xf32>
    %111 = arith.negf %110 : vector<16x128xf32>
    %112 = math.exp %111 : vector<16x128xf32>
    %cst_48 = arith.constant 1.000000e+00 : f32
    %113 = vector.broadcast %cst_48 : f32 to vector<16x128xf32>
    %114 = arith.addf %113, %112 : vector<16x128xf32>
    %115 = arith.divf %113, %114 : vector<16x128xf32>
    %116 = vector.extract_strided_slice %33 {offsets = [0, 128], sizes = [16, 128], strides = [1, 1]} : vector<16x256xf32> to vector<16x128xf32>
    %117 = arith.mulf %107, %116 : vector<16x128xf32>
    %118 = arith.mulf %101, %109 : vector<16x128xf32>
    %119 = arith.addf %117, %118 : vector<16x128xf32>
    %120 = math.tanh %119 : vector<16x128xf32>
    %121 = arith.mulf %115, %120 : vector<16x128xf32>
    %122 = vector.broadcast %89 : i32 to vector<16x1xi32>
    %123 = arith.cmpi slt, %122, %28 : vector<16x1xi32>
    %cst_49 = arith.constant 0.000000e+00 : f32
    %124 = vector.shape_cast %123 : vector<16x1xi1> to vector<16x1xi1>
    %125 = vector.broadcast %124 : vector<16x1xi1> to vector<16x128xi1>
    %126 = vector.broadcast %cst_49 : f32 to vector<16x128xf32>
    %127 = arith.select %125, %121, %126 : vector<16x128xi1>, vector<16x128xf32>
    %128 = arith.truncf %127 : vector<16x128xf32> to vector<16x128xbf16>
    %129 = arith.index_cast %87 : i32 to index
    %c0_50 = arith.constant 0 : index
    %c0_51 = arith.constant 0 : index
    %130 = vector.load %arg8[%129, %c0_50, %c0_51] : memref<4x16x128xbf16, #tpu.memory_space<vmem>>, vector<1x16x128xbf16>
    %131 = vector.shape_cast %130 : vector<1x16x128xbf16> to vector<16x128xbf16>
    %132 = vector.shape_cast %128 : vector<16x128xbf16> to vector<1x16x128xbf16>
    tpu.vector_store %arg8[%129, %c0_50, %c0_51], %132 {strides = array<i32>} : memref<4x16x128xbf16, #tpu.memory_space<vmem>>, vector<1x16x128xbf16>,
    %133 = vector.extract_strided_slice %32 {offsets = [0, 128], sizes = [16, 128], strides = [1, 1]} : vector<16x256xf32> to vector<16x128xf32>
    %134 = vector.shape_cast %123 : vector<16x1xi1> to vector<16x1xi1>
    %135 = vector.broadcast %134 : vector<16x1xi1> to vector<16x128xi1>
    %136 = arith.select %135, %121, %133 : vector<16x128xi1>, vector<16x128xf32>
    %137 = vector.shape_cast %123 : vector<16x1xi1> to vector<16x1xi1>
    %138 = vector.broadcast %137 : vector<16x1xi1> to vector<16x128xi1>
    %139 = arith.select %138, %119, %116 : vector<16x128xi1>, vector<16x128xf32>
    %140 = tpu.concatenate %83, %136 in 1 : vector<16x128xf32>, vector<16x128xf32> -> vector<16x256xf32>
    %141 = tpu.concatenate %86, %139 in 1 : vector<16x128xf32>, vector<16x128xf32> -> vector<16x256xf32>
    %c1_i32_52 = arith.constant 1 : i32
    %142 = arith.truncf %140 : vector<16x256xf32> to vector<16x256xbf16>
    %cst_53 = arith.constant dense<0.000000e+00> : vector<16x1024xf32>
    %143 = tpu.matmul %142, %27, %cst_53 {dimension_numbers = #tpu.dot_dimension_numbers<[1], [0], [0], [1], [0, 0, 1, 1], [], []>} : vector<16x256xbf16>, vector<256x1024xbf16>, vector<16x1024xf32> -> vector<16x1024xf32>
    %144 = arith.addi %29, %c1_i32_52 : i32
    %145 = arith.index_cast %c1_i32_52 : i32 to index
    %c0_54 = arith.constant 0 : index
    %c0_55 = arith.constant 0 : index
    %146 = vector.load %arg11[%145, %c0_54, %c0_55] : memref<4x16x512xbf16, #tpu.memory_space<vmem>>, vector<1x16x512xbf16>
    %147 = vector.shape_cast %146 : vector<1x16x512xbf16> to vector<16x512xbf16>
    %148 = arith.extf %147 : vector<16x512xbf16> to vector<16x512xf32>
    %149 = vector.extract_strided_slice %143 {offsets = [0, 0], sizes = [16, 512], strides = [1, 1]} : vector<16x1024xf32> to vector<16x512xf32>
    %150 = arith.addf %148, %149 : vector<16x512xf32>
    %151 = vector.extract_strided_slice %150 {offsets = [0, 0], sizes = [16, 128], strides = [1, 1]} : vector<16x512xf32> to vector<16x128xf32>
    %152 = arith.negf %151 : vector<16x128xf32>
    %153 = math.exp %152 : vector<16x128xf32>
    %cst_56 = arith.constant 1.000000e+00 : f32
    %154 = vector.broadcast %cst_56 : f32 to vector<16x128xf32>
    %155 = arith.addf %154, %153 : vector<16x128xf32>
    %156 = arith.divf %154, %155 : vector<16x128xf32>
    %157 = vector.extract_strided_slice %150 {offsets = [0, 128], sizes = [16, 128], strides = [1, 1]} : vector<16x512xf32> to vector<16x128xf32>
    %158 = arith.negf %157 : vector<16x128xf32>
    %159 = math.exp %158 : vector<16x128xf32>
    %cst_57 = arith.constant 1.000000e+00 : f32
    %160 = vector.broadcast %cst_57 : f32 to vector<16x128xf32>
    %161 = arith.addf %160, %159 : vector<16x128xf32>
    %162 = arith.divf %160, %161 : vector<16x128xf32>
    %163 = vector.extract_strided_slice %150 {offsets = [0, 256], sizes = [16, 128], strides = [1, 1]} : vector<16x512xf32> to vector<16x128xf32>
    %164 = math.tanh %163 : vector<16x128xf32>
    %165 = vector.extract_strided_slice %150 {offsets = [0, 384], sizes = [16, 128], strides = [1, 1]} : vector<16x512xf32> to vector<16x128xf32>
    %166 = arith.negf %165 : vector<16x128xf32>
    %167 = math.exp %166 : vector<16x128xf32>
    %cst_58 = arith.constant 1.000000e+00 : f32
    %168 = vector.broadcast %cst_58 : f32 to vector<16x128xf32>
    %169 = arith.addf %168, %167 : vector<16x128xf32>
    %170 = arith.divf %168, %169 : vector<16x128xf32>
    %171 = vector.extract_strided_slice %141 {offsets = [0, 0], sizes = [16, 128], strides = [1, 1]} : vector<16x256xf32> to vector<16x128xf32>
    %172 = arith.mulf %162, %171 : vector<16x128xf32>
    %173 = arith.mulf %156, %164 : vector<16x128xf32>
    %174 = arith.addf %172, %173 : vector<16x128xf32>
    %175 = math.tanh %174 : vector<16x128xf32>
    %176 = arith.mulf %170, %175 : vector<16x128xf32>
    %177 = vector.broadcast %144 : i32 to vector<16x1xi32>
    %178 = arith.cmpi slt, %177, %28 : vector<16x1xi32>
    %cst_59 = arith.constant 0.000000e+00 : f32
    %179 = vector.shape_cast %178 : vector<16x1xi1> to vector<16x1xi1>
    %180 = vector.broadcast %179 : vector<16x1xi1> to vector<16x128xi1>
    %181 = vector.broadcast %cst_59 : f32 to vector<16x128xf32>
    %182 = arith.select %180, %176, %181 : vector<16x128xi1>, vector<16x128xf32>
    %183 = arith.truncf %182 : vector<16x128xf32> to vector<16x128xbf16>
    %184 = arith.index_cast %c1_i32_52 : i32 to index
    %c0_60 = arith.constant 0 : index
    %c0_61 = arith.constant 0 : index
    %185 = vector.load %arg7[%184, %c0_60, %c0_61] : memref<4x16x128xbf16, #tpu.memory_space<vmem>>, vector<1x16x128xbf16>
    %186 = vector.shape_cast %185 : vector<1x16x128xbf16> to vector<16x128xbf16>
    %187 = vector.shape_cast %183 : vector<16x128xbf16> to vector<1x16x128xbf16>
    tpu.vector_store %arg7[%184, %c0_60, %c0_61], %187 {strides = array<i32>} : memref<4x16x128xbf16, #tpu.memory_space<vmem>>, vector<1x16x128xbf16>,
    %188 = vector.extract_strided_slice %140 {offsets = [0, 0], sizes = [16, 128], strides = [1, 1]} : vector<16x256xf32> to vector<16x128xf32>
    %189 = vector.shape_cast %178 : vector<16x1xi1> to vector<16x1xi1>
    %190 = vector.broadcast %189 : vector<16x1xi1> to vector<16x128xi1>
    %191 = arith.select %190, %176, %188 : vector<16x128xi1>, vector<16x128xf32>
    %192 = vector.shape_cast %178 : vector<16x1xi1> to vector<16x1xi1>
    %193 = vector.broadcast %192 : vector<16x1xi1> to vector<16x128xi1>
    %194 = arith.select %193, %174, %171 : vector<16x128xi1>, vector<16x128xf32>
    %c3_i32_62 = arith.constant 3 : i32
    %195 = arith.subi %c3_i32_62, %c1_i32_52 : i32
    %c3_i32_63 = arith.constant 3 : i32
    %196 = arith.subi %c3_i32_63, %c1_i32_52 : i32
    %197 = arith.addi %31, %196 : i32
    %198 = arith.index_cast %195 : i32 to index
    %c0_64 = arith.constant 0 : index
    %c0_65 = arith.constant 0 : index
    %199 = vector.load %arg12[%198, %c0_64, %c0_65] : memref<4x16x512xbf16, #tpu.memory_space<vmem>>, vector<1x16x512xbf16>
    %200 = vector.shape_cast %199 : vector<1x16x512xbf16> to vector<16x512xbf16>
    %201 = arith.extf %200 : vector<16x512xbf16> to vector<16x512xf32>
    %202 = vector.extract_strided_slice %143 {offsets = [0, 512], sizes = [16, 512], strides = [1, 1]} : vector<16x1024xf32> to vector<16x512xf32>
    %203 = arith.addf %201, %202 : vector<16x512xf32>
    %204 = vector.extract_strided_slice %203 {offsets = [0, 0], sizes = [16, 128], strides = [1, 1]} : vector<16x512xf32> to vector<16x128xf32>
    %205 = arith.negf %204 : vector<16x128xf32>
    %206 = math.exp %205 : vector<16x128xf32>
    %cst_66 = arith.constant 1.000000e+00 : f32
    %207 = vector.broadcast %cst_66 : f32 to vector<16x128xf32>
    %208 = arith.addf %207, %206 : vector<16x128xf32>
    %209 = arith.divf %207, %208 : vector<16x128xf32>
    %210 = vector.extract_strided_slice %203 {offsets = [0, 128], sizes = [16, 128], strides = [1, 1]} : vector<16x512xf32> to vector<16x128xf32>
    %211 = arith.negf %210 : vector<16x128xf32>
    %212 = math.exp %211 : vector<16x128xf32>
    %cst_67 = arith.constant 1.000000e+00 : f32
    %213 = vector.broadcast %cst_67 : f32 to vector<16x128xf32>
    %214 = arith.addf %213, %212 : vector<16x128xf32>
    %215 = arith.divf %213, %214 : vector<16x128xf32>
    %216 = vector.extract_strided_slice %203 {offsets = [0, 256], sizes = [16, 128], strides = [1, 1]} : vector<16x512xf32> to vector<16x128xf32>
    %217 = math.tanh %216 : vector<16x128xf32>
    %218 = vector.extract_strided_slice %203 {offsets = [0, 384], sizes = [16, 128], strides = [1, 1]} : vector<16x512xf32> to vector<16x128xf32>
    %219 = arith.negf %218 : vector<16x128xf32>
    %220 = math.exp %219 : vector<16x128xf32>
    %cst_68 = arith.constant 1.000000e+00 : f32
    %221 = vector.broadcast %cst_68 : f32 to vector<16x128xf32>
    %222 = arith.addf %221, %220 : vector<16x128xf32>
    %223 = arith.divf %221, %222 : vector<16x128xf32>
    %224 = vector.extract_strided_slice %141 {offsets = [0, 128], sizes = [16, 128], strides = [1, 1]} : vector<16x256xf32> to vector<16x128xf32>
    %225 = arith.mulf %215, %224 : vector<16x128xf32>
    %226 = arith.mulf %209, %217 : vector<16x128xf32>
    %227 = arith.addf %225, %226 : vector<16x128xf32>
    %228 = math.tanh %227 : vector<16x128xf32>
    %229 = arith.mulf %223, %228 : vector<16x128xf32>
    %230 = vector.broadcast %197 : i32 to vector<16x1xi32>
    %231 = arith.cmpi slt, %230, %28 : vector<16x1xi32>
    %cst_69 = arith.constant 0.000000e+00 : f32
    %232 = vector.shape_cast %231 : vector<16x1xi1> to vector<16x1xi1>
    %233 = vector.broadcast %232 : vector<16x1xi1> to vector<16x128xi1>
    %234 = vector.broadcast %cst_69 : f32 to vector<16x128xf32>
    %235 = arith.select %233, %229, %234 : vector<16x128xi1>, vector<16x128xf32>
    %236 = arith.truncf %235 : vector<16x128xf32> to vector<16x128xbf16>
    %237 = arith.index_cast %195 : i32 to index
    %c0_70 = arith.constant 0 : index
    %c0_71 = arith.constant 0 : index
    %238 = vector.load %arg8[%237, %c0_70, %c0_71] : memref<4x16x128xbf16, #tpu.memory_space<vmem>>, vector<1x16x128xbf16>
    %239 = vector.shape_cast %238 : vector<1x16x128xbf16> to vector<16x128xbf16>
    %240 = vector.shape_cast %236 : vector<16x128xbf16> to vector<1x16x128xbf16>
    tpu.vector_store %arg8[%237, %c0_70, %c0_71], %240 {strides = array<i32>} : memref<4x16x128xbf16, #tpu.memory_space<vmem>>, vector<1x16x128xbf16>,
    %241 = vector.extract_strided_slice %140 {offsets = [0, 128], sizes = [16, 128], strides = [1, 1]} : vector<16x256xf32> to vector<16x128xf32>
    %242 = vector.shape_cast %231 : vector<16x1xi1> to vector<16x1xi1>
    %243 = vector.broadcast %242 : vector<16x1xi1> to vector<16x128xi1>
    %244 = arith.select %243, %229, %241 : vector<16x128xi1>, vector<16x128xf32>
    %245 = vector.shape_cast %231 : vector<16x1xi1> to vector<16x1xi1>
    %246 = vector.broadcast %245 : vector<16x1xi1> to vector<16x128xi1>
    %247 = arith.select %246, %227, %224 : vector<16x128xi1>, vector<16x128xf32>
    %248 = tpu.concatenate %191, %244 in 1 : vector<16x128xf32>, vector<16x128xf32> -> vector<16x256xf32>
    %249 = tpu.concatenate %194, %247 in 1 : vector<16x128xf32>, vector<16x128xf32> -> vector<16x256xf32>
    %c2_i32 = arith.constant 2 : i32
    %250 = arith.truncf %248 : vector<16x256xf32> to vector<16x256xbf16>
    %cst_72 = arith.constant dense<0.000000e+00> : vector<16x1024xf32>
    %251 = tpu.matmul %250, %27, %cst_72 {dimension_numbers = #tpu.dot_dimension_numbers<[1], [0], [0], [1], [0, 0, 1, 1], [], []>} : vector<16x256xbf16>, vector<256x1024xbf16>, vector<16x1024xf32> -> vector<16x1024xf32>
    %252 = arith.addi %29, %c2_i32 : i32
    %253 = arith.index_cast %c2_i32 : i32 to index
    %c0_73 = arith.constant 0 : index
    %c0_74 = arith.constant 0 : index
    %254 = vector.load %arg11[%253, %c0_73, %c0_74] : memref<4x16x512xbf16, #tpu.memory_space<vmem>>, vector<1x16x512xbf16>
    %255 = vector.shape_cast %254 : vector<1x16x512xbf16> to vector<16x512xbf16>
    %256 = arith.extf %255 : vector<16x512xbf16> to vector<16x512xf32>
    %257 = vector.extract_strided_slice %251 {offsets = [0, 0], sizes = [16, 512], strides = [1, 1]} : vector<16x1024xf32> to vector<16x512xf32>
    %258 = arith.addf %256, %257 : vector<16x512xf32>
    %259 = vector.extract_strided_slice %258 {offsets = [0, 0], sizes = [16, 128], strides = [1, 1]} : vector<16x512xf32> to vector<16x128xf32>
    %260 = arith.negf %259 : vector<16x128xf32>
    %261 = math.exp %260 : vector<16x128xf32>
    %cst_75 = arith.constant 1.000000e+00 : f32
    %262 = vector.broadcast %cst_75 : f32 to vector<16x128xf32>
    %263 = arith.addf %262, %261 : vector<16x128xf32>
    %264 = arith.divf %262, %263 : vector<16x128xf32>
    %265 = vector.extract_strided_slice %258 {offsets = [0, 128], sizes = [16, 128], strides = [1, 1]} : vector<16x512xf32> to vector<16x128xf32>
    %266 = arith.negf %265 : vector<16x128xf32>
    %267 = math.exp %266 : vector<16x128xf32>
    %cst_76 = arith.constant 1.000000e+00 : f32
    %268 = vector.broadcast %cst_76 : f32 to vector<16x128xf32>
    %269 = arith.addf %268, %267 : vector<16x128xf32>
    %270 = arith.divf %268, %269 : vector<16x128xf32>
    %271 = vector.extract_strided_slice %258 {offsets = [0, 256], sizes = [16, 128], strides = [1, 1]} : vector<16x512xf32> to vector<16x128xf32>
    %272 = math.tanh %271 : vector<16x128xf32>
    %273 = vector.extract_strided_slice %258 {offsets = [0, 384], sizes = [16, 128], strides = [1, 1]} : vector<16x512xf32> to vector<16x128xf32>
    %274 = arith.negf %273 : vector<16x128xf32>
    %275 = math.exp %274 : vector<16x128xf32>
    %cst_77 = arith.constant 1.000000e+00 : f32
    %276 = vector.broadcast %cst_77 : f32 to vector<16x128xf32>
    %277 = arith.addf %276, %275 : vector<16x128xf32>
    %278 = arith.divf %276, %277 : vector<16x128xf32>
    %279 = vector.extract_strided_slice %249 {offsets = [0, 0], sizes = [16, 128], strides = [1, 1]} : vector<16x256xf32> to vector<16x128xf32>
    %280 = arith.mulf %270, %279 : vector<16x128xf32>
    %281 = arith.mulf %264, %272 : vector<16x128xf32>
    %282 = arith.addf %280, %281 : vector<16x128xf32>
    %283 = math.tanh %282 : vector<16x128xf32>
    %284 = arith.mulf %278, %283 : vector<16x128xf32>
    %285 = vector.broadcast %252 : i32 to vector<16x1xi32>
    %286 = arith.cmpi slt, %285, %28 : vector<16x1xi32>
    %cst_78 = arith.constant 0.000000e+00 : f32
    %287 = vector.shape_cast %286 : vector<16x1xi1> to vector<16x1xi1>
    %288 = vector.broadcast %287 : vector<16x1xi1> to vector<16x128xi1>
    %289 = vector.broadcast %cst_78 : f32 to vector<16x128xf32>
    %290 = arith.select %288, %284, %289 : vector<16x128xi1>, vector<16x128xf32>
    %291 = arith.truncf %290 : vector<16x128xf32> to vector<16x128xbf16>
    %292 = arith.index_cast %c2_i32 : i32 to index
    %c0_79 = arith.constant 0 : index
    %c0_80 = arith.constant 0 : index
    %293 = vector.load %arg7[%292, %c0_79, %c0_80] : memref<4x16x128xbf16, #tpu.memory_space<vmem>>, vector<1x16x128xbf16>
    %294 = vector.shape_cast %293 : vector<1x16x128xbf16> to vector<16x128xbf16>
    %295 = vector.shape_cast %291 : vector<16x128xbf16> to vector<1x16x128xbf16>
    tpu.vector_store %arg7[%292, %c0_79, %c0_80], %295 {strides = array<i32>} : memref<4x16x128xbf16, #tpu.memory_space<vmem>>, vector<1x16x128xbf16>,
    %296 = vector.extract_strided_slice %248 {offsets = [0, 0], sizes = [16, 128], strides = [1, 1]} : vector<16x256xf32> to vector<16x128xf32>
    %297 = vector.shape_cast %286 : vector<16x1xi1> to vector<16x1xi1>
    %298 = vector.broadcast %297 : vector<16x1xi1> to vector<16x128xi1>
    %299 = arith.select %298, %284, %296 : vector<16x128xi1>, vector<16x128xf32>
    %300 = vector.shape_cast %286 : vector<16x1xi1> to vector<16x1xi1>
    %301 = vector.broadcast %300 : vector<16x1xi1> to vector<16x128xi1>
    %302 = arith.select %301, %282, %279 : vector<16x128xi1>, vector<16x128xf32>
    %c3_i32_81 = arith.constant 3 : i32
    %303 = arith.subi %c3_i32_81, %c2_i32 : i32
    %c3_i32_82 = arith.constant 3 : i32
    %304 = arith.subi %c3_i32_82, %c2_i32 : i32
    %305 = arith.addi %31, %304 : i32
    %306 = arith.index_cast %303 : i32 to index
    %c0_83 = arith.constant 0 : index
    %c0_84 = arith.constant 0 : index
    %307 = vector.load %arg12[%306, %c0_83, %c0_84] : memref<4x16x512xbf16, #tpu.memory_space<vmem>>, vector<1x16x512xbf16>
    %308 = vector.shape_cast %307 : vector<1x16x512xbf16> to vector<16x512xbf16>
    %309 = arith.extf %308 : vector<16x512xbf16> to vector<16x512xf32>
    %310 = vector.extract_strided_slice %251 {offsets = [0, 512], sizes = [16, 512], strides = [1, 1]} : vector<16x1024xf32> to vector<16x512xf32>
    %311 = arith.addf %309, %310 : vector<16x512xf32>
    %312 = vector.extract_strided_slice %311 {offsets = [0, 0], sizes = [16, 128], strides = [1, 1]} : vector<16x512xf32> to vector<16x128xf32>
    %313 = arith.negf %312 : vector<16x128xf32>
    %314 = math.exp %313 : vector<16x128xf32>
    %cst_85 = arith.constant 1.000000e+00 : f32
    %315 = vector.broadcast %cst_85 : f32 to vector<16x128xf32>
    %316 = arith.addf %315, %314 : vector<16x128xf32>
    %317 = arith.divf %315, %316 : vector<16x128xf32>
    %318 = vector.extract_strided_slice %311 {offsets = [0, 128], sizes = [16, 128], strides = [1, 1]} : vector<16x512xf32> to vector<16x128xf32>
    %319 = arith.negf %318 : vector<16x128xf32>
    %320 = math.exp %319 : vector<16x128xf32>
    %cst_86 = arith.constant 1.000000e+00 : f32
    %321 = vector.broadcast %cst_86 : f32 to vector<16x128xf32>
    %322 = arith.addf %321, %320 : vector<16x128xf32>
    %323 = arith.divf %321, %322 : vector<16x128xf32>
    %324 = vector.extract_strided_slice %311 {offsets = [0, 256], sizes = [16, 128], strides = [1, 1]} : vector<16x512xf32> to vector<16x128xf32>
    %325 = math.tanh %324 : vector<16x128xf32>
    %326 = vector.extract_strided_slice %311 {offsets = [0, 384], sizes = [16, 128], strides = [1, 1]} : vector<16x512xf32> to vector<16x128xf32>
    %327 = arith.negf %326 : vector<16x128xf32>
    %328 = math.exp %327 : vector<16x128xf32>
    %cst_87 = arith.constant 1.000000e+00 : f32
    %329 = vector.broadcast %cst_87 : f32 to vector<16x128xf32>
    %330 = arith.addf %329, %328 : vector<16x128xf32>
    %331 = arith.divf %329, %330 : vector<16x128xf32>
    %332 = vector.extract_strided_slice %249 {offsets = [0, 128], sizes = [16, 128], strides = [1, 1]} : vector<16x256xf32> to vector<16x128xf32>
    %333 = arith.mulf %323, %332 : vector<16x128xf32>
    %334 = arith.mulf %317, %325 : vector<16x128xf32>
    %335 = arith.addf %333, %334 : vector<16x128xf32>
    %336 = math.tanh %335 : vector<16x128xf32>
    %337 = arith.mulf %331, %336 : vector<16x128xf32>
    %338 = vector.broadcast %305 : i32 to vector<16x1xi32>
    %339 = arith.cmpi slt, %338, %28 : vector<16x1xi32>
    %cst_88 = arith.constant 0.000000e+00 : f32
    %340 = vector.shape_cast %339 : vector<16x1xi1> to vector<16x1xi1>
    %341 = vector.broadcast %340 : vector<16x1xi1> to vector<16x128xi1>
    %342 = vector.broadcast %cst_88 : f32 to vector<16x128xf32>
    %343 = arith.select %341, %337, %342 : vector<16x128xi1>, vector<16x128xf32>
    %344 = arith.truncf %343 : vector<16x128xf32> to vector<16x128xbf16>
    %345 = arith.index_cast %303 : i32 to index
    %c0_89 = arith.constant 0 : index
    %c0_90 = arith.constant 0 : index
    %346 = vector.load %arg8[%345, %c0_89, %c0_90] : memref<4x16x128xbf16, #tpu.memory_space<vmem>>, vector<1x16x128xbf16>
    %347 = vector.shape_cast %346 : vector<1x16x128xbf16> to vector<16x128xbf16>
    %348 = vector.shape_cast %344 : vector<16x128xbf16> to vector<1x16x128xbf16>
    tpu.vector_store %arg8[%345, %c0_89, %c0_90], %348 {strides = array<i32>} : memref<4x16x128xbf16, #tpu.memory_space<vmem>>, vector<1x16x128xbf16>,
    %349 = vector.extract_strided_slice %248 {offsets = [0, 128], sizes = [16, 128], strides = [1, 1]} : vector<16x256xf32> to vector<16x128xf32>
    %350 = vector.shape_cast %339 : vector<16x1xi1> to vector<16x1xi1>
    %351 = vector.broadcast %350 : vector<16x1xi1> to vector<16x128xi1>
    %352 = arith.select %351, %337, %349 : vector<16x128xi1>, vector<16x128xf32>
    %353 = vector.shape_cast %339 : vector<16x1xi1> to vector<16x1xi1>
    %354 = vector.broadcast %353 : vector<16x1xi1> to vector<16x128xi1>
    %355 = arith.select %354, %335, %332 : vector<16x128xi1>, vector<16x128xf32>
    %356 = tpu.concatenate %299, %352 in 1 : vector<16x128xf32>, vector<16x128xf32> -> vector<16x256xf32>
    %357 = tpu.concatenate %302, %355 in 1 : vector<16x128xf32>, vector<16x128xf32> -> vector<16x256xf32>
    %c3_i32_91 = arith.constant 3 : i32
    %358 = arith.truncf %356 : vector<16x256xf32> to vector<16x256xbf16>
    %cst_92 = arith.constant dense<0.000000e+00> : vector<16x1024xf32>
    %359 = tpu.matmul %358, %27, %cst_92 {dimension_numbers = #tpu.dot_dimension_numbers<[1], [0], [0], [1], [0, 0, 1, 1], [], []>} : vector<16x256xbf16>, vector<256x1024xbf16>, vector<16x1024xf32> -> vector<16x1024xf32>
    %360 = arith.addi %29, %c3_i32_91 : i32
    %361 = arith.index_cast %c3_i32_91 : i32 to index
    %c0_93 = arith.constant 0 : index
    %c0_94 = arith.constant 0 : index
    %362 = vector.load %arg11[%361, %c0_93, %c0_94] : memref<4x16x512xbf16, #tpu.memory_space<vmem>>, vector<1x16x512xbf16>
    %363 = vector.shape_cast %362 : vector<1x16x512xbf16> to vector<16x512xbf16>
    %364 = arith.extf %363 : vector<16x512xbf16> to vector<16x512xf32>
    %365 = vector.extract_strided_slice %359 {offsets = [0, 0], sizes = [16, 512], strides = [1, 1]} : vector<16x1024xf32> to vector<16x512xf32>
    %366 = arith.addf %364, %365 : vector<16x512xf32>
    %367 = vector.extract_strided_slice %366 {offsets = [0, 0], sizes = [16, 128], strides = [1, 1]} : vector<16x512xf32> to vector<16x128xf32>
    %368 = arith.negf %367 : vector<16x128xf32>
    %369 = math.exp %368 : vector<16x128xf32>
    %cst_95 = arith.constant 1.000000e+00 : f32
    %370 = vector.broadcast %cst_95 : f32 to vector<16x128xf32>
    %371 = arith.addf %370, %369 : vector<16x128xf32>
    %372 = arith.divf %370, %371 : vector<16x128xf32>
    %373 = vector.extract_strided_slice %366 {offsets = [0, 128], sizes = [16, 128], strides = [1, 1]} : vector<16x512xf32> to vector<16x128xf32>
    %374 = arith.negf %373 : vector<16x128xf32>
    %375 = math.exp %374 : vector<16x128xf32>
    %cst_96 = arith.constant 1.000000e+00 : f32
    %376 = vector.broadcast %cst_96 : f32 to vector<16x128xf32>
    %377 = arith.addf %376, %375 : vector<16x128xf32>
    %378 = arith.divf %376, %377 : vector<16x128xf32>
    %379 = vector.extract_strided_slice %366 {offsets = [0, 256], sizes = [16, 128], strides = [1, 1]} : vector<16x512xf32> to vector<16x128xf32>
    %380 = math.tanh %379 : vector<16x128xf32>
    %381 = vector.extract_strided_slice %366 {offsets = [0, 384], sizes = [16, 128], strides = [1, 1]} : vector<16x512xf32> to vector<16x128xf32>
    %382 = arith.negf %381 : vector<16x128xf32>
    %383 = math.exp %382 : vector<16x128xf32>
    %cst_97 = arith.constant 1.000000e+00 : f32
    %384 = vector.broadcast %cst_97 : f32 to vector<16x128xf32>
    %385 = arith.addf %384, %383 : vector<16x128xf32>
    %386 = arith.divf %384, %385 : vector<16x128xf32>
    %387 = vector.extract_strided_slice %357 {offsets = [0, 0], sizes = [16, 128], strides = [1, 1]} : vector<16x256xf32> to vector<16x128xf32>
    %388 = arith.mulf %378, %387 : vector<16x128xf32>
    %389 = arith.mulf %372, %380 : vector<16x128xf32>
    %390 = arith.addf %388, %389 : vector<16x128xf32>
    %391 = math.tanh %390 : vector<16x128xf32>
    %392 = arith.mulf %386, %391 : vector<16x128xf32>
    %393 = vector.broadcast %360 : i32 to vector<16x1xi32>
    %394 = arith.cmpi slt, %393, %28 : vector<16x1xi32>
    %cst_98 = arith.constant 0.000000e+00 : f32
    %395 = vector.shape_cast %394 : vector<16x1xi1> to vector<16x1xi1>
    %396 = vector.broadcast %395 : vector<16x1xi1> to vector<16x128xi1>
    %397 = vector.broadcast %cst_98 : f32 to vector<16x128xf32>
    %398 = arith.select %396, %392, %397 : vector<16x128xi1>, vector<16x128xf32>
    %399 = arith.truncf %398 : vector<16x128xf32> to vector<16x128xbf16>
    %400 = arith.index_cast %c3_i32_91 : i32 to index
    %c0_99 = arith.constant 0 : index
    %c0_100 = arith.constant 0 : index
    %401 = vector.load %arg7[%400, %c0_99, %c0_100] : memref<4x16x128xbf16, #tpu.memory_space<vmem>>, vector<1x16x128xbf16>
    %402 = vector.shape_cast %401 : vector<1x16x128xbf16> to vector<16x128xbf16>
    %403 = vector.shape_cast %399 : vector<16x128xbf16> to vector<1x16x128xbf16>
    tpu.vector_store %arg7[%400, %c0_99, %c0_100], %403 {strides = array<i32>} : memref<4x16x128xbf16, #tpu.memory_space<vmem>>, vector<1x16x128xbf16>,
    %404 = vector.extract_strided_slice %356 {offsets = [0, 0], sizes = [16, 128], strides = [1, 1]} : vector<16x256xf32> to vector<16x128xf32>
    %405 = vector.shape_cast %394 : vector<16x1xi1> to vector<16x1xi1>
    %406 = vector.broadcast %405 : vector<16x1xi1> to vector<16x128xi1>
    %407 = arith.select %406, %392, %404 : vector<16x128xi1>, vector<16x128xf32>
    %408 = vector.shape_cast %394 : vector<16x1xi1> to vector<16x1xi1>
    %409 = vector.broadcast %408 : vector<16x1xi1> to vector<16x128xi1>
    %410 = arith.select %409, %390, %387 : vector<16x128xi1>, vector<16x128xf32>
    %c3_i32_101 = arith.constant 3 : i32
    %411 = arith.subi %c3_i32_101, %c3_i32_91 : i32
    %c3_i32_102 = arith.constant 3 : i32
    %412 = arith.subi %c3_i32_102, %c3_i32_91 : i32
    %413 = arith.addi %31, %412 : i32
    %414 = arith.index_cast %411 : i32 to index
    %c0_103 = arith.constant 0 : index
    %c0_104 = arith.constant 0 : index
    %415 = vector.load %arg12[%414, %c0_103, %c0_104] : memref<4x16x512xbf16, #tpu.memory_space<vmem>>, vector<1x16x512xbf16>
    %416 = vector.shape_cast %415 : vector<1x16x512xbf16> to vector<16x512xbf16>
    %417 = arith.extf %416 : vector<16x512xbf16> to vector<16x512xf32>
    %418 = vector.extract_strided_slice %359 {offsets = [0, 512], sizes = [16, 512], strides = [1, 1]} : vector<16x1024xf32> to vector<16x512xf32>
    %419 = arith.addf %417, %418 : vector<16x512xf32>
    %420 = vector.extract_strided_slice %419 {offsets = [0, 0], sizes = [16, 128], strides = [1, 1]} : vector<16x512xf32> to vector<16x128xf32>
    %421 = arith.negf %420 : vector<16x128xf32>
    %422 = math.exp %421 : vector<16x128xf32>
    %cst_105 = arith.constant 1.000000e+00 : f32
    %423 = vector.broadcast %cst_105 : f32 to vector<16x128xf32>
    %424 = arith.addf %423, %422 : vector<16x128xf32>
    %425 = arith.divf %423, %424 : vector<16x128xf32>
    %426 = vector.extract_strided_slice %419 {offsets = [0, 128], sizes = [16, 128], strides = [1, 1]} : vector<16x512xf32> to vector<16x128xf32>
    %427 = arith.negf %426 : vector<16x128xf32>
    %428 = math.exp %427 : vector<16x128xf32>
    %cst_106 = arith.constant 1.000000e+00 : f32
    %429 = vector.broadcast %cst_106 : f32 to vector<16x128xf32>
    %430 = arith.addf %429, %428 : vector<16x128xf32>
    %431 = arith.divf %429, %430 : vector<16x128xf32>
    %432 = vector.extract_strided_slice %419 {offsets = [0, 256], sizes = [16, 128], strides = [1, 1]} : vector<16x512xf32> to vector<16x128xf32>
    %433 = math.tanh %432 : vector<16x128xf32>
    %434 = vector.extract_strided_slice %419 {offsets = [0, 384], sizes = [16, 128], strides = [1, 1]} : vector<16x512xf32> to vector<16x128xf32>
    %435 = arith.negf %434 : vector<16x128xf32>
    %436 = math.exp %435 : vector<16x128xf32>
    %cst_107 = arith.constant 1.000000e+00 : f32
    %437 = vector.broadcast %cst_107 : f32 to vector<16x128xf32>
    %438 = arith.addf %437, %436 : vector<16x128xf32>
    %439 = arith.divf %437, %438 : vector<16x128xf32>
    %440 = vector.extract_strided_slice %357 {offsets = [0, 128], sizes = [16, 128], strides = [1, 1]} : vector<16x256xf32> to vector<16x128xf32>
    %441 = arith.mulf %431, %440 : vector<16x128xf32>
    %442 = arith.mulf %425, %433 : vector<16x128xf32>
    %443 = arith.addf %441, %442 : vector<16x128xf32>
    %444 = math.tanh %443 : vector<16x128xf32>
    %445 = arith.mulf %439, %444 : vector<16x128xf32>
    %446 = vector.broadcast %413 : i32 to vector<16x1xi32>
    %447 = arith.cmpi slt, %446, %28 : vector<16x1xi32>
    %cst_108 = arith.constant 0.000000e+00 : f32
    %448 = vector.shape_cast %447 : vector<16x1xi1> to vector<16x1xi1>
    %449 = vector.broadcast %448 : vector<16x1xi1> to vector<16x128xi1>
    %450 = vector.broadcast %cst_108 : f32 to vector<16x128xf32>
    %451 = arith.select %449, %445, %450 : vector<16x128xi1>, vector<16x128xf32>
    %452 = arith.truncf %451 : vector<16x128xf32> to vector<16x128xbf16>
    %453 = arith.index_cast %411 : i32 to index
    %c0_109 = arith.constant 0 : index
    %c0_110 = arith.constant 0 : index
    %454 = vector.load %arg8[%453, %c0_109, %c0_110] : memref<4x16x128xbf16, #tpu.memory_space<vmem>>, vector<1x16x128xbf16>
    %455 = vector.shape_cast %454 : vector<1x16x128xbf16> to vector<16x128xbf16>
    %456 = vector.shape_cast %452 : vector<16x128xbf16> to vector<1x16x128xbf16>
    tpu.vector_store %arg8[%453, %c0_109, %c0_110], %456 {strides = array<i32>} : memref<4x16x128xbf16, #tpu.memory_space<vmem>>, vector<1x16x128xbf16>,
    %457 = vector.extract_strided_slice %356 {offsets = [0, 128], sizes = [16, 128], strides = [1, 1]} : vector<16x256xf32> to vector<16x128xf32>
    %458 = vector.shape_cast %447 : vector<16x1xi1> to vector<16x1xi1>
    %459 = vector.broadcast %458 : vector<16x1xi1> to vector<16x128xi1>
    %460 = arith.select %459, %445, %457 : vector<16x128xi1>, vector<16x128xf32>
    %461 = vector.shape_cast %447 : vector<16x1xi1> to vector<16x1xi1>
    %462 = vector.broadcast %461 : vector<16x1xi1> to vector<16x128xi1>
    %463 = arith.select %462, %443, %440 : vector<16x128xi1>, vector<16x128xf32>
    %464 = tpu.concatenate %407, %460 in 1 : vector<16x128xf32>, vector<16x128xf32> -> vector<16x256xf32>
    %465 = tpu.concatenate %410, %463 in 1 : vector<16x128xf32>, vector<16x128xf32> -> vector<16x256xf32>
    %c4_i32_111 = arith.constant 4 : i32
    %c0_112 = arith.constant 0 : index
    %c0_113 = arith.constant 0 : index
    %466 = vector.load %arg13[%c0_112, %c0_113] : memref<16x256xf32, #tpu.memory_space<vmem>>, vector<16x256xf32>
    tpu.vector_store %arg13[%c0_112, %c0_113], %464 {strides = array<i32>} : memref<16x256xf32, #tpu.memory_space<vmem>>, vector<16x256xf32>,
    %c0_114 = arith.constant 0 : index
    %c0_115 = arith.constant 0 : index
    %467 = vector.load %arg14[%c0_114, %c0_115] : memref<16x256xf32, #tpu.memory_space<vmem>>, vector<16x256xf32>
    tpu.vector_store %arg14[%c0_114, %c0_115], %465 {strides = array<i32>} : memref<16x256xf32, #tpu.memory_space<vmem>>, vector<16x256xf32>,
    %c1_i32_116 = arith.constant 1 : i32
    %468 = arith.cmpi eq, %arg0, %c1_i32_116 : i32
    %469 = arith.extui %468 : i1 to i32
    %c0_i32_117 = arith.constant 0 : i32
    %470 = arith.cmpi ne, %469, %c0_i32_117 : i32
    scf.if %470 {
      %c0_118 = arith.constant 0 : index
      %c0_119 = arith.constant 0 : index
      %471 = vector.load %arg9[%c0_118, %c0_119] : memref<16x256xf32, #tpu.memory_space<vmem>>, vector<16x256xf32>
      tpu.vector_store %arg9[%c0_118, %c0_119], %464 {strides = array<i32>} : memref<16x256xf32, #tpu.memory_space<vmem>>, vector<16x256xf32>,
      %c0_120 = arith.constant 0 : index
      %c0_121 = arith.constant 0 : index
      %472 = vector.load %arg10[%c0_120, %c0_121] : memref<16x256xf32, #tpu.memory_space<vmem>>, vector<16x256xf32>
      tpu.vector_store %arg10[%c0_120, %c0_121], %465 {strides = array<i32>} : memref<16x256xf32, #tpu.memory_space<vmem>>, vector<16x256xf32>,
    } else {
    }
    return
  }
  func.func @transform_0(%arg0: i32) -> (i32, i32, i32) {
    %c0_i32 = arith.constant 0 : i32
    %c0_i32_0 = arith.constant 0 : i32
    %c0_i32_1 = arith.constant 0 : i32
    return %arg0, %c0_i32, %c0_i32_0 : i32, i32, i32
  }
  func.func @transform_1(%arg0: i32) -> (i32, i32, i32) {
    %c1_i32 = arith.constant 1 : i32
    %0 = arith.subi %c1_i32, %arg0 : i32
    %c0_i32 = arith.constant 0 : i32
    %c0_i32_0 = arith.constant 0 : i32
    %c0_i32_1 = arith.constant 0 : i32
    return %0, %c0_i32, %c0_i32_0 : i32, i32, i32
  }
  func.func @transform_2(%arg0: i32) -> (i32, i32, i32) {
    %c0_i32 = arith.constant 0 : i32
    %c0_i32_0 = arith.constant 0 : i32
    %c0_i32_1 = arith.constant 0 : i32
    %c0_i32_2 = arith.constant 0 : i32
    return %c0_i32, %c0_i32_0, %c0_i32_1 : i32, i32, i32
  }
  func.func @transform_3(%arg0: i32) -> (i32, i32) {
    %c0_i32 = arith.constant 0 : i32
    %c0_i32_0 = arith.constant 0 : i32
    %c0_i32_1 = arith.constant 0 : i32
    return %c0_i32, %c0_i32_0 : i32, i32
  }
  func.func @transform_4(%arg0: i32) -> (i32, i32, i32) {
    %c0_i32 = arith.constant 0 : i32
    %c0_i32_0 = arith.constant 0 : i32
    %c0_i32_1 = arith.constant 0 : i32
    %c0_i32_2 = arith.constant 0 : i32
    return %c0_i32, %c0_i32_0, %c0_i32_1 : i32, i32, i32
  }
  func.func @transform_5(%arg0: i32) -> (i32, i32) {
    %c0_i32 = arith.constant 0 : i32
    %c0_i32_0 = arith.constant 0 : i32
    %c0_i32_1 = arith.constant 0 : i32
    return %c0_i32, %c0_i32_0 : i32, i32
  }
  func.func @transform_6(%arg0: i32) -> (i32, i32, i32) {
    %c0_i32 = arith.constant 0 : i32
    %c0_i32_0 = arith.constant 0 : i32
    %c0_i32_1 = arith.constant 0 : i32
    return %arg0, %c0_i32, %c0_i32_0 : i32, i32, i32
  }
  func.func @transform_7(%arg0: i32) -> (i32, i32, i32) {
    %c1_i32 = arith.constant 1 : i32
    %0 = arith.subi %c1_i32, %arg0 : i32
    %c0_i32 = arith.constant 0 : i32
    %c0_i32_0 = arith.constant 0 : i32
    %c0_i32_1 = arith.constant 0 : i32
    return %0, %c0_i32, %c0_i32_0 : i32, i32, i32
  }
  func.func @transform_8(%arg0: i32) -> (i32, i32) {
    %c0_i32 = arith.constant 0 : i32
    %c0_i32_0 = arith.constant 0 : i32
    %c0_i32_1 = arith.constant 0 : i32
    return %c0_i32, %c0_i32_0 : i32, i32
  }
  func.func @transform_9(%arg0: i32) -> (i32, i32) {
    %c0_i32 = arith.constant 0 : i32
    %c0_i32_0 = arith.constant 0 : i32
    %c0_i32_1 = arith.constant 0 : i32
    return %c0_i32, %c0_i32_0 : i32, i32
  }
}

module attributes {stable_mosaic.version = 11 : i64} {
  func.func @kernel(%arg0: i32, %arg1: memref<4x16x128xbf16, #tpu.memory_space<vmem>>, %arg2: memref<4x16x128xbf16, #tpu.memory_space<vmem>>, %arg3: memref<2x128x512xbf16, #tpu.memory_space<vmem>>, %arg4: memref<256x1024xbf16, #tpu.memory_space<vmem>>, %arg5: memref<2x1x512xf32, #tpu.memory_space<vmem>>, %arg6: memref<16x1xi32, #tpu.memory_space<vmem>>, %arg7: memref<4x16x128xbf16, #tpu.memory_space<vmem>>, %arg8: memref<4x16x128xbf16, #tpu.memory_space<vmem>>, %arg9: memref<16x256xf32, #tpu.memory_space<vmem>>, %arg10: memref<16x256xf32, #tpu.memory_space<vmem>>, %arg11: memref<4x16x512xbf16, #tpu.memory_space<vmem>>, %arg12: memref<4x16x512xbf16, #tpu.memory_space<vmem>>, %arg13: memref<16x256xf32, #tpu.memory_space<vmem>>, %arg14: memref<16x256xf32, #tpu.memory_space<vmem>>) attributes {dimension_semantics = [#tpu.dimension_semantics<arbitrary>], iteration_bounds = array<i64: 2>, scalar_prefetch = 0 : i64, scratch_operands = 4 : i64, tpu.core_type = #tpu.core_type<tc>, window_params = [{transform_indices = @transform_0, window_bounds = array<i64: 4, 16, 128>}, {transform_indices = @transform_1, window_bounds = array<i64: 4, 16, 128>}, {pipeline_mode = #tpu.pipeline_mode<synchronous>, transform_indices = @transform_2, window_bounds = array<i64: 2, 128, 512>}, {pipeline_mode = #tpu.pipeline_mode<synchronous>, transform_indices = @transform_3, window_bounds = array<i64: 256, 1024>}, {pipeline_mode = #tpu.pipeline_mode<synchronous>, transform_indices = @transform_4, window_bounds = array<i64: 2, 1, 512>}, {pipeline_mode = #tpu.pipeline_mode<synchronous>, transform_indices = @transform_5, window_bounds = array<i64: 16, 1>}, {transform_indices = @transform_6, window_bounds = array<i64: 4, 16, 128>}, {transform_indices = @transform_7, window_bounds = array<i64: 4, 16, 128>}, {pipeline_mode = #tpu.pipeline_mode<synchronous>, transform_indices = @transform_8, window_bounds = array<i64: 16, 256>}, {pipeline_mode = #tpu.pipeline_mode<synchronous>, transform_indices = @transform_9, window_bounds = array<i64: 16, 256>}]} {
    %c0_i32 = arith.constant 0 : i32
    %0 = arith.cmpi eq, %arg0, %c0_i32 : i32
    %1 = arith.extui %0 : i1 to i32
    %c0_i32_0 = arith.constant 0 : i32
    %2 = arith.cmpi ne, %1, %c0_i32_0 : i32
    scf.if %2 {
      %cst_118 = arith.constant 0.000000e+00 : f32
      %471 = vector.broadcast %cst_118 : f32 to vector<16x256xf32>
      %c0_119 = arith.constant 0 : index
      %c0_120 = arith.constant 0 : index
      %472 = vector.load %arg13[%c0_119, %c0_120] : memref<16x256xf32, #tpu.memory_space<vmem>>, vector<16x256xf32>
      tpu.vector_store %arg13[%c0_119, %c0_120], %471 {strides = array<i32>} : memref<16x256xf32, #tpu.memory_space<vmem>>, vector<16x256xf32>,
      %cst_121 = arith.constant 0.000000e+00 : f32
      %473 = vector.broadcast %cst_121 : f32 to vector<16x256xf32>
      %c0_122 = arith.constant 0 : index
      %c0_123 = arith.constant 0 : index
      %474 = vector.load %arg14[%c0_122, %c0_123] : memref<16x256xf32, #tpu.memory_space<vmem>>, vector<16x256xf32>
      tpu.vector_store %arg14[%c0_122, %c0_123], %473 {strides = array<i32>} : memref<16x256xf32, #tpu.memory_space<vmem>>, vector<16x256xf32>,
    } else {
    }
    %c0 = arith.constant 0 : index
    %c0_1 = arith.constant 0 : index
    %c0_2 = arith.constant 0 : index
    %3 = vector.load %arg1[%c0, %c0_1, %c0_2] : memref<4x16x128xbf16, #tpu.memory_space<vmem>>, vector<4x16x128xbf16>
    %4 = vector.shape_cast %3 : vector<4x16x128xbf16> to vector<64x128xbf16>
    %c0_3 = arith.constant 0 : index
    %c0_4 = arith.constant 0 : index
    %c0_5 = arith.constant 0 : index
    %5 = vector.load %arg3[%c0_3, %c0_4, %c0_5] : memref<2x128x512xbf16, #tpu.memory_space<vmem>>, vector<1x128x512xbf16>
    %6 = vector.shape_cast %5 : vector<1x128x512xbf16> to vector<128x512xbf16>
    %cst = arith.constant dense<0.000000e+00> : vector<64x512xf32>
    %7 = tpu.matmul %4, %6, %cst {dimension_numbers = #tpu.dot_dimension_numbers<[1], [0], [0], [1], [0, 0, 1, 1], [], []>} : vector<64x128xbf16>, vector<128x512xbf16>, vector<64x512xf32> -> vector<64x512xf32>
    %c0_6 = arith.constant 0 : index
    %c0_7 = arith.constant 0 : index
    %c0_8 = arith.constant 0 : index
    %8 = vector.load %arg5[%c0_6, %c0_7, %c0_8] : memref<2x1x512xf32, #tpu.memory_space<vmem>>, vector<1x1x512xf32>
    %9 = vector.shape_cast %8 : vector<1x1x512xf32> to vector<1x512xf32>
    %10 = vector.broadcast %9 : vector<1x512xf32> to vector<64x512xf32>
    %11 = arith.addf %7, %10 : vector<64x512xf32>
    %12 = vector.shape_cast %11 : vector<64x512xf32> to vector<4x16x512xf32>
    %13 = arith.truncf %12 : vector<4x16x512xf32> to vector<4x16x512xbf16>
    %c0_9 = arith.constant 0 : index
    %c0_10 = arith.constant 0 : index
    %c0_11 = arith.constant 0 : index
    %14 = vector.load %arg11[%c0_9, %c0_10, %c0_11] : memref<4x16x512xbf16, #tpu.memory_space<vmem>>, vector<4x16x512xbf16>
    tpu.vector_store %arg11[%c0_9, %c0_10, %c0_11], %13 {strides = array<i32>} : memref<4x16x512xbf16, #tpu.memory_space<vmem>>, vector<4x16x512xbf16>,
    %c0_12 = arith.constant 0 : index
    %c0_13 = arith.constant 0 : index
    %c0_14 = arith.constant 0 : index
    %15 = vector.load %arg2[%c0_12, %c0_13, %c0_14] : memref<4x16x128xbf16, #tpu.memory_space<vmem>>, vector<4x16x128xbf16>
    %16 = vector.shape_cast %15 : vector<4x16x128xbf16> to vector<64x128xbf16>
    %c1 = arith.constant 1 : index
    %c0_15 = arith.constant 0 : index
    %c0_16 = arith.constant 0 : index
    %17 = vector.load %arg3[%c1, %c0_15, %c0_16] : memref<2x128x512xbf16, #tpu.memory_space<vmem>>, vector<1x128x512xbf16>
    %18 = vector.shape_cast %17 : vector<1x128x512xbf16> to vector<128x512xbf16>
    %cst_17 = arith.constant dense<0.000000e+00> : vector<64x512xf32>
    %19 = tpu.matmul %16, %18, %cst_17 {dimension_numbers = #tpu.dot_dimension_numbers<[1], [0], [0], [1], [0, 0, 1, 1], [], []>} : vector<64x128xbf16>, vector<128x512xbf16>, vector<64x512xf32> -> vector<64x512xf32>
    %c1_18 = arith.constant 1 : index
    %c0_19 = arith.constant 0 : index
    %c0_20 = arith.constant 0 : index
    %20 = vector.load %arg5[%c1_18, %c0_19, %c0_20] : memref<2x1x512xf32, #tpu.memory_space<vmem>>, vector<1x1x512xf32>
    %21 = vector.shape_cast %20 : vector<1x1x512xf32> to vector<1x512xf32>
    %22 = vector.broadcast %21 : vector<1x512xf32> to vector<64x512xf32>
    %23 = arith.addf %19, %22 : vector<64x512xf32>
    %24 = vector.shape_cast %23 : vector<64x512xf32> to vector<4x16x512xf32>
    %25 = arith.truncf %24 : vector<4x16x512xf32> to vector<4x16x512xbf16>
    %c0_21 = arith.constant 0 : index
    %c0_22 = arith.constant 0 : index
    %c0_23 = arith.constant 0 : index
    %26 = vector.load %arg12[%c0_21, %c0_22, %c0_23] : memref<4x16x512xbf16, #tpu.memory_space<vmem>>, vector<4x16x512xbf16>
    tpu.vector_store %arg12[%c0_21, %c0_22, %c0_23], %25 {strides = array<i32>} : memref<4x16x512xbf16, #tpu.memory_space<vmem>>, vector<4x16x512xbf16>,
    %c0_24 = arith.constant 0 : index
    %c0_25 = arith.constant 0 : index
    %27 = vector.load %arg4[%c0_24, %c0_25] : memref<256x1024xbf16, #tpu.memory_space<vmem>>, vector<256x1024xbf16>
    %c0_26 = arith.constant 0 : index
    %c0_27 = arith.constant 0 : index
    %28 = vector.load %arg6[%c0_26, %c0_27] : memref<16x1xi32, #tpu.memory_space<vmem>>, vector<16x1xi32>
    %c4_i32 = arith.constant 4 : i32
    %29 = arith.muli %arg0, %c4_i32 : i32
    %c1_i32 = arith.constant 1 : i32
    %30 = arith.subi %c1_i32, %arg0 : i32
    %c4_i32_28 = arith.constant 4 : i32
    %31 = arith.muli %30, %c4_i32_28 : i32
    %c0_29 = arith.constant 0 : index
    %c0_30 = arith.constant 0 : index
    %32 = vector.load %arg13[%c0_29, %c0_30] : memref<16x256xf32, #tpu.memory_space<vmem>>, vector<16x256xf32>
    %c0_31 = arith.constant 0 : index
    %c0_32 = arith.constant 0 : index
    %33 = vector.load %arg14[%c0_31, %c0_32] : memref<16x256xf32, #tpu.memory_space<vmem>>, vector<16x256xf32>
    %c0_i32_33 = arith.constant 0 : i32
    %34 = arith.truncf %32 : vector<16x256xf32> to vector<16x256xbf16>
    %cst_34 = arith.constant dense<0.000000e+00> : vector<16x1024xf32>
    %35 = tpu.matmul %34, %27, %cst_34 {dimension_numbers = #tpu.dot_dimension_numbers<[1], [0], [0], [1], [0, 0, 1, 1], [], []>} : vector<16x256xbf16>, vector<256x1024xbf16>, vector<16x1024xf32> -> vector<16x1024xf32>
    %36 = arith.addi %29, %c0_i32_33 : i32
    %37 = arith.index_cast %c0_i32_33 : i32 to index
    %c0_35 = arith.constant 0 : index
    %c0_36 = arith.constant 0 : index
    %38 = vector.load %arg11[%37, %c0_35, %c0_36] : memref<4x16x512xbf16, #tpu.memory_space<vmem>>, vector<1x16x512xbf16>
    %39 = vector.shape_cast %38 : vector<1x16x512xbf16> to vector<16x512xbf16>
    %40 = arith.extf %39 : vector<16x512xbf16> to vector<16x512xf32>
    %41 = vector.extract_strided_slice %35 {offsets = [0, 0], sizes = [16, 512], strides = [1, 1]} : vector<16x1024xf32> to vector<16x512xf32>
    %42 = arith.addf %40, %41 : vector<16x512xf32>
    %43 = vector.extract_strided_slice %42 {offsets = [0, 0], sizes = [16, 128], strides = [1, 1]} : vector<16x512xf32> to vector<16x128xf32>
    %44 = arith.negf %43 : vector<16x128xf32>
    %45 = math.exp %44 : vector<16x128xf32>
    %cst_37 = arith.constant 1.000000e+00 : f32
    %46 = vector.broadcast %cst_37 : f32 to vector<16x128xf32>
    %47 = arith.addf %46, %45 : vector<16x128xf32>
    %48 = arith.divf %46, %47 : vector<16x128xf32>
    %49 = vector.extract_strided_slice %42 {offsets = [0, 128], sizes = [16, 128], strides = [1, 1]} : vector<16x512xf32> to vector<16x128xf32>
    %50 = arith.negf %49 : vector<16x128xf32>
    %51 = math.exp %50 : vector<16x128xf32>
    %cst_38 = arith.constant 1.000000e+00 : f32
    %52 = vector.broadcast %cst_38 : f32 to vector<16x128xf32>
    %53 = arith.addf %52, %51 : vector<16x128xf32>
    %54 = arith.divf %52, %53 : vector<16x128xf32>
    %55 = vector.extract_strided_slice %42 {offsets = [0, 256], sizes = [16, 128], strides = [1, 1]} : vector<16x512xf32> to vector<16x128xf32>
    %56 = math.tanh %55 : vector<16x128xf32>
    %57 = vector.extract_strided_slice %42 {offsets = [0, 384], sizes = [16, 128], strides = [1, 1]} : vector<16x512xf32> to vector<16x128xf32>
    %58 = arith.negf %57 : vector<16x128xf32>
    %59 = math.exp %58 : vector<16x128xf32>
    %cst_39 = arith.constant 1.000000e+00 : f32
    %60 = vector.broadcast %cst_39 : f32 to vector<16x128xf32>
    %61 = arith.addf %60, %59 : vector<16x128xf32>
    %62 = arith.divf %60, %61 : vector<16x128xf32>
    %63 = vector.extract_strided_slice %33 {offsets = [0, 0], sizes = [16, 128], strides = [1, 1]} : vector<16x256xf32> to vector<16x128xf32>
    %64 = arith.mulf %54, %63 : vector<16x128xf32>
    %65 = arith.mulf %48, %56 : vector<16x128xf32>
    %66 = arith.addf %64, %65 : vector<16x128xf32>
    %67 = math.tanh %66 : vector<16x128xf32>
    %68 = arith.mulf %62, %67 : vector<16x128xf32>
    %69 = vector.broadcast %36 : i32 to vector<16x1xi32>
    %70 = arith.cmpi slt, %69, %28 : vector<16x1xi32>
    %cst_40 = arith.constant 0.000000e+00 : f32
    %71 = vector.shape_cast %70 : vector<16x1xi1> to vector<16x1xi1>
    %72 = vector.broadcast %71 : vector<16x1xi1> to vector<16x128xi1>
    %73 = vector.broadcast %cst_40 : f32 to vector<16x128xf32>
    %74 = arith.select %72, %68, %73 : vector<16x128xi1>, vector<16x128xf32>
    %75 = arith.truncf %74 : vector<16x128xf32> to vector<16x128xbf16>
    %76 = arith.index_cast %c0_i32_33 : i32 to index
    %c0_41 = arith.constant 0 : index
    %c0_42 = arith.constant 0 : index
    %77 = vector.load %arg7[%76, %c0_41, %c0_42] : memref<4x16x128xbf16, #tpu.memory_space<vmem>>, vector<1x16x128xbf16>
    %78 = vector.shape_cast %77 : vector<1x16x128xbf16> to vector<16x128xbf16>
    %79 = vector.shape_cast %75 : vector<16x128xbf16> to vector<1x16x128xbf16>
    tpu.vector_store %arg7[%76, %c0_41, %c0_42], %79 {strides = array<i32>} : memref<4x16x128xbf16, #tpu.memory_space<vmem>>, vector<1x16x128xbf16>,
    %80 = vector.extract_strided_slice %32 {offsets = [0, 0], sizes = [16, 128], strides = [1, 1]} : vector<16x256xf32> to vector<16x128xf32>
    %81 = vector.shape_cast %70 : vector<16x1xi1> to vector<16x1xi1>
    %82 = vector.broadcast %81 : vector<16x1xi1> to vector<16x128xi1>
    %83 = arith.select %82, %68, %80 : vector<16x128xi1>, vector<16x128xf32>
    %84 = vector.shape_cast %70 : vector<16x1xi1> to vector<16x1xi1>
    %85 = vector.broadcast %84 : vector<16x1xi1> to vector<16x128xi1>
    %86 = arith.select %85, %66, %63 : vector<16x128xi1>, vector<16x128xf32>
    %c3_i32 = arith.constant 3 : i32
    %87 = arith.subi %c3_i32, %c0_i32_33 : i32
    %c3_i32_43 = arith.constant 3 : i32
    %88 = arith.subi %c3_i32_43, %c0_i32_33 : i32
    %89 = arith.addi %31, %88 : i32
    %90 = arith.index_cast %87 : i32 to index
    %c0_44 = arith.constant 0 : index
    %c0_45 = arith.constant 0 : index
    %91 = vector.load %arg12[%90, %c0_44, %c0_45] : memref<4x16x512xbf16, #tpu.memory_space<vmem>>, vector<1x16x512xbf16>
    %92 = vector.shape_cast %91 : vector<1x16x512xbf16> to vector<16x512xbf16>
    %93 = arith.extf %92 : vector<16x512xbf16> to vector<16x512xf32>
    %94 = vector.extract_strided_slice %35 {offsets = [0, 512], sizes = [16, 512], strides = [1, 1]} : vector<16x1024xf32> to vector<16x512xf32>
    %95 = arith.addf %93, %94 : vector<16x512xf32>
    %96 = vector.extract_strided_slice %95 {offsets = [0, 0], sizes = [16, 128], strides = [1, 1]} : vector<16x512xf32> to vector<16x128xf32>
    %97 = arith.negf %96 : vector<16x128xf32>
    %98 = math.exp %97 : vector<16x128xf32>
    %cst_46 = arith.constant 1.000000e+00 : f32
    %99 = vector.broadcast %cst_46 : f32 to vector<16x128xf32>
    %100 = arith.addf %99, %98 : vector<16x128xf32>
    %101 = arith.divf %99, %100 : vector<16x128xf32>
    %102 = vector.extract_strided_slice %95 {offsets = [0, 128], sizes = [16, 128], strides = [1, 1]} : vector<16x512xf32> to vector<16x128xf32>
    %103 = arith.negf %102 : vector<16x128xf32>
    %104 = math.exp %103 : vector<16x128xf32>
    %cst_47 = arith.constant 1.000000e+00 : f32
    %105 = vector.broadcast %cst_47 : f32 to vector<16x128xf32>
    %106 = arith.addf %105, %104 : vector<16x128xf32>
    %107 = arith.divf %105, %106 : vector<16x128xf32>
    %108 = vector.extract_strided_slice %95 {offsets = [0, 256], sizes = [16, 128], strides = [1, 1]} : vector<16x512xf32> to vector<16x128xf32>
    %109 = math.tanh %108 : vector<16x128xf32>
    %110 = vector.extract_strided_slice %95 {offsets = [0, 384], sizes = [16, 128], strides = [1, 1]} : vector<16x512xf32> to vector<16x128xf32>
    %111 = arith.negf %110 : vector<16x128xf32>
    %112 = math.exp %111 : vector<16x128xf32>
    %cst_48 = arith.constant 1.000000e+00 : f32
    %113 = vector.broadcast %cst_48 : f32 to vector<16x128xf32>
    %114 = arith.addf %113, %112 : vector<16x128xf32>
    %115 = arith.divf %113, %114 : vector<16x128xf32>
    %116 = vector.extract_strided_slice %33 {offsets = [0, 128], sizes = [16, 128], strides = [1, 1]} : vector<16x256xf32> to vector<16x128xf32>
    %117 = arith.mulf %107, %116 : vector<16x128xf32>
    %118 = arith.mulf %101, %109 : vector<16x128xf32>
    %119 = arith.addf %117, %118 : vector<16x128xf32>
    %120 = math.tanh %119 : vector<16x128xf32>
    %121 = arith.mulf %115, %120 : vector<16x128xf32>
    %122 = vector.broadcast %89 : i32 to vector<16x1xi32>
    %123 = arith.cmpi slt, %122, %28 : vector<16x1xi32>
    %cst_49 = arith.constant 0.000000e+00 : f32
    %124 = vector.shape_cast %123 : vector<16x1xi1> to vector<16x1xi1>
    %125 = vector.broadcast %124 : vector<16x1xi1> to vector<16x128xi1>
    %126 = vector.broadcast %cst_49 : f32 to vector<16x128xf32>
    %127 = arith.select %125, %121, %126 : vector<16x128xi1>, vector<16x128xf32>
    %128 = arith.truncf %127 : vector<16x128xf32> to vector<16x128xbf16>
    %129 = arith.index_cast %87 : i32 to index
    %c0_50 = arith.constant 0 : index
    %c0_51 = arith.constant 0 : index
    %130 = vector.load %arg8[%129, %c0_50, %c0_51] : memref<4x16x128xbf16, #tpu.memory_space<vmem>>, vector<1x16x128xbf16>
    %131 = vector.shape_cast %130 : vector<1x16x128xbf16> to vector<16x128xbf16>
    %132 = vector.shape_cast %128 : vector<16x128xbf16> to vector<1x16x128xbf16>
    tpu.vector_store %arg8[%129, %c0_50, %c0_51], %132 {strides = array<i32>} : memref<4x16x128xbf16, #tpu.memory_space<vmem>>, vector<1x16x128xbf16>,
    %133 = vector.extract_strided_slice %32 {offsets = [0, 128], sizes = [16, 128], strides = [1, 1]} : vector<16x256xf32> to vector<16x128xf32>
    %134 = vector.shape_cast %123 : vector<16x1xi1> to vector<16x1xi1>
    %135 = vector.broadcast %134 : vector<16x1xi1> to vector<16x128xi1>
    %136 = arith.select %135, %121, %133 : vector<16x128xi1>, vector<16x128xf32>
    %137 = vector.shape_cast %123 : vector<16x1xi1> to vector<16x1xi1>
    %138 = vector.broadcast %137 : vector<16x1xi1> to vector<16x128xi1>
    %139 = arith.select %138, %119, %116 : vector<16x128xi1>, vector<16x128xf32>
    %140 = tpu.concatenate %83, %136 in 1 : vector<16x128xf32>, vector<16x128xf32> -> vector<16x256xf32>
    %141 = tpu.concatenate %86, %139 in 1 : vector<16x128xf32>, vector<16x128xf32> -> vector<16x256xf32>
    %c1_i32_52 = arith.constant 1 : i32
    %142 = arith.truncf %140 : vector<16x256xf32> to vector<16x256xbf16>
    %cst_53 = arith.constant dense<0.000000e+00> : vector<16x1024xf32>
    %143 = tpu.matmul %142, %27, %cst_53 {dimension_numbers = #tpu.dot_dimension_numbers<[1], [0], [0], [1], [0, 0, 1, 1], [], []>} : vector<16x256xbf16>, vector<256x1024xbf16>, vector<16x1024xf32> -> vector<16x1024xf32>
    %144 = arith.addi %29, %c1_i32_52 : i32
    %145 = arith.index_cast %c1_i32_52 : i32 to index
    %c0_54 = arith.constant 0 : index
    %c0_55 = arith.constant 0 : index
    %146 = vector.load %arg11[%145, %c0_54, %c0_55] : memref<4x16x512xbf16, #tpu.memory_space<vmem>>, vector<1x16x512xbf16>
    %147 = vector.shape_cast %146 : vector<1x16x512xbf16> to vector<16x512xbf16>
    %148 = arith.extf %147 : vector<16x512xbf16> to vector<16x512xf32>
    %149 = vector.extract_strided_slice %143 {offsets = [0, 0], sizes = [16, 512], strides = [1, 1]} : vector<16x1024xf32> to vector<16x512xf32>
    %150 = arith.addf %148, %149 : vector<16x512xf32>
    %151 = vector.extract_strided_slice %150 {offsets = [0, 0], sizes = [16, 128], strides = [1, 1]} : vector<16x512xf32> to vector<16x128xf32>
    %152 = arith.negf %151 : vector<16x128xf32>
    %153 = math.exp %152 : vector<16x128xf32>
    %cst_56 = arith.constant 1.000000e+00 : f32
    %154 = vector.broadcast %cst_56 : f32 to vector<16x128xf32>
    %155 = arith.addf %154, %153 : vector<16x128xf32>
    %156 = arith.divf %154, %155 : vector<16x128xf32>
    %157 = vector.extract_strided_slice %150 {offsets = [0, 128], sizes = [16, 128], strides = [1, 1]} : vector<16x512xf32> to vector<16x128xf32>
    %158 = arith.negf %157 : vector<16x128xf32>
    %159 = math.exp %158 : vector<16x128xf32>
    %cst_57 = arith.constant 1.000000e+00 : f32
    %160 = vector.broadcast %cst_57 : f32 to vector<16x128xf32>
    %161 = arith.addf %160, %159 : vector<16x128xf32>
    %162 = arith.divf %160, %161 : vector<16x128xf32>
    %163 = vector.extract_strided_slice %150 {offsets = [0, 256], sizes = [16, 128], strides = [1, 1]} : vector<16x512xf32> to vector<16x128xf32>
    %164 = math.tanh %163 : vector<16x128xf32>
    %165 = vector.extract_strided_slice %150 {offsets = [0, 384], sizes = [16, 128], strides = [1, 1]} : vector<16x512xf32> to vector<16x128xf32>
    %166 = arith.negf %165 : vector<16x128xf32>
    %167 = math.exp %166 : vector<16x128xf32>
    %cst_58 = arith.constant 1.000000e+00 : f32
    %168 = vector.broadcast %cst_58 : f32 to vector<16x128xf32>
    %169 = arith.addf %168, %167 : vector<16x128xf32>
    %170 = arith.divf %168, %169 : vector<16x128xf32>
    %171 = vector.extract_strided_slice %141 {offsets = [0, 0], sizes = [16, 128], strides = [1, 1]} : vector<16x256xf32> to vector<16x128xf32>
    %172 = arith.mulf %162, %171 : vector<16x128xf32>
    %173 = arith.mulf %156, %164 : vector<16x128xf32>
    %174 = arith.addf %172, %173 : vector<16x128xf32>
    %175 = math.tanh %174 : vector<16x128xf32>
    %176 = arith.mulf %170, %175 : vector<16x128xf32>
    %177 = vector.broadcast %144 : i32 to vector<16x1xi32>
    %178 = arith.cmpi slt, %177, %28 : vector<16x1xi32>
    %cst_59 = arith.constant 0.000000e+00 : f32
    %179 = vector.shape_cast %178 : vector<16x1xi1> to vector<16x1xi1>
    %180 = vector.broadcast %179 : vector<16x1xi1> to vector<16x128xi1>
    %181 = vector.broadcast %cst_59 : f32 to vector<16x128xf32>
    %182 = arith.select %180, %176, %181 : vector<16x128xi1>, vector<16x128xf32>
    %183 = arith.truncf %182 : vector<16x128xf32> to vector<16x128xbf16>
    %184 = arith.index_cast %c1_i32_52 : i32 to index
    %c0_60 = arith.constant 0 : index
    %c0_61 = arith.constant 0 : index
    %185 = vector.load %arg7[%184, %c0_60, %c0_61] : memref<4x16x128xbf16, #tpu.memory_space<vmem>>, vector<1x16x128xbf16>
    %186 = vector.shape_cast %185 : vector<1x16x128xbf16> to vector<16x128xbf16>
    %187 = vector.shape_cast %183 : vector<16x128xbf16> to vector<1x16x128xbf16>
    tpu.vector_store %arg7[%184, %c0_60, %c0_61], %187 {strides = array<i32>} : memref<4x16x128xbf16, #tpu.memory_space<vmem>>, vector<1x16x128xbf16>,
    %188 = vector.extract_strided_slice %140 {offsets = [0, 0], sizes = [16, 128], strides = [1, 1]} : vector<16x256xf32> to vector<16x128xf32>
    %189 = vector.shape_cast %178 : vector<16x1xi1> to vector<16x1xi1>
    %190 = vector.broadcast %189 : vector<16x1xi1> to vector<16x128xi1>
    %191 = arith.select %190, %176, %188 : vector<16x128xi1>, vector<16x128xf32>
    %192 = vector.shape_cast %178 : vector<16x1xi1> to vector<16x1xi1>
    %193 = vector.broadcast %192 : vector<16x1xi1> to vector<16x128xi1>
    %194 = arith.select %193, %174, %171 : vector<16x128xi1>, vector<16x128xf32>
    %c3_i32_62 = arith.constant 3 : i32
    %195 = arith.subi %c3_i32_62, %c1_i32_52 : i32
    %c3_i32_63 = arith.constant 3 : i32
    %196 = arith.subi %c3_i32_63, %c1_i32_52 : i32
    %197 = arith.addi %31, %196 : i32
    %198 = arith.index_cast %195 : i32 to index
    %c0_64 = arith.constant 0 : index
    %c0_65 = arith.constant 0 : index
    %199 = vector.load %arg12[%198, %c0_64, %c0_65] : memref<4x16x512xbf16, #tpu.memory_space<vmem>>, vector<1x16x512xbf16>
    %200 = vector.shape_cast %199 : vector<1x16x512xbf16> to vector<16x512xbf16>
    %201 = arith.extf %200 : vector<16x512xbf16> to vector<16x512xf32>
    %202 = vector.extract_strided_slice %143 {offsets = [0, 512], sizes = [16, 512], strides = [1, 1]} : vector<16x1024xf32> to vector<16x512xf32>
    %203 = arith.addf %201, %202 : vector<16x512xf32>
    %204 = vector.extract_strided_slice %203 {offsets = [0, 0], sizes = [16, 128], strides = [1, 1]} : vector<16x512xf32> to vector<16x128xf32>
    %205 = arith.negf %204 : vector<16x128xf32>
    %206 = math.exp %205 : vector<16x128xf32>
    %cst_66 = arith.constant 1.000000e+00 : f32
    %207 = vector.broadcast %cst_66 : f32 to vector<16x128xf32>
    %208 = arith.addf %207, %206 : vector<16x128xf32>
    %209 = arith.divf %207, %208 : vector<16x128xf32>
    %210 = vector.extract_strided_slice %203 {offsets = [0, 128], sizes = [16, 128], strides = [1, 1]} : vector<16x512xf32> to vector<16x128xf32>
    %211 = arith.negf %210 : vector<16x128xf32>
    %212 = math.exp %211 : vector<16x128xf32>
    %cst_67 = arith.constant 1.000000e+00 : f32
    %213 = vector.broadcast %cst_67 : f32 to vector<16x128xf32>
    %214 = arith.addf %213, %212 : vector<16x128xf32>
    %215 = arith.divf %213, %214 : vector<16x128xf32>
    %216 = vector.extract_strided_slice %203 {offsets = [0, 256], sizes = [16, 128], strides = [1, 1]} : vector<16x512xf32> to vector<16x128xf32>
    %217 = math.tanh %216 : vector<16x128xf32>
    %218 = vector.extract_strided_slice %203 {offsets = [0, 384], sizes = [16, 128], strides = [1, 1]} : vector<16x512xf32> to vector<16x128xf32>
    %219 = arith.negf %218 : vector<16x128xf32>
    %220 = math.exp %219 : vector<16x128xf32>
    %cst_68 = arith.constant 1.000000e+00 : f32
    %221 = vector.broadcast %cst_68 : f32 to vector<16x128xf32>
    %222 = arith.addf %221, %220 : vector<16x128xf32>
    %223 = arith.divf %221, %222 : vector<16x128xf32>
    %224 = vector.extract_strided_slice %141 {offsets = [0, 128], sizes = [16, 128], strides = [1, 1]} : vector<16x256xf32> to vector<16x128xf32>
    %225 = arith.mulf %215, %224 : vector<16x128xf32>
    %226 = arith.mulf %209, %217 : vector<16x128xf32>
    %227 = arith.addf %225, %226 : vector<16x128xf32>
    %228 = math.tanh %227 : vector<16x128xf32>
    %229 = arith.mulf %223, %228 : vector<16x128xf32>
    %230 = vector.broadcast %197 : i32 to vector<16x1xi32>
    %231 = arith.cmpi slt, %230, %28 : vector<16x1xi32>
    %cst_69 = arith.constant 0.000000e+00 : f32
    %232 = vector.shape_cast %231 : vector<16x1xi1> to vector<16x1xi1>
    %233 = vector.broadcast %232 : vector<16x1xi1> to vector<16x128xi1>
    %234 = vector.broadcast %cst_69 : f32 to vector<16x128xf32>
    %235 = arith.select %233, %229, %234 : vector<16x128xi1>, vector<16x128xf32>
    %236 = arith.truncf %235 : vector<16x128xf32> to vector<16x128xbf16>
    %237 = arith.index_cast %195 : i32 to index
    %c0_70 = arith.constant 0 : index
    %c0_71 = arith.constant 0 : index
    %238 = vector.load %arg8[%237, %c0_70, %c0_71] : memref<4x16x128xbf16, #tpu.memory_space<vmem>>, vector<1x16x128xbf16>
    %239 = vector.shape_cast %238 : vector<1x16x128xbf16> to vector<16x128xbf16>
    %240 = vector.shape_cast %236 : vector<16x128xbf16> to vector<1x16x128xbf16>
    tpu.vector_store %arg8[%237, %c0_70, %c0_71], %240 {strides = array<i32>} : memref<4x16x128xbf16, #tpu.memory_space<vmem>>, vector<1x16x128xbf16>,
    %241 = vector.extract_strided_slice %140 {offsets = [0, 128], sizes = [16, 128], strides = [1, 1]} : vector<16x256xf32> to vector<16x128xf32>
    %242 = vector.shape_cast %231 : vector<16x1xi1> to vector<16x1xi1>
    %243 = vector.broadcast %242 : vector<16x1xi1> to vector<16x128xi1>
    %244 = arith.select %243, %229, %241 : vector<16x128xi1>, vector<16x128xf32>
    %245 = vector.shape_cast %231 : vector<16x1xi1> to vector<16x1xi1>
    %246 = vector.broadcast %245 : vector<16x1xi1> to vector<16x128xi1>
    %247 = arith.select %246, %227, %224 : vector<16x128xi1>, vector<16x128xf32>
    %248 = tpu.concatenate %191, %244 in 1 : vector<16x128xf32>, vector<16x128xf32> -> vector<16x256xf32>
    %249 = tpu.concatenate %194, %247 in 1 : vector<16x128xf32>, vector<16x128xf32> -> vector<16x256xf32>
    %c2_i32 = arith.constant 2 : i32
    %250 = arith.truncf %248 : vector<16x256xf32> to vector<16x256xbf16>
    %cst_72 = arith.constant dense<0.000000e+00> : vector<16x1024xf32>
    %251 = tpu.matmul %250, %27, %cst_72 {dimension_numbers = #tpu.dot_dimension_numbers<[1], [0], [0], [1], [0, 0, 1, 1], [], []>} : vector<16x256xbf16>, vector<256x1024xbf16>, vector<16x1024xf32> -> vector<16x1024xf32>
    %252 = arith.addi %29, %c2_i32 : i32
    %253 = arith.index_cast %c2_i32 : i32 to index
    %c0_73 = arith.constant 0 : index
    %c0_74 = arith.constant 0 : index
    %254 = vector.load %arg11[%253, %c0_73, %c0_74] : memref<4x16x512xbf16, #tpu.memory_space<vmem>>, vector<1x16x512xbf16>
    %255 = vector.shape_cast %254 : vector<1x16x512xbf16> to vector<16x512xbf16>
    %256 = arith.extf %255 : vector<16x512xbf16> to vector<16x512xf32>
    %257 = vector.extract_strided_slice %251 {offsets = [0, 0], sizes = [16, 512], strides = [1, 1]} : vector<16x1024xf32> to vector<16x512xf32>
    %258 = arith.addf %256, %257 : vector<16x512xf32>
    %259 = vector.extract_strided_slice %258 {offsets = [0, 0], sizes = [16, 128], strides = [1, 1]} : vector<16x512xf32> to vector<16x128xf32>
    %260 = arith.negf %259 : vector<16x128xf32>
    %261 = math.exp %260 : vector<16x128xf32>
    %cst_75 = arith.constant 1.000000e+00 : f32
    %262 = vector.broadcast %cst_75 : f32 to vector<16x128xf32>
    %263 = arith.addf %262, %261 : vector<16x128xf32>
    %264 = arith.divf %262, %263 : vector<16x128xf32>
    %265 = vector.extract_strided_slice %258 {offsets = [0, 128], sizes = [16, 128], strides = [1, 1]} : vector<16x512xf32> to vector<16x128xf32>
    %266 = arith.negf %265 : vector<16x128xf32>
    %267 = math.exp %266 : vector<16x128xf32>
    %cst_76 = arith.constant 1.000000e+00 : f32
    %268 = vector.broadcast %cst_76 : f32 to vector<16x128xf32>
    %269 = arith.addf %268, %267 : vector<16x128xf32>
    %270 = arith.divf %268, %269 : vector<16x128xf32>
    %271 = vector.extract_strided_slice %258 {offsets = [0, 256], sizes = [16, 128], strides = [1, 1]} : vector<16x512xf32> to vector<16x128xf32>
    %272 = math.tanh %271 : vector<16x128xf32>
    %273 = vector.extract_strided_slice %258 {offsets = [0, 384], sizes = [16, 128], strides = [1, 1]} : vector<16x512xf32> to vector<16x128xf32>
    %274 = arith.negf %273 : vector<16x128xf32>
    %275 = math.exp %274 : vector<16x128xf32>
    %cst_77 = arith.constant 1.000000e+00 : f32
    %276 = vector.broadcast %cst_77 : f32 to vector<16x128xf32>
    %277 = arith.addf %276, %275 : vector<16x128xf32>
    %278 = arith.divf %276, %277 : vector<16x128xf32>
    %279 = vector.extract_strided_slice %249 {offsets = [0, 0], sizes = [16, 128], strides = [1, 1]} : vector<16x256xf32> to vector<16x128xf32>
    %280 = arith.mulf %270, %279 : vector<16x128xf32>
    %281 = arith.mulf %264, %272 : vector<16x128xf32>
    %282 = arith.addf %280, %281 : vector<16x128xf32>
    %283 = math.tanh %282 : vector<16x128xf32>
    %284 = arith.mulf %278, %283 : vector<16x128xf32>
    %285 = vector.broadcast %252 : i32 to vector<16x1xi32>
    %286 = arith.cmpi slt, %285, %28 : vector<16x1xi32>
    %cst_78 = arith.constant 0.000000e+00 : f32
    %287 = vector.shape_cast %286 : vector<16x1xi1> to vector<16x1xi1>
    %288 = vector.broadcast %287 : vector<16x1xi1> to vector<16x128xi1>
    %289 = vector.broadcast %cst_78 : f32 to vector<16x128xf32>
    %290 = arith.select %288, %284, %289 : vector<16x128xi1>, vector<16x128xf32>
    %291 = arith.truncf %290 : vector<16x128xf32> to vector<16x128xbf16>
    %292 = arith.index_cast %c2_i32 : i32 to index
    %c0_79 = arith.constant 0 : index
    %c0_80 = arith.constant 0 : index
    %293 = vector.load %arg7[%292, %c0_79, %c0_80] : memref<4x16x128xbf16, #tpu.memory_space<vmem>>, vector<1x16x128xbf16>
    %294 = vector.shape_cast %293 : vector<1x16x128xbf16> to vector<16x128xbf16>
    %295 = vector.shape_cast %291 : vector<16x128xbf16> to vector<1x16x128xbf16>
    tpu.vector_store %arg7[%292, %c0_79, %c0_80], %295 {strides = array<i32>} : memref<4x16x128xbf16, #tpu.memory_space<vmem>>, vector<1x16x128xbf16>,
    %296 = vector.extract_strided_slice %248 {offsets = [0, 0], sizes = [16, 128], strides = [1, 1]} : vector<16x256xf32> to vector<16x128xf32>
    %297 = vector.shape_cast %286 : vector<16x1xi1> to vector<16x1xi1>
    %298 = vector.broadcast %297 : vector<16x1xi1> to vector<16x128xi1>
    %299 = arith.select %298, %284, %296 : vector<16x128xi1>, vector<16x128xf32>
    %300 = vector.shape_cast %286 : vector<16x1xi1> to vector<16x1xi1>
    %301 = vector.broadcast %300 : vector<16x1xi1> to vector<16x128xi1>
    %302 = arith.select %301, %282, %279 : vector<16x128xi1>, vector<16x128xf32>
    %c3_i32_81 = arith.constant 3 : i32
    %303 = arith.subi %c3_i32_81, %c2_i32 : i32
    %c3_i32_82 = arith.constant 3 : i32
    %304 = arith.subi %c3_i32_82, %c2_i32 : i32
    %305 = arith.addi %31, %304 : i32
    %306 = arith.index_cast %303 : i32 to index
    %c0_83 = arith.constant 0 : index
    %c0_84 = arith.constant 0 : index
    %307 = vector.load %arg12[%306, %c0_83, %c0_84] : memref<4x16x512xbf16, #tpu.memory_space<vmem>>, vector<1x16x512xbf16>
    %308 = vector.shape_cast %307 : vector<1x16x512xbf16> to vector<16x512xbf16>
    %309 = arith.extf %308 : vector<16x512xbf16> to vector<16x512xf32>
    %310 = vector.extract_strided_slice %251 {offsets = [0, 512], sizes = [16, 512], strides = [1, 1]} : vector<16x1024xf32> to vector<16x512xf32>
    %311 = arith.addf %309, %310 : vector<16x512xf32>
    %312 = vector.extract_strided_slice %311 {offsets = [0, 0], sizes = [16, 128], strides = [1, 1]} : vector<16x512xf32> to vector<16x128xf32>
    %313 = arith.negf %312 : vector<16x128xf32>
    %314 = math.exp %313 : vector<16x128xf32>
    %cst_85 = arith.constant 1.000000e+00 : f32
    %315 = vector.broadcast %cst_85 : f32 to vector<16x128xf32>
    %316 = arith.addf %315, %314 : vector<16x128xf32>
    %317 = arith.divf %315, %316 : vector<16x128xf32>
    %318 = vector.extract_strided_slice %311 {offsets = [0, 128], sizes = [16, 128], strides = [1, 1]} : vector<16x512xf32> to vector<16x128xf32>
    %319 = arith.negf %318 : vector<16x128xf32>
    %320 = math.exp %319 : vector<16x128xf32>
    %cst_86 = arith.constant 1.000000e+00 : f32
    %321 = vector.broadcast %cst_86 : f32 to vector<16x128xf32>
    %322 = arith.addf %321, %320 : vector<16x128xf32>
    %323 = arith.divf %321, %322 : vector<16x128xf32>
    %324 = vector.extract_strided_slice %311 {offsets = [0, 256], sizes = [16, 128], strides = [1, 1]} : vector<16x512xf32> to vector<16x128xf32>
    %325 = math.tanh %324 : vector<16x128xf32>
    %326 = vector.extract_strided_slice %311 {offsets = [0, 384], sizes = [16, 128], strides = [1, 1]} : vector<16x512xf32> to vector<16x128xf32>
    %327 = arith.negf %326 : vector<16x128xf32>
    %328 = math.exp %327 : vector<16x128xf32>
    %cst_87 = arith.constant 1.000000e+00 : f32
    %329 = vector.broadcast %cst_87 : f32 to vector<16x128xf32>
    %330 = arith.addf %329, %328 : vector<16x128xf32>
    %331 = arith.divf %329, %330 : vector<16x128xf32>
    %332 = vector.extract_strided_slice %249 {offsets = [0, 128], sizes = [16, 128], strides = [1, 1]} : vector<16x256xf32> to vector<16x128xf32>
    %333 = arith.mulf %323, %332 : vector<16x128xf32>
    %334 = arith.mulf %317, %325 : vector<16x128xf32>
    %335 = arith.addf %333, %334 : vector<16x128xf32>
    %336 = math.tanh %335 : vector<16x128xf32>
    %337 = arith.mulf %331, %336 : vector<16x128xf32>
    %338 = vector.broadcast %305 : i32 to vector<16x1xi32>
    %339 = arith.cmpi slt, %338, %28 : vector<16x1xi32>
    %cst_88 = arith.constant 0.000000e+00 : f32
    %340 = vector.shape_cast %339 : vector<16x1xi1> to vector<16x1xi1>
    %341 = vector.broadcast %340 : vector<16x1xi1> to vector<16x128xi1>
    %342 = vector.broadcast %cst_88 : f32 to vector<16x128xf32>
    %343 = arith.select %341, %337, %342 : vector<16x128xi1>, vector<16x128xf32>
    %344 = arith.truncf %343 : vector<16x128xf32> to vector<16x128xbf16>
    %345 = arith.index_cast %303 : i32 to index
    %c0_89 = arith.constant 0 : index
    %c0_90 = arith.constant 0 : index
    %346 = vector.load %arg8[%345, %c0_89, %c0_90] : memref<4x16x128xbf16, #tpu.memory_space<vmem>>, vector<1x16x128xbf16>
    %347 = vector.shape_cast %346 : vector<1x16x128xbf16> to vector<16x128xbf16>
    %348 = vector.shape_cast %344 : vector<16x128xbf16> to vector<1x16x128xbf16>
    tpu.vector_store %arg8[%345, %c0_89, %c0_90], %348 {strides = array<i32>} : memref<4x16x128xbf16, #tpu.memory_space<vmem>>, vector<1x16x128xbf16>,
    %349 = vector.extract_strided_slice %248 {offsets = [0, 128], sizes = [16, 128], strides = [1, 1]} : vector<16x256xf32> to vector<16x128xf32>
    %350 = vector.shape_cast %339 : vector<16x1xi1> to vector<16x1xi1>
    %351 = vector.broadcast %350 : vector<16x1xi1> to vector<16x128xi1>
    %352 = arith.select %351, %337, %349 : vector<16x128xi1>, vector<16x128xf32>
    %353 = vector.shape_cast %339 : vector<16x1xi1> to vector<16x1xi1>
    %354 = vector.broadcast %353 : vector<16x1xi1> to vector<16x128xi1>
    %355 = arith.select %354, %335, %332 : vector<16x128xi1>, vector<16x128xf32>
    %356 = tpu.concatenate %299, %352 in 1 : vector<16x128xf32>, vector<16x128xf32> -> vector<16x256xf32>
    %357 = tpu.concatenate %302, %355 in 1 : vector<16x128xf32>, vector<16x128xf32> -> vector<16x256xf32>
    %c3_i32_91 = arith.constant 3 : i32
    %358 = arith.truncf %356 : vector<16x256xf32> to vector<16x256xbf16>
    %cst_92 = arith.constant dense<0.000000e+00> : vector<16x1024xf32>
    %359 = tpu.matmul %358, %27, %cst_92 {dimension_numbers = #tpu.dot_dimension_numbers<[1], [0], [0], [1], [0, 0, 1, 1], [], []>} : vector<16x256xbf16>, vector<256x1024xbf16>, vector<16x1024xf32> -> vector<16x1024xf32>
    %360 = arith.addi %29, %c3_i32_91 : i32
    %361 = arith.index_cast %c3_i32_91 : i32 to index
    %c0_93 = arith.constant 0 : index
    %c0_94 = arith.constant 0 : index
    %362 = vector.load %arg11[%361, %c0_93, %c0_94] : memref<4x16x512xbf16, #tpu.memory_space<vmem>>, vector<1x16x512xbf16>
    %363 = vector.shape_cast %362 : vector<1x16x512xbf16> to vector<16x512xbf16>
    %364 = arith.extf %363 : vector<16x512xbf16> to vector<16x512xf32>
    %365 = vector.extract_strided_slice %359 {offsets = [0, 0], sizes = [16, 512], strides = [1, 1]} : vector<16x1024xf32> to vector<16x512xf32>
    %366 = arith.addf %364, %365 : vector<16x512xf32>
    %367 = vector.extract_strided_slice %366 {offsets = [0, 0], sizes = [16, 128], strides = [1, 1]} : vector<16x512xf32> to vector<16x128xf32>
    %368 = arith.negf %367 : vector<16x128xf32>
    %369 = math.exp %368 : vector<16x128xf32>
    %cst_95 = arith.constant 1.000000e+00 : f32
    %370 = vector.broadcast %cst_95 : f32 to vector<16x128xf32>
    %371 = arith.addf %370, %369 : vector<16x128xf32>
    %372 = arith.divf %370, %371 : vector<16x128xf32>
    %373 = vector.extract_strided_slice %366 {offsets = [0, 128], sizes = [16, 128], strides = [1, 1]} : vector<16x512xf32> to vector<16x128xf32>
    %374 = arith.negf %373 : vector<16x128xf32>
    %375 = math.exp %374 : vector<16x128xf32>
    %cst_96 = arith.constant 1.000000e+00 : f32
    %376 = vector.broadcast %cst_96 : f32 to vector<16x128xf32>
    %377 = arith.addf %376, %375 : vector<16x128xf32>
    %378 = arith.divf %376, %377 : vector<16x128xf32>
    %379 = vector.extract_strided_slice %366 {offsets = [0, 256], sizes = [16, 128], strides = [1, 1]} : vector<16x512xf32> to vector<16x128xf32>
    %380 = math.tanh %379 : vector<16x128xf32>
    %381 = vector.extract_strided_slice %366 {offsets = [0, 384], sizes = [16, 128], strides = [1, 1]} : vector<16x512xf32> to vector<16x128xf32>
    %382 = arith.negf %381 : vector<16x128xf32>
    %383 = math.exp %382 : vector<16x128xf32>
    %cst_97 = arith.constant 1.000000e+00 : f32
    %384 = vector.broadcast %cst_97 : f32 to vector<16x128xf32>
    %385 = arith.addf %384, %383 : vector<16x128xf32>
    %386 = arith.divf %384, %385 : vector<16x128xf32>
    %387 = vector.extract_strided_slice %357 {offsets = [0, 0], sizes = [16, 128], strides = [1, 1]} : vector<16x256xf32> to vector<16x128xf32>
    %388 = arith.mulf %378, %387 : vector<16x128xf32>
    %389 = arith.mulf %372, %380 : vector<16x128xf32>
    %390 = arith.addf %388, %389 : vector<16x128xf32>
    %391 = math.tanh %390 : vector<16x128xf32>
    %392 = arith.mulf %386, %391 : vector<16x128xf32>
    %393 = vector.broadcast %360 : i32 to vector<16x1xi32>
    %394 = arith.cmpi slt, %393, %28 : vector<16x1xi32>
    %cst_98 = arith.constant 0.000000e+00 : f32
    %395 = vector.shape_cast %394 : vector<16x1xi1> to vector<16x1xi1>
    %396 = vector.broadcast %395 : vector<16x1xi1> to vector<16x128xi1>
    %397 = vector.broadcast %cst_98 : f32 to vector<16x128xf32>
    %398 = arith.select %396, %392, %397 : vector<16x128xi1>, vector<16x128xf32>
    %399 = arith.truncf %398 : vector<16x128xf32> to vector<16x128xbf16>
    %400 = arith.index_cast %c3_i32_91 : i32 to index
    %c0_99 = arith.constant 0 : index
    %c0_100 = arith.constant 0 : index
    %401 = vector.load %arg7[%400, %c0_99, %c0_100] : memref<4x16x128xbf16, #tpu.memory_space<vmem>>, vector<1x16x128xbf16>
    %402 = vector.shape_cast %401 : vector<1x16x128xbf16> to vector<16x128xbf16>
    %403 = vector.shape_cast %399 : vector<16x128xbf16> to vector<1x16x128xbf16>
    tpu.vector_store %arg7[%400, %c0_99, %c0_100], %403 {strides = array<i32>} : memref<4x16x128xbf16, #tpu.memory_space<vmem>>, vector<1x16x128xbf16>,
    %404 = vector.extract_strided_slice %356 {offsets = [0, 0], sizes = [16, 128], strides = [1, 1]} : vector<16x256xf32> to vector<16x128xf32>
    %405 = vector.shape_cast %394 : vector<16x1xi1> to vector<16x1xi1>
    %406 = vector.broadcast %405 : vector<16x1xi1> to vector<16x128xi1>
    %407 = arith.select %406, %392, %404 : vector<16x128xi1>, vector<16x128xf32>
    %408 = vector.shape_cast %394 : vector<16x1xi1> to vector<16x1xi1>
    %409 = vector.broadcast %408 : vector<16x1xi1> to vector<16x128xi1>
    %410 = arith.select %409, %390, %387 : vector<16x128xi1>, vector<16x128xf32>
    %c3_i32_101 = arith.constant 3 : i32
    %411 = arith.subi %c3_i32_101, %c3_i32_91 : i32
    %c3_i32_102 = arith.constant 3 : i32
    %412 = arith.subi %c3_i32_102, %c3_i32_91 : i32
    %413 = arith.addi %31, %412 : i32
    %414 = arith.index_cast %411 : i32 to index
    %c0_103 = arith.constant 0 : index
    %c0_104 = arith.constant 0 : index
    %415 = vector.load %arg12[%414, %c0_103, %c0_104] : memref<4x16x512xbf16, #tpu.memory_space<vmem>>, vector<1x16x512xbf16>
    %416 = vector.shape_cast %415 : vector<1x16x512xbf16> to vector<16x512xbf16>
    %417 = arith.extf %416 : vector<16x512xbf16> to vector<16x512xf32>
    %418 = vector.extract_strided_slice %359 {offsets = [0, 512], sizes = [16, 512], strides = [1, 1]} : vector<16x1024xf32> to vector<16x512xf32>
    %419 = arith.addf %417, %418 : vector<16x512xf32>
    %420 = vector.extract_strided_slice %419 {offsets = [0, 0], sizes = [16, 128], strides = [1, 1]} : vector<16x512xf32> to vector<16x128xf32>
    %421 = arith.negf %420 : vector<16x128xf32>
    %422 = math.exp %421 : vector<16x128xf32>
    %cst_105 = arith.constant 1.000000e+00 : f32
    %423 = vector.broadcast %cst_105 : f32 to vector<16x128xf32>
    %424 = arith.addf %423, %422 : vector<16x128xf32>
    %425 = arith.divf %423, %424 : vector<16x128xf32>
    %426 = vector.extract_strided_slice %419 {offsets = [0, 128], sizes = [16, 128], strides = [1, 1]} : vector<16x512xf32> to vector<16x128xf32>
    %427 = arith.negf %426 : vector<16x128xf32>
    %428 = math.exp %427 : vector<16x128xf32>
    %cst_106 = arith.constant 1.000000e+00 : f32
    %429 = vector.broadcast %cst_106 : f32 to vector<16x128xf32>
    %430 = arith.addf %429, %428 : vector<16x128xf32>
    %431 = arith.divf %429, %430 : vector<16x128xf32>
    %432 = vector.extract_strided_slice %419 {offsets = [0, 256], sizes = [16, 128], strides = [1, 1]} : vector<16x512xf32> to vector<16x128xf32>
    %433 = math.tanh %432 : vector<16x128xf32>
    %434 = vector.extract_strided_slice %419 {offsets = [0, 384], sizes = [16, 128], strides = [1, 1]} : vector<16x512xf32> to vector<16x128xf32>
    %435 = arith.negf %434 : vector<16x128xf32>
    %436 = math.exp %435 : vector<16x128xf32>
    %cst_107 = arith.constant 1.000000e+00 : f32
    %437 = vector.broadcast %cst_107 : f32 to vector<16x128xf32>
    %438 = arith.addf %437, %436 : vector<16x128xf32>
    %439 = arith.divf %437, %438 : vector<16x128xf32>
    %440 = vector.extract_strided_slice %357 {offsets = [0, 128], sizes = [16, 128], strides = [1, 1]} : vector<16x256xf32> to vector<16x128xf32>
    %441 = arith.mulf %431, %440 : vector<16x128xf32>
    %442 = arith.mulf %425, %433 : vector<16x128xf32>
    %443 = arith.addf %441, %442 : vector<16x128xf32>
    %444 = math.tanh %443 : vector<16x128xf32>
    %445 = arith.mulf %439, %444 : vector<16x128xf32>
    %446 = vector.broadcast %413 : i32 to vector<16x1xi32>
    %447 = arith.cmpi slt, %446, %28 : vector<16x1xi32>
    %cst_108 = arith.constant 0.000000e+00 : f32
    %448 = vector.shape_cast %447 : vector<16x1xi1> to vector<16x1xi1>
    %449 = vector.broadcast %448 : vector<16x1xi1> to vector<16x128xi1>
    %450 = vector.broadcast %cst_108 : f32 to vector<16x128xf32>
    %451 = arith.select %449, %445, %450 : vector<16x128xi1>, vector<16x128xf32>
    %452 = arith.truncf %451 : vector<16x128xf32> to vector<16x128xbf16>
    %453 = arith.index_cast %411 : i32 to index
    %c0_109 = arith.constant 0 : index
    %c0_110 = arith.constant 0 : index
    %454 = vector.load %arg8[%453, %c0_109, %c0_110] : memref<4x16x128xbf16, #tpu.memory_space<vmem>>, vector<1x16x128xbf16>
    %455 = vector.shape_cast %454 : vector<1x16x128xbf16> to vector<16x128xbf16>
    %456 = vector.shape_cast %452 : vector<16x128xbf16> to vector<1x16x128xbf16>
    tpu.vector_store %arg8[%453, %c0_109, %c0_110], %456 {strides = array<i32>} : memref<4x16x128xbf16, #tpu.memory_space<vmem>>, vector<1x16x128xbf16>,
    %457 = vector.extract_strided_slice %356 {offsets = [0, 128], sizes = [16, 128], strides = [1, 1]} : vector<16x256xf32> to vector<16x128xf32>
    %458 = vector.shape_cast %447 : vector<16x1xi1> to vector<16x1xi1>
    %459 = vector.broadcast %458 : vector<16x1xi1> to vector<16x128xi1>
    %460 = arith.select %459, %445, %457 : vector<16x128xi1>, vector<16x128xf32>
    %461 = vector.shape_cast %447 : vector<16x1xi1> to vector<16x1xi1>
    %462 = vector.broadcast %461 : vector<16x1xi1> to vector<16x128xi1>
    %463 = arith.select %462, %443, %440 : vector<16x128xi1>, vector<16x128xf32>
    %464 = tpu.concatenate %407, %460 in 1 : vector<16x128xf32>, vector<16x128xf32> -> vector<16x256xf32>
    %465 = tpu.concatenate %410, %463 in 1 : vector<16x128xf32>, vector<16x128xf32> -> vector<16x256xf32>
    %c4_i32_111 = arith.constant 4 : i32
    %c0_112 = arith.constant 0 : index
    %c0_113 = arith.constant 0 : index
    %466 = vector.load %arg13[%c0_112, %c0_113] : memref<16x256xf32, #tpu.memory_space<vmem>>, vector<16x256xf32>
    tpu.vector_store %arg13[%c0_112, %c0_113], %464 {strides = array<i32>} : memref<16x256xf32, #tpu.memory_space<vmem>>, vector<16x256xf32>,
    %c0_114 = arith.constant 0 : index
    %c0_115 = arith.constant 0 : index
    %467 = vector.load %arg14[%c0_114, %c0_115] : memref<16x256xf32, #tpu.memory_space<vmem>>, vector<16x256xf32>
    tpu.vector_store %arg14[%c0_114, %c0_115], %465 {strides = array<i32>} : memref<16x256xf32, #tpu.memory_space<vmem>>, vector<16x256xf32>,
    %c1_i32_116 = arith.constant 1 : i32
    %468 = arith.cmpi eq, %arg0, %c1_i32_116 : i32
    %469 = arith.extui %468 : i1 to i32
    %c0_i32_117 = arith.constant 0 : i32
    %470 = arith.cmpi ne, %469, %c0_i32_117 : i32
    scf.if %470 {
      %c0_118 = arith.constant 0 : index
      %c0_119 = arith.constant 0 : index
      %471 = vector.load %arg9[%c0_118, %c0_119] : memref<16x256xf32, #tpu.memory_space<vmem>>, vector<16x256xf32>
      tpu.vector_store %arg9[%c0_118, %c0_119], %464 {strides = array<i32>} : memref<16x256xf32, #tpu.memory_space<vmem>>, vector<16x256xf32>,
      %c0_120 = arith.constant 0 : index
      %c0_121 = arith.constant 0 : index
      %472 = vector.load %arg10[%c0_120, %c0_121] : memref<16x256xf32, #tpu.memory_space<vmem>>, vector<16x256xf32>
      tpu.vector_store %arg10[%c0_120, %c0_121], %465 {strides = array<i32>} : memref<16x256xf32, #tpu.memory_space<vmem>>, vector<16x256xf32>,
    } else {
    }
    return
  }
  func.func @transform_0(%arg0: i32) -> (i32, i32, i32) {
    %c0_i32 = arith.constant 0 : i32
    %c0_i32_0 = arith.constant 0 : i32
    %c0_i32_1 = arith.constant 0 : i32
    return %arg0, %c0_i32, %c0_i32_0 : i32, i32, i32
  }
  func.func @transform_1(%arg0: i32) -> (i32, i32, i32) {
    %c1_i32 = arith.constant 1 : i32
    %0 = arith.subi %c1_i32, %arg0 : i32
    %c0_i32 = arith.constant 0 : i32
    %c0_i32_0 = arith.constant 0 : i32
    %c0_i32_1 = arith.constant 0 : i32
    return %0, %c0_i32, %c0_i32_0 : i32, i32, i32
  }
  func.func @transform_2(%arg0: i32) -> (i32, i32, i32) {
    %c0_i32 = arith.constant 0 : i32
    %c0_i32_0 = arith.constant 0 : i32
    %c0_i32_1 = arith.constant 0 : i32
    %c0_i32_2 = arith.constant 0 : i32
    return %c0_i32, %c0_i32_0, %c0_i32_1 : i32, i32, i32
  }
  func.func @transform_3(%arg0: i32) -> (i32, i32) {
    %c0_i32 = arith.constant 0 : i32
    %c0_i32_0 = arith.constant 0 : i32
    %c0_i32_1 = arith.constant 0 : i32
    return %c0_i32, %c0_i32_0 : i32, i32
  }
  func.func @transform_4(%arg0: i32) -> (i32, i32, i32) {
    %c0_i32 = arith.constant 0 : i32
    %c0_i32_0 = arith.constant 0 : i32
    %c0_i32_1 = arith.constant 0 : i32
    %c0_i32_2 = arith.constant 0 : i32
    return %c0_i32, %c0_i32_0, %c0_i32_1 : i32, i32, i32
  }
  func.func @transform_5(%arg0: i32) -> (i32, i32) {
    %c0_i32 = arith.constant 0 : i32
    %c0_i32_0 = arith.constant 0 : i32
    %c0_i32_1 = arith.constant 0 : i32
    return %c0_i32, %c0_i32_0 : i32, i32
  }
  func.func @transform_6(%arg0: i32) -> (i32, i32, i32) {
    %c0_i32 = arith.constant 0 : i32
    %c0_i32_0 = arith.constant 0 : i32
    %c0_i32_1 = arith.constant 0 : i32
    return %arg0, %c0_i32, %c0_i32_0 : i32, i32, i32
  }
  func.func @transform_7(%arg0: i32) -> (i32, i32, i32) {
    %c1_i32 = arith.constant 1 : i32
    %0 = arith.subi %c1_i32, %arg0 : i32
    %c0_i32 = arith.constant 0 : i32
    %c0_i32_0 = arith.constant 0 : i32
    %c0_i32_1 = arith.constant 0 : i32
    return %0, %c0_i32, %c0_i32_0 : i32, i32, i32
  }
  func.func @transform_8(%arg0: i32) -> (i32, i32) {
    %c0_i32 = arith.constant 0 : i32
    %c0_i32_0 = arith.constant 0 : i32
    %c0_i32_1 = arith.constant 0 : i32
    return %c0_i32, %c0_i32_0 : i32, i32
  }
  func.func @transform_9(%arg0: i32) -> (i32, i32) {
    %c0_i32 = arith.constant 0 : i32
    %c0_i32_0 = arith.constant 0 : i32
    %c0_i32_1 = arith.constant 0 : i32
    return %c0_i32, %c0_i32_0 : i32, i32
  }
}

module attributes {stable_mosaic.version = 11 : i64} {
  func.func @_linear_kernel(%arg0: i32, %arg1: i32, %arg2: memref<256x256xbf16, #tpu.memory_space<vmem>>, %arg3: memref<256x128xbf16, #tpu.memory_space<vmem>>, %arg4: memref<1x128xf32, #tpu.memory_space<vmem>>, %arg5: memref<256x128xf32, #tpu.memory_space<vmem>>) attributes {dimension_semantics = [#tpu.dimension_semantics<parallel>, #tpu.dimension_semantics<parallel>], iteration_bounds = array<i64: 1, 1>, scalar_prefetch = 0 : i64, scratch_operands = 0 : i64, tpu.core_type = #tpu.core_type<tc>, window_params = [{transform_indices = @transform_0, window_bounds = array<i64: 256, 256>}, {transform_indices = @transform_1, window_bounds = array<i64: 256, 128>}, {transform_indices = @transform_2, window_bounds = array<i64: 1, 128>}, {transform_indices = @transform_3, window_bounds = array<i64: 256, 128>}]} {
    %c0 = arith.constant 0 : index
    %c0_0 = arith.constant 0 : index
    %0 = vector.load %arg2[%c0, %c0_0] : memref<256x256xbf16, #tpu.memory_space<vmem>>, vector<256x256xbf16>
    %c0_1 = arith.constant 0 : index
    %c0_2 = arith.constant 0 : index
    %1 = vector.load %arg3[%c0_1, %c0_2] : memref<256x128xbf16, #tpu.memory_space<vmem>>, vector<256x128xbf16>
    %cst = arith.constant dense<0.000000e+00> : vector<256x128xf32>
    %2 = tpu.matmul %0, %1, %cst {dimension_numbers = #tpu.dot_dimension_numbers<[1], [0], [0], [1], [0, 0, 1, 1], [], []>} : vector<256x256xbf16>, vector<256x128xbf16>, vector<256x128xf32> -> vector<256x128xf32>
    %c0_3 = arith.constant 0 : index
    %c0_4 = arith.constant 0 : index
    %3 = vector.load %arg4[%c0_3, %c0_4] : memref<1x128xf32, #tpu.memory_space<vmem>>, vector<1x128xf32>
    %4 = vector.broadcast %3 : vector<1x128xf32> to vector<256x128xf32>
    %5 = arith.addf %2, %4 : vector<256x128xf32>
    %c0_5 = arith.constant 0 : index
    %c0_6 = arith.constant 0 : index
    %6 = vector.load %arg5[%c0_5, %c0_6] : memref<256x128xf32, #tpu.memory_space<vmem>>, vector<256x128xf32>
    tpu.vector_store %arg5[%c0_5, %c0_6], %5 {strides = array<i32>} : memref<256x128xf32, #tpu.memory_space<vmem>>, vector<256x128xf32>,
    return
  }
  func.func @transform_0(%arg0: i32, %arg1: i32) -> (i32, i32) {
    %c0_i32 = arith.constant 0 : i32
    %c0_i32_0 = arith.constant 0 : i32
    return %arg0, %c0_i32 : i32, i32
  }
  func.func @transform_1(%arg0: i32, %arg1: i32) -> (i32, i32) {
    %c0_i32 = arith.constant 0 : i32
    %c0_i32_0 = arith.constant 0 : i32
    return %c0_i32, %arg1 : i32, i32
  }
  func.func @transform_2(%arg0: i32, %arg1: i32) -> (i32, i32) {
    %c0_i32 = arith.constant 0 : i32
    %c0_i32_0 = arith.constant 0 : i32
    return %c0_i32, %arg1 : i32, i32
  }
  func.func @transform_3(%arg0: i32, %arg1: i32) -> (i32, i32) {
    %c0_i32 = arith.constant 0 : i32
    return %arg0, %arg1 : i32, i32
  }
}

</mosaic_0001>

<llo_original>
// kernel: neg.1
$region0: #{neg.1}
  #allocation0 [shape = 's32[1]{0}', space=sflag, size = 0x4, scoped, tag = 'scoped memory for neg.1']
  %s0 = inlined_call_operand.vmem [shape: s32[2], index: 0, kind: input, shape index: {}]
  %s1 = inlined_call_operand.vmem [shape: s32[2], index: 1, kind: output, shape index: {}]
  %v2 = vld [vmem:[%s0] sm:$0x1]
  %3 = xla_tuple %v2
  %4 = xla_tuple %3
  %v5 = vsub.s32 0, %v2
  %6 = xla_tuple %v5
  %7 = vst [vmem:[%s1] sm:$0x1] %v5

// kernel: encoder_forward.5
$region0: #{encoder_forward.5}
  #allocation0 [shape = 'u32[]', space=smem, size = 0x4, offset = 0x4, fixed_abs, tag = 'smem constant byte address 0x4 - core index']
  #allocation1 [shape = 'u32[144,128]{1,0:T(1,128)}', space=vmem, size = 0x12000, scoped, tag = 'internal scratch']
  %s0 = inlined_call_operand.hbm [shape: bf16[256,256], index: 0, kind: input, shape index: {}]
  %s1 = inlined_call_operand.hbm [shape: bf16[256,128], index: 1, kind: input, shape index: {}]
  %s2 = inlined_call_operand.hbm [shape: f32[1,128], index: 2, kind: input, shape index: {}]
  %s3 = inlined_call_operand.hbm [shape: f32[256,128], index: 3, kind: output, shape index: {}]
  %s4 = sld [smem:[#allocation0]]
  $region34: #{encoder_forward.5} parent=0
    _
  %s6 = ssub.s32 1, %s4
  %s7 = scalar_select 0, %s6, %s4
  $region1: #{encoder_forward.5} parent=0
    #allocation2 [shape = 'u8[131072]{0}', space=vmem, size = 0x20000, scoped, tag = 'input window, operand 0, single buffered']
    #allocation3 [shape = 's32[1]{0}', space=sflag, size = 0x4, scoped, tag = 'scoped memory for encoder_forward.5']
    #allocation4 [shape = 's32[1]{0}', space=sflag, size = 0x4, scoped, tag = 'scoped memory for encoder_forward.5']
    #allocation5 [shape = 'u8[65536]{0}', space=vmem, size = 0x10000, scoped, tag = 'input window, operand 1, single buffered']
    #allocation6 [shape = 's32[1]{0}', space=sflag, size = 0x4, scoped, tag = 'scoped memory for encoder_forward.5']
    #allocation7 [shape = 'u8[512]{0}', space=vmem, size = 0x400, scoped, tag = 'input window, operand 2, single buffered']
    #allocation8 [shape = 'u8[131072]{0}', space=vmem, size = 0x20000, scoped, tag = 'output window, operand 0, single buffered']
    %8 = vsyncpa [#allocation3], 0
    %9 = vsyncpa [#allocation6], 0
    %10 = vsyncpa [#allocation4], 0
    // Predicated region
    $region2: #{encoder_forward.5} parent=1 // pred_check
      _
    $region3: #{encoder_forward.5} parent=1 // pred_check_branch
      %12 = sbr.rel (0) target = $region5
    $region4: #{encoder_forward.5} parent=1 // pred_region
      %s14 = ssub.s32 4096, 4096
      %15 = vsyncadd [#allocation3], %s14
      %s16 = sshll.u32 [#allocation2], 4
      %s17 = int_to_ptr.vmem [resolvable:$true] %s16
      %22 = dma.hbm_to_vmem [thread:$0]  %s0, 4096, %s17, [#allocation3], 128, 128, 8
    $region5: #{encoder_forward.5} parent=1 // pred_fallthru
      _
    // Predicated region
    $region6: #{encoder_forward.5} parent=1 // pred_check
      _
    $region7: #{encoder_forward.5} parent=1 // pred_check_branch
      %24 = sbr.rel (0) target = $region9
    $region8: #{encoder_forward.5} parent=1 // pred_region
      %s26 = ssub.s32 2048, 2048
      %27 = vsyncadd [#allocation6], %s26
      %s28 = sshll.u32 [#allocation5], 4
      %s29 = int_to_ptr.vmem [resolvable:$true] %s28
      %34 = dma.hbm_to_vmem [thread:$0]  %s1, 2048, %s29, [#allocation6], 64, 64, 4
    $region9: #{encoder_forward.5} parent=1 // pred_fallthru
      _
    // Predicated region
    $region10: #{encoder_forward.5} parent=1 // pred_check
      _
    $region11: #{encoder_forward.5} parent=1 // pred_check_branch
      %36 = sbr.rel (0) target = $region13
    $region12: #{encoder_forward.5} parent=1 // pred_region
      %s38 = ssub.s32 16, 16
      %39 = vsyncadd [#allocation6], %s38
      %s41 = sshll.u32 [#allocation7], 4
      %s42 = int_to_ptr.vmem [resolvable:$true] %s41
      %44 = dma.hbm_to_vmem [thread:$0]  %s2, 16, %s42, [#allocation6]
    $region13: #{encoder_forward.5} parent=1 // pred_fallthru
      _
    // Predicated region
    $region14: #{encoder_forward.5} parent=1 // pred_check
      _
    $region15: #{encoder_forward.5} parent=1 // pred_check_branch
      %46 = sbr.rel (0) target = $region17
    $region16: #{encoder_forward.5} parent=1 // pred_region
      %47 = dma.done [#allocation3], 4096
    $region17: #{encoder_forward.5} parent=1 // pred_fallthru
      _
    // Predicated region
    $region18: #{encoder_forward.5} parent=1 // pred_check
      _
    $region19: #{encoder_forward.5} parent=1 // pred_check_branch
      %49 = sbr.rel (0) target = $region21
    $region20: #{encoder_forward.5} parent=1 // pred_region
      %50 = dma.done [#allocation6], 2048
    $region21: #{encoder_forward.5} parent=1 // pred_fallthru
      _
    // Predicated region
    $region22: #{encoder_forward.5} parent=1 // pred_check
      _
    $region23: #{encoder_forward.5} parent=1 // pred_check_branch
      %52 = sbr.rel (0) target = $region25
    $region24: #{encoder_forward.5} parent=1 // pred_region
      %53 = dma.done [#allocation6], 16
    $region25: #{encoder_forward.5} parent=1 // pred_fallthru
      _
    %v55 = vld [vmem:[#allocation2] sm:$0xff]
    %v56 = vld [vmem:[#allocation2 + $0x8] sm:$0xff]
    %v57 = vld [vmem:[#allocation2 + $0x10] sm:$0xff]
    %v58 = vld [vmem:[#allocation2 + $0x18] sm:$0xff]
    %v59 = vld [vmem:[#allocation2 + $0x20] sm:$0xff]
    %v60 = vld [vmem:[#allocation2 + $0x28] sm:$0xff]
    %v61 = vld [vmem:[#allocation2 + $0x30] sm:$0xff]
    %v62 = vld [vmem:[#allocation2 + $0x38] sm:$0xff]
    %v63 = vld [vmem:[#allocation2 + $0x40] sm:$0xff]
    %v64 = vld [vmem:[#allocation2 + $0x48] sm:$0xff]
    %v65 = vld [vmem:[#allocation2 + $0x50] sm:$0xff]
    %v66 = vld [vmem:[#allocation2 + $0x58] sm:$0xff]
    %v67 = vld [vmem:[#allocation2 + $0x60] sm:$0xff]
    %v68 = vld [vmem:[#allocation2 + $0x68] sm:$0xff]
    %v69 = vld [vmem:[#allocation2 + $0x70] sm:$0xff]
    %v70 = vld [vmem:[#allocation2 + $0x78] sm:$0xff]
    %v71 = vld [vmem:[#allocation2 + $0x80] sm:$0xff]
    %v72 = vld [vmem:[#allocation2 + $0x88] sm:$0xff]
    %v73 = vld [vmem:[#allocation2 + $0x90] sm:$0xff]
    %v74 = vld [vmem:[#allocation2 + $0x98] sm:$0xff]
    %v75 = vld [vmem:[#allocation2 + $0xa0] sm:$0xff]
    %v76 = vld [vmem:[#allocation2 + $0xa8] sm:$0xff]
    %v77 = vld [vmem:[#allocation2 + $0xb0] sm:$0xff]
    %v78 = vld [vmem:[#allocation2 + $0xb8] sm:$0xff]
    %v79 = vld [vmem:[#allocation2 + $0xc0] sm:$0xff]
    %v80 = vld [vmem:[#allocation2 + $0xc8] sm:$0xff]
    %v81 = vld [vmem:[#allocation2 + $0xd0] sm:$0xff]
    %v82 = vld [vmem:[#allocation2 + $0xd8] sm:$0xff]
    %v83 = vld [vmem:[#allocation2 + $0xe0] sm:$0xff]
    %v84 = vld [vmem:[#allocation2 + $0xe8] sm:$0xff]
    %v85 = vld [vmem:[#allocation2 + $0xf0] sm:$0xff]
    %v86 = vld [vmem:[#allocation2 + $0xf8] sm:$0xff]
    %v87 = vld [vmem:[#allocation5] sm:$0xf]
    %v88 = vld [vmem:[#allocation5 + $0x4] sm:$0xf]
    %v89 = vld [vmem:[#allocation5 + $0x8] sm:$0xf]
    %v90 = vld [vmem:[#allocation5 + $0xc] sm:$0xf]
    %v91 = vld [vmem:[#allocation5 + $0x10] sm:$0xf]
    %v92 = vld [vmem:[#allocation5 + $0x14] sm:$0xf]
    %v93 = vld [vmem:[#allocation5 + $0x18] sm:$0xf]
    %v94 = vld [vmem:[#allocation5 + $0x1c] sm:$0xf]
    %v95 = vld [vmem:[#allocation5 + $0x20] sm:$0xf]
    %v96 = vld [vmem:[#allocation5 + $0x24] sm:$0xf]
    %v97 = vld [vmem:[#allocation5 + $0x28] sm:$0xf]
    %v98 = vld [vmem:[#allocation5 + $0x2c] sm:$0xf]
    %v99 = vld [vmem:[#allocation5 + $0x30] sm:$0xf]
    %v100 = vld [vmem:[#allocation5 + $0x34] sm:$0xf]
    %v101 = vld [vmem:[#allocation5 + $0x38] sm:$0xf]
    %v102 = vld [vmem:[#allocation5 + $0x3c] sm:$0xf]
    %v103 = vld [vmem:[#allocation5 + $0x40] sm:$0xf]
    %v104 = vld [vmem:[#allocation5 + $0x44] sm:$0xf]
    %v105 = vld [vmem:[#allocation5 + $0x48] sm:$0xf]
    %v106 = vld [vmem:[#allocation5 + $0x4c] sm:$0xf]
    %v107 = vld [vmem:[#allocation5 + $0x50] sm:$0xf]
    %v108 = vld [vmem:[#allocation5 + $0x54] sm:$0xf]
    %v109 = vld [vmem:[#allocation5 + $0x58] sm:$0xf]
    %v110 = vld [vmem:[#allocation5 + $0x5c] sm:$0xf]
    %v111 = vld [vmem:[#allocation5 + $0x60] sm:$0xf]
    %v112 = vld [vmem:[#allocation5 + $0x64] sm:$0xf]
    %v113 = vld [vmem:[#allocation5 + $0x68] sm:$0xf]
    %v114 = vld [vmem:[#allocation5 + $0x6c] sm:$0xf]
    %v115 = vld [vmem:[#allocation5 + $0x70] sm:$0xf]
    %v116 = vld [vmem:[#allocation5 + $0x74] sm:$0xf]
    %v117 = vld [vmem:[#allocation5 + $0x78] sm:$0xf]
    %v118 = vld [vmem:[#allocation5 + $0x7c] sm:$0xf]
    %v119 = vld [vmem:[#allocation7] sm:$0x1]
    %v121 = vlaneseq
    %v122 = vshrl.u32 %v121, 7
    %v123 = vsub.s32 0, %v122
    %v124 = vrot.slane %v119, %v123
    %v158 = vunpack.c.l.b16 %v55
    %v159 = vunpack.c.h.b16 %v55
    %v160 = vunpack.c.l.b16 %v56
    %v161 = vunpack.c.h.b16 %v56
    %v162 = vunpack.c.l.b16 %v57
    %v163 = vunpack.c.h.b16 %v57
    %v164 = vunpack.c.l.b16 %v58
    %v165 = vunpack.c.h.b16 %v58
    %v166 = vunpack.c.l.b16 %v59
    %v167 = vunpack.c.h.b16 %v59
    %v168 = vunpack.c.l.b16 %v60
    %v169 = vunpack.c.h.b16 %v60
    %v170 = vunpack.c.l.b16 %v61
    %v171 = vunpack.c.h.b16 %v61
    %v172 = vunpack.c.l.b16 %v62
    %v173 = vunpack.c.h.b16 %v62
    %v174 = vunpack.c.l.b16 %v63
    %v175 = vunpack.c.h.b16 %v63
    %v176 = vunpack.c.l.b16 %v64
    %v177 = vunpack.c.h.b16 %v64
    %v178 = vunpack.c.l.b16 %v65
    %v179 = vunpack.c.h.b16 %v65
    %v180 = vunpack.c.l.b16 %v66
    %v181 = vunpack.c.h.b16 %v66
    %v182 = vunpack.c.l.b16 %v67
    %v183 = vunpack.c.h.b16 %v67
    %v184 = vunpack.c.l.b16 %v68
    %v185 = vunpack.c.h.b16 %v68
    %v186 = vunpack.c.l.b16 %v69
    %v187 = vunpack.c.h.b16 %v69
    %v188 = vunpack.c.l.b16 %v70
    %v189 = vunpack.c.h.b16 %v70
    %v190 = vunpack.c.l.b16 %v71
    %v191 = vunpack.c.h.b16 %v71
    %v192 = vunpack.c.l.b16 %v72
    %v193 = vunpack.c.h.b16 %v72
    %v194 = vunpack.c.l.b16 %v73
    %v195 = vunpack.c.h.b16 %v73
    %v196 = vunpack.c.l.b16 %v74
    %v197 = vunpack.c.h.b16 %v74
    %v198 = vunpack.c.l.b16 %v75
    %v199 = vunpack.c.h.b16 %v75
    %v200 = vunpack.c.l.b16 %v76
    %v201 = vunpack.c.h.b16 %v76
    %v202 = vunpack.c.l.b16 %v77
    %v203 = vunpack.c.h.b16 %v77
    %v204 = vunpack.c.l.b16 %v78
    %v205 = vunpack.c.h.b16 %v78
    %v206 = vunpack.c.l.b16 %v79
    %v207 = vunpack.c.h.b16 %v79
    %v208 = vunpack.c.l.b16 %v80
    %v209 = vunpack.c.h.b16 %v80
    %v210 = vunpack.c.l.b16 %v81
    %v211 = vunpack.c.h.b16 %v81
    %v212 = vunpack.c.l.b16 %v82
    %v213 = vunpack.c.h.b16 %v82
    %v214 = vunpack.c.l.b16 %v83
    %v215 = vunpack.c.h.b16 %v83
    %v216 = vunpack.c.l.b16 %v84
    %v217 = vunpack.c.h.b16 %v84
    %v218 = vunpack.c.l.b16 %v85
    %v219 = vunpack.c.h.b16 %v85
    %v220 = vunpack.c.l.b16 %v86
    %v221 = vunpack.c.h.b16 %v86
    %v222 = vpack.c.b16 %v160, %v158
    %v223 = vpack.c.b16 %v161, %v159
    %v224 = vpack.c.b16 %v164, %v162
    %v225 = vpack.c.b16 %v165, %v163
    %v226 = vpack.c.b16 %v168, %v166
    %v227 = vpack.c.b16 %v169, %v167
    %v228 = vpack.c.b16 %v172, %v170
    %v229 = vpack.c.b16 %v173, %v171
    %v230 = vpack.c.b16 %v176, %v174
    %v231 = vpack.c.b16 %v177, %v175
    %v232 = vpack.c.b16 %v180, %v178
    %v233 = vpack.c.b16 %v181, %v179
    %v234 = vpack.c.b16 %v184, %v182
    %v235 = vpack.c.b16 %v185, %v183
    %v236 = vpack.c.b16 %v188, %v186
    %v237 = vpack.c.b16 %v189, %v187
    %v238 = vpack.c.b16 %v192, %v190
    %v239 = vpack.c.b16 %v193, %v191
    %v240 = vpack.c.b16 %v196, %v194
    %v241 = vpack.c.b16 %v197, %v195
    %v242 = vpack.c.b16 %v200, %v198
    %v243 = vpack.c.b16 %v201, %v199
    %v244 = vpack.c.b16 %v204, %v202
    %v245 = vpack.c.b16 %v205, %v203
    %v246 = vpack.c.b16 %v208, %v206
    %v247 = vpack.c.b16 %v209, %v207
    %v248 = vpack.c.b16 %v212, %v210
    %v249 = vpack.c.b16 %v213, %v211
    %v250 = vpack.c.b16 %v216, %v214
    %v251 = vpack.c.b16 %v217, %v215
    %v252 = vpack.c.b16 %v220, %v218
    %v253 = vpack.c.b16 %v221, %v219
    %v318 = vunpack.c.l.b16 %v87
    %v319 = vunpack.c.l.b16 %v88
    %v320 = vunpack.c.l.b16 %v89
    %v321 = vunpack.c.l.b16 %v90
    %v322 = vunpack.c.l.b16 %v91
    %v323 = vunpack.c.l.b16 %v92
    %v324 = vunpack.c.l.b16 %v93
    %v325 = vunpack.c.l.b16 %v94
    %v326 = vunpack.c.l.b16 %v95
    %v327 = vunpack.c.l.b16 %v96
    %v328 = vunpack.c.l.b16 %v97
    %v329 = vunpack.c.l.b16 %v98
    %v330 = vunpack.c.l.b16 %v99
    %v331 = vunpack.c.l.b16 %v100
    %v332 = vunpack.c.l.b16 %v101
    %v333 = vunpack.c.l.b16 %v102
    %v334 = vunpack.c.l.b16 %v103
    %v335 = vunpack.c.l.b16 %v104
    %v336 = vunpack.c.l.b16 %v105
    %v337 = vunpack.c.l.b16 %v106
    %v338 = vunpack.c.l.b16 %v107
    %v339 = vunpack.c.l.b16 %v108
    %v340 = vunpack.c.l.b16 %v109
    %v341 = vunpack.c.l.b16 %v110
    %v342 = vunpack.c.l.b16 %v111
    %v343 = vunpack.c.l.b16 %v112
    %v344 = vunpack.c.l.b16 %v113
    %v345 = vunpack.c.l.b16 %v114
    %v346 = vunpack.c.l.b16 %v115
    %v347 = vunpack.c.l.b16 %v116
    %v348 = vunpack.c.l.b16 %v117
    %v349 = vunpack.c.l.b16 %v118
    %v350 = vpack.c.b16 %v319, %v318
    %v351 = vpack.c.b16 %v321, %v320
    %v352 = vpack.c.b16 %v323, %v322
    %v353 = vpack.c.b16 %v325, %v324
    %v354 = vpack.c.b16 %v327, %v326
    %v355 = vpack.c.b16 %v329, %v328
    %v356 = vpack.c.b16 %v331, %v330
    %v357 = vpack.c.b16 %v333, %v332
    %v358 = vpack.c.b16 %v335, %v334
    %v359 = vpack.c.b16 %v337, %v336
    %v360 = vpack.c.b16 %v339, %v338
    %v361 = vpack.c.b16 %v341, %v340
    %v362 = vpack.c.b16 %v343, %v342
    %v363 = vpack.c.b16 %v345, %v344
    %v364 = vpack.c.b16 %v347, %v346
    %v365 = vpack.c.b16 %v349, %v348
    %382 = vmatprep.subr.bf16.mxu0 0
    %383 = vmatpush1.bf16.msra.mxu0 %v350
    %384 = vmatprep.subr.bf16.mxu0 0
    %385 = vmatpush1.bf16.msra.mxu0 %v351
    %386 = vmatprep.subr.bf16.mxu0 0
    %387 = vmatpush1.bf16.msra.mxu0 %v352
    %388 = vmatprep.subr.bf16.mxu0 0
    %389 = vmatpush1.bf16.msra.mxu0 %v353
    %390 = vmatprep.subr.bf16.mxu0 0
    %391 = vmatpush1.bf16.msra.mxu0 %v354
    %392 = vmatprep.subr.bf16.mxu0 0
    %393 = vmatpush1.bf16.msra.mxu0 %v355
    %394 = vmatprep.subr.bf16.mxu0 0
    %395 = vmatpush1.bf16.msra.mxu0 %v356
    %396 = vmatprep.subr.bf16.mxu0 0
    %397 = vmatpush1.bf16.msra.mxu0 %v357
    %398 = vmatprep.subr.bf16.mxu0 0
    %399 = vmatpush1.bf16.msra.mxu0 %v358
    %400 = vmatprep.subr.bf16.mxu0 0
    %401 = vmatpush1.bf16.msra.mxu0 %v359
    %402 = vmatprep.subr.bf16.mxu0 0
    %403 = vmatpush1.bf16.msra.mxu0 %v360
    %404 = vmatprep.subr.bf16.mxu0 0
    %405 = vmatpush1.bf16.msra.mxu0 %v361
    %406 = vmatprep.subr.bf16.mxu0 0
    %407 = vmatpush1.bf16.msra.mxu0 %v362
    %408 = vmatprep.subr.bf16.mxu0 0
    %409 = vmatpush1.bf16.msra.mxu0 %v363
    %410 = vmatprep.subr.bf16.mxu0 0
    %411 = vmatpush1.bf16.msra.mxu0 %v364
    %412 = vmatprep.subr.bf16.mxu0 0
    %413 = vmatpush1.bf16.msra.mxu0 %v365
    %414 = vmatprep.mubr.bf16.mxu0 %v223
    %415 = vmatmul.mubr.bf16.gmra.mrb[0].mxu0 %v222
    %v416 = vpop.f32.mrb[0].mxu0
    %v417 = vadd.f32 %v124, %v416
    %v418 = vpop.f32.mrb[0].mxu0
    %v419 = vpop.f32.mrb[0].mxu0
    %v420 = vadd.f32 %v124, %v419
    %v421 = vpop.f32.mrb[0].mxu0
    %422 = vmatprep.mubr.bf16.mxu0 %v225
    %423 = vmatmul.mubr.bf16.gmra.mrb[0].mxu0 %v224
    %v424 = vpop.f32.mrb[0].mxu0
    %v425 = vadd.f32 %v124, %v424
    %v426 = vpop.f32.mrb[0].mxu0
    %v427 = vpop.f32.mrb[0].mxu0
    %v428 = vadd.f32 %v124, %v427
    %v429 = vpop.f32.mrb[0].mxu0
    %430 = vmatprep.mubr.bf16.mxu0 %v227
    %431 = vmatmul.mubr.bf16.gmra.mrb[0].mxu0 %v226
    %v432 = vpop.f32.mrb[0].mxu0
    %v433 = vadd.f32 %v124, %v432
    %v434 = vpop.f32.mrb[0].mxu0
    %v435 = vpop.f32.mrb[0].mxu0
    %v436 = vadd.f32 %v124, %v435
    %v437 = vpop.f32.mrb[0].mxu0
    %438 = vmatprep.mubr.bf16.mxu0 %v229
    %439 = vmatmul.mubr.bf16.gmra.mrb[0].mxu0 %v228
    %v440 = vpop.f32.mrb[0].mxu0
    %v441 = vadd.f32 %v124, %v440
    %v442 = vpop.f32.mrb[0].mxu0
    %v443 = vpop.f32.mrb[0].mxu0
    %v444 = vadd.f32 %v124, %v443
    %v445 = vpop.f32.mrb[0].mxu0
    %446 = vmatprep.mubr.bf16.mxu0 %v231
    %447 = vmatmul.mubr.bf16.gmra.mrb[0].mxu0 %v230
    %v448 = vpop.f32.mrb[0].mxu0
    %v449 = vadd.f32 %v124, %v448
    %v450 = vpop.f32.mrb[0].mxu0
    %v451 = vpop.f32.mrb[0].mxu0
    %v452 = vadd.f32 %v124, %v451
    %v453 = vpop.f32.mrb[0].mxu0
    %454 = vmatprep.mubr.bf16.mxu0 %v233
    %455 = vmatmul.mubr.bf16.gmra.mrb[0].mxu0 %v232
    %v456 = vpop.f32.mrb[0].mxu0
    %v457 = vadd.f32 %v124, %v456
    %v458 = vpop.f32.mrb[0].mxu0
    %v459 = vpop.f32.mrb[0].mxu0
    %v460 = vadd.f32 %v124, %v459
    %v461 = vpop.f32.mrb[0].mxu0
    %462 = vmatprep.mubr.bf16.mxu0 %v235
    %463 = vmatmul.mubr.bf16.gmra.mrb[0].mxu0 %v234
    %v464 = vpop.f32.mrb[0].mxu0
    %v465 = vadd.f32 %v124, %v464
    %v466 = vpop.f32.mrb[0].mxu0
    %v467 = vpop.f32.mrb[0].mxu0
    %v468 = vadd.f32 %v124, %v467
    %v469 = vpop.f32.mrb[0].mxu0
    %470 = vmatprep.mubr.bf16.mxu0 %v237
    %471 = vmatmul.mubr.bf16.gmra.mrb[0].mxu0 %v236
    %v472 = vpop.f32.mrb[0].mxu0
    %v473 = vadd.f32 %v124, %v472
    %v474 = vpop.f32.mrb[0].mxu0
    %v475 = vpop.f32.mrb[0].mxu0
    %v476 = vadd.f32 %v124, %v475
    %v477 = vpop.f32.mrb[0].mxu0
    %478 = vmatprep.mubr.bf16.mxu0 %v239
    %479 = vmatmul.mubr.bf16.gmra.mrb[0].mxu0 %v238
    %v480 = vpop.f32.mrb[0].mxu0
    %v481 = vadd.f32 %v124, %v480
    %v482 = vpop.f32.mrb[0].mxu0
    %v483 = vpop.f32.mrb[0].mxu0
    %v484 = vadd.f32 %v124, %v483
    %v485 = vpop.f32.mrb[0].mxu0
    %486 = vmatprep.mubr.bf16.mxu0 %v241
    %487 = vmatmul.mubr.bf16.gmra.mrb[0].mxu0 %v240
    %v488 = vpop.f32.mrb[0].mxu0
    %v489 = vadd.f32 %v124, %v488
    %v490 = vpop.f32.mrb[0].mxu0
    %v491 = vpop.f32.mrb[0].mxu0
    %v492 = vadd.f32 %v124, %v491
    %v493 = vpop.f32.mrb[0].mxu0
    %494 = vmatprep.mubr.bf16.mxu0 %v243
    %495 = vmatmul.mubr.bf16.gmra.mrb[0].mxu0 %v242
    %v496 = vpop.f32.mrb[0].mxu0
    %v497 = vadd.f32 %v124, %v496
    %v498 = vpop.f32.mrb[0].mxu0
    %v499 = vpop.f32.mrb[0].mxu0
    %v500 = vadd.f32 %v124, %v499
    %v501 = vpop.f32.mrb[0].mxu0
    %502 = vmatprep.mubr.bf16.mxu0 %v245
    %503 = vmatmul.mubr.bf16.gmra.mrb[0].mxu0 %v244
    %v504 = vpop.f32.mrb[0].mxu0
    %v505 = vadd.f32 %v124, %v504
    %v506 = vpop.f32.mrb[0].mxu0
    %v507 = vpop.f32.mrb[0].mxu0
    %v508 = vadd.f32 %v124, %v507
    %v509 = vpop.f32.mrb[0].mxu0
    %510 = vmatprep.mubr.bf16.mxu0 %v247
    %511 = vmatmul.mubr.bf16.gmra.mrb[0].mxu0 %v246
    %v512 = vpop.f32.mrb[0].mxu0
    %v513 = vadd.f32 %v124, %v512
    %v514 = vpop.f32.mrb[0].mxu0
    %v515 = vpop.f32.mrb[0].mxu0
    %v516 = vadd.f32 %v124, %v515
    %v517 = vpop.f32.mrb[0].mxu0
    %518 = vmatprep.mubr.bf16.mxu0 %v249
    %519 = vmatmul.mubr.bf16.gmra.mrb[0].mxu0 %v248
    %v520 = vpop.f32.mrb[0].mxu0
    %v521 = vadd.f32 %v124, %v520
    %v522 = vpop.f32.mrb[0].mxu0
    %v523 = vpop.f32.mrb[0].mxu0
    %v524 = vadd.f32 %v124, %v523
    %v525 = vpop.f32.mrb[0].mxu0
    %526 = vmatprep.mubr.bf16.mxu0 %v251
    %527 = vmatmul.mubr.bf16.gmra.mrb[0].mxu0 %v250
    %v528 = vpop.f32.mrb[0].mxu0
    %v529 = vadd.f32 %v124, %v528
    %v530 = vpop.f32.mrb[0].mxu0
    %v531 = vpop.f32.mrb[0].mxu0
    %v532 = vadd.f32 %v124, %v531
    %v533 = vpop.f32.mrb[0].mxu0
    %534 = vmatprep.mubr.bf16.mxu0 %v253
    %535 = vmatmul.mubr.bf16.gmra.mrb[0].mxu0 %v252
    %v536 = vpop.f32.mrb[0].mxu0
    %v537 = vadd.f32 %v124, %v536
    %v538 = vpop.f32.mrb[0].mxu0
    %v539 = vpop.f32.mrb[0].mxu0
    %v540 = vadd.f32 %v124, %v539
    %v541 = vpop.f32.mrb[0].mxu0
    %542 = vdwg.mxu0
    %543 = vst [vmem:[#allocation8] sm:$0xff] %v417
    %544 = vst [vmem:[#allocation8 + $0x8] sm:$0xff] %v420
    %545 = vst [vmem:[#allocation8 + $0x10] sm:$0xff] %v425
    %546 = vst [vmem:[#allocation8 + $0x18] sm:$0xff] %v428
    %547 = vst [vmem:[#allocation8 + $0x20] sm:$0xff] %v433
    %548 = vst [vmem:[#allocation8 + $0x28] sm:$0xff] %v436
    %549 = vst [vmem:[#allocation8 + $0x30] sm:$0xff] %v441
    %550 = vst [vmem:[#allocation8 + $0x38] sm:$0xff] %v444
    %551 = vst [vmem:[#allocation8 + $0x40] sm:$0xff] %v449
    %552 = vst [vmem:[#allocation8 + $0x48] sm:$0xff] %v452
    %553 = vst [vmem:[#allocation8 + $0x50] sm:$0xff] %v457
    %554 = vst [vmem:[#allocation8 + $0x58] sm:$0xff] %v460
    %555 = vst [vmem:[#allocation8 + $0x60] sm:$0xff] %v465
    %556 = vst [vmem:[#allocation8 + $0x68] sm:$0xff] %v468
    %557 = vst [vmem:[#allocation8 + $0x70] sm:$0xff] %v473
    %558 = vst [vmem:[#allocation8 + $0x78] sm:$0xff] %v476
    %559 = vst [vmem:[#allocation8 + $0x80] sm:$0xff] %v481
    %560 = vst [vmem:[#allocation8 + $0x88] sm:$0xff] %v484
    %561 = vst [vmem:[#allocation8 + $0x90] sm:$0xff] %v489
    %562 = vst [vmem:[#allocation8 + $0x98] sm:$0xff] %v492
    %563 = vst [vmem:[#allocation8 + $0xa0] sm:$0xff] %v497
    %564 = vst [vmem:[#allocation8 + $0xa8] sm:$0xff] %v500
    %565 = vst [vmem:[#allocation8 + $0xb0] sm:$0xff] %v505
    %566 = vst [vmem:[#allocation8 + $0xb8] sm:$0xff] %v508
    %567 = vst [vmem:[#allocation8 + $0xc0] sm:$0xff] %v513
    %568 = vst [vmem:[#allocation8 + $0xc8] sm:$0xff] %v516
    %569 = vst [vmem:[#allocation8 + $0xd0] sm:$0xff] %v521
    %570 = vst [vmem:[#allocation8 + $0xd8] sm:$0xff] %v524
    %571 = vst [vmem:[#allocation8 + $0xe0] sm:$0xff] %v529
    %572 = vst [vmem:[#allocation8 + $0xe8] sm:$0xff] %v532
    %573 = vst [vmem:[#allocation8 + $0xf0] sm:$0xff] %v537
    %574 = vst [vmem:[#allocation8 + $0xf8] sm:$0xff] %v540
    // Predicated region
    $region26: #{encoder_forward.5} parent=1 // pred_check
      _
    $region27: #{encoder_forward.5} parent=1 // pred_check_branch
      %576 = sbr.rel (0) target = $region29
    $region28: #{encoder_forward.5} parent=1 // pred_region
      %s578 = ssub.s32 4096, 4096
      %579 = vsyncadd [#allocation4], %s578
      %s580 = sshll.u32 [#allocation8], 4
      %s581 = int_to_ptr.vmem [resolvable:$true] %s580
      %586 = dma.vmem_to_hbm [thread:$0]  %s581, 4096, %s3, [#allocation4], 128, 128, 8
    $region29: #{encoder_forward.5} parent=1 // pred_fallthru
      _
    // Predicated region
    $region30: #{encoder_forward.5} parent=1 // pred_check
      _
    $region31: #{encoder_forward.5} parent=1 // pred_check_branch
      %588 = sbr.rel (0) target = $region33
    $region32: #{encoder_forward.5} parent=1 // pred_region
      %589 = dma.done [#allocation4], 4096
    $region33: #{encoder_forward.5} parent=1 // pred_fallthru
      _
    %590 = vsyncpa [#allocation3], 1
    %591 = vsyncpa [#allocation6], 1
    %592 = vsyncpa [#allocation4], 1

// kernel: encoder_forward.3
$region0: #{encoder_forward.3}
  #allocation0 [shape = 'u32[]', space=smem, size = 0x4, offset = 0x4, fixed_abs, tag = 'smem constant byte address 0x4 - core index']
  #allocation1 [shape = 'u32[144,128]{1,0:T(1,128)}', space=vmem, size = 0x12000, scoped, tag = 'internal scratch']
  #allocation2 [shape = 'bf16[4,16,512]{2,1,0:T(16,128)(2,1)}', space=vmem, size = 0x10000, scoped, tag = 'scratch operand']
  #allocation3 [shape = 'bf16[4,16,512]{2,1,0:T(16,128)(2,1)}', space=vmem, size = 0x10000, scoped, tag = 'scratch operand']
  #allocation4 [shape = 'f32[16,256]{1,0:T(8,128)}', space=vmem, size = 0x4000, scoped, tag = 'scratch operand']
  #allocation5 [shape = 'f32[16,256]{1,0:T(8,128)}', space=vmem, size = 0x4000, scoped, tag = 'scratch operand']
  %s0 = inlined_call_operand.hbm [shape: bf16[8,16,128], index: 0, kind: input, shape index: {}, may-alias: {0,1}]
  %s1 = inlined_call_operand.hbm [shape: bf16[8,16,128], index: 1, kind: input, shape index: {}, may-alias: {0,1}]
  %s2 = inlined_call_operand.hbm [shape: bf16[2,128,512], index: 2, kind: input, shape index: {}]
  %s3 = inlined_call_operand.hbm [shape: bf16[256,1024], index: 3, kind: input, shape index: {}]
  %s4 = inlined_call_operand.hbm [shape: f32[2,1,512], index: 4, kind: input, shape index: {}]
  %s5 = inlined_call_operand.hbm [shape: s32[16,1], index: 5, kind: input, shape index: {}]
  %s6 = inlined_call_operand.hbm [shape: bf16[8,16,128], index: 6, kind: output, shape index: {0}]
  %s7 = inlined_call_operand.hbm [shape: bf16[8,16,128], index: 7, kind: output, shape index: {1}]
  %s8 = inlined_call_operand.hbm [shape: f32[16,256], index: 8, kind: output, shape index: {2}]
  %s9 = inlined_call_operand.hbm [shape: f32[16,256], index: 9, kind: output, shape index: {3}]
  %10 = xla_tuple %s6, %s7, %s8, %s9
  %s11 = sld [smem:[#allocation0]]
  $region113: #{encoder_forward.3} parent=0
    _
  %s13 = ssub.s32 1, %s11
  %s14 = scalar_select 0, %s13, %s11
  $region1: #{encoder_forward.3} parent=0
    #allocation6 [shape = 'u8[32768]{0}', space=vmem, size = 0x8000, scoped, tag = 'input window, operand 0']
    #allocation7 [shape = 's32[2]{0}', space=sflag, size = 0x8, scoped, tag = 'scoped memory for encoder_forward.3']
    #allocation8 [shape = 's32[2]{0}', space=sflag, size = 0x8, scoped, tag = 'scoped memory for encoder_forward.3']
    #allocation9 [shape = 'u8[32768]{0}', space=vmem, size = 0x8000, scoped, tag = 'input window, operand 1']
    #allocation10 [shape = 's32[2]{0}', space=sflag, size = 0x8, scoped, tag = 'scoped memory for encoder_forward.3']
    #allocation11 [shape = 'u8[262144]{0}', space=vmem, size = 0x40000, scoped, tag = 'input window, operand 2, single buffered']
    #allocation12 [shape = 'u8[524288]{0}', space=vmem, size = 0x80000, scoped, tag = 'input window, operand 3, single buffered']
    #allocation13 [shape = 's32[1]{0}', space=sflag, size = 0x4, scoped, tag = 'scoped memory for encoder_forward.3']
    #allocation14 [shape = 'u8[4096]{0}', space=vmem, size = 0x1000, scoped, tag = 'input window, operand 4, single buffered']
    #allocation15 [shape = 'u8[8192]{0}', space=vmem, size = 0x2000, scoped, tag = 'input window, operand 5, single buffered']
    #allocation16 [shape = 's32[1]{0}', space=sflag, size = 0x4, scoped, tag = 'scoped memory for encoder_forward.3']
    #allocation17 [shape = 'u8[32768]{0}', space=vmem, size = 0x8000, scoped, tag = 'output window, operand 0']
    #allocation18 [shape = 'u8[32768]{0}', space=vmem, size = 0x8000, scoped, tag = 'output window, operand 1']
    #allocation19 [shape = 's32[2]{0}', space=sflag, size = 0x8, scoped, tag = 'scoped memory for encoder_forward.3']
    #allocation20 [shape = 'u8[16384]{0}', space=vmem, size = 0x4000, scoped, tag = 'output window, operand 2, single buffered']
    #allocation21 [shape = 'u8[16384]{0}', space=vmem, size = 0x4000, scoped, tag = 'output window, operand 3, single buffered']
    #allocation22 [shape = 's32[1]{0}', space=sflag, size = 0x4, scoped, tag = 'scoped memory for encoder_forward.3']
    %15 = vsyncpa [#allocation7], 0
    %s16 = scalar_lea.sflag [#allocation7], 1
    %17 = vsyncpa %s16, 0
    %18 = vsyncpa [#allocation10], 0
    %s19 = scalar_lea.sflag [#allocation10], 1
    %20 = vsyncpa %s19, 0
    %21 = vsyncpa [#allocation13], 0
    %22 = vsyncpa [#allocation16], 0
    %23 = vsyncpa [#allocation8], 0
    %s24 = scalar_lea.sflag [#allocation8], 1
    %25 = vsyncpa %s24, 0
    %26 = vsyncpa [#allocation19], 0
    %s27 = scalar_lea.sflag [#allocation19], 1
    %28 = vsyncpa %s27, 0
    %29 = vsyncpa [#allocation22], 0
    loop: start=0, step=1, limit=4
    $region2: #{encoder_forward.3} parent=1 // loop_pre_header
      _
    $region3: #{encoder_forward.3} parent=1 // loop_header
      %s31 = sphi 0, %s35
      %p32 = scmp.ge.s32.totalorder %s31, 4
      %s41 = sphi 0, %s43
      %s44 = sphi 0, %s41
      %s45 = sphi 0, %s44
      %s61 = sphi 0, %s45
      %s69 = sphi 0, %s71
      %s72 = sphi 0, %s69
      %s73 = sphi 0, %s72
      %s89 = sphi 0, %s73
      %s93 = sphi 0, %s93
      %s95 = sphi 0, %s93
      %s96 = sphi 0, %s95
      %s110 = sphi 0, %s96
      %s114 = sphi 0, %s114
      %s116 = sphi 0, %s114
      %s117 = sphi 0, %s116
      %s131 = sphi 0, %s117
      %s135 = sphi 0, %s135
      %s137 = sphi 0, %s135
      %s138 = sphi 0, %s137
      %s152 = sphi 0, %s138
      %s156 = sphi 0, %s156
      %s158 = sphi 0, %s156
      %s159 = sphi 0, %s158
      %s173 = sphi 0, %s159
      %s179 = sphi 0, %s181
      %s182 = sphi 0, %s179
      %s183 = sphi 0, %s182
      %s199 = sphi 0, %s183
      %s207 = sphi 0, %s209
      %s210 = sphi 0, %s207
      %s211 = sphi 0, %s210
      %s227 = sphi 0, %s211
      %s231 = sphi 0, %s231
      %s233 = sphi 0, %s231
      %s234 = sphi 0, %s233
      %s248 = sphi 0, %s234
      %s252 = sphi 0, %s252
      %s254 = sphi 0, %s252
      %s255 = sphi 0, %s254
      %s269 = sphi 0, %s255
    $region4: #{encoder_forward.3} parent=1 // loop_header_branch
      %34 = sbr.rel (%p32) target = $region8
    $region5: #{encoder_forward.3} parent=1 // loop_body
      %s36 = ssub.s32 %s31, 1
      %s37 = ssub.s32 %s31, 2
      %s38 = sadd.s32 %s31, 1
      %s39 = ssub.s32 %s31, %s38
      %p40 = scmp.eq.s32.totalorder %s39, 0
      %s42 = sadd.s32 %s41, 1
      %s43 = scalar_select %p40, %s41, %s42
      %p46 = pneg %p40
      %p47 = scmp.eq.s32.totalorder %s31, 1
      %p48 = por %p46, %p47
      %p49 = scmp.ne.s32.totalorder %s41, %s44
      %p50 = scmp.eq.s32.totalorder %s31, 0
      %p51 = por %p49, %p50
      %p52 = scmp.ne.s32.totalorder %s41, %s44
      %p53 = scmp.eq.s32.totalorder %s36, 1
      %p54 = por %p52, %p53
      %p55 = scmp.ne.s32.totalorder %s44, %s45
      %p56 = scmp.eq.s32.totalorder %s36, 0
      %p57 = por %p55, %p56
      %p58 = scmp.ne.s32.totalorder %s44, %s45
      %p59 = scmp.eq.s32.totalorder %s37, 1
      %p60 = por %p58, %p59
      %p62 = scmp.ne.s32.totalorder %s45, %s61
      %p63 = scmp.eq.s32.totalorder %s37, 0
      %p64 = por %p62, %p63
      %s65 = ssub.s32 1, %s31
      %s66 = ssub.s32 1, %s38
      %s67 = ssub.s32 %s65, %s66
      %p68 = scmp.eq.s32.totalorder %s67, 0
      %s70 = sadd.s32 %s69, 1
      %s71 = scalar_select %p68, %s69, %s70
      %p74 = pneg %p68
      %p75 = scmp.eq.s32.totalorder %s31, 1
      %p76 = por %p74, %p75
      %p77 = scmp.ne.s32.totalorder %s69, %s72
      %p78 = scmp.eq.s32.totalorder %s31, 0
      %p79 = por %p77, %p78
      %p80 = scmp.ne.s32.totalorder %s69, %s72
      %p81 = scmp.eq.s32.totalorder %s36, 1
      %p82 = por %p80, %p81
      %p83 = scmp.ne.s32.totalorder %s72, %s73
      %p84 = scmp.eq.s32.totalorder %s36, 0
      %p85 = por %p83, %p84
      %p86 = scmp.ne.s32.totalorder %s72, %s73
      %p87 = scmp.eq.s32.totalorder %s37, 1
      %p88 = por %p86, %p87
      %p90 = scmp.ne.s32.totalorder %s73, %s89
      %p91 = scmp.eq.s32.totalorder %s37, 0
      %p92 = por %p90, %p91
      %s94 = sadd.s32 %s93, 1
      %p97 = scmp.eq.s32.totalorder %s31, 1
      %p98 = scmp.ne.s32.totalorder %s93, %s95
      %p99 = scmp.eq.s32.totalorder %s31, 0
      %p100 = por %p98, %p99
      %p101 = scmp.ne.s32.totalorder %s93, %s95
      %p102 = scmp.eq.s32.totalorder %s36, 1
      %p103 = por %p101, %p102
      %p104 = scmp.ne.s32.totalorder %s95, %s96
      %p105 = scmp.eq.s32.totalorder %s36, 0
      %p106 = por %p104, %p105
      %p107 = scmp.ne.s32.totalorder %s95, %s96
      %p108 = scmp.eq.s32.totalorder %s37, 1
      %p109 = por %p107, %p108
      %p111 = scmp.ne.s32.totalorder %s96, %s110
      %p112 = scmp.eq.s32.totalorder %s37, 0
      %p113 = por %p111, %p112
      %s115 = sadd.s32 %s114, 1
      %p118 = scmp.eq.s32.totalorder %s31, 1
      %p119 = scmp.ne.s32.totalorder %s114, %s116
      %p120 = scmp.eq.s32.totalorder %s31, 0
      %p121 = por %p119, %p120
      %p122 = scmp.ne.s32.totalorder %s114, %s116
      %p123 = scmp.eq.s32.totalorder %s36, 1
      %p124 = por %p122, %p123
      %p125 = scmp.ne.s32.totalorder %s116, %s117
      %p126 = scmp.eq.s32.totalorder %s36, 0
      %p127 = por %p125, %p126
      %p128 = scmp.ne.s32.totalorder %s116, %s117
      %p129 = scmp.eq.s32.totalorder %s37, 1
      %p130 = por %p128, %p129
      %p132 = scmp.ne.s32.totalorder %s117, %s131
      %p133 = scmp.eq.s32.totalorder %s37, 0
      %p134 = por %p132, %p133
      %s136 = sadd.s32 %s135, 1
      %p139 = scmp.eq.s32.totalorder %s31, 1
      %p140 = scmp.ne.s32.totalorder %s135, %s137
      %p141 = scmp.eq.s32.totalorder %s31, 0
      %p142 = por %p140, %p141
      %p143 = scmp.ne.s32.totalorder %s135, %s137
      %p144 = scmp.eq.s32.totalorder %s36, 1
      %p145 = por %p143, %p144
      %p146 = scmp.ne.s32.totalorder %s137, %s138
      %p147 = scmp.eq.s32.totalorder %s36, 0
      %p148 = por %p146, %p147
      %p149 = scmp.ne.s32.totalorder %s137, %s138
      %p150 = scmp.eq.s32.totalorder %s37, 1
      %p151 = por %p149, %p150
      %p153 = scmp.ne.s32.totalorder %s138, %s152
      %p154 = scmp.eq.s32.totalorder %s37, 0
      %p155 = por %p153, %p154
      %s157 = sadd.s32 %s156, 1
      %p160 = scmp.eq.s32.totalorder %s31, 1
      %p161 = scmp.ne.s32.totalorder %s156, %s158
      %p162 = scmp.eq.s32.totalorder %s31, 0
      %p163 = por %p161, %p162
      %p164 = scmp.ne.s32.totalorder %s156, %s158
      %p165 = scmp.eq.s32.totalorder %s36, 1
      %p166 = por %p164, %p165
      %p167 = scmp.ne.s32.totalorder %s158, %s159
      %p168 = scmp.eq.s32.totalorder %s36, 0
      %p169 = por %p167, %p168
      %p170 = scmp.ne.s32.totalorder %s158, %s159
      %p171 = scmp.eq.s32.totalorder %s37, 1
      %p172 = por %p170, %p171
      %p174 = scmp.ne.s32.totalorder %s159, %s173
      %p175 = scmp.eq.s32.totalorder %s37, 0
      %p176 = por %p174, %p175
      %s177 = ssub.s32 %s31, %s38
      %p178 = scmp.eq.s32.totalorder %s177, 0
      %s180 = sadd.s32 %s179, 1
      %s181 = scalar_select %p178, %s179, %s180
      %p184 = pneg %p178
      %p185 = scmp.eq.s32.totalorder %s31, 1
      %p186 = por %p184, %p185
      %p187 = scmp.ne.s32.totalorder %s179, %s182
      %p188 = scmp.eq.s32.totalorder %s31, 0
      %p189 = por %p187, %p188
      %p190 = scmp.ne.s32.totalorder %s179, %s182
      %p191 = scmp.eq.s32.totalorder %s36, 1
      %p192 = por %p190, %p191
      %p193 = scmp.ne.s32.totalorder %s182, %s183
      %p194 = scmp.eq.s32.totalorder %s36, 0
      %p195 = por %p193, %p194
      %p196 = scmp.ne.s32.totalorder %s182, %s183
      %p197 = scmp.eq.s32.totalorder %s37, 1
      %p198 = por %p196, %p197
      %p200 = scmp.ne.s32.totalorder %s183, %s199
      %p201 = scmp.eq.s32.totalorder %s37, 0
      %p202 = por %p200, %p201
      %s203 = ssub.s32 1, %s31
      %s204 = ssub.s32 1, %s38
      %s205 = ssub.s32 %s203, %s204
      %p206 = scmp.eq.s32.totalorder %s205, 0
      %s208 = sadd.s32 %s207, 1
      %s209 = scalar_select %p206, %s207, %s208
      %p212 = pneg %p206
      %p213 = scmp.eq.s32.totalorder %s31, 1
      %p214 = por %p212, %p213
      %p215 = scmp.ne.s32.totalorder %s207, %s210
      %p216 = scmp.eq.s32.totalorder %s31, 0
      %p217 = por %p215, %p216
      %p218 = scmp.ne.s32.totalorder %s207, %s210
      %p219 = scmp.eq.s32.totalorder %s36, 1
      %p220 = por %p218, %p219
      %p221 = scmp.ne.s32.totalorder %s210, %s211
      %p222 = scmp.eq.s32.totalorder %s36, 0
      %p223 = por %p221, %p222
      %p224 = scmp.ne.s32.totalorder %s210, %s211
      %p225 = scmp.eq.s32.totalorder %s37, 1
      %p226 = por %p224, %p225
      %p228 = scmp.ne.s32.totalorder %s211, %s227
      %p229 = scmp.eq.s32.totalorder %s37, 0
      %p230 = por %p228, %p229
      %s232 = sadd.s32 %s231, 1
      %p235 = scmp.eq.s32.totalorder %s31, 1
      %p236 = scmp.ne.s32.totalorder %s231, %s233
      %p237 = scmp.eq.s32.totalorder %s31, 0
      %p238 = por %p236, %p237
      %p239 = scmp.ne.s32.totalorder %s231, %s233
      %p240 = scmp.eq.s32.totalorder %s36, 1
      %p241 = por %p239, %p240
      %p242 = scmp.ne.s32.totalorder %s233, %s234
      %p243 = scmp.eq.s32.totalorder %s36, 0
      %p244 = por %p242, %p243
      %p245 = scmp.ne.s32.totalorder %s233, %s234
      %p246 = scmp.eq.s32.totalorder %s37, 1
      %p247 = por %p245, %p246
      %p249 = scmp.ne.s32.totalorder %s234, %s248
      %p250 = scmp.eq.s32.totalorder %s37, 0
      %p251 = por %p249, %p250
      %s253 = sadd.s32 %s252, 1
      %p256 = scmp.eq.s32.totalorder %s31, 1
      %p257 = scmp.ne.s32.totalorder %s252, %s254
      %p258 = scmp.eq.s32.totalorder %s31, 0
      %p259 = por %p257, %p258
      %p260 = scmp.ne.s32.totalorder %s252, %s254
      %p261 = scmp.eq.s32.totalorder %s36, 1
      %p262 = por %p260, %p261
      %p263 = scmp.ne.s32.totalorder %s254, %s255
      %p264 = scmp.eq.s32.totalorder %s36, 0
      %p265 = por %p263, %p264
      %p266 = scmp.ne.s32.totalorder %s254, %s255
      %p267 = scmp.eq.s32.totalorder %s37, 1
      %p268 = por %p266, %p267
      %p270 = scmp.ne.s32.totalorder %s255, %s269
      %p271 = scmp.eq.s32.totalorder %s37, 0
      %p272 = por %p270, %p271
      %p273 = scmp.le.s32.totalorder 1, %s31
      %p274 = scmp.lt.s32.totalorder %s31, 3
      %p275 = pnand %p273, %p274
      %p276 = pneg %p275
      // Predicated region
      $region9: #{encoder_forward.3} parent=5 // pred_check
        _
      $region10: #{encoder_forward.3} parent=5 // pred_check_branch
        %278 = sbr.rel (%p275) target = $region12
      $region11: #{encoder_forward.3} parent=5 // pred_region
        %s279 = ssub.s32 %s31, 1
        // Predicated region
        $region13: #{encoder_forward.3} parent=11 // pred_check
          %p280 = pneg %p106
        $region14: #{encoder_forward.3} parent=11 // pred_check_branch
          %282 = sbr.rel (%p280) target = $region16
        $region15: #{encoder_forward.3} parent=11 // pred_region
          %s284 = ssub.s32 8192, 8192
          %285 = vsyncadd [#allocation10], %s284
          %s286 = sshll.u32 [#allocation11], 4
          %s287 = int_to_ptr.vmem [resolvable:$true] %s286
          %292 = dma.hbm_to_vmem [thread:$0]  %s2, 8192, %s287, [#allocation10], 256, 256, 16
        $region16: #{encoder_forward.3} parent=11 // pred_fallthru
          _
        // Predicated region
        $region17: #{encoder_forward.3} parent=11 // pred_check
          %p293 = pneg %p127
        $region18: #{encoder_forward.3} parent=11 // pred_check_branch
          %295 = sbr.rel (%p293) target = $region20
        $region19: #{encoder_forward.3} parent=11 // pred_region
          %s297 = ssub.s32 16384, 16384
          %298 = vsyncadd [#allocation13], %s297
          %s299 = sshll.u32 [#allocation12], 4
          %s300 = int_to_ptr.vmem [resolvable:$true] %s299
          %305 = dma.hbm_to_vmem [thread:$0]  %s3, 16384, %s300, [#allocation13], 512, 512, 32
        $region20: #{encoder_forward.3} parent=11 // pred_fallthru
          _
        // Predicated region
        $region21: #{encoder_forward.3} parent=11 // pred_check
          %p306 = pneg %p148
        $region22: #{encoder_forward.3} parent=11 // pred_check_branch
          %308 = sbr.rel (%p306) target = $region24
        $region23: #{encoder_forward.3} parent=11 // pred_region
          %s310 = ssub.s32 128, 128
          %311 = vsyncadd [#allocation13], %s310
          %s312 = sshll.u32 [#allocation14], 4
          %s313 = int_to_ptr.vmem [resolvable:$true] %s312
          %318 = dma.hbm_to_vmem [thread:$0]  %s4, 128, %s313, [#allocation13], 64, 64, 4
        $region24: #{encoder_forward.3} parent=11 // pred_fallthru
          _
        // Predicated region
        $region25: #{encoder_forward.3} parent=11 // pred_check
          %p319 = pneg %p169
        $region26: #{encoder_forward.3} parent=11 // pred_check_branch
          %321 = sbr.rel (%p319) target = $region28
        $region27: #{encoder_forward.3} parent=11 // pred_region
          %s323 = ssub.s32 256, 256
          %324 = vsyncadd [#allocation16], %s323
          %s325 = sshll.u32 [#allocation15], 4
          %s326 = int_to_ptr.vmem [resolvable:$true] %s325
          %331 = dma.hbm_to_vmem [thread:$0]  %s5, 256, %s326, [#allocation16], 128, 128, 8
        $region28: #{encoder_forward.3} parent=11 // pred_fallthru
          _
      $region12: #{encoder_forward.3} parent=5 // pred_fallthru
        _
      %p332 = scmp.lt.s32.totalorder %s31, 2
      // Predicated region
      $region29: #{encoder_forward.3} parent=5 // pred_check
        %p333 = pneg %p332
      $region30: #{encoder_forward.3} parent=5 // pred_check_branch
        %335 = sbr.rel (%p333) target = $region32
      $region31: #{encoder_forward.3} parent=5 // pred_region
        // Predicated region
        $region33: #{encoder_forward.3} parent=31 // pred_check
          %p336 = pneg %p51
        $region34: #{encoder_forward.3} parent=31 // pred_check_branch
          %338 = sbr.rel (%p336) target = $region36
        $region35: #{encoder_forward.3} parent=31 // pred_region
          %s339 = sand.u32 %s41, 1
          %s340 = scalar_lea.sflag [#allocation7], %s339
          %s341 = sand.u32 %s41, 1
          %s342 = smul.addr %s341, 32
          %s343 = scalar_lea.vmem [#allocation6], %s342
          %s344 = smul.u32 4, %s31
          %s346 = ssub.s32 512, 512
          %347 = vsyncadd %s340, %s346
          %s348 = smul.addr %s344, 2
          %s349 = smul.addr %s348, 64
          %s350 = scalar_lea.hbm %s0, %s349
          %s351 = sshll.u32 %s343, 4
          %s352 = int_to_ptr.vmem [resolvable:$true] %s351
          %357 = dma.hbm_to_vmem [thread:$0]  %s350, 512, %s352, %s340, 64, 64, 4
        $region36: #{encoder_forward.3} parent=31 // pred_fallthru
          _
        // Predicated region
        $region37: #{encoder_forward.3} parent=31 // pred_check
          %p358 = pneg %p79
        $region38: #{encoder_forward.3} parent=31 // pred_check_branch
          %360 = sbr.rel (%p358) target = $region40
        $region39: #{encoder_forward.3} parent=31 // pred_region
          %s361 = sand.u32 %s31, 1
          %s362 = scalar_lea.sflag [#allocation10], %s361
          %s363 = sand.u32 %s69, 1
          %s364 = smul.addr %s363, 32
          %s365 = scalar_lea.vmem [#allocation9], %s364
          %s366 = ssub.s32 1, %s31
          %s367 = smul.u32 4, %s366
          %s369 = ssub.s32 512, 512
          %370 = vsyncadd %s362, %s369
          %s371 = smul.addr %s367, 2
          %s372 = smul.addr %s371, 64
          %s373 = scalar_lea.hbm %s1, %s372
          %s374 = sshll.u32 %s365, 4
          %s375 = int_to_ptr.vmem [resolvable:$true] %s374
          %380 = dma.hbm_to_vmem [thread:$0]  %s373, 512, %s375, %s362, 64, 64, 4
        $region40: #{encoder_forward.3} parent=31 // pred_fallthru
          _
      $region32: #{encoder_forward.3} parent=5 // pred_fallthru
        _
      %p381 = scmp.le.s32.totalorder 1, %s31
      %p382 = scmp.lt.s32.totalorder %s31, 3
      %p383 = pnand %p381, %p382
      %p384 = pneg %p383
      // Predicated region
      $region41: #{encoder_forward.3} parent=5 // pred_check
        _
      $region42: #{encoder_forward.3} parent=5 // pred_check_branch
        %386 = sbr.rel (%p383) target = $region44
      $region43: #{encoder_forward.3} parent=5 // pred_region
        %s387 = ssub.s32 %s31, 1
        %s388 = sand.u32 %s44, 1
        %s389 = scalar_lea.sflag [#allocation7], %s388
        %s390 = sand.u32 %s44, 1
        %s391 = smul.addr %s390, 32
        %s392 = scalar_lea.vmem [#allocation6], %s391
        // Predicated region
        $region45: #{encoder_forward.3} parent=43 // pred_check
          %p393 = pneg %p57
        $region46: #{encoder_forward.3} parent=43 // pred_check_branch
          %395 = sbr.rel (%p393) target = $region48
        $region47: #{encoder_forward.3} parent=43 // pred_region
          %396 = dma.done %s389, 512
        $region48: #{encoder_forward.3} parent=43 // pred_fallthru
          _
        %s397 = sand.u32 %s36, 1
        %s398 = scalar_lea.sflag [#allocation10], %s397
        %s399 = sand.u32 %s72, 1
        %s400 = smul.addr %s399, 32
        %s401 = scalar_lea.vmem [#allocation9], %s400
        // Predicated region
        $region49: #{encoder_forward.3} parent=43 // pred_check
          %p402 = pneg %p85
        $region50: #{encoder_forward.3} parent=43 // pred_check_branch
          %404 = sbr.rel (%p402) target = $region52
        $region51: #{encoder_forward.3} parent=43 // pred_region
          %405 = dma.done %s398, 512
        $region52: #{encoder_forward.3} parent=43 // pred_fallthru
          _
        // Predicated region
        $region53: #{encoder_forward.3} parent=43 // pred_check
          %p406 = pneg %p106
        $region54: #{encoder_forward.3} parent=43 // pred_check_branch
          %408 = sbr.rel (%p406) target = $region56
        $region55: #{encoder_forward.3} parent=43 // pred_region
          %409 = dma.done [#allocation10], 8192
        $region56: #{encoder_forward.3} parent=43 // pred_fallthru
          _
        // Predicated region
        $region57: #{encoder_forward.3} parent=43 // pred_check
          %p410 = pneg %p127
        $region58: #{encoder_forward.3} parent=43 // pred_check_branch
          %412 = sbr.rel (%p410) target = $region60
        $region59: #{encoder_forward.3} parent=43 // pred_region
          %413 = dma.done [#allocation13], 16384
        $region60: #{encoder_forward.3} parent=43 // pred_fallthru
          _
        // Predicated region
        $region61: #{encoder_forward.3} parent=43 // pred_check
          %p414 = pneg %p148
        $region62: #{encoder_forward.3} parent=43 // pred_check_branch
          %416 = sbr.rel (%p414) target = $region64
        $region63: #{encoder_forward.3} parent=43 // pred_region
          %417 = dma.done [#allocation13], 128
        $region64: #{encoder_forward.3} parent=43 // pred_fallthru
          _
        // Predicated region
        $region65: #{encoder_forward.3} parent=43 // pred_check
          %p418 = pneg %p169
        $region66: #{encoder_forward.3} parent=43 // pred_check_branch
          %420 = sbr.rel (%p418) target = $region68
        $region67: #{encoder_forward.3} parent=43 // pred_region
          %421 = dma.done [#allocation16], 256
        $region68: #{encoder_forward.3} parent=43 // pred_fallthru
          _
        %s422 = sand.u32 %s44, 1
        %s423 = scalar_lea.sflag [#allocation7], %s422
        %s424 = sand.u32 %s44, 1
        %s425 = smul.addr %s424, 32
        %s426 = scalar_lea.vmem [#allocation6], %s425
        %p427 = pneg %p57
        %p428 = pneg %p54
        %s429 = sand.u32 %s36, 1
        %s430 = scalar_lea.sflag [#allocation10], %s429
        %s431 = sand.u32 %s72, 1
        %s432 = smul.addr %s431, 32
        %s433 = scalar_lea.vmem [#allocation9], %s432
        %p434 = pneg %p85
        %p435 = pneg %p82
        %p436 = pneg %p106
        %p437 = pneg %p103
        %p438 = pneg %p127
        %p439 = pneg %p124
        %p440 = pneg %p148
        %p441 = pneg %p145
        %p442 = pneg %p169
        %p443 = pneg %p166
        %p444 = pneg %p195
        %p445 = pneg %p192
        %s446 = sand.u32 %s182, 1
        %s447 = scalar_lea.sflag [#allocation8], %s446
        %s448 = sand.u32 %s182, 1
        %s449 = smul.addr %s448, 32
        %s450 = scalar_lea.vmem [#allocation17], %s449
        %p451 = pneg %p223
        %p452 = pneg %p220
        %s453 = sand.u32 %s36, 1
        %s454 = scalar_lea.sflag [#allocation19], %s453
        %s455 = sand.u32 %s210, 1
        %s456 = smul.addr %s455, 32
        %s457 = scalar_lea.vmem [#allocation18], %s456
        %p458 = pneg %p244
        %p459 = pneg %p241
        %p460 = pneg %p265
        %p461 = pneg %p262
        %s462 = smul.u32 4, %s36
        %s463 = ssub.s32 1, %s36
        %s464 = smul.u32 4, %s463
        %s465 = smul.u32 4, %s36
        %s466 = ssub.s32 1, %s36
        %s467 = smul.u32 4, %s466
        %p469 = scmp.eq.s32.totalorder %s36, 0
        // Predicated region
        $region69: #{encoder_forward.3} parent=43 // pred_check
          %p470 = pneg %p469
        $region70: #{encoder_forward.3} parent=43 // pred_check_branch
          %472 = sbr.rel (%p470) target = $region72
        $region71: #{encoder_forward.3} parent=43 // pred_region
          %473 = vst [vmem:[#allocation4] sm:$0xff] 0.0
          %474 = vst [vmem:[#allocation4 + $0x8] sm:$0xff] 0.0
          %475 = vst [vmem:[#allocation4 + $0x10] sm:$0xff] 0.0
          %476 = vst [vmem:[#allocation4 + $0x18] sm:$0xff] 0.0
          %477 = vst [vmem:[#allocation5] sm:$0xff] 0.0
          %478 = vst [vmem:[#allocation5 + $0x8] sm:$0xff] 0.0
          %479 = vst [vmem:[#allocation5 + $0x10] sm:$0xff] 0.0
          %480 = vst [vmem:[#allocation5 + $0x18] sm:$0xff] 0.0
        $region72: #{encoder_forward.3} parent=43 // pred_fallthru
          _
        %v481 = vld [vmem:[%s392] sm:$0xf]
        %v482 = vld [vmem:[%s392 + $0x4] sm:$0xf]
        %v483 = vld [vmem:[%s392 + $0x8] sm:$0xf]
        %v484 = vld [vmem:[%s392 + $0xc] sm:$0xf]
        %v485 = vld [vmem:[%s392 + $0x10] sm:$0xf]
        %v486 = vld [vmem:[%s392 + $0x14] sm:$0xf]
        %v487 = vld [vmem:[%s392 + $0x18] sm:$0xf]
        %v488 = vld [vmem:[%s392 + $0x1c] sm:$0xf]
        %v489 = vld [vmem:[#allocation11] sm:$0xff]
        %v490 = vld [vmem:[#allocation11 + $0x8] sm:$0xff]
        %v491 = vld [vmem:[#allocation11 + $0x10] sm:$0xff]
        %v492 = vld [vmem:[#allocation11 + $0x18] sm:$0xff]
        %v493 = vld [vmem:[#allocation11 + $0x20] sm:$0xff]
        %v494 = vld [vmem:[#allocation11 + $0x28] sm:$0xff]
        %v495 = vld [vmem:[#allocation11 + $0x30] sm:$0xff]
        %v496 = vld [vmem:[#allocation11 + $0x38] sm:$0xff]
        %v497 = vld [vmem:[#allocation11 + $0x40] sm:$0xff]
        %v498 = vld [vmem:[#allocation11 + $0x48] sm:$0xff]
        %v499 = vld [vmem:[#allocation11 + $0x50] sm:$0xff]
        %v500 = vld [vmem:[#allocation11 + $0x58] sm:$0xff]
        %v501 = vld [vmem:[#allocation11 + $0x60] sm:$0xff]
        %v502 = vld [vmem:[#allocation11 + $0x68] sm:$0xff]
        %v503 = vld [vmem:[#allocation11 + $0x70] sm:$0xff]
        %v504 = vld [vmem:[#allocation11 + $0x78] sm:$0xff]
        %v505 = vld [vmem:[#allocation11 + $0x80] sm:$0xff]
        %v506 = vld [vmem:[#allocation11 + $0x88] sm:$0xff]
        %v507 = vld [vmem:[#allocation11 + $0x90] sm:$0xff]
        %v508 = vld [vmem:[#allocation11 + $0x98] sm:$0xff]
        %v509 = vld [vmem:[#allocation11 + $0xa0] sm:$0xff]
        %v510 = vld [vmem:[#allocation11 + $0xa8] sm:$0xff]
        %v511 = vld [vmem:[#allocation11 + $0xb0] sm:$0xff]
        %v512 = vld [vmem:[#allocation11 + $0xb8] sm:$0xff]
        %v513 = vld [vmem:[#allocation11 + $0xc0] sm:$0xff]
        %v514 = vld [vmem:[#allocation11 + $0xc8] sm:$0xff]
        %v515 = vld [vmem:[#allocation11 + $0xd0] sm:$0xff]
        %v516 = vld [vmem:[#allocation11 + $0xd8] sm:$0xff]
        %v517 = vld [vmem:[#allocation11 + $0xe0] sm:$0xff]
        %v518 = vld [vmem:[#allocation11 + $0xe8] sm:$0xff]
        %v519 = vld [vmem:[#allocation11 + $0xf0] sm:$0xff]
        %v520 = vld [vmem:[#allocation11 + $0xf8] sm:$0xff]
        %v521 = vld [vmem:[#allocation14] sm:$0xf]
        %v523 = vlaneseq
        %v524 = vshrl.u32 %v523, 7
        %v525 = vsub.s32 0, %v524
        %v526 = vrot.slane %v521, %v525
        %v527 = vlaneseq
        %v528 = vshrl.u32 %v527, 7
        %v529 = vsub.s32 1, %v528
        %v530 = vrot.slane %v521, %v529
        %v531 = vlaneseq
        %v532 = vshrl.u32 %v531, 7
        %v533 = vsub.s32 2, %v532
        %v534 = vrot.slane %v521, %v533
        %v535 = vlaneseq
        %v536 = vshrl.u32 %v535, 7
        %v537 = vsub.s32 3, %v536
        %v538 = vrot.slane %v521, %v537
        %v551 = vunpack.c.l.b16 %v481
        %v552 = vunpack.c.l.b16 %v482
        %v553 = vunpack.c.l.b16 %v483
        %v554 = vunpack.c.l.b16 %v484
        %v555 = vunpack.c.l.b16 %v485
        %v556 = vunpack.c.l.b16 %v486
        %v557 = vunpack.c.l.b16 %v487
        %v558 = vunpack.c.l.b16 %v488
        %v559 = vpack.c.b16 %v552, %v551
        %v560 = vpack.c.b16 %v554, %v553
        %v561 = vpack.c.b16 %v556, %v555
        %v562 = vpack.c.b16 %v558, %v557
        %v599 = vunpack.c.l.b16 %v489
        %v600 = vunpack.c.h.b16 %v489
        %v601 = vunpack.c.l.b16 %v490
        %v602 = vunpack.c.h.b16 %v490
        %v603 = vunpack.c.l.b16 %v491
        %v604 = vunpack.c.h.b16 %v491
        %v605 = vunpack.c.l.b16 %v492
        %v606 = vunpack.c.h.b16 %v492
        %v607 = vunpack.c.l.b16 %v493
        %v608 = vunpack.c.h.b16 %v493
        %v609 = vunpack.c.l.b16 %v494
        %v610 = vunpack.c.h.b16 %v494
        %v611 = vunpack.c.l.b16 %v495
        %v612 = vunpack.c.h.b16 %v495
        %v613 = vunpack.c.l.b16 %v496
        %v614 = vunpack.c.h.b16 %v496
        %v615 = vunpack.c.l.b16 %v497
        %v616 = vunpack.c.h.b16 %v497
        %v617 = vunpack.c.l.b16 %v498
        %v618 = vunpack.c.h.b16 %v498
        %v619 = vunpack.c.l.b16 %v499
        %v620 = vunpack.c.h.b16 %v499
        %v621 = vunpack.c.l.b16 %v500
        %v622 = vunpack.c.h.b16 %v500
        %v623 = vunpack.c.l.b16 %v501
        %v624 = vunpack.c.h.b16 %v501
        %v625 = vunpack.c.l.b16 %v502
        %v626 = vunpack.c.h.b16 %v502
        %v627 = vunpack.c.l.b16 %v503
        %v628 = vunpack.c.h.b16 %v503
        %v629 = vunpack.c.l.b16 %v504
        %v630 = vunpack.c.h.b16 %v504
        %v631 = vunpack.c.l.b16 %v505
        %v632 = vunpack.c.h.b16 %v505
        %v633 = vunpack.c.l.b16 %v506
        %v634 = vunpack.c.h.b16 %v506
        %v635 = vunpack.c.l.b16 %v507
        %v636 = vunpack.c.h.b16 %v507
        %v637 = vunpack.c.l.b16 %v508
        %v638 = vunpack.c.h.b16 %v508
        %v639 = vunpack.c.l.b16 %v509
        %v640 = vunpack.c.h.b16 %v509
        %v641 = vunpack.c.l.b16 %v510
        %v642 = vunpack.c.h.b16 %v510
        %v643 = vunpack.c.l.b16 %v511
        %v644 = vunpack.c.h.b16 %v511
        %v645 = vunpack.c.l.b16 %v512
        %v646 = vunpack.c.h.b16 %v512
        %v647 = vunpack.c.l.b16 %v513
        %v648 = vunpack.c.h.b16 %v513
        %v649 = vunpack.c.l.b16 %v514
        %v650 = vunpack.c.h.b16 %v514
        %v651 = vunpack.c.l.b16 %v515
        %v652 = vunpack.c.h.b16 %v515
        %v653 = vunpack.c.l.b16 %v516
        %v654 = vunpack.c.h.b16 %v516
        %v655 = vunpack.c.l.b16 %v517
        %v656 = vunpack.c.h.b16 %v517
        %v657 = vunpack.c.l.b16 %v518
        %v658 = vunpack.c.h.b16 %v518
        %v659 = vunpack.c.l.b16 %v519
        %v660 = vunpack.c.h.b16 %v519
        %v661 = vunpack.c.l.b16 %v520
        %v662 = vunpack.c.h.b16 %v520
        %v663 = vpack.c.b16 %v603, %v599
        %v664 = vpack.c.b16 %v604, %v600
        %v665 = vpack.c.b16 %v605, %v601
        %v666 = vpack.c.b16 %v606, %v602
        %v667 = vpack.c.b16 %v611, %v607
        %v668 = vpack.c.b16 %v612, %v608
        %v669 = vpack.c.b16 %v613, %v609
        %v670 = vpack.c.b16 %v614, %v610
        %v671 = vpack.c.b16 %v619, %v615
        %v672 = vpack.c.b16 %v620, %v616
        %v673 = vpack.c.b16 %v621, %v617
        %v674 = vpack.c.b16 %v622, %v618
        %v675 = vpack.c.b16 %v627, %v623
        %v676 = vpack.c.b16 %v628, %v624
        %v677 = vpack.c.b16 %v629, %v625
        %v678 = vpack.c.b16 %v630, %v626
        %v679 = vpack.c.b16 %v635, %v631
        %v680 = vpack.c.b16 %v636, %v632
        %v681 = vpack.c.b16 %v637, %v633
        %v682 = vpack.c.b16 %v638, %v634
        %v683 = vpack.c.b16 %v643, %v639
        %v684 = vpack.c.b16 %v644, %v640
        %v685 = vpack.c.b16 %v645, %v641
        %v686 = vpack.c.b16 %v646, %v642
        %v687 = vpack.c.b16 %v651, %v647
        %v688 = vpack.c.b16 %v652, %v648
        %v689 = vpack.c.b16 %v653, %v649
        %v690 = vpack.c.b16 %v654, %v650
        %v691 = vpack.c.b16 %v659, %v655
        %v692 = vpack.c.b16 %v660, %v656
        %v693 = vpack.c.b16 %v661, %v657
        %v694 = vpack.c.b16 %v662, %v658
        %727 = vmatprep.subr.bf16.mxu0 %v664
        %728 = vmatpush1.bf16.msra.mxu0 %v663
        %729 = vmatprep.subr.bf16.mxu0 %v668
        %730 = vmatpush1.bf16.msra.mxu0 %v667
        %731 = vmatprep.subr.bf16.mxu0 %v672
        %732 = vmatpush1.bf16.msra.mxu0 %v671
        %733 = vmatprep.subr.bf16.mxu0 %v676
        %734 = vmatpush1.bf16.msra.mxu0 %v675
        %735 = vmatprep.subr.bf16.mxu0 %v680
        %736 = vmatpush1.bf16.msra.mxu0 %v679
        %737 = vmatprep.subr.bf16.mxu0 %v684
        %738 = vmatpush1.bf16.msra.mxu0 %v683
        %739 = vmatprep.subr.bf16.mxu0 %v688
        %740 = vmatpush1.bf16.msra.mxu0 %v687
        %741 = vmatprep.subr.bf16.mxu0 %v692
        %742 = vmatpush1.bf16.msra.mxu0 %v691
        %743 = vmatprep.subr.bf16.mxu0 0
        %744 = vmatpush1.bf16.msra.mxu0 0
        %745 = vmatprep.subr.bf16.mxu0 0
        %746 = vmatpush1.bf16.msra.mxu0 0
        %747 = vmatprep.subr.bf16.mxu0 0
        %748 = vmatpush1.bf16.msra.mxu0 0
        %749 = vmatprep.subr.bf16.mxu0 0
        %750 = vmatpush1.bf16.msra.mxu0 0
        %751 = vmatprep.subr.bf16.mxu0 0
        %752 = vmatpush1.bf16.msra.mxu0 0
        %753 = vmatprep.subr.bf16.mxu0 0
        %754 = vmatpush1.bf16.msra.mxu0 0
        %755 = vmatprep.subr.bf16.mxu0 0
        %756 = vmatpush1.bf16.msra.mxu0 0
        %757 = vmatprep.subr.bf16.mxu0 0
        %758 = vmatpush1.bf16.msra.mxu0 0
        %759 = vmatprep.mubr.bf16.mxu0 0
        %760 = vmatmul.mubr.bf16.gmra.mrb[0].mxu0 %v559
        %v761 = vpop.f32.mrb[0].mxu0
        %v762 = vadd.f32 %v526, %v761
        %v763 = vpop.f32.mrb[0].mxu0
        %v764 = vadd.f32 %v530, %v763
        %v765 = vpop.f32.mrb[0].mxu0
        %v766 = vadd.f32 %v526, %v765
        %v767 = vpop.f32.mrb[0].mxu0
        %v768 = vadd.f32 %v530, %v767
        %769 = vmatprep.mubr.bf16.mxu0 0
        %770 = vmatmul.mubr.bf16.gmra.mrb[0].mxu0 %v560
        %v771 = vpop.f32.mrb[0].mxu0
        %v772 = vadd.f32 %v526, %v771
        %v773 = vpop.f32.mrb[0].mxu0
        %v774 = vadd.f32 %v530, %v773
        %v775 = vpop.f32.mrb[0].mxu0
        %v776 = vadd.f32 %v526, %v775
        %v777 = vpop.f32.mrb[0].mxu0
        %v778 = vadd.f32 %v530, %v777
        %779 = vmatprep.mubr.bf16.mxu0 0
        %780 = vmatmul.mubr.bf16.gmra.mrb[0].mxu0 %v561
        %v781 = vpop.f32.mrb[0].mxu0
        %v782 = vadd.f32 %v526, %v781
        %v783 = vpop.f32.mrb[0].mxu0
        %v784 = vadd.f32 %v530, %v783
        %v785 = vpop.f32.mrb[0].mxu0
        %v786 = vadd.f32 %v526, %v785
        %v787 = vpop.f32.mrb[0].mxu0
        %v788 = vadd.f32 %v530, %v787
        %789 = vmatprep.mubr.bf16.mxu0 0
        %790 = vmatmul.mubr.bf16.gmra.mrb[0].mxu0 %v562
        %v791 = vpop.f32.mrb[0].mxu0
        %v792 = vadd.f32 %v526, %v791
        %v793 = vpop.f32.mrb[0].mxu0
        %v794 = vadd.f32 %v530, %v793
        %v795 = vpop.f32.mrb[0].mxu0
        %v796 = vadd.f32 %v526, %v795
        %v797 = vpop.f32.mrb[0].mxu0
        %v798 = vadd.f32 %v530, %v797
        %799 = vdwg.mxu0
        %800 = vmatprep.subr.bf16.mxu0 %v666
        %801 = vmatpush1.bf16.msra.mxu0 %v665
        %802 = vmatprep.subr.bf16.mxu0 %v670
        %803 = vmatpush1.bf16.msra.mxu0 %v669
        %804 = vmatprep.subr.bf16.mxu0 %v674
        %805 = vmatpush1.bf16.msra.mxu0 %v673
        %806 = vmatprep.subr.bf16.mxu0 %v678
        %807 = vmatpush1.bf16.msra.mxu0 %v677
        %808 = vmatprep.subr.bf16.mxu0 %v682
        %809 = vmatpush1.bf16.msra.mxu0 %v681
        %810 = vmatprep.subr.bf16.mxu0 %v686
        %811 = vmatpush1.bf16.msra.mxu0 %v685
        %812 = vmatprep.subr.bf16.mxu0 %v690
        %813 = vmatpush1.bf16.msra.mxu0 %v689
        %814 = vmatprep.subr.bf16.mxu0 %v694
        %815 = vmatpush1.bf16.msra.mxu0 %v693
        %816 = vmatprep.subr.bf16.mxu0 0
        %817 = vmatpush1.bf16.msra.mxu0 0
        %818 = vmatprep.subr.bf16.mxu0 0
        %819 = vmatpush1.bf16.msra.mxu0 0
        %820 = vmatprep.subr.bf16.mxu0 0
        %821 = vmatpush1.bf16.msra.mxu0 0
        %822 = vmatprep.subr.bf16.mxu0 0
        %823 = vmatpush1.bf16.msra.mxu0 0
        %824 = vmatprep.subr.bf16.mxu0 0
        %825 = vmatpush1.bf16.msra.mxu0 0
        %826 = vmatprep.subr.bf16.mxu0 0
        %827 = vmatpush1.bf16.msra.mxu0 0
        %828 = vmatprep.subr.bf16.mxu0 0
        %829 = vmatpush1.bf16.msra.mxu0 0
        %830 = vmatprep.subr.bf16.mxu0 0
        %831 = vmatpush1.bf16.msra.mxu0 0
        %832 = vmatprep.mubr.bf16.mxu0 0
        %833 = vmatmul.mubr.bf16.gmra.mrb[0].mxu0 %v559
        %v834 = vpop.f32.mrb[0].mxu0
        %v835 = vadd.f32 %v534, %v834
        %v836 = vpop.f32.mrb[0].mxu0
        %v837 = vadd.f32 %v538, %v836
        %v838 = vpop.f32.mrb[0].mxu0
        %v839 = vadd.f32 %v534, %v838
        %v840 = vpop.f32.mrb[0].mxu0
        %v841 = vadd.f32 %v538, %v840
        %842 = vmatprep.mubr.bf16.mxu0 0
        %843 = vmatmul.mubr.bf16.gmra.mrb[0].mxu0 %v560
        %v844 = vpop.f32.mrb[0].mxu0
        %v845 = vadd.f32 %v534, %v844
        %v846 = vpop.f32.mrb[0].mxu0
        %v847 = vadd.f32 %v538, %v846
        %v848 = vpop.f32.mrb[0].mxu0
        %v849 = vadd.f32 %v534, %v848
        %v850 = vpop.f32.mrb[0].mxu0
        %v851 = vadd.f32 %v538, %v850
        %852 = vmatprep.mubr.bf16.mxu0 0
        %853 = vmatmul.mubr.bf16.gmra.mrb[0].mxu0 %v561
        %v854 = vpop.f32.mrb[0].mxu0
        %v855 = vadd.f32 %v534, %v854
        %v856 = vpop.f32.mrb[0].mxu0
        %v857 = vadd.f32 %v538, %v856
        %v858 = vpop.f32.mrb[0].mxu0
        %v859 = vadd.f32 %v534, %v858
        %v860 = vpop.f32.mrb[0].mxu0
        %v861 = vadd.f32 %v538, %v860
        %862 = vmatprep.mubr.bf16.mxu0 0
        %863 = vmatmul.mubr.bf16.gmra.mrb[0].mxu0 %v562
        %v864 = vpop.f32.mrb[0].mxu0
        %v865 = vadd.f32 %v534, %v864
        %v866 = vpop.f32.mrb[0].mxu0
        %v867 = vadd.f32 %v538, %v866
        %v868 = vpop.f32.mrb[0].mxu0
        %v869 = vadd.f32 %v534, %v868
        %v870 = vpop.f32.mrb[0].mxu0
        %v871 = vadd.f32 %v538, %v870
        %872 = vdwg.mxu0
        %v873 = vpack.c.bf16 %v766, %v762
        %v874 = vpack.c.bf16 %v768, %v764
        %v875 = vpack.c.bf16 %v839, %v835
        %v876 = vpack.c.bf16 %v841, %v837
        %v877 = vpack.c.bf16 %v776, %v772
        %v878 = vpack.c.bf16 %v778, %v774
        %v879 = vpack.c.bf16 %v849, %v845
        %v880 = vpack.c.bf16 %v851, %v847
        %v881 = vpack.c.bf16 %v786, %v782
        %v882 = vpack.c.bf16 %v788, %v784
        %v883 = vpack.c.bf16 %v859, %v855
        %v884 = vpack.c.bf16 %v861, %v857
        %v885 = vpack.c.bf16 %v796, %v792
        %v886 = vpack.c.bf16 %v798, %v794
        %v887 = vpack.c.bf16 %v869, %v865
        %v888 = vpack.c.bf16 %v871, %v867
        %889 = vst [vmem:[#allocation2] sm:$0xff] %v873
        %890 = vst [vmem:[#allocation2 + $0x8] sm:$0xff] %v874
        %891 = vst [vmem:[#allocation2 + $0x10] sm:$0xff] %v875
        %892 = vst [vmem:[#allocation2 + $0x18] sm:$0xff] %v876
        %893 = vst [vmem:[#allocation2 + $0x20] sm:$0xff] %v877
        %894 = vst [vmem:[#allocation2 + $0x28] sm:$0xff] %v878
        %895 = vst [vmem:[#allocation2 + $0x30] sm:$0xff] %v879
        %896 = vst [vmem:[#allocation2 + $0x38] sm:$0xff] %v880
        %897 = vst [vmem:[#allocation2 + $0x40] sm:$0xff] %v881
        %898 = vst [vmem:[#allocation2 + $0x48] sm:$0xff] %v882
        %899 = vst [vmem:[#allocation2 + $0x50] sm:$0xff] %v883
        %900 = vst [vmem:[#allocation2 + $0x58] sm:$0xff] %v884
        %901 = vst [vmem:[#allocation2 + $0x60] sm:$0xff] %v885
        %902 = vst [vmem:[#allocation2 + $0x68] sm:$0xff] %v886
        %903 = vst [vmem:[#allocation2 + $0x70] sm:$0xff] %v887
        %904 = vst [vmem:[#allocation2 + $0x78] sm:$0xff] %v888
        %v905 = vld [vmem:[%s401] sm:$0xf]
        %v906 = vld [vmem:[%s401 + $0x4] sm:$0xf]
        %v907 = vld [vmem:[%s401 + $0x8] sm:$0xf]
        %v908 = vld [vmem:[%s401 + $0xc] sm:$0xf]
        %v909 = vld [vmem:[%s401 + $0x10] sm:$0xf]
        %v910 = vld [vmem:[%s401 + $0x14] sm:$0xf]
        %v911 = vld [vmem:[%s401 + $0x18] sm:$0xf]
        %v912 = vld [vmem:[%s401 + $0x1c] sm:$0xf]
        %s913 = scalar_lea.vmem [#allocation11], 256
        %v914 = vld [vmem:[%s913] sm:$0xff]
        %v915 = vld [vmem:[%s913 + $0x8] sm:$0xff]
        %v916 = vld [vmem:[%s913 + $0x10] sm:$0xff]
        %v917 = vld [vmem:[%s913 + $0x18] sm:$0xff]
        %v918 = vld [vmem:[%s913 + $0x20] sm:$0xff]
        %v919 = vld [vmem:[%s913 + $0x28] sm:$0xff]
        %v920 = vld [vmem:[%s913 + $0x30] sm:$0xff]
        %v921 = vld [vmem:[%s913 + $0x38] sm:$0xff]
        %v922 = vld [vmem:[%s913 + $0x40] sm:$0xff]
        %v923 = vld [vmem:[%s913 + $0x48] sm:$0xff]
        %v924 = vld [vmem:[%s913 + $0x50] sm:$0xff]
        %v925 = vld [vmem:[%s913 + $0x58] sm:$0xff]
        %v926 = vld [vmem:[%s913 + $0x60] sm:$0xff]
        %v927 = vld [vmem:[%s913 + $0x68] sm:$0xff]
        %v928 = vld [vmem:[%s913 + $0x70] sm:$0xff]
        %v929 = vld [vmem:[%s913 + $0x78] sm:$0xff]
        %v930 = vld [vmem:[%s913 + $0x80] sm:$0xff]
        %v931 = vld [vmem:[%s913 + $0x88] sm:$0xff]
        %v932 = vld [vmem:[%s913 + $0x90] sm:$0xff]
        %v933 = vld [vmem:[%s913 + $0x98] sm:$0xff]
        %v934 = vld [vmem:[%s913 + $0xa0] sm:$0xff]
        %v935 = vld [vmem:[%s913 + $0xa8] sm:$0xff]
        %v936 = vld [vmem:[%s913 + $0xb0] sm:$0xff]
        %v937 = vld [vmem:[%s913 + $0xb8] sm:$0xff]
        %v938 = vld [vmem:[%s913 + $0xc0] sm:$0xff]
        %v939 = vld [vmem:[%s913 + $0xc8] sm:$0xff]
        %v940 = vld [vmem:[%s913 + $0xd0] sm:$0xff]
        %v941 = vld [vmem:[%s913 + $0xd8] sm:$0xff]
        %v942 = vld [vmem:[%s913 + $0xe0] sm:$0xff]
        %v943 = vld [vmem:[%s913 + $0xe8] sm:$0xff]
        %v944 = vld [vmem:[%s913 + $0xf0] sm:$0xff]
        %v945 = vld [vmem:[%s913 + $0xf8] sm:$0xff]
        %s946 = scalar_lea.vmem [#allocation14], 4
        %v947 = vld [vmem:[%s946] sm:$0xf]
        %v949 = vlaneseq
        %v950 = vshrl.u32 %v949, 7
        %v951 = vsub.s32 0, %v950
        %v952 = vrot.slane %v947, %v951
        %v953 = vlaneseq
        %v954 = vshrl.u32 %v953, 7
        %v955 = vsub.s32 1, %v954
        %v956 = vrot.slane %v947, %v955
        %v957 = vlaneseq
        %v958 = vshrl.u32 %v957, 7
        %v959 = vsub.s32 2, %v958
        %v960 = vrot.slane %v947, %v959
        %v961 = vlaneseq
        %v962 = vshrl.u32 %v961, 7
        %v963 = vsub.s32 3, %v962
        %v964 = vrot.slane %v947, %v963
        %v977 = vunpack.c.l.b16 %v905
        %v978 = vunpack.c.l.b16 %v906
        %v979 = vunpack.c.l.b16 %v907
        %v980 = vunpack.c.l.b16 %v908
        %v981 = vunpack.c.l.b16 %v909
        %v982 = vunpack.c.l.b16 %v910
        %v983 = vunpack.c.l.b16 %v911
        %v984 = vunpack.c.l.b16 %v912
        %v985 = vpack.c.b16 %v978, %v977
        %v986 = vpack.c.b16 %v980, %v979
        %v987 = vpack.c.b16 %v982, %v981
        %v988 = vpack.c.b16 %v984, %v983
        %v1025 = vunpack.c.l.b16 %v914
        %v1026 = vunpack.c.h.b16 %v914
        %v1027 = vunpack.c.l.b16 %v915
        %v1028 = vunpack.c.h.b16 %v915
        %v1029 = vunpack.c.l.b16 %v916
        %v1030 = vunpack.c.h.b16 %v916
        %v1031 = vunpack.c.l.b16 %v917
        %v1032 = vunpack.c.h.b16 %v917
        %v1033 = vunpack.c.l.b16 %v918
        %v1034 = vunpack.c.h.b16 %v918
        %v1035 = vunpack.c.l.b16 %v919
        %v1036 = vunpack.c.h.b16 %v919
        %v1037 = vunpack.c.l.b16 %v920
        %v1038 = vunpack.c.h.b16 %v920
        %v1039 = vunpack.c.l.b16 %v921
        %v1040 = vunpack.c.h.b16 %v921
        %v1041 = vunpack.c.l.b16 %v922
        %v1042 = vunpack.c.h.b16 %v922
        %v1043 = vunpack.c.l.b16 %v923
        %v1044 = vunpack.c.h.b16 %v923
        %v1045 = vunpack.c.l.b16 %v924
        %v1046 = vunpack.c.h.b16 %v924
        %v1047 = vunpack.c.l.b16 %v925
        %v1048 = vunpack.c.h.b16 %v925
        %v1049 = vunpack.c.l.b16 %v926
        %v1050 = vunpack.c.h.b16 %v926
        %v1051 = vunpack.c.l.b16 %v927
        %v1052 = vunpack.c.h.b16 %v927
        %v1053 = vunpack.c.l.b16 %v928
        %v1054 = vunpack.c.h.b16 %v928
        %v1055 = vunpack.c.l.b16 %v929
        %v1056 = vunpack.c.h.b16 %v929
        %v1057 = vunpack.c.l.b16 %v930
        %v1058 = vunpack.c.h.b16 %v930
        %v1059 = vunpack.c.l.b16 %v931
        %v1060 = vunpack.c.h.b16 %v931
        %v1061 = vunpack.c.l.b16 %v932
        %v1062 = vunpack.c.h.b16 %v932
        %v1063 = vunpack.c.l.b16 %v933
        %v1064 = vunpack.c.h.b16 %v933
        %v1065 = vunpack.c.l.b16 %v934
        %v1066 = vunpack.c.h.b16 %v934
        %v1067 = vunpack.c.l.b16 %v935
        %v1068 = vunpack.c.h.b16 %v935
        %v1069 = vunpack.c.l.b16 %v936
        %v1070 = vunpack.c.h.b16 %v936
        %v1071 = vunpack.c.l.b16 %v937
        %v1072 = vunpack.c.h.b16 %v937
        %v1073 = vunpack.c.l.b16 %v938
        %v1074 = vunpack.c.h.b16 %v938
        %v1075 = vunpack.c.l.b16 %v939
        %v1076 = vunpack.c.h.b16 %v939
        %v1077 = vunpack.c.l.b16 %v940
        %v1078 = vunpack.c.h.b16 %v940
        %v1079 = vunpack.c.l.b16 %v941
        %v1080 = vunpack.c.h.b16 %v941
        %v1081 = vunpack.c.l.b16 %v942
        %v1082 = vunpack.c.h.b16 %v942
        %v1083 = vunpack.c.l.b16 %v943
        %v1084 = vunpack.c.h.b16 %v943
        %v1085 = vunpack.c.l.b16 %v944
        %v1086 = vunpack.c.h.b16 %v944
        %v1087 = vunpack.c.l.b16 %v945
        %v1088 = vunpack.c.h.b16 %v945
        %v1089 = vpack.c.b16 %v1029, %v1025
        %v1090 = vpack.c.b16 %v1030, %v1026
        %v1091 = vpack.c.b16 %v1031, %v1027
        %v1092 = vpack.c.b16 %v1032, %v1028
        %v1093 = vpack.c.b16 %v1037, %v1033
        %v1094 = vpack.c.b16 %v1038, %v1034
        %v1095 = vpack.c.b16 %v1039, %v1035
        %v1096 = vpack.c.b16 %v1040, %v1036
        %v1097 = vpack.c.b16 %v1045, %v1041
        %v1098 = vpack.c.b16 %v1046, %v1042
        %v1099 = vpack.c.b16 %v1047, %v1043
        %v1100 = vpack.c.b16 %v1048, %v1044
        %v1101 = vpack.c.b16 %v1053, %v1049
        %v1102 = vpack.c.b16 %v1054, %v1050
        %v1103 = vpack.c.b16 %v1055, %v1051
        %v1104 = vpack.c.b16 %v1056, %v1052
        %v1105 = vpack.c.b16 %v1061, %v1057
        %v1106 = vpack.c.b16 %v1062, %v1058
        %v1107 = vpack.c.b16 %v1063, %v1059
        %v1108 = vpack.c.b16 %v1064, %v1060
        %v1109 = vpack.c.b16 %v1069, %v1065
        %v1110 = vpack.c.b16 %v1070, %v1066
        %v1111 = vpack.c.b16 %v1071, %v1067
        %v1112 = vpack.c.b16 %v1072, %v1068
        %v1113 = vpack.c.b16 %v1077, %v1073
        %v1114 = vpack.c.b16 %v1078, %v1074
        %v1115 = vpack.c.b16 %v1079, %v1075
        %v1116 = vpack.c.b16 %v1080, %v1076
        %v1117 = vpack.c.b16 %v1085, %v1081
        %v1118 = vpack.c.b16 %v1086, %v1082
        %v1119 = vpack.c.b16 %v1087, %v1083
        %v1120 = vpack.c.b16 %v1088, %v1084
        %1153 = vmatprep.subr.bf16.mxu0 %v1090
        %1154 = vmatpush1.bf16.msra.mxu0 %v1089
        %1155 = vmatprep.subr.bf16.mxu0 %v1094
        %1156 = vmatpush1.bf16.msra.mxu0 %v1093
        %1157 = vmatprep.subr.bf16.mxu0 %v1098
        %1158 = vmatpush1.bf16.msra.mxu0 %v1097
        %1159 = vmatprep.subr.bf16.mxu0 %v1102
        %1160 = vmatpush1.bf16.msra.mxu0 %v1101
        %1161 = vmatprep.subr.bf16.mxu0 %v1106
        %1162 = vmatpush1.bf16.msra.mxu0 %v1105
        %1163 = vmatprep.subr.bf16.mxu0 %v1110
        %1164 = vmatpush1.bf16.msra.mxu0 %v1109
        %1165 = vmatprep.subr.bf16.mxu0 %v1114
        %1166 = vmatpush1.bf16.msra.mxu0 %v1113
        %1167 = vmatprep.subr.bf16.mxu0 %v1118
        %1168 = vmatpush1.bf16.msra.mxu0 %v1117
        %1169 = vmatprep.subr.bf16.mxu0 0
        %1170 = vmatpush1.bf16.msra.mxu0 0
        %1171 = vmatprep.subr.bf16.mxu0 0
        %1172 = vmatpush1.bf16.msra.mxu0 0
        %1173 = vmatprep.subr.bf16.mxu0 0
        %1174 = vmatpush1.bf16.msra.mxu0 0
        %1175 = vmatprep.subr.bf16.mxu0 0
        %1176 = vmatpush1.bf16.msra.mxu0 0
        %1177 = vmatprep.subr.bf16.mxu0 0
        %1178 = vmatpush1.bf16.msra.mxu0 0
        %1179 = vmatprep.subr.bf16.mxu0 0
        %1180 = vmatpush1.bf16.msra.mxu0 0
        %1181 = vmatprep.subr.bf16.mxu0 0
        %1182 = vmatpush1.bf16.msra.mxu0 0
        %1183 = vmatprep.subr.bf16.mxu0 0
        %1184 = vmatpush1.bf16.msra.mxu0 0
        %1185 = vmatprep.mubr.bf16.mxu0 0
        %1186 = vmatmul.mubr.bf16.gmra.mrb[0].mxu0 %v985
        %v1187 = vpop.f32.mrb[0].mxu0
        %v1188 = vadd.f32 %v952, %v1187
        %v1189 = vpop.f32.mrb[0].mxu0
        %v1190 = vadd.f32 %v956, %v1189
        %v1191 = vpop.f32.mrb[0].mxu0
        %v1192 = vadd.f32 %v952, %v1191
        %v1193 = vpop.f32.mrb[0].mxu0
        %v1194 = vadd.f32 %v956, %v1193
        %1195 = vmatprep.mubr.bf16.mxu0 0
        %1196 = vmatmul.mubr.bf16.gmra.mrb[0].mxu0 %v986
        %v1197 = vpop.f32.mrb[0].mxu0
        %v1198 = vadd.f32 %v952, %v1197
        %v1199 = vpop.f32.mrb[0].mxu0
        %v1200 = vadd.f32 %v956, %v1199
        %v1201 = vpop.f32.mrb[0].mxu0
        %v1202 = vadd.f32 %v952, %v1201
        %v1203 = vpop.f32.mrb[0].mxu0
        %v1204 = vadd.f32 %v956, %v1203
        %1205 = vmatprep.mubr.bf16.mxu0 0
        %1206 = vmatmul.mubr.bf16.gmra.mrb[0].mxu0 %v987
        %v1207 = vpop.f32.mrb[0].mxu0
        %v1208 = vadd.f32 %v952, %v1207
        %v1209 = vpop.f32.mrb[0].mxu0
        %v1210 = vadd.f32 %v956, %v1209
        %v1211 = vpop.f32.mrb[0].mxu0
        %v1212 = vadd.f32 %v952, %v1211
        %v1213 = vpop.f32.mrb[0].mxu0
        %v1214 = vadd.f32 %v956, %v1213
        %1215 = vmatprep.mubr.bf16.mxu0 0
        %1216 = vmatmul.mubr.bf16.gmra.mrb[0].mxu0 %v988
        %v1217 = vpop.f32.mrb[0].mxu0
        %v1218 = vadd.f32 %v952, %v1217
        %v1219 = vpop.f32.mrb[0].mxu0
        %v1220 = vadd.f32 %v956, %v1219
        %v1221 = vpop.f32.mrb[0].mxu0
        %v1222 = vadd.f32 %v952, %v1221
        %v1223 = vpop.f32.mrb[0].mxu0
        %v1224 = vadd.f32 %v956, %v1223
        %1225 = vdwg.mxu0
        %1226 = vmatprep.subr.bf16.mxu0 %v1092
        %1227 = vmatpush1.bf16.msra.mxu0 %v1091
        %1228 = vmatprep.subr.bf16.mxu0 %v1096
        %1229 = vmatpush1.bf16.msra.mxu0 %v1095
        %1230 = vmatprep.subr.bf16.mxu0 %v1100
        %1231 = vmatpush1.bf16.msra.mxu0 %v1099
        %1232 = vmatprep.subr.bf16.mxu0 %v1104
        %1233 = vmatpush1.bf16.msra.mxu0 %v1103
        %1234 = vmatprep.subr.bf16.mxu0 %v1108
        %1235 = vmatpush1.bf16.msra.mxu0 %v1107
        %1236 = vmatprep.subr.bf16.mxu0 %v1112
        %1237 = vmatpush1.bf16.msra.mxu0 %v1111
        %1238 = vmatprep.subr.bf16.mxu0 %v1116
        %1239 = vmatpush1.bf16.msra.mxu0 %v1115
        %1240 = vmatprep.subr.bf16.mxu0 %v1120
        %1241 = vmatpush1.bf16.msra.mxu0 %v1119
        %1242 = vmatprep.subr.bf16.mxu0 0
        %1243 = vmatpush1.bf16.msra.mxu0 0
        %1244 = vmatprep.subr.bf16.mxu0 0
        %1245 = vmatpush1.bf16.msra.mxu0 0
        %1246 = vmatprep.subr.bf16.mxu0 0
        %1247 = vmatpush1.bf16.msra.mxu0 0
        %1248 = vmatprep.subr.bf16.mxu0 0
        %1249 = vmatpush1.bf16.msra.mxu0 0
        %1250 = vmatprep.subr.bf16.mxu0 0
        %1251 = vmatpush1.bf16.msra.mxu0 0
        %1252 = vmatprep.subr.bf16.mxu0 0
        %1253 = vmatpush1.bf16.msra.mxu0 0
        %1254 = vmatprep.subr.bf16.mxu0 0
        %1255 = vmatpush1.bf16.msra.mxu0 0
        %1256 = vmatprep.subr.bf16.mxu0 0
        %1257 = vmatpush1.bf16.msra.mxu0 0
        %1258 = vmatprep.mubr.bf16.mxu0 0
        %1259 = vmatmul.mubr.bf16.gmra.mrb[0].mxu0 %v985
        %v1260 = vpop.f32.mrb[0].mxu0
        %v1261 = vadd.f32 %v960, %v1260
        %v1262 = vpop.f32.mrb[0].mxu0
        %v1263 = vadd.f32 %v964, %v1262
        %v1264 = vpop.f32.mrb[0].mxu0
        %v1265 = vadd.f32 %v960, %v1264
        %v1266 = vpop.f32.mrb[0].mxu0
        %v1267 = vadd.f32 %v964, %v1266
        %1268 = vmatprep.mubr.bf16.mxu0 0
        %1269 = vmatmul.mubr.bf16.gmra.mrb[0].mxu0 %v986
        %v1270 = vpop.f32.mrb[0].mxu0
        %v1271 = vadd.f32 %v960, %v1270
        %v1272 = vpop.f32.mrb[0].mxu0
        %v1273 = vadd.f32 %v964, %v1272
        %v1274 = vpop.f32.mrb[0].mxu0
        %v1275 = vadd.f32 %v960, %v1274
        %v1276 = vpop.f32.mrb[0].mxu0
        %v1277 = vadd.f32 %v964, %v1276
        %1278 = vmatprep.mubr.bf16.mxu0 0
        %1279 = vmatmul.mubr.bf16.gmra.mrb[0].mxu0 %v987
        %v1280 = vpop.f32.mrb[0].mxu0
        %v1281 = vadd.f32 %v960, %v1280
        %v1282 = vpop.f32.mrb[0].mxu0
        %v1283 = vadd.f32 %v964, %v1282
        %v1284 = vpop.f32.mrb[0].mxu0
        %v1285 = vadd.f32 %v960, %v1284
        %v1286 = vpop.f32.mrb[0].mxu0
        %v1287 = vadd.f32 %v964, %v1286
        %1288 = vmatprep.mubr.bf16.mxu0 0
        %1289 = vmatmul.mubr.bf16.gmra.mrb[0].mxu0 %v988
        %v1290 = vpop.f32.mrb[0].mxu0
        %v1291 = vadd.f32 %v960, %v1290
        %v1292 = vpop.f32.mrb[0].mxu0
        %v1293 = vadd.f32 %v964, %v1292
        %v1294 = vpop.f32.mrb[0].mxu0
        %v1295 = vadd.f32 %v960, %v1294
        %v1296 = vpop.f32.mrb[0].mxu0
        %v1297 = vadd.f32 %v964, %v1296
        %1298 = vdwg.mxu0
        %v1299 = vpack.c.bf16 %v1192, %v1188
        %v1300 = vpack.c.bf16 %v1194, %v1190
        %v1301 = vpack.c.bf16 %v1265, %v1261
        %v1302 = vpack.c.bf16 %v1267, %v1263
        %v1303 = vpack.c.bf16 %v1202, %v1198
        %v1304 = vpack.c.bf16 %v1204, %v1200
        %v1305 = vpack.c.bf16 %v1275, %v1271
        %v1306 = vpack.c.bf16 %v1277, %v1273
        %v1307 = vpack.c.bf16 %v1212, %v1208
        %v1308 = vpack.c.bf16 %v1214, %v1210
        %v1309 = vpack.c.bf16 %v1285, %v1281
        %v1310 = vpack.c.bf16 %v1287, %v1283
        %v1311 = vpack.c.bf16 %v1222, %v1218
        %v1312 = vpack.c.bf16 %v1224, %v1220
        %v1313 = vpack.c.bf16 %v1295, %v1291
        %v1314 = vpack.c.bf16 %v1297, %v1293
        %1315 = vst [vmem:[#allocation3] sm:$0xff] %v1299
        %1316 = vst [vmem:[#allocation3 + $0x8] sm:$0xff] %v1300
        %1317 = vst [vmem:[#allocation3 + $0x10] sm:$0xff] %v1301
        %1318 = vst [vmem:[#allocation3 + $0x18] sm:$0xff] %v1302
        %1319 = vst [vmem:[#allocation3 + $0x20] sm:$0xff] %v1303
        %1320 = vst [vmem:[#allocation3 + $0x28] sm:$0xff] %v1304
        %1321 = vst [vmem:[#allocation3 + $0x30] sm:$0xff] %v1305
        %1322 = vst [vmem:[#allocation3 + $0x38] sm:$0xff] %v1306
        %1323 = vst [vmem:[#allocation3 + $0x40] sm:$0xff] %v1307
        %1324 = vst [vmem:[#allocation3 + $0x48] sm:$0xff] %v1308
        %1325 = vst [vmem:[#allocation3 + $0x50] sm:$0xff] %v1309
        %1326 = vst [vmem:[#allocation3 + $0x58] sm:$0xff] %v1310
        %1327 = vst [vmem:[#allocation3 + $0x60] sm:$0xff] %v1311
        %1328 = vst [vmem:[#allocation3 + $0x68] sm:$0xff] %v1312
        %1329 = vst [vmem:[#allocation3 + $0x70] sm:$0xff] %v1313
        %1330 = vst [vmem:[#allocation3 + $0x78] sm:$0xff] %v1314
        %v1331 = vld [vmem:[#allocation12] sm:$0xff]
        %v1332 = vld [vmem:[#allocation12 + $0x8] sm:$0xff]
        %v1333 = vld [vmem:[#allocation12 + $0x10] sm:$0xff]
        %v1334 = vld [vmem:[#allocation12 + $0x18] sm:$0xff]
        %v1335 = vld [vmem:[#allocation12 + $0x20] sm:$0xff]
        %v1336 = vld [vmem:[#allocation12 + $0x28] sm:$0xff]
        %v1337 = vld [vmem:[#allocation12 + $0x30] sm:$0xff]
        %v1338 = vld [vmem:[#allocation12 + $0x38] sm:$0xff]
        %v1339 = vld [vmem:[#allocation12 + $0x40] sm:$0xff]
        %v1340 = vld [vmem:[#allocation12 + $0x48] sm:$0xff]
        %v1341 = vld [vmem:[#allocation12 + $0x50] sm:$0xff]
        %v1342 = vld [vmem:[#allocation12 + $0x58] sm:$0xff]
        %v1343 = vld [vmem:[#allocation12 + $0x60] sm:$0xff]
        %v1344 = vld [vmem:[#allocation12 + $0x68] sm:$0xff]
        %v1345 = vld [vmem:[#allocation12 + $0x70] sm:$0xff]
        %v1346 = vld [vmem:[#allocation12 + $0x78] sm:$0xff]
        %v1347 = vld [vmem:[#allocation12 + $0x80] sm:$0xff]
        %v1348 = vld [vmem:[#allocation12 + $0x88] sm:$0xff]
        %v1349 = vld [vmem:[#allocation12 + $0x90] sm:$0xff]
        %v1350 = vld [vmem:[#allocation12 + $0x98] sm:$0xff]
        %v1351 = vld [vmem:[#allocation12 + $0xa0] sm:$0xff]
        %v1352 = vld [vmem:[#allocation12 + $0xa8] sm:$0xff]
        %v1353 = vld [vmem:[#allocation12 + $0xb0] sm:$0xff]
        %v1354 = vld [vmem:[#allocation12 + $0xb8] sm:$0xff]
        %v1355 = vld [vmem:[#allocation12 + $0xc0] sm:$0xff]
        %v1356 = vld [vmem:[#allocation12 + $0xc8] sm:$0xff]
        %v1357 = vld [vmem:[#allocation12 + $0xd0] sm:$0xff]
        %v1358 = vld [vmem:[#allocation12 + $0xd8] sm:$0xff]
        %v1359 = vld [vmem:[#allocation12 + $0xe0] sm:$0xff]
        %v1360 = vld [vmem:[#allocation12 + $0xe8] sm:$0xff]
        %v1361 = vld [vmem:[#allocation12 + $0xf0] sm:$0xff]
        %v1362 = vld [vmem:[#allocation12 + $0xf8] sm:$0xff]
        %v1363 = vld [vmem:[#allocation12 + $0x100] sm:$0xff]
        %v1364 = vld [vmem:[#allocation12 + $0x108] sm:$0xff]
        %v1365 = vld [vmem:[#allocation12 + $0x110] sm:$0xff]
        %v1366 = vld [vmem:[#allocation12 + $0x118] sm:$0xff]
        %v1367 = vld [vmem:[#allocation12 + $0x120] sm:$0xff]
        %v1368 = vld [vmem:[#allocation12 + $0x128] sm:$0xff]
        %v1369 = vld [vmem:[#allocation12 + $0x130] sm:$0xff]
        %v1370 = vld [vmem:[#allocation12 + $0x138] sm:$0xff]
        %v1371 = vld [vmem:[#allocation12 + $0x140] sm:$0xff]
        %v1372 = vld [vmem:[#allocation12 + $0x148] sm:$0xff]
        %v1373 = vld [vmem:[#allocation12 + $0x150] sm:$0xff]
        %v1374 = vld [vmem:[#allocation12 + $0x158] sm:$0xff]
        %v1375 = vld [vmem:[#allocation12 + $0x160] sm:$0xff]
        %v1376 = vld [vmem:[#allocation12 + $0x168] sm:$0xff]
        %v1377 = vld [vmem:[#allocation12 + $0x170] sm:$0xff]
        %v1378 = vld [vmem:[#allocation12 + $0x178] sm:$0xff]
        %v1379 = vld [vmem:[#allocation12 + $0x180] sm:$0xff]
        %v1380 = vld [vmem:[#allocation12 + $0x188] sm:$0xff]
        %v1381 = vld [vmem:[#allocation12 + $0x190] sm:$0xff]
        %v1382 = vld [vmem:[#allocation12 + $0x198] sm:$0xff]
        %v1383 = vld [vmem:[#allocation12 + $0x1a0] sm:$0xff]
        %v1384 = vld [vmem:[#allocation12 + $0x1a8] sm:$0xff]
        %v1385 = vld [vmem:[#allocation12 + $0x1b0] sm:$0xff]
        %v1386 = vld [vmem:[#allocation12 + $0x1b8] sm:$0xff]
        %v1387 = vld [vmem:[#allocation12 + $0x1c0] sm:$0xff]
        %v1388 = vld [vmem:[#allocation12 + $0x1c8] sm:$0xff]
        %v1389 = vld [vmem:[#allocation12 + $0x1d0] sm:$0xff]
        %v1390 = vld [vmem:[#allocation12 + $0x1d8] sm:$0xff]
        %v1391 = vld [vmem:[#allocation12 + $0x1e0] sm:$0xff]
        %v1392 = vld [vmem:[#allocation12 + $0x1e8] sm:$0xff]
        %v1393 = vld [vmem:[#allocation12 + $0x1f0] sm:$0xff]
        %v1394 = vld [vmem:[#allocation12 + $0x1f8] sm:$0xff]
        %v1395 = vld [vmem:[#allocation12 + $0x200] sm:$0xff]
        %v1396 = vld [vmem:[#allocation12 + $0x208] sm:$0xff]
        %v1397 = vld [vmem:[#allocation12 + $0x210] sm:$0xff]
        %v1398 = vld [vmem:[#allocation12 + $0x218] sm:$0xff]
        %v1399 = vld [vmem:[#allocation12 + $0x220] sm:$0xff]
        %v1400 = vld [vmem:[#allocation12 + $0x228] sm:$0xff]
        %v1401 = vld [vmem:[#allocation12 + $0x230] sm:$0xff]
        %v1402 = vld [vmem:[#allocation12 + $0x238] sm:$0xff]
        %v1403 = vld [vmem:[#allocation12 + $0x240] sm:$0xff]
        %v1404 = vld [vmem:[#allocation12 + $0x248] sm:$0xff]
        %v1405 = vld [vmem:[#allocation12 + $0x250] sm:$0xff]
        %v1406 = vld [vmem:[#allocation12 + $0x258] sm:$0xff]
        %v1407 = vld [vmem:[#allocation12 + $0x260] sm:$0xff]
        %v1408 = vld [vmem:[#allocation12 + $0x268] sm:$0xff]
        %v1409 = vld [vmem:[#allocation12 + $0x270] sm:$0xff]
        %v1410 = vld [vmem:[#allocation12 + $0x278] sm:$0xff]
        %v1411 = vld [vmem:[#allocation12 + $0x280] sm:$0xff]
        %v1412 = vld [vmem:[#allocation12 + $0x288] sm:$0xff]
        %v1413 = vld [vmem:[#allocation12 + $0x290] sm:$0xff]
        %v1414 = vld [vmem:[#allocation12 + $0x298] sm:$0xff]
        %v1415 = vld [vmem:[#allocation12 + $0x2a0] sm:$0xff]
        %v1416 = vld [vmem:[#allocation12 + $0x2a8] sm:$0xff]
        %v1417 = vld [vmem:[#allocation12 + $0x2b0] sm:$0xff]
        %v1418 = vld [vmem:[#allocation12 + $0x2b8] sm:$0xff]
        %v1419 = vld [vmem:[#allocation12 + $0x2c0] sm:$0xff]
        %v1420 = vld [vmem:[#allocation12 + $0x2c8] sm:$0xff]
        %v1421 = vld [vmem:[#allocation12 + $0x2d0] sm:$0xff]
        %v1422 = vld [vmem:[#allocation12 + $0x2d8] sm:$0xff]
        %v1423 = vld [vmem:[#allocation12 + $0x2e0] sm:$0xff]
        %v1424 = vld [vmem:[#allocation12 + $0x2e8] sm:$0xff]
        %v1425 = vld [vmem:[#allocation12 + $0x2f0] sm:$0xff]
        %v1426 = vld [vmem:[#allocation12 + $0x2f8] sm:$0xff]
        %v1427 = vld [vmem:[#allocation12 + $0x300] sm:$0xff]
        %v1428 = vld [vmem:[#allocation12 + $0x308] sm:$0xff]
        %v1429 = vld [vmem:[#allocation12 + $0x310] sm:$0xff]
        %v1430 = vld [vmem:[#allocation12 + $0x318] sm:$0xff]
        %v1431 = vld [vmem:[#allocation12 + $0x320] sm:$0xff]
        %v1432 = vld [vmem:[#allocation12 + $0x328] sm:$0xff]
        %v1433 = vld [vmem:[#allocation12 + $0x330] sm:$0xff]
        %v1434 = vld [vmem:[#allocation12 + $0x338] sm:$0xff]
        %v1435 = vld [vmem:[#allocation12 + $0x340] sm:$0xff]
        %v1436 = vld [vmem:[#allocation12 + $0x348] sm:$0xff]
        %v1437 = vld [vmem:[#allocation12 + $0x350] sm:$0xff]
        %v1438 = vld [vmem:[#allocation12 + $0x358] sm:$0xff]
        %v1439 = vld [vmem:[#allocation12 + $0x360] sm:$0xff]
        %v1440 = vld [vmem:[#allocation12 + $0x368] sm:$0xff]
        %v1441 = vld [vmem:[#allocation12 + $0x370] sm:$0xff]
        %v1442 = vld [vmem:[#allocation12 + $0x378] sm:$0xff]
        %v1443 = vld [vmem:[#allocation12 + $0x380] sm:$0xff]
        %v1444 = vld [vmem:[#allocation12 + $0x388] sm:$0xff]
        %v1445 = vld [vmem:[#allocation12 + $0x390] sm:$0xff]
        %v1446 = vld [vmem:[#allocation12 + $0x398] sm:$0xff]
        %v1447 = vld [vmem:[#allocation12 + $0x3a0] sm:$0xff]
        %v1448 = vld [vmem:[#allocation12 + $0x3a8] sm:$0xff]
        %v1449 = vld [vmem:[#allocation12 + $0x3b0] sm:$0xff]
        %v1450 = vld [vmem:[#allocation12 + $0x3b8] sm:$0xff]
        %v1451 = vld [vmem:[#allocation12 + $0x3c0] sm:$0xff]
        %v1452 = vld [vmem:[#allocation12 + $0x3c8] sm:$0xff]
        %v1453 = vld [vmem:[#allocation12 + $0x3d0] sm:$0xff]
        %v1454 = vld [vmem:[#allocation12 + $0x3d8] sm:$0xff]
        %v1455 = vld [vmem:[#allocation12 + $0x3e0] sm:$0xff]
        %v1456 = vld [vmem:[#allocation12 + $0x3e8] sm:$0xff]
        %v1457 = vld [vmem:[#allocation12 + $0x3f0] sm:$0xff]
        %v1458 = vld [vmem:[#allocation12 + $0x3f8] sm:$0xff]
        %v1459 = vld [vmem:[#allocation15] sm:$0xff]
        %v1460 = vld [vmem:[#allocation15 + $0x8] sm:$0xff]
        %s1461 = smul.u32 %s36, 4
        %s1462 = ssub.s32 1, %s36
        %s1463 = smul.u32 %s1462, 4
        %v1464 = vld [vmem:[#allocation4] sm:$0xff]
        %v1465 = vld [vmem:[#allocation4 + $0x8] sm:$0xff]
        %v1466 = vld [vmem:[#allocation4 + $0x10] sm:$0xff]
        %v1467 = vld [vmem:[#allocation4 + $0x18] sm:$0xff]
        %v1468 = vld [vmem:[#allocation5] sm:$0xff]
        %v1469 = vld [vmem:[#allocation5 + $0x8] sm:$0xff]
        %v1470 = vld [vmem:[#allocation5 + $0x10] sm:$0xff]
        %v1471 = vld [vmem:[#allocation5 + $0x18] sm:$0xff]
        %v1472 = vpack.c.bf16 %v1466, %v1464
        %v1473 = vpack.c.bf16 %v1467, %v1465
        %v1602 = vunpack.c.l.b16 %v1331
        %v1603 = vunpack.c.h.b16 %v1331
        %v1604 = vunpack.c.l.b16 %v1332
        %v1605 = vunpack.c.h.b16 %v1332
        %v1606 = vunpack.c.l.b16 %v1333
        %v1607 = vunpack.c.h.b16 %v1333
        %v1608 = vunpack.c.l.b16 %v1334
        %v1609 = vunpack.c.h.b16 %v1334
        %v1610 = vunpack.c.l.b16 %v1335
        %v1611 = vunpack.c.h.b16 %v1335
        %v1612 = vunpack.c.l.b16 %v1336
        %v1613 = vunpack.c.h.b16 %v1336
        %v1614 = vunpack.c.l.b16 %v1337
        %v1615 = vunpack.c.h.b16 %v1337
        %v1616 = vunpack.c.l.b16 %v1338
        %v1617 = vunpack.c.h.b16 %v1338
        %v1618 = vunpack.c.l.b16 %v1339
        %v1619 = vunpack.c.h.b16 %v1339
        %v1620 = vunpack.c.l.b16 %v1340
        %v1621 = vunpack.c.h.b16 %v1340
        %v1622 = vunpack.c.l.b16 %v1341
        %v1623 = vunpack.c.h.b16 %v1341
        %v1624 = vunpack.c.l.b16 %v1342
        %v1625 = vunpack.c.h.b16 %v1342
        %v1626 = vunpack.c.l.b16 %v1343
        %v1627 = vunpack.c.h.b16 %v1343
        %v1628 = vunpack.c.l.b16 %v1344
        %v1629 = vunpack.c.h.b16 %v1344
        %v1630 = vunpack.c.l.b16 %v1345
        %v1631 = vunpack.c.h.b16 %v1345
        %v1632 = vunpack.c.l.b16 %v1346
        %v1633 = vunpack.c.h.b16 %v1346
        %v1634 = vunpack.c.l.b16 %v1347
        %v1635 = vunpack.c.h.b16 %v1347
        %v1636 = vunpack.c.l.b16 %v1348
        %v1637 = vunpack.c.h.b16 %v1348
        %v1638 = vunpack.c.l.b16 %v1349
        %v1639 = vunpack.c.h.b16 %v1349
        %v1640 = vunpack.c.l.b16 %v1350
        %v1641 = vunpack.c.h.b16 %v1350
        %v1642 = vunpack.c.l.b16 %v1351
        %v1643 = vunpack.c.h.b16 %v1351
        %v1644 = vunpack.c.l.b16 %v1352
        %v1645 = vunpack.c.h.b16 %v1352
        %v1646 = vunpack.c.l.b16 %v1353
        %v1647 = vunpack.c.h.b16 %v1353
        %v1648 = vunpack.c.l.b16 %v1354
        %v1649 = vunpack.c.h.b16 %v1354
        %v1650 = vunpack.c.l.b16 %v1355
        %v1651 = vunpack.c.h.b16 %v1355
        %v1652 = vunpack.c.l.b16 %v1356
        %v1653 = vunpack.c.h.b16 %v1356
        %v1654 = vunpack.c.l.b16 %v1357
        %v1655 = vunpack.c.h.b16 %v1357
        %v1656 = vunpack.c.l.b16 %v1358
        %v1657 = vunpack.c.h.b16 %v1358
        %v1658 = vunpack.c.l.b16 %v1359
        %v1659 = vunpack.c.h.b16 %v1359
        %v1660 = vunpack.c.l.b16 %v1360
        %v1661 = vunpack.c.h.b16 %v1360
        %v1662 = vunpack.c.l.b16 %v1361
        %v1663 = vunpack.c.h.b16 %v1361
        %v1664 = vunpack.c.l.b16 %v1362
        %v1665 = vunpack.c.h.b16 %v1362
        %v1666 = vunpack.c.l.b16 %v1363
        %v1667 = vunpack.c.h.b16 %v1363
        %v1668 = vunpack.c.l.b16 %v1364
        %v1669 = vunpack.c.h.b16 %v1364
        %v1670 = vunpack.c.l.b16 %v1365
        %v1671 = vunpack.c.h.b16 %v1365
        %v1672 = vunpack.c.l.b16 %v1366
        %v1673 = vunpack.c.h.b16 %v1366
        %v1674 = vunpack.c.l.b16 %v1367
        %v1675 = vunpack.c.h.b16 %v1367
        %v1676 = vunpack.c.l.b16 %v1368
        %v1677 = vunpack.c.h.b16 %v1368
        %v1678 = vunpack.c.l.b16 %v1369
        %v1679 = vunpack.c.h.b16 %v1369
        %v1680 = vunpack.c.l.b16 %v1370
        %v1681 = vunpack.c.h.b16 %v1370
        %v1682 = vunpack.c.l.b16 %v1371
        %v1683 = vunpack.c.h.b16 %v1371
        %v1684 = vunpack.c.l.b16 %v1372
        %v1685 = vunpack.c.h.b16 %v1372
        %v1686 = vunpack.c.l.b16 %v1373
        %v1687 = vunpack.c.h.b16 %v1373
        %v1688 = vunpack.c.l.b16 %v1374
        %v1689 = vunpack.c.h.b16 %v1374
        %v1690 = vunpack.c.l.b16 %v1375
        %v1691 = vunpack.c.h.b16 %v1375
        %v1692 = vunpack.c.l.b16 %v1376
        %v1693 = vunpack.c.h.b16 %v1376
        %v1694 = vunpack.c.l.b16 %v1377
        %v1695 = vunpack.c.h.b16 %v1377
        %v1696 = vunpack.c.l.b16 %v1378
        %v1697 = vunpack.c.h.b16 %v1378
        %v1698 = vunpack.c.l.b16 %v1379
        %v1699 = vunpack.c.h.b16 %v1379
        %v1700 = vunpack.c.l.b16 %v1380
        %v1701 = vunpack.c.h.b16 %v1380
        %v1702 = vunpack.c.l.b16 %v1381
        %v1703 = vunpack.c.h.b16 %v1381
        %v1704 = vunpack.c.l.b16 %v1382
        %v1705 = vunpack.c.h.b16 %v1382
        %v1706 = vunpack.c.l.b16 %v1383
        %v1707 = vunpack.c.h.b16 %v1383
        %v1708 = vunpack.c.l.b16 %v1384
        %v1709 = vunpack.c.h.b16 %v1384
        %v1710 = vunpack.c.l.b16 %v1385
        %v1711 = vunpack.c.h.b16 %v1385
        %v1712 = vunpack.c.l.b16 %v1386
        %v1713 = vunpack.c.h.b16 %v1386
        %v1714 = vunpack.c.l.b16 %v1387
        %v1715 = vunpack.c.h.b16 %v1387
        %v1716 = vunpack.c.l.b16 %v1388
        %v1717 = vunpack.c.h.b16 %v1388
        %v1718 = vunpack.c.l.b16 %v1389
        %v1719 = vunpack.c.h.b16 %v1389
        %v1720 = vunpack.c.l.b16 %v1390
        %v1721 = vunpack.c.h.b16 %v1390
        %v1722 = vunpack.c.l.b16 %v1391
        %v1723 = vunpack.c.h.b16 %v1391
        %v1724 = vunpack.c.l.b16 %v1392
        %v1725 = vunpack.c.h.b16 %v1392
        %v1726 = vunpack.c.l.b16 %v1393
        %v1727 = vunpack.c.h.b16 %v1393
        %v1728 = vunpack.c.l.b16 %v1394
        %v1729 = vunpack.c.h.b16 %v1394
        %v1730 = vunpack.c.l.b16 %v1395
        %v1731 = vunpack.c.h.b16 %v1395
        %v1732 = vunpack.c.l.b16 %v1396
        %v1733 = vunpack.c.h.b16 %v1396
        %v1734 = vunpack.c.l.b16 %v1397
        %v1735 = vunpack.c.h.b16 %v1397
        %v1736 = vunpack.c.l.b16 %v1398
        %v1737 = vunpack.c.h.b16 %v1398
        %v1738 = vunpack.c.l.b16 %v1399
        %v1739 = vunpack.c.h.b16 %v1399
        %v1740 = vunpack.c.l.b16 %v1400
        %v1741 = vunpack.c.h.b16 %v1400
        %v1742 = vunpack.c.l.b16 %v1401
        %v1743 = vunpack.c.h.b16 %v1401
        %v1744 = vunpack.c.l.b16 %v1402
        %v1745 = vunpack.c.h.b16 %v1402
        %v1746 = vunpack.c.l.b16 %v1403
        %v1747 = vunpack.c.h.b16 %v1403
        %v1748 = vunpack.c.l.b16 %v1404
        %v1749 = vunpack.c.h.b16 %v1404
        %v1750 = vunpack.c.l.b16 %v1405
        %v1751 = vunpack.c.h.b16 %v1405
        %v1752 = vunpack.c.l.b16 %v1406
        %v1753 = vunpack.c.h.b16 %v1406
        %v1754 = vunpack.c.l.b16 %v1407
        %v1755 = vunpack.c.h.b16 %v1407
        %v1756 = vunpack.c.l.b16 %v1408
        %v1757 = vunpack.c.h.b16 %v1408
        %v1758 = vunpack.c.l.b16 %v1409
        %v1759 = vunpack.c.h.b16 %v1409
        %v1760 = vunpack.c.l.b16 %v1410
        %v1761 = vunpack.c.h.b16 %v1410
        %v1762 = vunpack.c.l.b16 %v1411
        %v1763 = vunpack.c.h.b16 %v1411
        %v1764 = vunpack.c.l.b16 %v1412
        %v1765 = vunpack.c.h.b16 %v1412
        %v1766 = vunpack.c.l.b16 %v1413
        %v1767 = vunpack.c.h.b16 %v1413
        %v1768 = vunpack.c.l.b16 %v1414
        %v1769 = vunpack.c.h.b16 %v1414
        %v1770 = vunpack.c.l.b16 %v1415
        %v1771 = vunpack.c.h.b16 %v1415
        %v1772 = vunpack.c.l.b16 %v1416
        %v1773 = vunpack.c.h.b16 %v1416
        %v1774 = vunpack.c.l.b16 %v1417
        %v1775 = vunpack.c.h.b16 %v1417
        %v1776 = vunpack.c.l.b16 %v1418
        %v1777 = vunpack.c.h.b16 %v1418
        %v1778 = vunpack.c.l.b16 %v1419
        %v1779 = vunpack.c.h.b16 %v1419
        %v1780 = vunpack.c.l.b16 %v1420
        %v1781 = vunpack.c.h.b16 %v1420
        %v1782 = vunpack.c.l.b16 %v1421
        %v1783 = vunpack.c.h.b16 %v1421
        %v1784 = vunpack.c.l.b16 %v1422
        %v1785 = vunpack.c.h.b16 %v1422
        %v1786 = vunpack.c.l.b16 %v1423
        %v1787 = vunpack.c.h.b16 %v1423
        %v1788 = vunpack.c.l.b16 %v1424
        %v1789 = vunpack.c.h.b16 %v1424
        %v1790 = vunpack.c.l.b16 %v1425
        %v1791 = vunpack.c.h.b16 %v1425
        %v1792 = vunpack.c.l.b16 %v1426
        %v1793 = vunpack.c.h.b16 %v1426
        %v1794 = vunpack.c.l.b16 %v1427
        %v1795 = vunpack.c.h.b16 %v1427
        %v1796 = vunpack.c.l.b16 %v1428
        %v1797 = vunpack.c.h.b16 %v1428
        %v1798 = vunpack.c.l.b16 %v1429
        %v1799 = vunpack.c.h.b16 %v1429
        %v1800 = vunpack.c.l.b16 %v1430
        %v1801 = vunpack.c.h.b16 %v1430
        %v1802 = vunpack.c.l.b16 %v1431
        %v1803 = vunpack.c.h.b16 %v1431
        %v1804 = vunpack.c.l.b16 %v1432
        %v1805 = vunpack.c.h.b16 %v1432
        %v1806 = vunpack.c.l.b16 %v1433
        %v1807 = vunpack.c.h.b16 %v1433
        %v1808 = vunpack.c.l.b16 %v1434
        %v1809 = vunpack.c.h.b16 %v1434
        %v1810 = vunpack.c.l.b16 %v1435
        %v1811 = vunpack.c.h.b16 %v1435
        %v1812 = vunpack.c.l.b16 %v1436
        %v1813 = vunpack.c.h.b16 %v1436
        %v1814 = vunpack.c.l.b16 %v1437
        %v1815 = vunpack.c.h.b16 %v1437
        %v1816 = vunpack.c.l.b16 %v1438
        %v1817 = vunpack.c.h.b16 %v1438
        %v1818 = vunpack.c.l.b16 %v1439
        %v1819 = vunpack.c.h.b16 %v1439
        %v1820 = vunpack.c.l.b16 %v1440
        %v1821 = vunpack.c.h.b16 %v1440
        %v1822 = vunpack.c.l.b16 %v1441
        %v1823 = vunpack.c.h.b16 %v1441
        %v1824 = vunpack.c.l.b16 %v1442
        %v1825 = vunpack.c.h.b16 %v1442
        %v1826 = vunpack.c.l.b16 %v1443
        %v1827 = vunpack.c.h.b16 %v1443
        %v1828 = vunpack.c.l.b16 %v1444
        %v1829 = vunpack.c.h.b16 %v1444
        %v1830 = vunpack.c.l.b16 %v1445
        %v1831 = vunpack.c.h.b16 %v1445
        %v1832 = vunpack.c.l.b16 %v1446
        %v1833 = vunpack.c.h.b16 %v1446
        %v1834 = vunpack.c.l.b16 %v1447
        %v1835 = vunpack.c.h.b16 %v1447
        %v1836 = vunpack.c.l.b16 %v1448
        %v1837 = vunpack.c.h.b16 %v1448
        %v1838 = vunpack.c.l.b16 %v1449
        %v1839 = vunpack.c.h.b16 %v1449
        %v1840 = vunpack.c.l.b16 %v1450
        %v1841 = vunpack.c.h.b16 %v1450
        %v1842 = vunpack.c.l.b16 %v1451
        %v1843 = vunpack.c.h.b16 %v1451
        %v1844 = vunpack.c.l.b16 %v1452
        %v1845 = vunpack.c.h.b16 %v1452
        %v1846 = vunpack.c.l.b16 %v1453
        %v1847 = vunpack.c.h.b16 %v1453
        %v1848 = vunpack.c.l.b16 %v1454
        %v1849 = vunpack.c.h.b16 %v1454
        %v1850 = vunpack.c.l.b16 %v1455
        %v1851 = vunpack.c.h.b16 %v1455
        %v1852 = vunpack.c.l.b16 %v1456
        %v1853 = vunpack.c.h.b16 %v1456
        %v1854 = vunpack.c.l.b16 %v1457
        %v1855 = vunpack.c.h.b16 %v1457
        %v1856 = vunpack.c.l.b16 %v1458
        %v1857 = vunpack.c.h.b16 %v1458
        %v1858 = vpack.c.b16 %v1610, %v1602
        %v1859 = vpack.c.b16 %v1611, %v1603
        %v1860 = vpack.c.b16 %v1612, %v1604
        %v1861 = vpack.c.b16 %v1613, %v1605
        %v1862 = vpack.c.b16 %v1614, %v1606
        %v1863 = vpack.c.b16 %v1615, %v1607
        %v1864 = vpack.c.b16 %v1616, %v1608
        %v1865 = vpack.c.b16 %v1617, %v1609
        %v1866 = vpack.c.b16 %v1626, %v1618
        %v1867 = vpack.c.b16 %v1627, %v1619
        %v1868 = vpack.c.b16 %v1628, %v1620
        %v1869 = vpack.c.b16 %v1629, %v1621
        %v1870 = vpack.c.b16 %v1630, %v1622
        %v1871 = vpack.c.b16 %v1631, %v1623
        %v1872 = vpack.c.b16 %v1632, %v1624
        %v1873 = vpack.c.b16 %v1633, %v1625
        %v1874 = vpack.c.b16 %v1642, %v1634
        %v1875 = vpack.c.b16 %v1643, %v1635
        %v1876 = vpack.c.b16 %v1644, %v1636
        %v1877 = vpack.c.b16 %v1645, %v1637
        %v1878 = vpack.c.b16 %v1646, %v1638
        %v1879 = vpack.c.b16 %v1647, %v1639
        %v1880 = vpack.c.b16 %v1648, %v1640
        %v1881 = vpack.c.b16 %v1649, %v1641
        %v1882 = vpack.c.b16 %v1658, %v1650
        %v1883 = vpack.c.b16 %v1659, %v1651
        %v1884 = vpack.c.b16 %v1660, %v1652
        %v1885 = vpack.c.b16 %v1661, %v1653
        %v1886 = vpack.c.b16 %v1662, %v1654
        %v1887 = vpack.c.b16 %v1663, %v1655
        %v1888 = vpack.c.b16 %v1664, %v1656
        %v1889 = vpack.c.b16 %v1665, %v1657
        %v1890 = vpack.c.b16 %v1674, %v1666
        %v1891 = vpack.c.b16 %v1675, %v1667
        %v1892 = vpack.c.b16 %v1676, %v1668
        %v1893 = vpack.c.b16 %v1677, %v1669
        %v1894 = vpack.c.b16 %v1678, %v1670
        %v1895 = vpack.c.b16 %v1679, %v1671
        %v1896 = vpack.c.b16 %v1680, %v1672
        %v1897 = vpack.c.b16 %v1681, %v1673
        %v1898 = vpack.c.b16 %v1690, %v1682
        %v1899 = vpack.c.b16 %v1691, %v1683
        %v1900 = vpack.c.b16 %v1692, %v1684
        %v1901 = vpack.c.b16 %v1693, %v1685
        %v1902 = vpack.c.b16 %v1694, %v1686
        %v1903 = vpack.c.b16 %v1695, %v1687
        %v1904 = vpack.c.b16 %v1696, %v1688
        %v1905 = vpack.c.b16 %v1697, %v1689
        %v1906 = vpack.c.b16 %v1706, %v1698
        %v1907 = vpack.c.b16 %v1707, %v1699
        %v1908 = vpack.c.b16 %v1708, %v1700
        %v1909 = vpack.c.b16 %v1709, %v1701
        %v1910 = vpack.c.b16 %v1710, %v1702
        %v1911 = vpack.c.b16 %v1711, %v1703
        %v1912 = vpack.c.b16 %v1712, %v1704
        %v1913 = vpack.c.b16 %v1713, %v1705
        %v1914 = vpack.c.b16 %v1722, %v1714
        %v1915 = vpack.c.b16 %v1723, %v1715
        %v1916 = vpack.c.b16 %v1724, %v1716
        %v1917 = vpack.c.b16 %v1725, %v1717
        %v1918 = vpack.c.b16 %v1726, %v1718
        %v1919 = vpack.c.b16 %v1727, %v1719
        %v1920 = vpack.c.b16 %v1728, %v1720
        %v1921 = vpack.c.b16 %v1729, %v1721
        %v1922 = vpack.c.b16 %v1738, %v1730
        %v1923 = vpack.c.b16 %v1739, %v1731
        %v1924 = vpack.c.b16 %v1740, %v1732
        %v1925 = vpack.c.b16 %v1741, %v1733
        %v1926 = vpack.c.b16 %v1742, %v1734
        %v1927 = vpack.c.b16 %v1743, %v1735
        %v1928 = vpack.c.b16 %v1744, %v1736
        %v1929 = vpack.c.b16 %v1745, %v1737
        %v1930 = vpack.c.b16 %v1754, %v1746
        %v1931 = vpack.c.b16 %v1755, %v1747
        %v1932 = vpack.c.b16 %v1756, %v1748
        %v1933 = vpack.c.b16 %v1757, %v1749
        %v1934 = vpack.c.b16 %v1758, %v1750
        %v1935 = vpack.c.b16 %v1759, %v1751
        %v1936 = vpack.c.b16 %v1760, %v1752
        %v1937 = vpack.c.b16 %v1761, %v1753
        %v1938 = vpack.c.b16 %v1770, %v1762
        %v1939 = vpack.c.b16 %v1771, %v1763
        %v1940 = vpack.c.b16 %v1772, %v1764
        %v1941 = vpack.c.b16 %v1773, %v1765
        %v1942 = vpack.c.b16 %v1774, %v1766
        %v1943 = vpack.c.b16 %v1775, %v1767
        %v1944 = vpack.c.b16 %v1776, %v1768
        %v1945 = vpack.c.b16 %v1777, %v1769
        %v1946 = vpack.c.b16 %v1786, %v1778
        %v1947 = vpack.c.b16 %v1787, %v1779
        %v1948 = vpack.c.b16 %v1788, %v1780
        %v1949 = vpack.c.b16 %v1789, %v1781
        %v1950 = vpack.c.b16 %v1790, %v1782
        %v1951 = vpack.c.b16 %v1791, %v1783
        %v1952 = vpack.c.b16 %v1792, %v1784
        %v1953 = vpack.c.b16 %v1793, %v1785
        %v1954 = vpack.c.b16 %v1802, %v1794
        %v1955 = vpack.c.b16 %v1803, %v1795
        %v1956 = vpack.c.b16 %v1804, %v1796
        %v1957 = vpack.c.b16 %v1805, %v1797
        %v1958 = vpack.c.b16 %v1806, %v1798
        %v1959 = vpack.c.b16 %v1807, %v1799
        %v1960 = vpack.c.b16 %v1808, %v1800
        %v1961 = vpack.c.b16 %v1809, %v1801
        %v1962 = vpack.c.b16 %v1818, %v1810
        %v1963 = vpack.c.b16 %v1819, %v1811
        %v1964 = vpack.c.b16 %v1820, %v1812
        %v1965 = vpack.c.b16 %v1821, %v1813
        %v1966 = vpack.c.b16 %v1822, %v1814
        %v1967 = vpack.c.b16 %v1823, %v1815
        %v1968 = vpack.c.b16 %v1824, %v1816
        %v1969 = vpack.c.b16 %v1825, %v1817
        %v1970 = vpack.c.b16 %v1834, %v1826
        %v1971 = vpack.c.b16 %v1835, %v1827
        %v1972 = vpack.c.b16 %v1836, %v1828
        %v1973 = vpack.c.b16 %v1837, %v1829
        %v1974 = vpack.c.b16 %v1838, %v1830
        %v1975 = vpack.c.b16 %v1839, %v1831
        %v1976 = vpack.c.b16 %v1840, %v1832
        %v1977 = vpack.c.b16 %v1841, %v1833
        %v1978 = vpack.c.b16 %v1850, %v1842
        %v1979 = vpack.c.b16 %v1851, %v1843
        %v1980 = vpack.c.b16 %v1852, %v1844
        %v1981 = vpack.c.b16 %v1853, %v1845
        %v1982 = vpack.c.b16 %v1854, %v1846
        %v1983 = vpack.c.b16 %v1855, %v1847
        %v1984 = vpack.c.b16 %v1856, %v1848
        %v1985 = vpack.c.b16 %v1857, %v1849
        %2114 = vmatprep.subr.bf16.mxu0 %v1859
        %2115 = vmatpush1.bf16.msra.mxu0 %v1858
        %2116 = vmatprep.subr.bf16.mxu0 %v1867
        %2117 = vmatpush1.bf16.msra.mxu0 %v1866
        %2118 = vmatprep.subr.bf16.mxu0 %v1875
        %2119 = vmatpush1.bf16.msra.mxu0 %v1874
        %2120 = vmatprep.subr.bf16.mxu0 %v1883
        %2121 = vmatpush1.bf16.msra.mxu0 %v1882
        %2122 = vmatprep.subr.bf16.mxu0 %v1891
        %2123 = vmatpush1.bf16.msra.mxu0 %v1890
        %2124 = vmatprep.subr.bf16.mxu0 %v1899
        %2125 = vmatpush1.bf16.msra.mxu0 %v1898
        %2126 = vmatprep.subr.bf16.mxu0 %v1907
        %2127 = vmatpush1.bf16.msra.mxu0 %v1906
        %2128 = vmatprep.subr.bf16.mxu0 %v1915
        %2129 = vmatpush1.bf16.msra.mxu0 %v1914
        %2130 = vmatprep.subr.bf16.mxu0 %v1923
        %2131 = vmatpush1.bf16.msra.mxu0 %v1922
        %2132 = vmatprep.subr.bf16.mxu0 %v1931
        %2133 = vmatpush1.bf16.msra.mxu0 %v1930
        %2134 = vmatprep.subr.bf16.mxu0 %v1939
        %2135 = vmatpush1.bf16.msra.mxu0 %v1938
        %2136 = vmatprep.subr.bf16.mxu0 %v1947
        %2137 = vmatpush1.bf16.msra.mxu0 %v1946
        %2138 = vmatprep.subr.bf16.mxu0 %v1955
        %2139 = vmatpush1.bf16.msra.mxu0 %v1954
        %2140 = vmatprep.subr.bf16.mxu0 %v1963
        %2141 = vmatpush1.bf16.msra.mxu0 %v1962
        %2142 = vmatprep.subr.bf16.mxu0 %v1971
        %2143 = vmatpush1.bf16.msra.mxu0 %v1970
        %2144 = vmatprep.subr.bf16.mxu0 %v1979
        %2145 = vmatpush1.bf16.msra.mxu0 %v1978
        %2146 = vmatprep.mubr.bf16.mxu0 %v1473
        %2147 = vmatmul.mubr.bf16.gmra.mrb[0].mxu0 %v1472
        %v2148 = vpop.f32.mrb[0].mxu0
        %v2149 = vadd.f32 0.0, %v2148
        %v2150 = vpop.f32.mrb[0].mxu0
        %v2151 = vadd.f32 0.0, %v2150
        %v2152 = vpop.f32.mrb[0].mxu0
        %v2153 = vadd.f32 0.0, %v2152
        %v2154 = vpop.f32.mrb[0].mxu0
        %v2155 = vadd.f32 0.0, %v2154
        %2156 = vdwg.mxu0
        %2157 = vmatprep.subr.bf16.mxu0 %v1861
        %2158 = vmatpush1.bf16.msra.mxu0 %v1860
        %2159 = vmatprep.subr.bf16.mxu0 %v1869
        %2160 = vmatpush1.bf16.msra.mxu0 %v1868
        %2161 = vmatprep.subr.bf16.mxu0 %v1877
        %2162 = vmatpush1.bf16.msra.mxu0 %v1876
        %2163 = vmatprep.subr.bf16.mxu0 %v1885
        %2164 = vmatpush1.bf16.msra.mxu0 %v1884
        %2165 = vmatprep.subr.bf16.mxu0 %v1893
        %2166 = vmatpush1.bf16.msra.mxu0 %v1892
        %2167 = vmatprep.subr.bf16.mxu0 %v1901
        %2168 = vmatpush1.bf16.msra.mxu0 %v1900
        %2169 = vmatprep.subr.bf16.mxu0 %v1909
        %2170 = vmatpush1.bf16.msra.mxu0 %v1908
        %2171 = vmatprep.subr.bf16.mxu0 %v1917
        %2172 = vmatpush1.bf16.msra.mxu0 %v1916
        %2173 = vmatprep.subr.bf16.mxu0 %v1925
        %2174 = vmatpush1.bf16.msra.mxu0 %v1924
        %2175 = vmatprep.subr.bf16.mxu0 %v1933
        %2176 = vmatpush1.bf16.msra.mxu0 %v1932
        %2177 = vmatprep.subr.bf16.mxu0 %v1941
        %2178 = vmatpush1.bf16.msra.mxu0 %v1940
        %2179 = vmatprep.subr.bf16.mxu0 %v1949
        %2180 = vmatpush1.bf16.msra.mxu0 %v1948
        %2181 = vmatprep.subr.bf16.mxu0 %v1957
        %2182 = vmatpush1.bf16.msra.mxu0 %v1956
        %2183 = vmatprep.subr.bf16.mxu0 %v1965
        %2184 = vmatpush1.bf16.msra.mxu0 %v1964
        %2185 = vmatprep.subr.bf16.mxu0 %v1973
        %2186 = vmatpush1.bf16.msra.mxu0 %v1972
        %2187 = vmatprep.subr.bf16.mxu0 %v1981
        %2188 = vmatpush1.bf16.msra.mxu0 %v1980
        %2189 = vmatprep.mubr.bf16.mxu0 %v1473
        %2190 = vmatmul.mubr.bf16.gmra.mrb[0].mxu0 %v1472
        %v2191 = vpop.f32.mrb[0].mxu0
        %v2192 = vadd.f32 0.0, %v2191
        %v2193 = vpop.f32.mrb[0].mxu0
        %v2194 = vadd.f32 0.0, %v2193
        %v2195 = vpop.f32.mrb[0].mxu0
        %v2196 = vadd.f32 0.0, %v2195
        %v2197 = vpop.f32.mrb[0].mxu0
        %v2198 = vadd.f32 0.0, %v2197
        %2199 = vdwg.mxu0
        %2200 = vmatprep.subr.bf16.mxu0 %v1863
        %2201 = vmatpush1.bf16.msra.mxu0 %v1862
        %2202 = vmatprep.subr.bf16.mxu0 %v1871
        %2203 = vmatpush1.bf16.msra.mxu0 %v1870
        %2204 = vmatprep.subr.bf16.mxu0 %v1879
        %2205 = vmatpush1.bf16.msra.mxu0 %v1878
        %2206 = vmatprep.subr.bf16.mxu0 %v1887
        %2207 = vmatpush1.bf16.msra.mxu0 %v1886
        %2208 = vmatprep.subr.bf16.mxu0 %v1895
        %2209 = vmatpush1.bf16.msra.mxu0 %v1894
        %2210 = vmatprep.subr.bf16.mxu0 %v1903
        %2211 = vmatpush1.bf16.msra.mxu0 %v1902
        %2212 = vmatprep.subr.bf16.mxu0 %v1911
        %2213 = vmatpush1.bf16.msra.mxu0 %v1910
        %2214 = vmatprep.subr.bf16.mxu0 %v1919
        %2215 = vmatpush1.bf16.msra.mxu0 %v1918
        %2216 = vmatprep.subr.bf16.mxu0 %v1927
        %2217 = vmatpush1.bf16.msra.mxu0 %v1926
        %2218 = vmatprep.subr.bf16.mxu0 %v1935
        %2219 = vmatpush1.bf16.msra.mxu0 %v1934
        %2220 = vmatprep.subr.bf16.mxu0 %v1943
        %2221 = vmatpush1.bf16.msra.mxu0 %v1942
        %2222 = vmatprep.subr.bf16.mxu0 %v1951
        %2223 = vmatpush1.bf16.msra.mxu0 %v1950
        %2224 = vmatprep.subr.bf16.mxu0 %v1959
        %2225 = vmatpush1.bf16.msra.mxu0 %v1958
        %2226 = vmatprep.subr.bf16.mxu0 %v1967
        %2227 = vmatpush1.bf16.msra.mxu0 %v1966
        %2228 = vmatprep.subr.bf16.mxu0 %v1975
        %2229 = vmatpush1.bf16.msra.mxu0 %v1974
        %2230 = vmatprep.subr.bf16.mxu0 %v1983
        %2231 = vmatpush1.bf16.msra.mxu0 %v1982
        %2232 = vmatprep.mubr.bf16.mxu0 %v1473
        %2233 = vmatmul.mubr.bf16.gmra.mrb[0].mxu0 %v1472
        %v2234 = vpop.f32.mrb[0].mxu0
        %v2235 = vadd.f32 0.0, %v2234
        %v2236 = vpop.f32.mrb[0].mxu0
        %v2237 = vadd.f32 0.0, %v2236
        %v2238 = vpop.f32.mrb[0].mxu0
        %v2239 = vadd.f32 0.0, %v2238
        %v2240 = vpop.f32.mrb[0].mxu0
        %v2241 = vadd.f32 0.0, %v2240
        %2242 = vdwg.mxu0
        %2243 = vmatprep.subr.bf16.mxu0 %v1865
        %2244 = vmatpush1.bf16.msra.mxu0 %v1864
        %2245 = vmatprep.subr.bf16.mxu0 %v1873
        %2246 = vmatpush1.bf16.msra.mxu0 %v1872
        %2247 = vmatprep.subr.bf16.mxu0 %v1881
        %2248 = vmatpush1.bf16.msra.mxu0 %v1880
        %2249 = vmatprep.subr.bf16.mxu0 %v1889
        %2250 = vmatpush1.bf16.msra.mxu0 %v1888
        %2251 = vmatprep.subr.bf16.mxu0 %v1897
        %2252 = vmatpush1.bf16.msra.mxu0 %v1896
        %2253 = vmatprep.subr.bf16.mxu0 %v1905
        %2254 = vmatpush1.bf16.msra.mxu0 %v1904
        %2255 = vmatprep.subr.bf16.mxu0 %v1913
        %2256 = vmatpush1.bf16.msra.mxu0 %v1912
        %2257 = vmatprep.subr.bf16.mxu0 %v1921
        %2258 = vmatpush1.bf16.msra.mxu0 %v1920
        %2259 = vmatprep.subr.bf16.mxu0 %v1929
        %2260 = vmatpush1.bf16.msra.mxu0 %v1928
        %2261 = vmatprep.subr.bf16.mxu0 %v1937
        %2262 = vmatpush1.bf16.msra.mxu0 %v1936
        %2263 = vmatprep.subr.bf16.mxu0 %v1945
        %2264 = vmatpush1.bf16.msra.mxu0 %v1944
        %2265 = vmatprep.subr.bf16.mxu0 %v1953
        %2266 = vmatpush1.bf16.msra.mxu0 %v1952
        %2267 = vmatprep.subr.bf16.mxu0 %v1961
        %2268 = vmatpush1.bf16.msra.mxu0 %v1960
        %2269 = vmatprep.subr.bf16.mxu0 %v1969
        %2270 = vmatpush1.bf16.msra.mxu0 %v1968
        %2271 = vmatprep.subr.bf16.mxu0 %v1977
        %2272 = vmatpush1.bf16.msra.mxu0 %v1976
        %2273 = vmatprep.subr.bf16.mxu0 %v1985
        %2274 = vmatpush1.bf16.msra.mxu0 %v1984
        %2275 = vmatprep.mubr.bf16.mxu0 %v1473
        %2276 = vmatmul.mubr.bf16.gmra.mrb[0].mxu0 %v1472
        %v2277 = vpop.f32.mrb[0].mxu0
        %v2278 = vadd.f32 0.0, %v2277
        %v2279 = vpop.f32.mrb[0].mxu0
        %v2280 = vadd.f32 0.0, %v2279
        %v2281 = vpop.f32.mrb[0].mxu0
        %v2282 = vadd.f32 0.0, %v2281
        %v2283 = vpop.f32.mrb[0].mxu0
        %v2284 = vadd.f32 0.0, %v2283
        %2285 = vdwg.mxu0
        %v2286 = vld [vmem:[#allocation2] sm:$0xff]
        %v2287 = vld [vmem:[#allocation2 + $0x8] sm:$0xff]
        %v2288 = vld [vmem:[#allocation2 + $0x10] sm:$0xff]
        %v2289 = vld [vmem:[#allocation2 + $0x18] sm:$0xff]
        %v2290 = vunpack.c.l.bf16 %v2286
        %v2291 = vunpack.c.l.bf16 %v2287
        %v2292 = vunpack.c.l.bf16 %v2288
        %v2293 = vunpack.c.l.bf16 %v2289
        %v2294 = vunpack.c.h.bf16 %v2286
        %v2295 = vunpack.c.h.bf16 %v2287
        %v2296 = vunpack.c.h.bf16 %v2288
        %v2297 = vunpack.c.h.bf16 %v2289
        %v2298 = vadd.f32 %v2290, %v2149
        %v2299 = vadd.f32 %v2291, %v2151
        %v2300 = vadd.f32 %v2292, %v2192
        %v2301 = vadd.f32 %v2293, %v2194
        %v2302 = vadd.f32 %v2294, %v2153
        %v2303 = vadd.f32 %v2295, %v2155
        %v2304 = vadd.f32 %v2296, %v2196
        %v2305 = vadd.f32 %v2297, %v2198
        %v2306 = vxor.u32 %v2298, 2147483648
        %v2307 = vxor.u32 %v2302, 2147483648
        %v2308 = vmul.f32 %v2306, 1.442695
        %v2309 = vpow.pop %v2308
        %v2310 = vmul.f32 %v2307, 1.442695
        %v2311 = vpow.pop %v2310
        %v2312 = vadd.f32 %v2309, 1.0
        %v2313 = vadd.f32 %v2311, 1.0
        %v2314 = vrcp.pop %v2312
        %v2315 = vmul.f32 1.0, %v2314
        %v2316 = vrcp.pop %v2313
        %v2317 = vmul.f32 1.0, %v2316
        %v2318 = vxor.u32 %v2299, 2147483648
        %v2319 = vxor.u32 %v2303, 2147483648
        %v2320 = vmul.f32 %v2318, 1.442695
        %v2321 = vpow.pop %v2320
        %v2322 = vmul.f32 %v2319, 1.442695
        %v2323 = vpow.pop %v2322
        %v2324 = vadd.f32 %v2321, 1.0
        %v2325 = vadd.f32 %v2323, 1.0
        %v2326 = vrcp.pop %v2324
        %v2327 = vmul.f32 1.0, %v2326
        %v2328 = vrcp.pop %v2325
        %v2329 = vmul.f32 1.0, %v2328
        %v2330 = vtanh.pop %v2300
        %v2331 = vtanh.pop %v2304
        %v2332 = vxor.u32 %v2301, 2147483648
        %v2333 = vxor.u32 %v2305, 2147483648
        %v2334 = vmul.f32 %v2332, 1.442695
        %v2335 = vpow.pop %v2334
        %v2336 = vmul.f32 %v2333, 1.442695
        %v2337 = vpow.pop %v2336
        %v2338 = vadd.f32 %v2335, 1.0
        %v2339 = vadd.f32 %v2337, 1.0
        %v2340 = vrcp.pop %v2338
        %v2341 = vmul.f32 1.0, %v2340
        %v2342 = vrcp.pop %v2339
        %v2343 = vmul.f32 1.0, %v2342
        %v2344 = vmul.f32 %v2327, %v1468
        %v2345 = vmul.f32 %v2329, %v1470
        %v2346 = vmul.f32 %v2315, %v2330
        %v2347 = vmul.f32 %v2317, %v2331
        %v2348 = vadd.f32 %v2344, %v2346
        %v2349 = vadd.f32 %v2345, %v2347
        %v2350 = vtanh.pop %v2348
        %v2351 = vtanh.pop %v2349
        %v2352 = vmul.f32 %v2341, %v2350
        %v2353 = vmul.f32 %v2343, %v2351
        %v2354 = vstv %s1461
        %vm2355 = vcmp.lt.s32.totalorder %v2354, %v1459
        %vm2356 = vcmp.lt.s32.totalorder %v2354, %v1460
        %v2357 = vsel %vm2355, 1, 0
        %v2358 = vsel %vm2356, 1, 0
        %2359 = vset.pattern.permute.xlu0 0
        %2360 = vperm.xlu0 %2359, %v2357
        %v2361 = vpop.permute.xlu0 %2360
        %2362 = vset.pattern.permute.xlu0 0
        %2363 = vperm.xlu0 %2362, %v2358
        %v2364 = vpop.permute.xlu0 %2363
        %vm2365 = vcmp.eq.s32.totalorder %v2361, 1
        %vm2366 = vcmp.eq.s32.totalorder %v2364, 1
        %v2367 = vsel %vm2365, %v2352, 0.0
        %v2368 = vsel %vm2366, %v2353, 0.0
        %v2369 = vpack.c.bf16 %v2368, %v2367
        %v2371 = vunpack.c.l.b16 %v2369
        %v2372 = vunpack.c.h.b16 %v2369
        %v2373 = vpack.c.b16 %v2371, %v2371
        %v2374 = vpack.c.b16 %v2372, %v2372
        %2377 = vst [vmem:[%s450] sm:$0xf] %v2373
        %2378 = vst [vmem:[%s450 + $0x4] sm:$0xf] %v2374
        %v2379 = vsel %vm2365, %v2352, %v1464
        %v2380 = vsel %vm2366, %v2353, %v1466
        %v2381 = vsel %vm2365, %v2348, %v1468
        %v2382 = vsel %vm2366, %v2349, %v1470
        %s2383 = sadd.s32 %s1463, 3
        %s2384 = scalar_lea.vmem [#allocation3], 96
        %v2385 = vld [vmem:[%s2384] sm:$0xff]
        %v2386 = vld [vmem:[%s2384 + $0x8] sm:$0xff]
        %v2387 = vld [vmem:[%s2384 + $0x10] sm:$0xff]
        %v2388 = vld [vmem:[%s2384 + $0x18] sm:$0xff]
        %v2389 = vunpack.c.l.bf16 %v2385
        %v2390 = vunpack.c.l.bf16 %v2386
        %v2391 = vunpack.c.l.bf16 %v2387
        %v2392 = vunpack.c.l.bf16 %v2388
        %v2393 = vunpack.c.h.bf16 %v2385
        %v2394 = vunpack.c.h.bf16 %v2386
        %v2395 = vunpack.c.h.bf16 %v2387
        %v2396 = vunpack.c.h.bf16 %v2388
        %v2397 = vadd.f32 %v2389, %v2235
        %v2398 = vadd.f32 %v2390, %v2237
        %v2399 = vadd.f32 %v2391, %v2278
        %v2400 = vadd.f32 %v2392, %v2280
        %v2401 = vadd.f32 %v2393, %v2239
        %v2402 = vadd.f32 %v2394, %v2241
        %v2403 = vadd.f32 %v2395, %v2282
        %v2404 = vadd.f32 %v2396, %v2284
        %v2405 = vxor.u32 %v2397, 2147483648
        %v2406 = vxor.u32 %v2401, 2147483648
        %v2407 = vmul.f32 %v2405, 1.442695
        %v2408 = vpow.pop %v2407
        %v2409 = vmul.f32 %v2406, 1.442695
        %v2410 = vpow.pop %v2409
        %v2411 = vadd.f32 %v2408, 1.0
        %v2412 = vadd.f32 %v2410, 1.0
        %v2413 = vrcp.pop %v2411
        %v2414 = vmul.f32 1.0, %v2413
        %v2415 = vrcp.pop %v2412
        %v2416 = vmul.f32 1.0, %v2415
        %v2417 = vxor.u32 %v2398, 2147483648
        %v2418 = vxor.u32 %v2402, 2147483648
        %v2419 = vmul.f32 %v2417, 1.442695
        %v2420 = vpow.pop %v2419
        %v2421 = vmul.f32 %v2418, 1.442695
        %v2422 = vpow.pop %v2421
        %v2423 = vadd.f32 %v2420, 1.0
        %v2424 = vadd.f32 %v2422, 1.0
        %v2425 = vrcp.pop %v2423
        %v2426 = vmul.f32 1.0, %v2425
        %v2427 = vrcp.pop %v2424
        %v2428 = vmul.f32 1.0, %v2427
        %v2429 = vtanh.pop %v2399
        %v2430 = vtanh.pop %v2403
        %v2431 = vxor.u32 %v2400, 2147483648
        %v2432 = vxor.u32 %v2404, 2147483648
        %v2433 = vmul.f32 %v2431, 1.442695
        %v2434 = vpow.pop %v2433
        %v2435 = vmul.f32 %v2432, 1.442695
        %v2436 = vpow.pop %v2435
        %v2437 = vadd.f32 %v2434, 1.0
        %v2438 = vadd.f32 %v2436, 1.0
        %v2439 = vrcp.pop %v2437
        %v2440 = vmul.f32 1.0, %v2439
        %v2441 = vrcp.pop %v2438
        %v2442 = vmul.f32 1.0, %v2441
        %v2443 = vmul.f32 %v2426, %v1469
        %v2444 = vmul.f32 %v2428, %v1471
        %v2445 = vmul.f32 %v2414, %v2429
        %v2446 = vmul.f32 %v2416, %v2430
        %v2447 = vadd.f32 %v2443, %v2445
        %v2448 = vadd.f32 %v2444, %v2446
        %v2449 = vtanh.pop %v2447
        %v2450 = vtanh.pop %v2448
        %v2451 = vmul.f32 %v2440, %v2449
        %v2452 = vmul.f32 %v2442, %v2450
        %v2453 = vstv %s2383
        %vm2454 = vcmp.lt.s32.totalorder %v2453, %v1459
        %vm2455 = vcmp.lt.s32.totalorder %v2453, %v1460
        %v2456 = vsel %vm2454, 1, 0
        %v2457 = vsel %vm2455, 1, 0
        %2458 = vset.pattern.permute.xlu0 0
        %2459 = vperm.xlu0 %2458, %v2456
        %v2460 = vpop.permute.xlu0 %2459
        %2461 = vset.pattern.permute.xlu0 0
        %2462 = vperm.xlu0 %2461, %v2457
        %v2463 = vpop.permute.xlu0 %2462
        %vm2464 = vcmp.eq.s32.totalorder %v2460, 1
        %vm2465 = vcmp.eq.s32.totalorder %v2463, 1
        %v2466 = vsel %vm2464, %v2451, 0.0
        %v2467 = vsel %vm2465, %v2452, 0.0
        %v2468 = vpack.c.bf16 %v2467, %v2466
        %v2470 = vunpack.c.l.b16 %v2468
        %v2471 = vunpack.c.h.b16 %v2468
        %v2472 = vpack.c.b16 %v2470, %v2470
        %v2473 = vpack.c.b16 %v2471, %v2471
        %s2476 = scalar_lea.vmem %s457, 24 [#allocation18]
        %2477 = vst [vmem:[%s2476] sm:$0xf] %v2472
        %2478 = vst [vmem:[%s2476 + $0x4] sm:$0xf] %v2473
        %v2479 = vsel %vm2464, %v2451, %v1465
        %v2480 = vsel %vm2465, %v2452, %v1467
        %v2481 = vsel %vm2464, %v2447, %v1469
        %v2482 = vsel %vm2465, %v2448, %v1471
        %v2483 = vpack.c.bf16 %v2380, %v2379
        %v2484 = vpack.c.bf16 %v2480, %v2479
        %2485 = vmatprep.subr.bf16.mxu0 %v1859
        %2486 = vmatpush1.bf16.msra.mxu0 %v1858
        %2487 = vmatprep.subr.bf16.mxu0 %v1867
        %2488 = vmatpush1.bf16.msra.mxu0 %v1866
        %2489 = vmatprep.subr.bf16.mxu0 %v1875
        %2490 = vmatpush1.bf16.msra.mxu0 %v1874
        %2491 = vmatprep.subr.bf16.mxu0 %v1883
        %2492 = vmatpush1.bf16.msra.mxu0 %v1882
        %2493 = vmatprep.subr.bf16.mxu0 %v1891
        %2494 = vmatpush1.bf16.msra.mxu0 %v1890
        %2495 = vmatprep.subr.bf16.mxu0 %v1899
        %2496 = vmatpush1.bf16.msra.mxu0 %v1898
        %2497 = vmatprep.subr.bf16.mxu0 %v1907
        %2498 = vmatpush1.bf16.msra.mxu0 %v1906
        %2499 = vmatprep.subr.bf16.mxu0 %v1915
        %2500 = vmatpush1.bf16.msra.mxu0 %v1914
        %2501 = vmatprep.subr.bf16.mxu0 %v1923
        %2502 = vmatpush1.bf16.msra.mxu0 %v1922
        %2503 = vmatprep.subr.bf16.mxu0 %v1931
        %2504 = vmatpush1.bf16.msra.mxu0 %v1930
        %2505 = vmatprep.subr.bf16.mxu0 %v1939
        %2506 = vmatpush1.bf16.msra.mxu0 %v1938
        %2507 = vmatprep.subr.bf16.mxu0 %v1947
        %2508 = vmatpush1.bf16.msra.mxu0 %v1946
        %2509 = vmatprep.subr.bf16.mxu0 %v1955
        %2510 = vmatpush1.bf16.msra.mxu0 %v1954
        %2511 = vmatprep.subr.bf16.mxu0 %v1963
        %2512 = vmatpush1.bf16.msra.mxu0 %v1962
        %2513 = vmatprep.subr.bf16.mxu0 %v1971
        %2514 = vmatpush1.bf16.msra.mxu0 %v1970
        %2515 = vmatprep.subr.bf16.mxu0 %v1979
        %2516 = vmatpush1.bf16.msra.mxu0 %v1978
        %2517 = vmatprep.mubr.bf16.mxu0 %v2484
        %2518 = vmatmul.mubr.bf16.gmra.mrb[0].mxu0 %v2483
        %v2519 = vpop.f32.mrb[0].mxu0
        %v2520 = vadd.f32 0.0, %v2519
        %v2521 = vpop.f32.mrb[0].mxu0
        %v2522 = vadd.f32 0.0, %v2521
        %v2523 = vpop.f32.mrb[0].mxu0
        %v2524 = vadd.f32 0.0, %v2523
        %v2525 = vpop.f32.mrb[0].mxu0
        %v2526 = vadd.f32 0.0, %v2525
        %2527 = vdwg.mxu0
        %2528 = vmatprep.subr.bf16.mxu0 %v1861
        %2529 = vmatpush1.bf16.msra.mxu0 %v1860
        %2530 = vmatprep.subr.bf16.mxu0 %v1869
        %2531 = vmatpush1.bf16.msra.mxu0 %v1868
        %2532 = vmatprep.subr.bf16.mxu0 %v1877
        %2533 = vmatpush1.bf16.msra.mxu0 %v1876
        %2534 = vmatprep.subr.bf16.mxu0 %v1885
        %2535 = vmatpush1.bf16.msra.mxu0 %v1884
        %2536 = vmatprep.subr.bf16.mxu0 %v1893
        %2537 = vmatpush1.bf16.msra.mxu0 %v1892
        %2538 = vmatprep.subr.bf16.mxu0 %v1901
        %2539 = vmatpush1.bf16.msra.mxu0 %v1900
        %2540 = vmatprep.subr.bf16.mxu0 %v1909
        %2541 = vmatpush1.bf16.msra.mxu0 %v1908
        %2542 = vmatprep.subr.bf16.mxu0 %v1917
        %2543 = vmatpush1.bf16.msra.mxu0 %v1916
        %2544 = vmatprep.subr.bf16.mxu0 %v1925
        %2545 = vmatpush1.bf16.msra.mxu0 %v1924
        %2546 = vmatprep.subr.bf16.mxu0 %v1933
        %2547 = vmatpush1.bf16.msra.mxu0 %v1932
        %2548 = vmatprep.subr.bf16.mxu0 %v1941
        %2549 = vmatpush1.bf16.msra.mxu0 %v1940
        %2550 = vmatprep.subr.bf16.mxu0 %v1949
        %2551 = vmatpush1.bf16.msra.mxu0 %v1948
        %2552 = vmatprep.subr.bf16.mxu0 %v1957
        %2553 = vmatpush1.bf16.msra.mxu0 %v1956
        %2554 = vmatprep.subr.bf16.mxu0 %v1965
        %2555 = vmatpush1.bf16.msra.mxu0 %v1964
        %2556 = vmatprep.subr.bf16.mxu0 %v1973
        %2557 = vmatpush1.bf16.msra.mxu0 %v1972
        %2558 = vmatprep.subr.bf16.mxu0 %v1981
        %2559 = vmatpush1.bf16.msra.mxu0 %v1980
        %2560 = vmatprep.mubr.bf16.mxu0 %v2484
        %2561 = vmatmul.mubr.bf16.gmra.mrb[0].mxu0 %v2483
        %v2562 = vpop.f32.mrb[0].mxu0
        %v2563 = vadd.f32 0.0, %v2562
        %v2564 = vpop.f32.mrb[0].mxu0
        %v2565 = vadd.f32 0.0, %v2564
        %v2566 = vpop.f32.mrb[0].mxu0
        %v2567 = vadd.f32 0.0, %v2566
        %v2568 = vpop.f32.mrb[0].mxu0
        %v2569 = vadd.f32 0.0, %v2568
        %2570 = vdwg.mxu0
        %2571 = vmatprep.subr.bf16.mxu0 %v1863
        %2572 = vmatpush1.bf16.msra.mxu0 %v1862
        %2573 = vmatprep.subr.bf16.mxu0 %v1871
        %2574 = vmatpush1.bf16.msra.mxu0 %v1870
        %2575 = vmatprep.subr.bf16.mxu0 %v1879
        %2576 = vmatpush1.bf16.msra.mxu0 %v1878
        %2577 = vmatprep.subr.bf16.mxu0 %v1887
        %2578 = vmatpush1.bf16.msra.mxu0 %v1886
        %2579 = vmatprep.subr.bf16.mxu0 %v1895
        %2580 = vmatpush1.bf16.msra.mxu0 %v1894
        %2581 = vmatprep.subr.bf16.mxu0 %v1903
        %2582 = vmatpush1.bf16.msra.mxu0 %v1902
        %2583 = vmatprep.subr.bf16.mxu0 %v1911
        %2584 = vmatpush1.bf16.msra.mxu0 %v1910
        %2585 = vmatprep.subr.bf16.mxu0 %v1919
        %2586 = vmatpush1.bf16.msra.mxu0 %v1918
        %2587 = vmatprep.subr.bf16.mxu0 %v1927
        %2588 = vmatpush1.bf16.msra.mxu0 %v1926
        %2589 = vmatprep.subr.bf16.mxu0 %v1935
        %2590 = vmatpush1.bf16.msra.mxu0 %v1934
        %2591 = vmatprep.subr.bf16.mxu0 %v1943
        %2592 = vmatpush1.bf16.msra.mxu0 %v1942
        %2593 = vmatprep.subr.bf16.mxu0 %v1951
        %2594 = vmatpush1.bf16.msra.mxu0 %v1950
        %2595 = vmatprep.subr.bf16.mxu0 %v1959
        %2596 = vmatpush1.bf16.msra.mxu0 %v1958
        %2597 = vmatprep.subr.bf16.mxu0 %v1967
        %2598 = vmatpush1.bf16.msra.mxu0 %v1966
        %2599 = vmatprep.subr.bf16.mxu0 %v1975
        %2600 = vmatpush1.bf16.msra.mxu0 %v1974
        %2601 = vmatprep.subr.bf16.mxu0 %v1983
        %2602 = vmatpush1.bf16.msra.mxu0 %v1982
        %2603 = vmatprep.mubr.bf16.mxu0 %v2484
        %2604 = vmatmul.mubr.bf16.gmra.mrb[0].mxu0 %v2483
        %v2605 = vpop.f32.mrb[0].mxu0
        %v2606 = vadd.f32 0.0, %v2605
        %v2607 = vpop.f32.mrb[0].mxu0
        %v2608 = vadd.f32 0.0, %v2607
        %v2609 = vpop.f32.mrb[0].mxu0
        %v2610 = vadd.f32 0.0, %v2609
        %v2611 = vpop.f32.mrb[0].mxu0
        %v2612 = vadd.f32 0.0, %v2611
        %2613 = vdwg.mxu0
        %2614 = vmatprep.subr.bf16.mxu0 %v1865
        %2615 = vmatpush1.bf16.msra.mxu0 %v1864
        %2616 = vmatprep.subr.bf16.mxu0 %v1873
        %2617 = vmatpush1.bf16.msra.mxu0 %v1872
        %2618 = vmatprep.subr.bf16.mxu0 %v1881
        %2619 = vmatpush1.bf16.msra.mxu0 %v1880
        %2620 = vmatprep.subr.bf16.mxu0 %v1889
        %2621 = vmatpush1.bf16.msra.mxu0 %v1888
        %2622 = vmatprep.subr.bf16.mxu0 %v1897
        %2623 = vmatpush1.bf16.msra.mxu0 %v1896
        %2624 = vmatprep.subr.bf16.mxu0 %v1905
        %2625 = vmatpush1.bf16.msra.mxu0 %v1904
        %2626 = vmatprep.subr.bf16.mxu0 %v1913
        %2627 = vmatpush1.bf16.msra.mxu0 %v1912
        %2628 = vmatprep.subr.bf16.mxu0 %v1921
        %2629 = vmatpush1.bf16.msra.mxu0 %v1920
        %2630 = vmatprep.subr.bf16.mxu0 %v1929
        %2631 = vmatpush1.bf16.msra.mxu0 %v1928
        %2632 = vmatprep.subr.bf16.mxu0 %v1937
        %2633 = vmatpush1.bf16.msra.mxu0 %v1936
        %2634 = vmatprep.subr.bf16.mxu0 %v1945
        %2635 = vmatpush1.bf16.msra.mxu0 %v1944
        %2636 = vmatprep.subr.bf16.mxu0 %v1953
        %2637 = vmatpush1.bf16.msra.mxu0 %v1952
        %2638 = vmatprep.subr.bf16.mxu0 %v1961
        %2639 = vmatpush1.bf16.msra.mxu0 %v1960
        %2640 = vmatprep.subr.bf16.mxu0 %v1969
        %2641 = vmatpush1.bf16.msra.mxu0 %v1968
        %2642 = vmatprep.subr.bf16.mxu0 %v1977
        %2643 = vmatpush1.bf16.msra.mxu0 %v1976
        %2644 = vmatprep.subr.bf16.mxu0 %v1985
        %2645 = vmatpush1.bf16.msra.mxu0 %v1984
        %2646 = vmatprep.mubr.bf16.mxu0 %v2484
        %2647 = vmatmul.mubr.bf16.gmra.mrb[0].mxu0 %v2483
        %v2648 = vpop.f32.mrb[0].mxu0
        %v2649 = vadd.f32 0.0, %v2648
        %v2650 = vpop.f32.mrb[0].mxu0
        %v2651 = vadd.f32 0.0, %v2650
        %v2652 = vpop.f32.mrb[0].mxu0
        %v2653 = vadd.f32 0.0, %v2652
        %v2654 = vpop.f32.mrb[0].mxu0
        %v2655 = vadd.f32 0.0, %v2654
        %2656 = vdwg.mxu0
        %s2657 = sadd.s32 %s1461, 1
        %s2658 = scalar_lea.vmem [#allocation2], 32
        %v2659 = vld [vmem:[%s2658] sm:$0xff]
        %v2660 = vld [vmem:[%s2658 + $0x8] sm:$0xff]
        %v2661 = vld [vmem:[%s2658 + $0x10] sm:$0xff]
        %v2662 = vld [vmem:[%s2658 + $0x18] sm:$0xff]
        %v2663 = vunpack.c.l.bf16 %v2659
        %v2664 = vunpack.c.l.bf16 %v2660
        %v2665 = vunpack.c.l.bf16 %v2661
        %v2666 = vunpack.c.l.bf16 %v2662
        %v2667 = vunpack.c.h.bf16 %v2659
        %v2668 = vunpack.c.h.bf16 %v2660
        %v2669 = vunpack.c.h.bf16 %v2661
        %v2670 = vunpack.c.h.bf16 %v2662
        %v2671 = vadd.f32 %v2663, %v2520
        %v2672 = vadd.f32 %v2664, %v2522
        %v2673 = vadd.f32 %v2665, %v2563
        %v2674 = vadd.f32 %v2666, %v2565
        %v2675 = vadd.f32 %v2667, %v2524
        %v2676 = vadd.f32 %v2668, %v2526
        %v2677 = vadd.f32 %v2669, %v2567
        %v2678 = vadd.f32 %v2670, %v2569
        %v2679 = vxor.u32 %v2671, 2147483648
        %v2680 = vxor.u32 %v2675, 2147483648
        %v2681 = vmul.f32 %v2679, 1.442695
        %v2682 = vpow.pop %v2681
        %v2683 = vmul.f32 %v2680, 1.442695
        %v2684 = vpow.pop %v2683
        %v2685 = vadd.f32 %v2682, 1.0
        %v2686 = vadd.f32 %v2684, 1.0
        %v2687 = vrcp.pop %v2685
        %v2688 = vmul.f32 1.0, %v2687
        %v2689 = vrcp.pop %v2686
        %v2690 = vmul.f32 1.0, %v2689
        %v2691 = vxor.u32 %v2672, 2147483648
        %v2692 = vxor.u32 %v2676, 2147483648
        %v2693 = vmul.f32 %v2691, 1.442695
        %v2694 = vpow.pop %v2693
        %v2695 = vmul.f32 %v2692, 1.442695
        %v2696 = vpow.pop %v2695
        %v2697 = vadd.f32 %v2694, 1.0
        %v2698 = vadd.f32 %v2696, 1.0
        %v2699 = vrcp.pop %v2697
        %v2700 = vmul.f32 1.0, %v2699
        %v2701 = vrcp.pop %v2698
        %v2702 = vmul.f32 1.0, %v2701
        %v2703 = vtanh.pop %v2673
        %v2704 = vtanh.pop %v2677
        %v2705 = vxor.u32 %v2674, 2147483648
        %v2706 = vxor.u32 %v2678, 2147483648
        %v2707 = vmul.f32 %v2705, 1.442695
        %v2708 = vpow.pop %v2707
        %v2709 = vmul.f32 %v2706, 1.442695
        %v2710 = vpow.pop %v2709
        %v2711 = vadd.f32 %v2708, 1.0
        %v2712 = vadd.f32 %v2710, 1.0
        %v2713 = vrcp.pop %v2711
        %v2714 = vmul.f32 1.0, %v2713
        %v2715 = vrcp.pop %v2712
        %v2716 = vmul.f32 1.0, %v2715
        %v2717 = vmul.f32 %v2700, %v2381
        %v2718 = vmul.f32 %v2702, %v2382
        %v2719 = vmul.f32 %v2688, %v2703
        %v2720 = vmul.f32 %v2690, %v2704
        %v2721 = vadd.f32 %v2717, %v2719
        %v2722 = vadd.f32 %v2718, %v2720
        %v2723 = vtanh.pop %v2721
        %v2724 = vtanh.pop %v2722
        %v2725 = vmul.f32 %v2714, %v2723
        %v2726 = vmul.f32 %v2716, %v2724
        %v2727 = vstv %s2657
        %vm2728 = vcmp.lt.s32.totalorder %v2727, %v1459
        %vm2729 = vcmp.lt.s32.totalorder %v2727, %v1460
        %v2730 = vsel %vm2728, 1, 0
        %v2731 = vsel %vm2729, 1, 0
        %2732 = vset.pattern.permute.xlu0 0
        %2733 = vperm.xlu0 %2732, %v2730
        %v2734 = vpop.permute.xlu0 %2733
        %2735 = vset.pattern.permute.xlu0 0
        %2736 = vperm.xlu0 %2735, %v2731
        %v2737 = vpop.permute.xlu0 %2736
        %vm2738 = vcmp.eq.s32.totalorder %v2734, 1
        %vm2739 = vcmp.eq.s32.totalorder %v2737, 1
        %v2740 = vsel %vm2738, %v2725, 0.0
        %v2741 = vsel %vm2739, %v2726, 0.0
        %v2742 = vpack.c.bf16 %v2741, %v2740
        %v2744 = vunpack.c.l.b16 %v2742
        %v2745 = vunpack.c.h.b16 %v2742
        %v2746 = vpack.c.b16 %v2744, %v2744
        %v2747 = vpack.c.b16 %v2745, %v2745
        %s2750 = scalar_lea.vmem %s450, 8 [#allocation17]
        %2751 = vst [vmem:[%s2750] sm:$0xf] %v2746
        %2752 = vst [vmem:[%s2750 + $0x4] sm:$0xf] %v2747
        %v2753 = vsel %vm2738, %v2725, %v2379
        %v2754 = vsel %vm2739, %v2726, %v2380
        %v2755 = vsel %vm2738, %v2721, %v2381
        %v2756 = vsel %vm2739, %v2722, %v2382
        %s2757 = sadd.s32 %s1463, 2
        %s2758 = scalar_lea.vmem [#allocation3], 64
        %v2759 = vld [vmem:[%s2758] sm:$0xff]
        %v2760 = vld [vmem:[%s2758 + $0x8] sm:$0xff]
        %v2761 = vld [vmem:[%s2758 + $0x10] sm:$0xff]
        %v2762 = vld [vmem:[%s2758 + $0x18] sm:$0xff]
        %v2763 = vunpack.c.l.bf16 %v2759
        %v2764 = vunpack.c.l.bf16 %v2760
        %v2765 = vunpack.c.l.bf16 %v2761
        %v2766 = vunpack.c.l.bf16 %v2762
        %v2767 = vunpack.c.h.bf16 %v2759
        %v2768 = vunpack.c.h.bf16 %v2760
        %v2769 = vunpack.c.h.bf16 %v2761
        %v2770 = vunpack.c.h.bf16 %v2762
        %v2771 = vadd.f32 %v2763, %v2606
        %v2772 = vadd.f32 %v2764, %v2608
        %v2773 = vadd.f32 %v2765, %v2649
        %v2774 = vadd.f32 %v2766, %v2651
        %v2775 = vadd.f32 %v2767, %v2610
        %v2776 = vadd.f32 %v2768, %v2612
        %v2777 = vadd.f32 %v2769, %v2653
        %v2778 = vadd.f32 %v2770, %v2655
        %v2779 = vxor.u32 %v2771, 2147483648
        %v2780 = vxor.u32 %v2775, 2147483648
        %v2781 = vmul.f32 %v2779, 1.442695
        %v2782 = vpow.pop %v2781
        %v2783 = vmul.f32 %v2780, 1.442695
        %v2784 = vpow.pop %v2783
        %v2785 = vadd.f32 %v2782, 1.0
        %v2786 = vadd.f32 %v2784, 1.0
        %v2787 = vrcp.pop %v2785
        %v2788 = vmul.f32 1.0, %v2787
        %v2789 = vrcp.pop %v2786
        %v2790 = vmul.f32 1.0, %v2789
        %v2791 = vxor.u32 %v2772, 2147483648
        %v2792 = vxor.u32 %v2776, 2147483648
        %v2793 = vmul.f32 %v2791, 1.442695
        %v2794 = vpow.pop %v2793
        %v2795 = vmul.f32 %v2792, 1.442695
        %v2796 = vpow.pop %v2795
        %v2797 = vadd.f32 %v2794, 1.0
        %v2798 = vadd.f32 %v2796, 1.0
        %v2799 = vrcp.pop %v2797
        %v2800 = vmul.f32 1.0, %v2799
        %v2801 = vrcp.pop %v2798
        %v2802 = vmul.f32 1.0, %v2801
        %v2803 = vtanh.pop %v2773
        %v2804 = vtanh.pop %v2777
        %v2805 = vxor.u32 %v2774, 2147483648
        %v2806 = vxor.u32 %v2778, 2147483648
        %v2807 = vmul.f32 %v2805, 1.442695
        %v2808 = vpow.pop %v2807
        %v2809 = vmul.f32 %v2806, 1.442695
        %v2810 = vpow.pop %v2809
        %v2811 = vadd.f32 %v2808, 1.0
        %v2812 = vadd.f32 %v2810, 1.0
        %v2813 = vrcp.pop %v2811
        %v2814 = vmul.f32 1.0, %v2813
        %v2815 = vrcp.pop %v2812
        %v2816 = vmul.f32 1.0, %v2815
        %v2817 = vmul.f32 %v2800, %v2481
        %v2818 = vmul.f32 %v2802, %v2482
        %v2819 = vmul.f32 %v2788, %v2803
        %v2820 = vmul.f32 %v2790, %v2804
        %v2821 = vadd.f32 %v2817, %v2819
        %v2822 = vadd.f32 %v2818, %v2820
        %v2823 = vtanh.pop %v2821
        %v2824 = vtanh.pop %v2822
        %v2825 = vmul.f32 %v2814, %v2823
        %v2826 = vmul.f32 %v2816, %v2824
        %v2827 = vstv %s2757
        %vm2828 = vcmp.lt.s32.totalorder %v2827, %v1459
        %vm2829 = vcmp.lt.s32.totalorder %v2827, %v1460
        %v2830 = vsel %vm2828, 1, 0
        %v2831 = vsel %vm2829, 1, 0
        %2832 = vset.pattern.permute.xlu0 0
        %2833 = vperm.xlu0 %2832, %v2830
        %v2834 = vpop.permute.xlu0 %2833
        %2835 = vset.pattern.permute.xlu0 0
        %2836 = vperm.xlu0 %2835, %v2831
        %v2837 = vpop.permute.xlu0 %2836
        %vm2838 = vcmp.eq.s32.totalorder %v2834, 1
        %vm2839 = vcmp.eq.s32.totalorder %v2837, 1
        %v2840 = vsel %vm2838, %v2825, 0.0
        %v2841 = vsel %vm2839, %v2826, 0.0
        %v2842 = vpack.c.bf16 %v2841, %v2840
        %v2844 = vunpack.c.l.b16 %v2842
        %v2845 = vunpack.c.h.b16 %v2842
        %v2846 = vpack.c.b16 %v2844, %v2844
        %v2847 = vpack.c.b16 %v2845, %v2845
        %s2850 = scalar_lea.vmem %s457, 16 [#allocation18]
        %2851 = vst [vmem:[%s2850] sm:$0xf] %v2846
        %2852 = vst [vmem:[%s2850 + $0x4] sm:$0xf] %v2847
        %v2853 = vsel %vm2838, %v2825, %v2479
        %v2854 = vsel %vm2839, %v2826, %v2480
        %v2855 = vsel %vm2838, %v2821, %v2481
        %v2856 = vsel %vm2839, %v2822, %v2482
        %v2857 = vpack.c.bf16 %v2754, %v2753
        %v2858 = vpack.c.bf16 %v2854, %v2853
        %2859 = vmatprep.subr.bf16.mxu0 %v1859
        %2860 = vmatpush1.bf16.msra.mxu0 %v1858
        %2861 = vmatprep.subr.bf16.mxu0 %v1867
        %2862 = vmatpush1.bf16.msra.mxu0 %v1866
        %2863 = vmatprep.subr.bf16.mxu0 %v1875
        %2864 = vmatpush1.bf16.msra.mxu0 %v1874
        %2865 = vmatprep.subr.bf16.mxu0 %v1883
        %2866 = vmatpush1.bf16.msra.mxu0 %v1882
        %2867 = vmatprep.subr.bf16.mxu0 %v1891
        %2868 = vmatpush1.bf16.msra.mxu0 %v1890
        %2869 = vmatprep.subr.bf16.mxu0 %v1899
        %2870 = vmatpush1.bf16.msra.mxu0 %v1898
        %2871 = vmatprep.subr.bf16.mxu0 %v1907
        %2872 = vmatpush1.bf16.msra.mxu0 %v1906
        %2873 = vmatprep.subr.bf16.mxu0 %v1915
        %2874 = vmatpush1.bf16.msra.mxu0 %v1914
        %2875 = vmatprep.subr.bf16.mxu0 %v1923
        %2876 = vmatpush1.bf16.msra.mxu0 %v1922
        %2877 = vmatprep.subr.bf16.mxu0 %v1931
        %2878 = vmatpush1.bf16.msra.mxu0 %v1930
        %2879 = vmatprep.subr.bf16.mxu0 %v1939
        %2880 = vmatpush1.bf16.msra.mxu0 %v1938
        %2881 = vmatprep.subr.bf16.mxu0 %v1947
        %2882 = vmatpush1.bf16.msra.mxu0 %v1946
        %2883 = vmatprep.subr.bf16.mxu0 %v1955
        %2884 = vmatpush1.bf16.msra.mxu0 %v1954
        %2885 = vmatprep.subr.bf16.mxu0 %v1963
        %2886 = vmatpush1.bf16.msra.mxu0 %v1962
        %2887 = vmatprep.subr.bf16.mxu0 %v1971
        %2888 = vmatpush1.bf16.msra.mxu0 %v1970
        %2889 = vmatprep.subr.bf16.mxu0 %v1979
        %2890 = vmatpush1.bf16.msra.mxu0 %v1978
        %2891 = vmatprep.mubr.bf16.mxu0 %v2858
        %2892 = vmatmul.mubr.bf16.gmra.mrb[0].mxu0 %v2857
        %v2893 = vpop.f32.mrb[0].mxu0
        %v2894 = vadd.f32 0.0, %v2893
        %v2895 = vpop.f32.mrb[0].mxu0
        %v2896 = vadd.f32 0.0, %v2895
        %v2897 = vpop.f32.mrb[0].mxu0
        %v2898 = vadd.f32 0.0, %v2897
        %v2899 = vpop.f32.mrb[0].mxu0
        %v2900 = vadd.f32 0.0, %v2899
        %2901 = vdwg.mxu0
        %2902 = vmatprep.subr.bf16.mxu0 %v1861
        %2903 = vmatpush1.bf16.msra.mxu0 %v1860
        %2904 = vmatprep.subr.bf16.mxu0 %v1869
        %2905 = vmatpush1.bf16.msra.mxu0 %v1868
        %2906 = vmatprep.subr.bf16.mxu0 %v1877
        %2907 = vmatpush1.bf16.msra.mxu0 %v1876
        %2908 = vmatprep.subr.bf16.mxu0 %v1885
        %2909 = vmatpush1.bf16.msra.mxu0 %v1884
        %2910 = vmatprep.subr.bf16.mxu0 %v1893
        %2911 = vmatpush1.bf16.msra.mxu0 %v1892
        %2912 = vmatprep.subr.bf16.mxu0 %v1901
        %2913 = vmatpush1.bf16.msra.mxu0 %v1900
        %2914 = vmatprep.subr.bf16.mxu0 %v1909
        %2915 = vmatpush1.bf16.msra.mxu0 %v1908
        %2916 = vmatprep.subr.bf16.mxu0 %v1917
        %2917 = vmatpush1.bf16.msra.mxu0 %v1916
        %2918 = vmatprep.subr.bf16.mxu0 %v1925
        %2919 = vmatpush1.bf16.msra.mxu0 %v1924
        %2920 = vmatprep.subr.bf16.mxu0 %v1933
        %2921 = vmatpush1.bf16.msra.mxu0 %v1932
        %2922 = vmatprep.subr.bf16.mxu0 %v1941
        %2923 = vmatpush1.bf16.msra.mxu0 %v1940
        %2924 = vmatprep.subr.bf16.mxu0 %v1949
        %2925 = vmatpush1.bf16.msra.mxu0 %v1948
        %2926 = vmatprep.subr.bf16.mxu0 %v1957
        %2927 = vmatpush1.bf16.msra.mxu0 %v1956
        %2928 = vmatprep.subr.bf16.mxu0 %v1965
        %2929 = vmatpush1.bf16.msra.mxu0 %v1964
        %2930 = vmatprep.subr.bf16.mxu0 %v1973
        %2931 = vmatpush1.bf16.msra.mxu0 %v1972
        %2932 = vmatprep.subr.bf16.mxu0 %v1981
        %2933 = vmatpush1.bf16.msra.mxu0 %v1980
        %2934 = vmatprep.mubr.bf16.mxu0 %v2858
        %2935 = vmatmul.mubr.bf16.gmra.mrb[0].mxu0 %v2857
        %v2936 = vpop.f32.mrb[0].mxu0
        %v2937 = vadd.f32 0.0, %v2936
        %v2938 = vpop.f32.mrb[0].mxu0
        %v2939 = vadd.f32 0.0, %v2938
        %v2940 = vpop.f32.mrb[0].mxu0
        %v2941 = vadd.f32 0.0, %v2940
        %v2942 = vpop.f32.mrb[0].mxu0
        %v2943 = vadd.f32 0.0, %v2942
        %2944 = vdwg.mxu0
        %2945 = vmatprep.subr.bf16.mxu0 %v1863
        %2946 = vmatpush1.bf16.msra.mxu0 %v1862
        %2947 = vmatprep.subr.bf16.mxu0 %v1871
        %2948 = vmatpush1.bf16.msra.mxu0 %v1870
        %2949 = vmatprep.subr.bf16.mxu0 %v1879
        %2950 = vmatpush1.bf16.msra.mxu0 %v1878
        %2951 = vmatprep.subr.bf16.mxu0 %v1887
        %2952 = vmatpush1.bf16.msra.mxu0 %v1886
        %2953 = vmatprep.subr.bf16.mxu0 %v1895
        %2954 = vmatpush1.bf16.msra.mxu0 %v1894
        %2955 = vmatprep.subr.bf16.mxu0 %v1903
        %2956 = vmatpush1.bf16.msra.mxu0 %v1902
        %2957 = vmatprep.subr.bf16.mxu0 %v1911
        %2958 = vmatpush1.bf16.msra.mxu0 %v1910
        %2959 = vmatprep.subr.bf16.mxu0 %v1919
        %2960 = vmatpush1.bf16.msra.mxu0 %v1918
        %2961 = vmatprep.subr.bf16.mxu0 %v1927
        %2962 = vmatpush1.bf16.msra.mxu0 %v1926
        %2963 = vmatprep.subr.bf16.mxu0 %v1935
        %2964 = vmatpush1.bf16.msra.mxu0 %v1934
        %2965 = vmatprep.subr.bf16.mxu0 %v1943
        %2966 = vmatpush1.bf16.msra.mxu0 %v1942
        %2967 = vmatprep.subr.bf16.mxu0 %v1951
        %2968 = vmatpush1.bf16.msra.mxu0 %v1950
        %2969 = vmatprep.subr.bf16.mxu0 %v1959
        %2970 = vmatpush1.bf16.msra.mxu0 %v1958
        %2971 = vmatprep.subr.bf16.mxu0 %v1967
        %2972 = vmatpush1.bf16.msra.mxu0 %v1966
        %2973 = vmatprep.subr.bf16.mxu0 %v1975
        %2974 = vmatpush1.bf16.msra.mxu0 %v1974
        %2975 = vmatprep.subr.bf16.mxu0 %v1983
        %2976 = vmatpush1.bf16.msra.mxu0 %v1982
        %2977 = vmatprep.mubr.bf16.mxu0 %v2858
        %2978 = vmatmul.mubr.bf16.gmra.mrb[0].mxu0 %v2857
        %v2979 = vpop.f32.mrb[0].mxu0
        %v2980 = vadd.f32 0.0, %v2979
        %v2981 = vpop.f32.mrb[0].mxu0
        %v2982 = vadd.f32 0.0, %v2981
        %v2983 = vpop.f32.mrb[0].mxu0
        %v2984 = vadd.f32 0.0, %v2983
        %v2985 = vpop.f32.mrb[0].mxu0
        %v2986 = vadd.f32 0.0, %v2985
        %2987 = vdwg.mxu0
        %2988 = vmatprep.subr.bf16.mxu0 %v1865
        %2989 = vmatpush1.bf16.msra.mxu0 %v1864
        %2990 = vmatprep.subr.bf16.mxu0 %v1873
        %2991 = vmatpush1.bf16.msra.mxu0 %v1872
        %2992 = vmatprep.subr.bf16.mxu0 %v1881
        %2993 = vmatpush1.bf16.msra.mxu0 %v1880
        %2994 = vmatprep.subr.bf16.mxu0 %v1889
        %2995 = vmatpush1.bf16.msra.mxu0 %v1888
        %2996 = vmatprep.subr.bf16.mxu0 %v1897
        %2997 = vmatpush1.bf16.msra.mxu0 %v1896
        %2998 = vmatprep.subr.bf16.mxu0 %v1905
        %2999 = vmatpush1.bf16.msra.mxu0 %v1904
        %3000 = vmatprep.subr.bf16.mxu0 %v1913
        %3001 = vmatpush1.bf16.msra.mxu0 %v1912
        %3002 = vmatprep.subr.bf16.mxu0 %v1921
        %3003 = vmatpush1.bf16.msra.mxu0 %v1920
        %3004 = vmatprep.subr.bf16.mxu0 %v1929
        %3005 = vmatpush1.bf16.msra.mxu0 %v1928
        %3006 = vmatprep.subr.bf16.mxu0 %v1937
        %3007 = vmatpush1.bf16.msra.mxu0 %v1936
        %3008 = vmatprep.subr.bf16.mxu0 %v1945
        %3009 = vmatpush1.bf16.msra.mxu0 %v1944
        %3010 = vmatprep.subr.bf16.mxu0 %v1953
        %3011 = vmatpush1.bf16.msra.mxu0 %v1952
        %3012 = vmatprep.subr.bf16.mxu0 %v1961
        %3013 = vmatpush1.bf16.msra.mxu0 %v1960
        %3014 = vmatprep.subr.bf16.mxu0 %v1969
        %3015 = vmatpush1.bf16.msra.mxu0 %v1968
        %3016 = vmatprep.subr.bf16.mxu0 %v1977
        %3017 = vmatpush1.bf16.msra.mxu0 %v1976
        %3018 = vmatprep.subr.bf16.mxu0 %v1985
        %3019 = vmatpush1.bf16.msra.mxu0 %v1984
        %3020 = vmatprep.mubr.bf16.mxu0 %v2858
        %3021 = vmatmul.mubr.bf16.gmra.mrb[0].mxu0 %v2857
        %v3022 = vpop.f32.mrb[0].mxu0
        %v3023 = vadd.f32 0.0, %v3022
        %v3024 = vpop.f32.mrb[0].mxu0
        %v3025 = vadd.f32 0.0, %v3024
        %v3026 = vpop.f32.mrb[0].mxu0
        %v3027 = vadd.f32 0.0, %v3026
        %v3028 = vpop.f32.mrb[0].mxu0
        %v3029 = vadd.f32 0.0, %v3028
        %3030 = vdwg.mxu0
        %s3031 = sadd.s32 %s1461, 2
        %s3032 = scalar_lea.vmem [#allocation2], 64
        %v3033 = vld [vmem:[%s3032] sm:$0xff]
        %v3034 = vld [vmem:[%s3032 + $0x8] sm:$0xff]
        %v3035 = vld [vmem:[%s3032 + $0x10] sm:$0xff]
        %v3036 = vld [vmem:[%s3032 + $0x18] sm:$0xff]
        %v3037 = vunpack.c.l.bf16 %v3033
        %v3038 = vunpack.c.l.bf16 %v3034
        %v3039 = vunpack.c.l.bf16 %v3035
        %v3040 = vunpack.c.l.bf16 %v3036
        %v3041 = vunpack.c.h.bf16 %v3033
        %v3042 = vunpack.c.h.bf16 %v3034
        %v3043 = vunpack.c.h.bf16 %v3035
        %v3044 = vunpack.c.h.bf16 %v3036
        %v3045 = vadd.f32 %v3037, %v2894
        %v3046 = vadd.f32 %v3038, %v2896
        %v3047 = vadd.f32 %v3039, %v2937
        %v3048 = vadd.f32 %v3040, %v2939
        %v3049 = vadd.f32 %v3041, %v2898
        %v3050 = vadd.f32 %v3042, %v2900
        %v3051 = vadd.f32 %v3043, %v2941
        %v3052 = vadd.f32 %v3044, %v2943
        %v3053 = vxor.u32 %v3045, 2147483648
        %v3054 = vxor.u32 %v3049, 2147483648
        %v3055 = vmul.f32 %v3053, 1.442695
        %v3056 = vpow.pop %v3055
        %v3057 = vmul.f32 %v3054, 1.442695
        %v3058 = vpow.pop %v3057
        %v3059 = vadd.f32 %v3056, 1.0
        %v3060 = vadd.f32 %v3058, 1.0
        %v3061 = vrcp.pop %v3059
        %v3062 = vmul.f32 1.0, %v3061
        %v3063 = vrcp.pop %v3060
        %v3064 = vmul.f32 1.0, %v3063
        %v3065 = vxor.u32 %v3046, 2147483648
        %v3066 = vxor.u32 %v3050, 2147483648
        %v3067 = vmul.f32 %v3065, 1.442695
        %v3068 = vpow.pop %v3067
        %v3069 = vmul.f32 %v3066, 1.442695
        %v3070 = vpow.pop %v3069
        %v3071 = vadd.f32 %v3068, 1.0
        %v3072 = vadd.f32 %v3070, 1.0
        %v3073 = vrcp.pop %v3071
        %v3074 = vmul.f32 1.0, %v3073
        %v3075 = vrcp.pop %v3072
        %v3076 = vmul.f32 1.0, %v3075
        %v3077 = vtanh.pop %v3047
        %v3078 = vtanh.pop %v3051
        %v3079 = vxor.u32 %v3048, 2147483648
        %v3080 = vxor.u32 %v3052, 2147483648
        %v3081 = vmul.f32 %v3079, 1.442695
        %v3082 = vpow.pop %v3081
        %v3083 = vmul.f32 %v3080, 1.442695
        %v3084 = vpow.pop %v3083
        %v3085 = vadd.f32 %v3082, 1.0
        %v3086 = vadd.f32 %v3084, 1.0
        %v3087 = vrcp.pop %v3085
        %v3088 = vmul.f32 1.0, %v3087
        %v3089 = vrcp.pop %v3086
        %v3090 = vmul.f32 1.0, %v3089
        %v3091 = vmul.f32 %v3074, %v2755
        %v3092 = vmul.f32 %v3076, %v2756
        %v3093 = vmul.f32 %v3062, %v3077
        %v3094 = vmul.f32 %v3064, %v3078
        %v3095 = vadd.f32 %v3091, %v3093
        %v3096 = vadd.f32 %v3092, %v3094
        %v3097 = vtanh.pop %v3095
        %v3098 = vtanh.pop %v3096
        %v3099 = vmul.f32 %v3088, %v3097
        %v3100 = vmul.f32 %v3090, %v3098
        %v3101 = vstv %s3031
        %vm3102 = vcmp.lt.s32.totalorder %v3101, %v1459
        %vm3103 = vcmp.lt.s32.totalorder %v3101, %v1460
        %v3104 = vsel %vm3102, 1, 0
        %v3105 = vsel %vm3103, 1, 0
        %3106 = vset.pattern.permute.xlu0 0
        %3107 = vperm.xlu0 %3106, %v3104
        %v3108 = vpop.permute.xlu0 %3107
        %3109 = vset.pattern.permute.xlu0 0
        %3110 = vperm.xlu0 %3109, %v3105
        %v3111 = vpop.permute.xlu0 %3110
        %vm3112 = vcmp.eq.s32.totalorder %v3108, 1
        %vm3113 = vcmp.eq.s32.totalorder %v3111, 1
        %v3114 = vsel %vm3112, %v3099, 0.0
        %v3115 = vsel %vm3113, %v3100, 0.0
        %v3116 = vpack.c.bf16 %v3115, %v3114
        %v3118 = vunpack.c.l.b16 %v3116
        %v3119 = vunpack.c.h.b16 %v3116
        %v3120 = vpack.c.b16 %v3118, %v3118
        %v3121 = vpack.c.b16 %v3119, %v3119
        %s3124 = scalar_lea.vmem %s450, 16 [#allocation17]
        %3125 = vst [vmem:[%s3124] sm:$0xf] %v3120
        %3126 = vst [vmem:[%s3124 + $0x4] sm:$0xf] %v3121
        %v3127 = vsel %vm3112, %v3099, %v2753
        %v3128 = vsel %vm3113, %v3100, %v2754
        %v3129 = vsel %vm3112, %v3095, %v2755
        %v3130 = vsel %vm3113, %v3096, %v2756
        %s3131 = sadd.s32 %s1463, 1
        %s3132 = scalar_lea.vmem [#allocation3], 32
        %v3133 = vld [vmem:[%s3132] sm:$0xff]
        %v3134 = vld [vmem:[%s3132 + $0x8] sm:$0xff]
        %v3135 = vld [vmem:[%s3132 + $0x10] sm:$0xff]
        %v3136 = vld [vmem:[%s3132 + $0x18] sm:$0xff]
        %v3137 = vunpack.c.l.bf16 %v3133
        %v3138 = vunpack.c.l.bf16 %v3134
        %v3139 = vunpack.c.l.bf16 %v3135
        %v3140 = vunpack.c.l.bf16 %v3136
        %v3141 = vunpack.c.h.bf16 %v3133
        %v3142 = vunpack.c.h.bf16 %v3134
        %v3143 = vunpack.c.h.bf16 %v3135
        %v3144 = vunpack.c.h.bf16 %v3136
        %v3145 = vadd.f32 %v3137, %v2980
        %v3146 = vadd.f32 %v3138, %v2982
        %v3147 = vadd.f32 %v3139, %v3023
        %v3148 = vadd.f32 %v3140, %v3025
        %v3149 = vadd.f32 %v3141, %v2984
        %v3150 = vadd.f32 %v3142, %v2986
        %v3151 = vadd.f32 %v3143, %v3027
        %v3152 = vadd.f32 %v3144, %v3029
        %v3153 = vxor.u32 %v3145, 2147483648
        %v3154 = vxor.u32 %v3149, 2147483648
        %v3155 = vmul.f32 %v3153, 1.442695
        %v3156 = vpow.pop %v3155
        %v3157 = vmul.f32 %v3154, 1.442695
        %v3158 = vpow.pop %v3157
        %v3159 = vadd.f32 %v3156, 1.0
        %v3160 = vadd.f32 %v3158, 1.0
        %v3161 = vrcp.pop %v3159
        %v3162 = vmul.f32 1.0, %v3161
        %v3163 = vrcp.pop %v3160
        %v3164 = vmul.f32 1.0, %v3163
        %v3165 = vxor.u32 %v3146, 2147483648
        %v3166 = vxor.u32 %v3150, 2147483648
        %v3167 = vmul.f32 %v3165, 1.442695
        %v3168 = vpow.pop %v3167
        %v3169 = vmul.f32 %v3166, 1.442695
        %v3170 = vpow.pop %v3169
        %v3171 = vadd.f32 %v3168, 1.0
        %v3172 = vadd.f32 %v3170, 1.0
        %v3173 = vrcp.pop %v3171
        %v3174 = vmul.f32 1.0, %v3173
        %v3175 = vrcp.pop %v3172
        %v3176 = vmul.f32 1.0, %v3175
        %v3177 = vtanh.pop %v3147
        %v3178 = vtanh.pop %v3151
        %v3179 = vxor.u32 %v3148, 2147483648
        %v3180 = vxor.u32 %v3152, 2147483648
        %v3181 = vmul.f32 %v3179, 1.442695
        %v3182 = vpow.pop %v3181
        %v3183 = vmul.f32 %v3180, 1.442695
        %v3184 = vpow.pop %v3183
        %v3185 = vadd.f32 %v3182, 1.0
        %v3186 = vadd.f32 %v3184, 1.0
        %v3187 = vrcp.pop %v3185
        %v3188 = vmul.f32 1.0, %v3187
        %v3189 = vrcp.pop %v3186
        %v3190 = vmul.f32 1.0, %v3189
        %v3191 = vmul.f32 %v3174, %v2855
        %v3192 = vmul.f32 %v3176, %v2856
        %v3193 = vmul.f32 %v3162, %v3177
        %v3194 = vmul.f32 %v3164, %v3178
        %v3195 = vadd.f32 %v3191, %v3193
        %v3196 = vadd.f32 %v3192, %v3194
        %v3197 = vtanh.pop %v3195
        %v3198 = vtanh.pop %v3196
        %v3199 = vmul.f32 %v3188, %v3197
        %v3200 = vmul.f32 %v3190, %v3198
        %v3201 = vstv %s3131
        %vm3202 = vcmp.lt.s32.totalorder %v3201, %v1459
        %vm3203 = vcmp.lt.s32.totalorder %v3201, %v1460
        %v3204 = vsel %vm3202, 1, 0
        %v3205 = vsel %vm3203, 1, 0
        %3206 = vset.pattern.permute.xlu0 0
        %3207 = vperm.xlu0 %3206, %v3204
        %v3208 = vpop.permute.xlu0 %3207
        %3209 = vset.pattern.permute.xlu0 0
        %3210 = vperm.xlu0 %3209, %v3205
        %v3211 = vpop.permute.xlu0 %3210
        %vm3212 = vcmp.eq.s32.totalorder %v3208, 1
        %vm3213 = vcmp.eq.s32.totalorder %v3211, 1
        %v3214 = vsel %vm3212, %v3199, 0.0
        %v3215 = vsel %vm3213, %v3200, 0.0
        %v3216 = vpack.c.bf16 %v3215, %v3214
        %v3218 = vunpack.c.l.b16 %v3216
        %v3219 = vunpack.c.h.b16 %v3216
        %v3220 = vpack.c.b16 %v3218, %v3218
        %v3221 = vpack.c.b16 %v3219, %v3219
        %s3224 = scalar_lea.vmem %s457, 8 [#allocation18]
        %3225 = vst [vmem:[%s3224] sm:$0xf] %v3220
        %3226 = vst [vmem:[%s3224 + $0x4] sm:$0xf] %v3221
        %v3227 = vsel %vm3212, %v3199, %v2853
        %v3228 = vsel %vm3213, %v3200, %v2854
        %v3229 = vsel %vm3212, %v3195, %v2855
        %v3230 = vsel %vm3213, %v3196, %v2856
        %v3231 = vpack.c.bf16 %v3128, %v3127
        %v3232 = vpack.c.bf16 %v3228, %v3227
        %3233 = vmatprep.subr.bf16.mxu0 %v1859
        %3234 = vmatpush1.bf16.msra.mxu0 %v1858
        %3235 = vmatprep.subr.bf16.mxu0 %v1867
        %3236 = vmatpush1.bf16.msra.mxu0 %v1866
        %3237 = vmatprep.subr.bf16.mxu0 %v1875
        %3238 = vmatpush1.bf16.msra.mxu0 %v1874
        %3239 = vmatprep.subr.bf16.mxu0 %v1883
        %3240 = vmatpush1.bf16.msra.mxu0 %v1882
        %3241 = vmatprep.subr.bf16.mxu0 %v1891
        %3242 = vmatpush1.bf16.msra.mxu0 %v1890
        %3243 = vmatprep.subr.bf16.mxu0 %v1899
        %3244 = vmatpush1.bf16.msra.mxu0 %v1898
        %3245 = vmatprep.subr.bf16.mxu0 %v1907
        %3246 = vmatpush1.bf16.msra.mxu0 %v1906
        %3247 = vmatprep.subr.bf16.mxu0 %v1915
        %3248 = vmatpush1.bf16.msra.mxu0 %v1914
        %3249 = vmatprep.subr.bf16.mxu0 %v1923
        %3250 = vmatpush1.bf16.msra.mxu0 %v1922
        %3251 = vmatprep.subr.bf16.mxu0 %v1931
        %3252 = vmatpush1.bf16.msra.mxu0 %v1930
        %3253 = vmatprep.subr.bf16.mxu0 %v1939
        %3254 = vmatpush1.bf16.msra.mxu0 %v1938
        %3255 = vmatprep.subr.bf16.mxu0 %v1947
        %3256 = vmatpush1.bf16.msra.mxu0 %v1946
        %3257 = vmatprep.subr.bf16.mxu0 %v1955
        %3258 = vmatpush1.bf16.msra.mxu0 %v1954
        %3259 = vmatprep.subr.bf16.mxu0 %v1963
        %3260 = vmatpush1.bf16.msra.mxu0 %v1962
        %3261 = vmatprep.subr.bf16.mxu0 %v1971
        %3262 = vmatpush1.bf16.msra.mxu0 %v1970
        %3263 = vmatprep.subr.bf16.mxu0 %v1979
        %3264 = vmatpush1.bf16.msra.mxu0 %v1978
        %3265 = vmatprep.mubr.bf16.mxu0 %v3232
        %3266 = vmatmul.mubr.bf16.gmra.mrb[0].mxu0 %v3231
        %v3267 = vpop.f32.mrb[0].mxu0
        %v3268 = vadd.f32 0.0, %v3267
        %v3269 = vpop.f32.mrb[0].mxu0
        %v3270 = vadd.f32 0.0, %v3269
        %v3271 = vpop.f32.mrb[0].mxu0
        %v3272 = vadd.f32 0.0, %v3271
        %v3273 = vpop.f32.mrb[0].mxu0
        %v3274 = vadd.f32 0.0, %v3273
        %3275 = vdwg.mxu0
        %3276 = vmatprep.subr.bf16.mxu0 %v1861
        %3277 = vmatpush1.bf16.msra.mxu0 %v1860
        %3278 = vmatprep.subr.bf16.mxu0 %v1869
        %3279 = vmatpush1.bf16.msra.mxu0 %v1868
        %3280 = vmatprep.subr.bf16.mxu0 %v1877
        %3281 = vmatpush1.bf16.msra.mxu0 %v1876
        %3282 = vmatprep.subr.bf16.mxu0 %v1885
        %3283 = vmatpush1.bf16.msra.mxu0 %v1884
        %3284 = vmatprep.subr.bf16.mxu0 %v1893
        %3285 = vmatpush1.bf16.msra.mxu0 %v1892
        %3286 = vmatprep.subr.bf16.mxu0 %v1901
        %3287 = vmatpush1.bf16.msra.mxu0 %v1900
        %3288 = vmatprep.subr.bf16.mxu0 %v1909
        %3289 = vmatpush1.bf16.msra.mxu0 %v1908
        %3290 = vmatprep.subr.bf16.mxu0 %v1917
        %3291 = vmatpush1.bf16.msra.mxu0 %v1916
        %3292 = vmatprep.subr.bf16.mxu0 %v1925
        %3293 = vmatpush1.bf16.msra.mxu0 %v1924
        %3294 = vmatprep.subr.bf16.mxu0 %v1933
        %3295 = vmatpush1.bf16.msra.mxu0 %v1932
        %3296 = vmatprep.subr.bf16.mxu0 %v1941
        %3297 = vmatpush1.bf16.msra.mxu0 %v1940
        %3298 = vmatprep.subr.bf16.mxu0 %v1949
        %3299 = vmatpush1.bf16.msra.mxu0 %v1948
        %3300 = vmatprep.subr.bf16.mxu0 %v1957
        %3301 = vmatpush1.bf16.msra.mxu0 %v1956
        %3302 = vmatprep.subr.bf16.mxu0 %v1965
        %3303 = vmatpush1.bf16.msra.mxu0 %v1964
        %3304 = vmatprep.subr.bf16.mxu0 %v1973
        %3305 = vmatpush1.bf16.msra.mxu0 %v1972
        %3306 = vmatprep.subr.bf16.mxu0 %v1981
        %3307 = vmatpush1.bf16.msra.mxu0 %v1980
        %3308 = vmatprep.mubr.bf16.mxu0 %v3232
        %3309 = vmatmul.mubr.bf16.gmra.mrb[0].mxu0 %v3231
        %v3310 = vpop.f32.mrb[0].mxu0
        %v3311 = vadd.f32 0.0, %v3310
        %v3312 = vpop.f32.mrb[0].mxu0
        %v3313 = vadd.f32 0.0, %v3312
        %v3314 = vpop.f32.mrb[0].mxu0
        %v3315 = vadd.f32 0.0, %v3314
        %v3316 = vpop.f32.mrb[0].mxu0
        %v3317 = vadd.f32 0.0, %v3316
        %3318 = vdwg.mxu0
        %3319 = vmatprep.subr.bf16.mxu0 %v1863
        %3320 = vmatpush1.bf16.msra.mxu0 %v1862
        %3321 = vmatprep.subr.bf16.mxu0 %v1871
        %3322 = vmatpush1.bf16.msra.mxu0 %v1870
        %3323 = vmatprep.subr.bf16.mxu0 %v1879
        %3324 = vmatpush1.bf16.msra.mxu0 %v1878
        %3325 = vmatprep.subr.bf16.mxu0 %v1887
        %3326 = vmatpush1.bf16.msra.mxu0 %v1886
        %3327 = vmatprep.subr.bf16.mxu0 %v1895
        %3328 = vmatpush1.bf16.msra.mxu0 %v1894
        %3329 = vmatprep.subr.bf16.mxu0 %v1903
        %3330 = vmatpush1.bf16.msra.mxu0 %v1902
        %3331 = vmatprep.subr.bf16.mxu0 %v1911
        %3332 = vmatpush1.bf16.msra.mxu0 %v1910
        %3333 = vmatprep.subr.bf16.mxu0 %v1919
        %3334 = vmatpush1.bf16.msra.mxu0 %v1918
        %3335 = vmatprep.subr.bf16.mxu0 %v1927
        %3336 = vmatpush1.bf16.msra.mxu0 %v1926
        %3337 = vmatprep.subr.bf16.mxu0 %v1935
        %3338 = vmatpush1.bf16.msra.mxu0 %v1934
        %3339 = vmatprep.subr.bf16.mxu0 %v1943
        %3340 = vmatpush1.bf16.msra.mxu0 %v1942
        %3341 = vmatprep.subr.bf16.mxu0 %v1951
        %3342 = vmatpush1.bf16.msra.mxu0 %v1950
        %3343 = vmatprep.subr.bf16.mxu0 %v1959
        %3344 = vmatpush1.bf16.msra.mxu0 %v1958
        %3345 = vmatprep.subr.bf16.mxu0 %v1967
        %3346 = vmatpush1.bf16.msra.mxu0 %v1966
        %3347 = vmatprep.subr.bf16.mxu0 %v1975
        %3348 = vmatpush1.bf16.msra.mxu0 %v1974
        %3349 = vmatprep.subr.bf16.mxu0 %v1983
        %3350 = vmatpush1.bf16.msra.mxu0 %v1982
        %3351 = vmatprep.mubr.bf16.mxu0 %v3232
        %3352 = vmatmul.mubr.bf16.gmra.mrb[0].mxu0 %v3231
        %v3353 = vpop.f32.mrb[0].mxu0
        %v3354 = vadd.f32 0.0, %v3353
        %v3355 = vpop.f32.mrb[0].mxu0
        %v3356 = vadd.f32 0.0, %v3355
        %v3357 = vpop.f32.mrb[0].mxu0
        %v3358 = vadd.f32 0.0, %v3357
        %v3359 = vpop.f32.mrb[0].mxu0
        %v3360 = vadd.f32 0.0, %v3359
        %3361 = vdwg.mxu0
        %3362 = vmatprep.subr.bf16.mxu0 %v1865
        %3363 = vmatpush1.bf16.msra.mxu0 %v1864
        %3364 = vmatprep.subr.bf16.mxu0 %v1873
        %3365 = vmatpush1.bf16.msra.mxu0 %v1872
        %3366 = vmatprep.subr.bf16.mxu0 %v1881
        %3367 = vmatpush1.bf16.msra.mxu0 %v1880
        %3368 = vmatprep.subr.bf16.mxu0 %v1889
        %3369 = vmatpush1.bf16.msra.mxu0 %v1888
        %3370 = vmatprep.subr.bf16.mxu0 %v1897
        %3371 = vmatpush1.bf16.msra.mxu0 %v1896
        %3372 = vmatprep.subr.bf16.mxu0 %v1905
        %3373 = vmatpush1.bf16.msra.mxu0 %v1904
        %3374 = vmatprep.subr.bf16.mxu0 %v1913
        %3375 = vmatpush1.bf16.msra.mxu0 %v1912
        %3376 = vmatprep.subr.bf16.mxu0 %v1921
        %3377 = vmatpush1.bf16.msra.mxu0 %v1920
        %3378 = vmatprep.subr.bf16.mxu0 %v1929
        %3379 = vmatpush1.bf16.msra.mxu0 %v1928
        %3380 = vmatprep.subr.bf16.mxu0 %v1937
        %3381 = vmatpush1.bf16.msra.mxu0 %v1936
        %3382 = vmatprep.subr.bf16.mxu0 %v1945
        %3383 = vmatpush1.bf16.msra.mxu0 %v1944
        %3384 = vmatprep.subr.bf16.mxu0 %v1953
        %3385 = vmatpush1.bf16.msra.mxu0 %v1952
        %3386 = vmatprep.subr.bf16.mxu0 %v1961
        %3387 = vmatpush1.bf16.msra.mxu0 %v1960
        %3388 = vmatprep.subr.bf16.mxu0 %v1969
        %3389 = vmatpush1.bf16.msra.mxu0 %v1968
        %3390 = vmatprep.subr.bf16.mxu0 %v1977
        %3391 = vmatpush1.bf16.msra.mxu0 %v1976
        %3392 = vmatprep.subr.bf16.mxu0 %v1985
        %3393 = vmatpush1.bf16.msra.mxu0 %v1984
        %3394 = vmatprep.mubr.bf16.mxu0 %v3232
        %3395 = vmatmul.mubr.bf16.gmra.mrb[0].mxu0 %v3231
        %v3396 = vpop.f32.mrb[0].mxu0
        %v3397 = vadd.f32 0.0, %v3396
        %v3398 = vpop.f32.mrb[0].mxu0
        %v3399 = vadd.f32 0.0, %v3398
        %v3400 = vpop.f32.mrb[0].mxu0
        %v3401 = vadd.f32 0.0, %v3400
        %v3402 = vpop.f32.mrb[0].mxu0
        %v3403 = vadd.f32 0.0, %v3402
        %3404 = vdwg.mxu0
        %s3405 = sadd.s32 %s1461, 3
        %s3406 = scalar_lea.vmem [#allocation2], 96
        %v3407 = vld [vmem:[%s3406] sm:$0xff]
        %v3408 = vld [vmem:[%s3406 + $0x8] sm:$0xff]
        %v3409 = vld [vmem:[%s3406 + $0x10] sm:$0xff]
        %v3410 = vld [vmem:[%s3406 + $0x18] sm:$0xff]
        %v3411 = vunpack.c.l.bf16 %v3407
        %v3412 = vunpack.c.l.bf16 %v3408
        %v3413 = vunpack.c.l.bf16 %v3409
        %v3414 = vunpack.c.l.bf16 %v3410
        %v3415 = vunpack.c.h.bf16 %v3407
        %v3416 = vunpack.c.h.bf16 %v3408
        %v3417 = vunpack.c.h.bf16 %v3409
        %v3418 = vunpack.c.h.bf16 %v3410
        %v3419 = vadd.f32 %v3411, %v3268
        %v3420 = vadd.f32 %v3412, %v3270
        %v3421 = vadd.f32 %v3413, %v3311
        %v3422 = vadd.f32 %v3414, %v3313
        %v3423 = vadd.f32 %v3415, %v3272
        %v3424 = vadd.f32 %v3416, %v3274
        %v3425 = vadd.f32 %v3417, %v3315
        %v3426 = vadd.f32 %v3418, %v3317
        %v3427 = vxor.u32 %v3419, 2147483648
        %v3428 = vxor.u32 %v3423, 2147483648
        %v3429 = vmul.f32 %v3427, 1.442695
        %v3430 = vpow.pop %v3429
        %v3431 = vmul.f32 %v3428, 1.442695
        %v3432 = vpow.pop %v3431
        %v3433 = vadd.f32 %v3430, 1.0
        %v3434 = vadd.f32 %v3432, 1.0
        %v3435 = vrcp.pop %v3433
        %v3436 = vmul.f32 1.0, %v3435
        %v3437 = vrcp.pop %v3434
        %v3438 = vmul.f32 1.0, %v3437
        %v3439 = vxor.u32 %v3420, 2147483648
        %v3440 = vxor.u32 %v3424, 2147483648
        %v3441 = vmul.f32 %v3439, 1.442695
        %v3442 = vpow.pop %v3441
        %v3443 = vmul.f32 %v3440, 1.442695
        %v3444 = vpow.pop %v3443
        %v3445 = vadd.f32 %v3442, 1.0
        %v3446 = vadd.f32 %v3444, 1.0
        %v3447 = vrcp.pop %v3445
        %v3448 = vmul.f32 1.0, %v3447
        %v3449 = vrcp.pop %v3446
        %v3450 = vmul.f32 1.0, %v3449
        %v3451 = vtanh.pop %v3421
        %v3452 = vtanh.pop %v3425
        %v3453 = vxor.u32 %v3422, 2147483648
        %v3454 = vxor.u32 %v3426, 2147483648
        %v3455 = vmul.f32 %v3453, 1.442695
        %v3456 = vpow.pop %v3455
        %v3457 = vmul.f32 %v3454, 1.442695
        %v3458 = vpow.pop %v3457
        %v3459 = vadd.f32 %v3456, 1.0
        %v3460 = vadd.f32 %v3458, 1.0
        %v3461 = vrcp.pop %v3459
        %v3462 = vmul.f32 1.0, %v3461
        %v3463 = vrcp.pop %v3460
        %v3464 = vmul.f32 1.0, %v3463
        %v3465 = vmul.f32 %v3448, %v3129
        %v3466 = vmul.f32 %v3450, %v3130
        %v3467 = vmul.f32 %v3436, %v3451
        %v3468 = vmul.f32 %v3438, %v3452
        %v3469 = vadd.f32 %v3465, %v3467
        %v3470 = vadd.f32 %v3466, %v3468
        %v3471 = vtanh.pop %v3469
        %v3472 = vtanh.pop %v3470
        %v3473 = vmul.f32 %v3462, %v3471
        %v3474 = vmul.f32 %v3464, %v3472
        %v3475 = vstv %s3405
        %vm3476 = vcmp.lt.s32.totalorder %v3475, %v1459
        %vm3477 = vcmp.lt.s32.totalorder %v3475, %v1460
        %v3478 = vsel %vm3476, 1, 0
        %v3479 = vsel %vm3477, 1, 0
        %3480 = vset.pattern.permute.xlu0 0
        %3481 = vperm.xlu0 %3480, %v3478
        %v3482 = vpop.permute.xlu0 %3481
        %3483 = vset.pattern.permute.xlu0 0
        %3484 = vperm.xlu0 %3483, %v3479
        %v3485 = vpop.permute.xlu0 %3484
        %vm3486 = vcmp.eq.s32.totalorder %v3482, 1
        %vm3487 = vcmp.eq.s32.totalorder %v3485, 1
        %v3488 = vsel %vm3486, %v3473, 0.0
        %v3489 = vsel %vm3487, %v3474, 0.0
        %v3490 = vpack.c.bf16 %v3489, %v3488
        %v3492 = vunpack.c.l.b16 %v3490
        %v3493 = vunpack.c.h.b16 %v3490
        %v3494 = vpack.c.b16 %v3492, %v3492
        %v3495 = vpack.c.b16 %v3493, %v3493
        %s3498 = scalar_lea.vmem %s450, 24 [#allocation17]
        %3499 = vst [vmem:[%s3498] sm:$0xf] %v3494
        %3500 = vst [vmem:[%s3498 + $0x4] sm:$0xf] %v3495
        %v3501 = vsel %vm3486, %v3473, %v3127
        %v3502 = vsel %vm3487, %v3474, %v3128
        %v3503 = vsel %vm3486, %v3469, %v3129
        %v3504 = vsel %vm3487, %v3470, %v3130
        %v3505 = vld [vmem:[#allocation3] sm:$0xff]
        %v3506 = vld [vmem:[#allocation3 + $0x8] sm:$0xff]
        %v3507 = vld [vmem:[#allocation3 + $0x10] sm:$0xff]
        %v3508 = vld [vmem:[#allocation3 + $0x18] sm:$0xff]
        %v3509 = vunpack.c.l.bf16 %v3505
        %v3510 = vunpack.c.l.bf16 %v3506
        %v3511 = vunpack.c.l.bf16 %v3507
        %v3512 = vunpack.c.l.bf16 %v3508
        %v3513 = vunpack.c.h.bf16 %v3505
        %v3514 = vunpack.c.h.bf16 %v3506
        %v3515 = vunpack.c.h.bf16 %v3507
        %v3516 = vunpack.c.h.bf16 %v3508
        %v3517 = vadd.f32 %v3509, %v3354
        %v3518 = vadd.f32 %v3510, %v3356
        %v3519 = vadd.f32 %v3511, %v3397
        %v3520 = vadd.f32 %v3512, %v3399
        %v3521 = vadd.f32 %v3513, %v3358
        %v3522 = vadd.f32 %v3514, %v3360
        %v3523 = vadd.f32 %v3515, %v3401
        %v3524 = vadd.f32 %v3516, %v3403
        %v3525 = vxor.u32 %v3517, 2147483648
        %v3526 = vxor.u32 %v3521, 2147483648
        %v3527 = vmul.f32 %v3525, 1.442695
        %v3528 = vpow.pop %v3527
        %v3529 = vmul.f32 %v3526, 1.442695
        %v3530 = vpow.pop %v3529
        %v3531 = vadd.f32 %v3528, 1.0
        %v3532 = vadd.f32 %v3530, 1.0
        %v3533 = vrcp.pop %v3531
        %v3534 = vmul.f32 1.0, %v3533
        %v3535 = vrcp.pop %v3532
        %v3536 = vmul.f32 1.0, %v3535
        %v3537 = vxor.u32 %v3518, 2147483648
        %v3538 = vxor.u32 %v3522, 2147483648
        %v3539 = vmul.f32 %v3537, 1.442695
        %v3540 = vpow.pop %v3539
        %v3541 = vmul.f32 %v3538, 1.442695
        %v3542 = vpow.pop %v3541
        %v3543 = vadd.f32 %v3540, 1.0
        %v3544 = vadd.f32 %v3542, 1.0
        %v3545 = vrcp.pop %v3543
        %v3546 = vmul.f32 1.0, %v3545
        %v3547 = vrcp.pop %v3544
        %v3548 = vmul.f32 1.0, %v3547
        %v3549 = vtanh.pop %v3519
        %v3550 = vtanh.pop %v3523
        %v3551 = vxor.u32 %v3520, 2147483648
        %v3552 = vxor.u32 %v3524, 2147483648
        %v3553 = vmul.f32 %v3551, 1.442695
        %v3554 = vpow.pop %v3553
        %v3555 = vmul.f32 %v3552, 1.442695
        %v3556 = vpow.pop %v3555
        %v3557 = vadd.f32 %v3554, 1.0
        %v3558 = vadd.f32 %v3556, 1.0
        %v3559 = vrcp.pop %v3557
        %v3560 = vmul.f32 1.0, %v3559
        %v3561 = vrcp.pop %v3558
        %v3562 = vmul.f32 1.0, %v3561
        %v3563 = vmul.f32 %v3546, %v3229
        %v3564 = vmul.f32 %v3548, %v3230
        %v3565 = vmul.f32 %v3534, %v3549
        %v3566 = vmul.f32 %v3536, %v3550
        %v3567 = vadd.f32 %v3563, %v3565
        %v3568 = vadd.f32 %v3564, %v3566
        %v3569 = vtanh.pop %v3567
        %v3570 = vtanh.pop %v3568
        %v3571 = vmul.f32 %v3560, %v3569
        %v3572 = vmul.f32 %v3562, %v3570
        %v3573 = vstv %s1463
        %vm3574 = vcmp.lt.s32.totalorder %v3573, %v1459
        %vm3575 = vcmp.lt.s32.totalorder %v3573, %v1460
        %v3576 = vsel %vm3574, 1, 0
        %v3577 = vsel %vm3575, 1, 0
        %3578 = vset.pattern.permute.xlu0 0
        %3579 = vperm.xlu0 %3578, %v3576
        %v3580 = vpop.permute.xlu0 %3579
        %3581 = vset.pattern.permute.xlu0 0
        %3582 = vperm.xlu0 %3581, %v3577
        %v3583 = vpop.permute.xlu0 %3582
        %vm3584 = vcmp.eq.s32.totalorder %v3580, 1
        %vm3585 = vcmp.eq.s32.totalorder %v3583, 1
        %v3586 = vsel %vm3584, %v3571, 0.0
        %v3587 = vsel %vm3585, %v3572, 0.0
        %v3588 = vpack.c.bf16 %v3587, %v3586
        %v3590 = vunpack.c.l.b16 %v3588
        %v3591 = vunpack.c.h.b16 %v3588
        %v3592 = vpack.c.b16 %v3590, %v3590
        %v3593 = vpack.c.b16 %v3591, %v3591
        %3596 = vst [vmem:[%s457] sm:$0xf] %v3592
        %3597 = vst [vmem:[%s457 + $0x4] sm:$0xf] %v3593
        %v3598 = vsel %vm3584, %v3571, %v3227
        %v3599 = vsel %vm3585, %v3572, %v3228
        %v3600 = vsel %vm3584, %v3567, %v3229
        %v3601 = vsel %vm3585, %v3568, %v3230
        %3602 = vst [vmem:[#allocation4] sm:$0xff] %v3501
        %3603 = vst [vmem:[#allocation4 + $0x8] sm:$0xff] %v3598
        %3604 = vst [vmem:[#allocation4 + $0x10] sm:$0xff] %v3502
        %3605 = vst [vmem:[#allocation4 + $0x18] sm:$0xff] %v3599
        %3606 = vst [vmem:[#allocation5] sm:$0xff] %v3503
        %3607 = vst [vmem:[#allocation5 + $0x8] sm:$0xff] %v3600
        %3608 = vst [vmem:[#allocation5 + $0x10] sm:$0xff] %v3504
        %3609 = vst [vmem:[#allocation5 + $0x18] sm:$0xff] %v3601
        %p3610 = scmp.eq.s32.totalorder %s36, 1
        // Predicated region
        $region73: #{encoder_forward.3} parent=43 // pred_check
          %p3611 = pneg %p3610
        $region74: #{encoder_forward.3} parent=43 // pred_check_branch
          %3613 = sbr.rel (%p3611) target = $region76
        $region75: #{encoder_forward.3} parent=43 // pred_region
          %3614 = vst [vmem:[#allocation20] sm:$0xff] %v3501
          %3615 = vst [vmem:[#allocation20 + $0x8] sm:$0xff] %v3598
          %3616 = vst [vmem:[#allocation20 + $0x10] sm:$0xff] %v3502
          %3617 = vst [vmem:[#allocation20 + $0x18] sm:$0xff] %v3599
          %3618 = vst [vmem:[#allocation21] sm:$0xff] %v3503
          %3619 = vst [vmem:[#allocation21 + $0x8] sm:$0xff] %v3600
          %3620 = vst [vmem:[#allocation21 + $0x10] sm:$0xff] %v3504
          %3621 = vst [vmem:[#allocation21 + $0x18] sm:$0xff] %v3601
        $region76: #{encoder_forward.3} parent=43 // pred_fallthru
          _
        %s3622 = sand.u32 %s182, 1
        %s3623 = scalar_lea.sflag [#allocation8], %s3622
        %s3624 = sand.u32 %s182, 1
        %s3625 = smul.addr %s3624, 32
        %s3626 = scalar_lea.vmem [#allocation17], %s3625
        %s3627 = sand.u32 %s36, 1
        %s3628 = scalar_lea.sflag [#allocation19], %s3627
        %s3629 = sand.u32 %s210, 1
        %s3630 = smul.addr %s3629, 32
        %s3631 = scalar_lea.vmem [#allocation18], %s3630
        // Predicated region
        $region77: #{encoder_forward.3} parent=43 // pred_check
          %p3632 = pneg %p192
        $region78: #{encoder_forward.3} parent=43 // pred_check_branch
          %3634 = sbr.rel (%p3632) target = $region80
        $region79: #{encoder_forward.3} parent=43 // pred_region
          %s3635 = smul.u32 4, %s36
          %s3637 = ssub.s32 512, 512
          %3638 = vsyncadd %s3623, %s3637
          %s3639 = smul.addr %s3635, 2
          %s3640 = smul.addr %s3639, 64
          %s3641 = scalar_lea.hbm %s6, %s3640
          %s3642 = sshll.u32 %s3626, 4
          %s3643 = int_to_ptr.vmem [resolvable:$true] %s3642
          %3648 = dma.vmem_to_hbm [thread:$0]  %s3643, 512, %s3641, %s3623, 64, 64, 4
        $region80: #{encoder_forward.3} parent=43 // pred_fallthru
          _
        // Predicated region
        $region81: #{encoder_forward.3} parent=43 // pred_check
          %p3649 = pneg %p220
        $region82: #{encoder_forward.3} parent=43 // pred_check_branch
          %3651 = sbr.rel (%p3649) target = $region84
        $region83: #{encoder_forward.3} parent=43 // pred_region
          %s3652 = ssub.s32 1, %s36
          %s3653 = smul.u32 4, %s3652
          %s3655 = ssub.s32 512, 512
          %3656 = vsyncadd %s3628, %s3655
          %s3657 = smul.addr %s3653, 2
          %s3658 = smul.addr %s3657, 64
          %s3659 = scalar_lea.hbm %s7, %s3658
          %s3660 = sshll.u32 %s3631, 4
          %s3661 = int_to_ptr.vmem [resolvable:$true] %s3660
          %3666 = dma.vmem_to_hbm [thread:$0]  %s3661, 512, %s3659, %s3628, 64, 64, 4
        $region84: #{encoder_forward.3} parent=43 // pred_fallthru
          _
        // Predicated region
        $region85: #{encoder_forward.3} parent=43 // pred_check
          %p3667 = pneg %p241
        $region86: #{encoder_forward.3} parent=43 // pred_check_branch
          %3669 = sbr.rel (%p3667) target = $region88
        $region87: #{encoder_forward.3} parent=43 // pred_region
          %s3671 = ssub.s32 512, 512
          %3672 = vsyncadd [#allocation19], %s3671
          %s3673 = sshll.u32 [#allocation20], 4
          %s3674 = int_to_ptr.vmem [resolvable:$true] %s3673
          %3679 = dma.vmem_to_hbm [thread:$0]  %s3674, 512, %s8, [#allocation19], 256, 256, 16
        $region88: #{encoder_forward.3} parent=43 // pred_fallthru
          _
        // Predicated region
        $region89: #{encoder_forward.3} parent=43 // pred_check
          %p3680 = pneg %p262
        $region90: #{encoder_forward.3} parent=43 // pred_check_branch
          %3682 = sbr.rel (%p3680) target = $region92
        $region91: #{encoder_forward.3} parent=43 // pred_region
          %s3684 = ssub.s32 512, 512
          %3685 = vsyncadd [#allocation22], %s3684
          %s3686 = sshll.u32 [#allocation21], 4
          %s3687 = int_to_ptr.vmem [resolvable:$true] %s3686
          %3692 = dma.vmem_to_hbm [thread:$0]  %s3687, 512, %s9, [#allocation22], 256, 256, 16
        $region92: #{encoder_forward.3} parent=43 // pred_fallthru
          _
        // Predicated region
        $region93: #{encoder_forward.3} parent=43 // pred_check
          %p3693 = pneg %p241
        $region94: #{encoder_forward.3} parent=43 // pred_check_branch
          %3695 = sbr.rel (%p3693) target = $region96
        $region95: #{encoder_forward.3} parent=43 // pred_region
          %3696 = dma.done [#allocation19], 512
        $region96: #{encoder_forward.3} parent=43 // pred_fallthru
          _
        // Predicated region
        $region97: #{encoder_forward.3} parent=43 // pred_check
          %p3697 = pneg %p262
        $region98: #{encoder_forward.3} parent=43 // pred_check_branch
          %3699 = sbr.rel (%p3697) target = $region100
        $region99: #{encoder_forward.3} parent=43 // pred_region
          %3700 = dma.done [#allocation22], 512
        $region100: #{encoder_forward.3} parent=43 // pred_fallthru
          _
      $region44: #{encoder_forward.3} parent=5 // pred_fallthru
        _
      %p3701 = scmp.le.s32.totalorder 2, %s31
      // Predicated region
      $region101: #{encoder_forward.3} parent=5 // pred_check
        %p3702 = pneg %p3701
      $region102: #{encoder_forward.3} parent=5 // pred_check_branch
        %3704 = sbr.rel (%p3702) target = $region104
      $region103: #{encoder_forward.3} parent=5 // pred_region
        %s3705 = ssub.s32 %s31, 2
        // Predicated region
        $region105: #{encoder_forward.3} parent=103 // pred_check
          %p3706 = pneg %p198
        $region106: #{encoder_forward.3} parent=103 // pred_check_branch
          %3708 = sbr.rel (%p3706) target = $region108
        $region107: #{encoder_forward.3} parent=103 // pred_region
          %s3709 = sand.u32 %s183, 1
          %s3710 = scalar_lea.sflag [#allocation8], %s3709
          %s3711 = sand.u32 %s183, 1
          %s3712 = smul.addr %s3711, 32
          %s3713 = scalar_lea.vmem [#allocation17], %s3712
          %3714 = dma.done %s3710, 512
        $region108: #{encoder_forward.3} parent=103 // pred_fallthru
          _
        // Predicated region
        $region109: #{encoder_forward.3} parent=103 // pred_check
          %p3715 = pneg %p226
        $region110: #{encoder_forward.3} parent=103 // pred_check_branch
          %3717 = sbr.rel (%p3715) target = $region112
        $region111: #{encoder_forward.3} parent=103 // pred_region
          %s3718 = sand.u32 %s37, 1
          %s3719 = scalar_lea.sflag [#allocation19], %s3718
          %s3720 = sand.u32 %s211, 1
          %s3721 = smul.addr %s3720, 32
          %s3722 = scalar_lea.vmem [#allocation18], %s3721
          %3723 = dma.done %s3719, 512
        $region112: #{encoder_forward.3} parent=103 // pred_fallthru
          _
      $region104: #{encoder_forward.3} parent=5 // pred_fallthru
        _
    $region6: #{encoder_forward.3} parent=1 // loop_footer
      %s35 = sadd.s32 1, %s31
    $region7: #{encoder_forward.3} parent=1 // loop_footer_branch
      %30 = sbr.rel target = $region3
    $region8: #{encoder_forward.3} parent=1 // loop_exit
      _
    %3724 = vsyncpa [#allocation7], 1
    %s3725 = scalar_lea.sflag [#allocation7], 1
    %3726 = vsyncpa %s3725, 1
    %3727 = vsyncpa [#allocation10], 1
    %s3728 = scalar_lea.sflag [#allocation10], 1
    %3729 = vsyncpa %s3728, 1
    %3730 = vsyncpa [#allocation13], 1
    %3731 = vsyncpa [#allocation16], 1
    %3732 = vsyncpa [#allocation8], 1
    %s3733 = scalar_lea.sflag [#allocation8], 1
    %3734 = vsyncpa %s3733, 1
    %3735 = vsyncpa [#allocation19], 1
    %s3736 = scalar_lea.sflag [#allocation19], 1
    %3737 = vsyncpa %s3736, 1
    %3738 = vsyncpa [#allocation22], 1

// kernel: encoder_forward.4
$region0: #{encoder_forward.4}
  #allocation0 [shape = 'u32[]', space=smem, size = 0x4, offset = 0x4, fixed_abs, tag = 'smem constant byte address 0x4 - core index']
  #allocation1 [shape = 'u32[144,128]{1,0:T(1,128)}', space=vmem, size = 0x12000, scoped, tag = 'internal scratch']
  #allocation2 [shape = 'bf16[4,16,512]{2,1,0:T(16,128)(2,1)}', space=vmem, size = 0x10000, scoped, tag = 'scratch operand']
  #allocation3 [shape = 'bf16[4,16,512]{2,1,0:T(16,128)(2,1)}', space=vmem, size = 0x10000, scoped, tag = 'scratch operand']
  #allocation4 [shape = 'f32[16,256]{1,0:T(8,128)}', space=vmem, size = 0x4000, scoped, tag = 'scratch operand']
  #allocation5 [shape = 'f32[16,256]{1,0:T(8,128)}', space=vmem, size = 0x4000, scoped, tag = 'scratch operand']
  %s0 = inlined_call_operand.hbm [shape: bf16[8,16,256], index: 0, kind: input, shape index: {}, may-alias: {0,1}]
  %s1 = inlined_call_operand.hbm [shape: bf16[8,16,256], index: 1, kind: input, shape index: {}, may-alias: {0,1}]
  %s2 = inlined_call_operand.hbm [shape: bf16[2,256,512], index: 2, kind: input, shape index: {}]
  %s3 = inlined_call_operand.hbm [shape: bf16[256,1024], index: 3, kind: input, shape index: {}]
  %s4 = inlined_call_operand.hbm [shape: f32[2,1,512], index: 4, kind: input, shape index: {}]
  %s5 = inlined_call_operand.hbm [shape: s32[16,1], index: 5, kind: input, shape index: {}]
  %s6 = inlined_call_operand.hbm [shape: bf16[8,16,128], index: 6, kind: output, shape index: {0}]
  %s7 = inlined_call_operand.hbm [shape: bf16[8,16,128], index: 7, kind: output, shape index: {1}]
  %s8 = inlined_call_operand.hbm [shape: f32[16,256], index: 8, kind: output, shape index: {2}]
  %s9 = inlined_call_operand.hbm [shape: f32[16,256], index: 9, kind: output, shape index: {3}]
  %10 = xla_tuple %s6, %s7, %s8, %s9
  %s11 = sld [smem:[#allocation0]]
  $region113: #{encoder_forward.4} parent=0
    _
  %s13 = ssub.s32 1, %s11
  %s14 = scalar_select 0, %s13, %s11
  $region1: #{encoder_forward.4} parent=0
    #allocation6 [shape = 'u8[65536]{0}', space=vmem, size = 0x10000, scoped, tag = 'input window, operand 0']
    #allocation7 [shape = 's32[2]{0}', space=sflag, size = 0x8, scoped, tag = 'scoped memory for encoder_forward.4']
    #allocation8 [shape = 's32[2]{0}', space=sflag, size = 0x8, scoped, tag = 'scoped memory for encoder_forward.4']
    #allocation9 [shape = 'u8[65536]{0}', space=vmem, size = 0x10000, scoped, tag = 'input window, operand 1']
    #allocation10 [shape = 's32[2]{0}', space=sflag, size = 0x8, scoped, tag = 'scoped memory for encoder_forward.4']
    #allocation11 [shape = 'u8[524288]{0}', space=vmem, size = 0x80000, scoped, tag = 'input window, operand 2, single buffered']
    #allocation12 [shape = 'u8[524288]{0}', space=vmem, size = 0x80000, scoped, tag = 'input window, operand 3, single buffered']
    #allocation13 [shape = 's32[1]{0}', space=sflag, size = 0x4, scoped, tag = 'scoped memory for encoder_forward.4']
    #allocation14 [shape = 'u8[4096]{0}', space=vmem, size = 0x1000, scoped, tag = 'input window, operand 4, single buffered']
    #allocation15 [shape = 'u8[8192]{0}', space=vmem, size = 0x2000, scoped, tag = 'input window, operand 5, single buffered']
    #allocation16 [shape = 's32[1]{0}', space=sflag, size = 0x4, scoped, tag = 'scoped memory for encoder_forward.4']
    #allocation17 [shape = 'u8[32768]{0}', space=vmem, size = 0x8000, scoped, tag = 'output window, operand 0']
    #allocation18 [shape = 'u8[32768]{0}', space=vmem, size = 0x8000, scoped, tag = 'output window, operand 1']
    #allocation19 [shape = 's32[2]{0}', space=sflag, size = 0x8, scoped, tag = 'scoped memory for encoder_forward.4']
    #allocation20 [shape = 'u8[16384]{0}', space=vmem, size = 0x4000, scoped, tag = 'output window, operand 2, single buffered']
    #allocation21 [shape = 'u8[16384]{0}', space=vmem, size = 0x4000, scoped, tag = 'output window, operand 3, single buffered']
    #allocation22 [shape = 's32[1]{0}', space=sflag, size = 0x4, scoped, tag = 'scoped memory for encoder_forward.4']
    %15 = vsyncpa [#allocation7], 0
    %s16 = scalar_lea.sflag [#allocation7], 1
    %17 = vsyncpa %s16, 0
    %18 = vsyncpa [#allocation10], 0
    %s19 = scalar_lea.sflag [#allocation10], 1
    %20 = vsyncpa %s19, 0
    %21 = vsyncpa [#allocation13], 0
    %22 = vsyncpa [#allocation16], 0
    %23 = vsyncpa [#allocation8], 0
    %s24 = scalar_lea.sflag [#allocation8], 1
    %25 = vsyncpa %s24, 0
    %26 = vsyncpa [#allocation19], 0
    %s27 = scalar_lea.sflag [#allocation19], 1
    %28 = vsyncpa %s27, 0
    %29 = vsyncpa [#allocation22], 0
    loop: start=0, step=1, limit=4
    $region2: #{encoder_forward.4} parent=1 // loop_pre_header
      _
    $region3: #{encoder_forward.4} parent=1 // loop_header
      %s31 = sphi 0, %s35
      %p32 = scmp.ge.s32.totalorder %s31, 4
      %s41 = sphi 0, %s43
      %s44 = sphi 0, %s41
      %s45 = sphi 0, %s44
      %s61 = sphi 0, %s45
      %s69 = sphi 0, %s71
      %s72 = sphi 0, %s69
      %s73 = sphi 0, %s72
      %s89 = sphi 0, %s73
      %s93 = sphi 0, %s93
      %s95 = sphi 0, %s93
      %s96 = sphi 0, %s95
      %s110 = sphi 0, %s96
      %s114 = sphi 0, %s114
      %s116 = sphi 0, %s114
      %s117 = sphi 0, %s116
      %s131 = sphi 0, %s117
      %s135 = sphi 0, %s135
      %s137 = sphi 0, %s135
      %s138 = sphi 0, %s137
      %s152 = sphi 0, %s138
      %s156 = sphi 0, %s156
      %s158 = sphi 0, %s156
      %s159 = sphi 0, %s158
      %s173 = sphi 0, %s159
      %s179 = sphi 0, %s181
      %s182 = sphi 0, %s179
      %s183 = sphi 0, %s182
      %s199 = sphi 0, %s183
      %s207 = sphi 0, %s209
      %s210 = sphi 0, %s207
      %s211 = sphi 0, %s210
      %s227 = sphi 0, %s211
      %s231 = sphi 0, %s231
      %s233 = sphi 0, %s231
      %s234 = sphi 0, %s233
      %s248 = sphi 0, %s234
      %s252 = sphi 0, %s252
      %s254 = sphi 0, %s252
      %s255 = sphi 0, %s254
      %s269 = sphi 0, %s255
    $region4: #{encoder_forward.4} parent=1 // loop_header_branch
      %34 = sbr.rel (%p32) target = $region8
    $region5: #{encoder_forward.4} parent=1 // loop_body
      %s36 = ssub.s32 %s31, 1
      %s37 = ssub.s32 %s31, 2
      %s38 = sadd.s32 %s31, 1
      %s39 = ssub.s32 %s31, %s38
      %p40 = scmp.eq.s32.totalorder %s39, 0
      %s42 = sadd.s32 %s41, 1
      %s43 = scalar_select %p40, %s41, %s42
      %p46 = pneg %p40
      %p47 = scmp.eq.s32.totalorder %s31, 1
      %p48 = por %p46, %p47
      %p49 = scmp.ne.s32.totalorder %s41, %s44
      %p50 = scmp.eq.s32.totalorder %s31, 0
      %p51 = por %p49, %p50
      %p52 = scmp.ne.s32.totalorder %s41, %s44
      %p53 = scmp.eq.s32.totalorder %s36, 1
      %p54 = por %p52, %p53
      %p55 = scmp.ne.s32.totalorder %s44, %s45
      %p56 = scmp.eq.s32.totalorder %s36, 0
      %p57 = por %p55, %p56
      %p58 = scmp.ne.s32.totalorder %s44, %s45
      %p59 = scmp.eq.s32.totalorder %s37, 1
      %p60 = por %p58, %p59
      %p62 = scmp.ne.s32.totalorder %s45, %s61
      %p63 = scmp.eq.s32.totalorder %s37, 0
      %p64 = por %p62, %p63
      %s65 = ssub.s32 1, %s31
      %s66 = ssub.s32 1, %s38
      %s67 = ssub.s32 %s65, %s66
      %p68 = scmp.eq.s32.totalorder %s67, 0
      %s70 = sadd.s32 %s69, 1
      %s71 = scalar_select %p68, %s69, %s70
      %p74 = pneg %p68
      %p75 = scmp.eq.s32.totalorder %s31, 1
      %p76 = por %p74, %p75
      %p77 = scmp.ne.s32.totalorder %s69, %s72
      %p78 = scmp.eq.s32.totalorder %s31, 0
      %p79 = por %p77, %p78
      %p80 = scmp.ne.s32.totalorder %s69, %s72
      %p81 = scmp.eq.s32.totalorder %s36, 1
      %p82 = por %p80, %p81
      %p83 = scmp.ne.s32.totalorder %s72, %s73
      %p84 = scmp.eq.s32.totalorder %s36, 0
      %p85 = por %p83, %p84
      %p86 = scmp.ne.s32.totalorder %s72, %s73
      %p87 = scmp.eq.s32.totalorder %s37, 1
      %p88 = por %p86, %p87
      %p90 = scmp.ne.s32.totalorder %s73, %s89
      %p91 = scmp.eq.s32.totalorder %s37, 0
      %p92 = por %p90, %p91
      %s94 = sadd.s32 %s93, 1
      %p97 = scmp.eq.s32.totalorder %s31, 1
      %p98 = scmp.ne.s32.totalorder %s93, %s95
      %p99 = scmp.eq.s32.totalorder %s31, 0
      %p100 = por %p98, %p99
      %p101 = scmp.ne.s32.totalorder %s93, %s95
      %p102 = scmp.eq.s32.totalorder %s36, 1
      %p103 = por %p101, %p102
      %p104 = scmp.ne.s32.totalorder %s95, %s96
      %p105 = scmp.eq.s32.totalorder %s36, 0
      %p106 = por %p104, %p105
      %p107 = scmp.ne.s32.totalorder %s95, %s96
      %p108 = scmp.eq.s32.totalorder %s37, 1
      %p109 = por %p107, %p108
      %p111 = scmp.ne.s32.totalorder %s96, %s110
      %p112 = scmp.eq.s32.totalorder %s37, 0
      %p113 = por %p111, %p112
      %s115 = sadd.s32 %s114, 1
      %p118 = scmp.eq.s32.totalorder %s31, 1
      %p119 = scmp.ne.s32.totalorder %s114, %s116
      %p120 = scmp.eq.s32.totalorder %s31, 0
      %p121 = por %p119, %p120
      %p122 = scmp.ne.s32.totalorder %s114, %s116
      %p123 = scmp.eq.s32.totalorder %s36, 1
      %p124 = por %p122, %p123
      %p125 = scmp.ne.s32.totalorder %s116, %s117
      %p126 = scmp.eq.s32.totalorder %s36, 0
      %p127 = por %p125, %p126
      %p128 = scmp.ne.s32.totalorder %s116, %s117
      %p129 = scmp.eq.s32.totalorder %s37, 1
      %p130 = por %p128, %p129
      %p132 = scmp.ne.s32.totalorder %s117, %s131
      %p133 = scmp.eq.s32.totalorder %s37, 0
      %p134 = por %p132, %p133
      %s136 = sadd.s32 %s135, 1
      %p139 = scmp.eq.s32.totalorder %s31, 1
      %p140 = scmp.ne.s32.totalorder %s135, %s137
      %p141 = scmp.eq.s32.totalorder %s31, 0
      %p142 = por %p140, %p141
      %p143 = scmp.ne.s32.totalorder %s135, %s137
      %p144 = scmp.eq.s32.totalorder %s36, 1
      %p145 = por %p143, %p144
      %p146 = scmp.ne.s32.totalorder %s137, %s138
      %p147 = scmp.eq.s32.totalorder %s36, 0
      %p148 = por %p146, %p147
      %p149 = scmp.ne.s32.totalorder %s137, %s138
      %p150 = scmp.eq.s32.totalorder %s37, 1
      %p151 = por %p149, %p150
      %p153 = scmp.ne.s32.totalorder %s138, %s152
      %p154 = scmp.eq.s32.totalorder %s37, 0
      %p155 = por %p153, %p154
      %s157 = sadd.s32 %s156, 1
      %p160 = scmp.eq.s32.totalorder %s31, 1
      %p161 = scmp.ne.s32.totalorder %s156, %s158
      %p162 = scmp.eq.s32.totalorder %s31, 0
      %p163 = por %p161, %p162
      %p164 = scmp.ne.s32.totalorder %s156, %s158
      %p165 = scmp.eq.s32.totalorder %s36, 1
      %p166 = por %p164, %p165
      %p167 = scmp.ne.s32.totalorder %s158, %s159
      %p168 = scmp.eq.s32.totalorder %s36, 0
      %p169 = por %p167, %p168
      %p170 = scmp.ne.s32.totalorder %s158, %s159
      %p171 = scmp.eq.s32.totalorder %s37, 1
      %p172 = por %p170, %p171
      %p174 = scmp.ne.s32.totalorder %s159, %s173
      %p175 = scmp.eq.s32.totalorder %s37, 0
      %p176 = por %p174, %p175
      %s177 = ssub.s32 %s31, %s38
      %p178 = scmp.eq.s32.totalorder %s177, 0
      %s180 = sadd.s32 %s179, 1
      %s181 = scalar_select %p178, %s179, %s180
      %p184 = pneg %p178
      %p185 = scmp.eq.s32.totalorder %s31, 1
      %p186 = por %p184, %p185
      %p187 = scmp.ne.s32.totalorder %s179, %s182
      %p188 = scmp.eq.s32.totalorder %s31, 0
      %p189 = por %p187, %p188
      %p190 = scmp.ne.s32.totalorder %s179, %s182
      %p191 = scmp.eq.s32.totalorder %s36, 1
      %p192 = por %p190, %p191
      %p193 = scmp.ne.s32.totalorder %s182, %s183
      %p194 = scmp.eq.s32.totalorder %s36, 0
      %p195 = por %p193, %p194
      %p196 = scmp.ne.s32.totalorder %s182, %s183
      %p197 = scmp.eq.s32.totalorder %s37, 1
      %p198 = por %p196, %p197
      %p200 = scmp.ne.s32.totalorder %s183, %s199
      %p201 = scmp.eq.s32.totalorder %s37, 0
      %p202 = por %p200, %p201
      %s203 = ssub.s32 1, %s31
      %s204 = ssub.s32 1, %s38
      %s205 = ssub.s32 %s203, %s204
      %p206 = scmp.eq.s32.totalorder %s205, 0
      %s208 = sadd.s32 %s207, 1
      %s209 = scalar_select %p206, %s207, %s208
      %p212 = pneg %p206
      %p213 = scmp.eq.s32.totalorder %s31, 1
      %p214 = por %p212, %p213
      %p215 = scmp.ne.s32.totalorder %s207, %s210
      %p216 = scmp.eq.s32.totalorder %s31, 0
      %p217 = por %p215, %p216
      %p218 = scmp.ne.s32.totalorder %s207, %s210
      %p219 = scmp.eq.s32.totalorder %s36, 1
      %p220 = por %p218, %p219
      %p221 = scmp.ne.s32.totalorder %s210, %s211
      %p222 = scmp.eq.s32.totalorder %s36, 0
      %p223 = por %p221, %p222
      %p224 = scmp.ne.s32.totalorder %s210, %s211
      %p225 = scmp.eq.s32.totalorder %s37, 1
      %p226 = por %p224, %p225
      %p228 = scmp.ne.s32.totalorder %s211, %s227
      %p229 = scmp.eq.s32.totalorder %s37, 0
      %p230 = por %p228, %p229
      %s232 = sadd.s32 %s231, 1
      %p235 = scmp.eq.s32.totalorder %s31, 1
      %p236 = scmp.ne.s32.totalorder %s231, %s233
      %p237 = scmp.eq.s32.totalorder %s31, 0
      %p238 = por %p236, %p237
      %p239 = scmp.ne.s32.totalorder %s231, %s233
      %p240 = scmp.eq.s32.totalorder %s36, 1
      %p241 = por %p239, %p240
      %p242 = scmp.ne.s32.totalorder %s233, %s234
      %p243 = scmp.eq.s32.totalorder %s36, 0
      %p244 = por %p242, %p243
      %p245 = scmp.ne.s32.totalorder %s233, %s234
      %p246 = scmp.eq.s32.totalorder %s37, 1
      %p247 = por %p245, %p246
      %p249 = scmp.ne.s32.totalorder %s234, %s248
      %p250 = scmp.eq.s32.totalorder %s37, 0
      %p251 = por %p249, %p250
      %s253 = sadd.s32 %s252, 1
      %p256 = scmp.eq.s32.totalorder %s31, 1
      %p257 = scmp.ne.s32.totalorder %s252, %s254
      %p258 = scmp.eq.s32.totalorder %s31, 0
      %p259 = por %p257, %p258
      %p260 = scmp.ne.s32.totalorder %s252, %s254
      %p261 = scmp.eq.s32.totalorder %s36, 1
      %p262 = por %p260, %p261
      %p263 = scmp.ne.s32.totalorder %s254, %s255
      %p264 = scmp.eq.s32.totalorder %s36, 0
      %p265 = por %p263, %p264
      %p266 = scmp.ne.s32.totalorder %s254, %s255
      %p267 = scmp.eq.s32.totalorder %s37, 1
      %p268 = por %p266, %p267
      %p270 = scmp.ne.s32.totalorder %s255, %s269
      %p271 = scmp.eq.s32.totalorder %s37, 0
      %p272 = por %p270, %p271
      %p273 = scmp.le.s32.totalorder 1, %s31
      %p274 = scmp.lt.s32.totalorder %s31, 3
      %p275 = pnand %p273, %p274
      %p276 = pneg %p275
      // Predicated region
      $region9: #{encoder_forward.4} parent=5 // pred_check
        _
      $region10: #{encoder_forward.4} parent=5 // pred_check_branch
        %278 = sbr.rel (%p275) target = $region12
      $region11: #{encoder_forward.4} parent=5 // pred_region
        %s279 = ssub.s32 %s31, 1
        // Predicated region
        $region13: #{encoder_forward.4} parent=11 // pred_check
          %p280 = pneg %p106
        $region14: #{encoder_forward.4} parent=11 // pred_check_branch
          %282 = sbr.rel (%p280) target = $region16
        $region15: #{encoder_forward.4} parent=11 // pred_region
          %s284 = ssub.s32 16384, 16384
          %285 = vsyncadd [#allocation10], %s284
          %s286 = sshll.u32 [#allocation11], 4
          %s287 = int_to_ptr.vmem [resolvable:$true] %s286
          %292 = dma.hbm_to_vmem [thread:$0]  %s2, 16384, %s287, [#allocation10], 256, 256, 16
        $region16: #{encoder_forward.4} parent=11 // pred_fallthru
          _
        // Predicated region
        $region17: #{encoder_forward.4} parent=11 // pred_check
          %p293 = pneg %p127
        $region18: #{encoder_forward.4} parent=11 // pred_check_branch
          %295 = sbr.rel (%p293) target = $region20
        $region19: #{encoder_forward.4} parent=11 // pred_region
          %s297 = ssub.s32 16384, 16384
          %298 = vsyncadd [#allocation13], %s297
          %s299 = sshll.u32 [#allocation12], 4
          %s300 = int_to_ptr.vmem [resolvable:$true] %s299
          %305 = dma.hbm_to_vmem [thread:$0]  %s3, 16384, %s300, [#allocation13], 512, 512, 32
        $region20: #{encoder_forward.4} parent=11 // pred_fallthru
          _
        // Predicated region
        $region21: #{encoder_forward.4} parent=11 // pred_check
          %p306 = pneg %p148
        $region22: #{encoder_forward.4} parent=11 // pred_check_branch
          %308 = sbr.rel (%p306) target = $region24
        $region23: #{encoder_forward.4} parent=11 // pred_region
          %s310 = ssub.s32 128, 128
          %311 = vsyncadd [#allocation13], %s310
          %s312 = sshll.u32 [#allocation14], 4
          %s313 = int_to_ptr.vmem [resolvable:$true] %s312
          %318 = dma.hbm_to_vmem [thread:$0]  %s4, 128, %s313, [#allocation13], 64, 64, 4
        $region24: #{encoder_forward.4} parent=11 // pred_fallthru
          _
        // Predicated region
        $region25: #{encoder_forward.4} parent=11 // pred_check
          %p319 = pneg %p169
        $region26: #{encoder_forward.4} parent=11 // pred_check_branch
          %321 = sbr.rel (%p319) target = $region28
        $region27: #{encoder_forward.4} parent=11 // pred_region
          %s323 = ssub.s32 256, 256
          %324 = vsyncadd [#allocation16], %s323
          %s325 = sshll.u32 [#allocation15], 4
          %s326 = int_to_ptr.vmem [resolvable:$true] %s325
          %331 = dma.hbm_to_vmem [thread:$0]  %s5, 256, %s326, [#allocation16], 128, 128, 8
        $region28: #{encoder_forward.4} parent=11 // pred_fallthru
          _
      $region12: #{encoder_forward.4} parent=5 // pred_fallthru
        _
      %p332 = scmp.lt.s32.totalorder %s31, 2
      // Predicated region
      $region29: #{encoder_forward.4} parent=5 // pred_check
        %p333 = pneg %p332
      $region30: #{encoder_forward.4} parent=5 // pred_check_branch
        %335 = sbr.rel (%p333) target = $region32
      $region31: #{encoder_forward.4} parent=5 // pred_region
        // Predicated region
        $region33: #{encoder_forward.4} parent=31 // pred_check
          %p336 = pneg %p51
        $region34: #{encoder_forward.4} parent=31 // pred_check_branch
          %338 = sbr.rel (%p336) target = $region36
        $region35: #{encoder_forward.4} parent=31 // pred_region
          %s339 = sand.u32 %s41, 1
          %s340 = scalar_lea.sflag [#allocation7], %s339
          %s341 = sand.u32 %s41, 1
          %s342 = smul.addr %s341, 64
          %s343 = scalar_lea.vmem [#allocation6], %s342
          %s344 = smul.u32 4, %s31
          %s346 = ssub.s32 1024, 1024
          %347 = vsyncadd %s340, %s346
          %s348 = smul.addr %s344, 4
          %s349 = smul.addr %s348, 64
          %s350 = scalar_lea.hbm %s0, %s349
          %s351 = sshll.u32 %s343, 4
          %s352 = int_to_ptr.vmem [resolvable:$true] %s351
          %357 = dma.hbm_to_vmem [thread:$0]  %s350, 1024, %s352, %s340, 128, 128, 8
        $region36: #{encoder_forward.4} parent=31 // pred_fallthru
          _
        // Predicated region
        $region37: #{encoder_forward.4} parent=31 // pred_check
          %p358 = pneg %p79
        $region38: #{encoder_forward.4} parent=31 // pred_check_branch
          %360 = sbr.rel (%p358) target = $region40
        $region39: #{encoder_forward.4} parent=31 // pred_region
          %s361 = sand.u32 %s31, 1
          %s362 = scalar_lea.sflag [#allocation10], %s361
          %s363 = sand.u32 %s69, 1
          %s364 = smul.addr %s363, 64
          %s365 = scalar_lea.vmem [#allocation9], %s364
          %s366 = ssub.s32 1, %s31
          %s367 = smul.u32 4, %s366
          %s369 = ssub.s32 1024, 1024
          %370 = vsyncadd %s362, %s369
          %s371 = smul.addr %s367, 4
          %s372 = smul.addr %s371, 64
          %s373 = scalar_lea.hbm %s1, %s372
          %s374 = sshll.u32 %s365, 4
          %s375 = int_to_ptr.vmem [resolvable:$true] %s374
          %380 = dma.hbm_to_vmem [thread:$0]  %s373, 1024, %s375, %s362, 128, 128, 8
        $region40: #{encoder_forward.4} parent=31 // pred_fallthru
          _
      $region32: #{encoder_forward.4} parent=5 // pred_fallthru
        _
      %p381 = scmp.le.s32.totalorder 1, %s31
      %p382 = scmp.lt.s32.totalorder %s31, 3
      %p383 = pnand %p381, %p382
      %p384 = pneg %p383
      // Predicated region
      $region41: #{encoder_forward.4} parent=5 // pred_check
        _
      $region42: #{encoder_forward.4} parent=5 // pred_check_branch
        %386 = sbr.rel (%p383) target = $region44
      $region43: #{encoder_forward.4} parent=5 // pred_region
        %s387 = ssub.s32 %s31, 1
        %s388 = sand.u32 %s44, 1
        %s389 = scalar_lea.sflag [#allocation7], %s388
        %s390 = sand.u32 %s44, 1
        %s391 = smul.addr %s390, 64
        %s392 = scalar_lea.vmem [#allocation6], %s391
        // Predicated region
        $region45: #{encoder_forward.4} parent=43 // pred_check
          %p393 = pneg %p57
        $region46: #{encoder_forward.4} parent=43 // pred_check_branch
          %395 = sbr.rel (%p393) target = $region48
        $region47: #{encoder_forward.4} parent=43 // pred_region
          %396 = dma.done %s389, 1024
        $region48: #{encoder_forward.4} parent=43 // pred_fallthru
          _
        %s397 = sand.u32 %s36, 1
        %s398 = scalar_lea.sflag [#allocation10], %s397
        %s399 = sand.u32 %s72, 1
        %s400 = smul.addr %s399, 64
        %s401 = scalar_lea.vmem [#allocation9], %s400
        // Predicated region
        $region49: #{encoder_forward.4} parent=43 // pred_check
          %p402 = pneg %p85
        $region50: #{encoder_forward.4} parent=43 // pred_check_branch
          %404 = sbr.rel (%p402) target = $region52
        $region51: #{encoder_forward.4} parent=43 // pred_region
          %405 = dma.done %s398, 1024
        $region52: #{encoder_forward.4} parent=43 // pred_fallthru
          _
        // Predicated region
        $region53: #{encoder_forward.4} parent=43 // pred_check
          %p406 = pneg %p106
        $region54: #{encoder_forward.4} parent=43 // pred_check_branch
          %408 = sbr.rel (%p406) target = $region56
        $region55: #{encoder_forward.4} parent=43 // pred_region
          %409 = dma.done [#allocation10], 16384
        $region56: #{encoder_forward.4} parent=43 // pred_fallthru
          _
        // Predicated region
        $region57: #{encoder_forward.4} parent=43 // pred_check
          %p410 = pneg %p127
        $region58: #{encoder_forward.4} parent=43 // pred_check_branch
          %412 = sbr.rel (%p410) target = $region60
        $region59: #{encoder_forward.4} parent=43 // pred_region
          %413 = dma.done [#allocation13], 16384
        $region60: #{encoder_forward.4} parent=43 // pred_fallthru
          _
        // Predicated region
        $region61: #{encoder_forward.4} parent=43 // pred_check
          %p414 = pneg %p148
        $region62: #{encoder_forward.4} parent=43 // pred_check_branch
          %416 = sbr.rel (%p414) target = $region64
        $region63: #{encoder_forward.4} parent=43 // pred_region
          %417 = dma.done [#allocation13], 128
        $region64: #{encoder_forward.4} parent=43 // pred_fallthru
          _
        // Predicated region
        $region65: #{encoder_forward.4} parent=43 // pred_check
          %p418 = pneg %p169
        $region66: #{encoder_forward.4} parent=43 // pred_check_branch
          %420 = sbr.rel (%p418) target = $region68
        $region67: #{encoder_forward.4} parent=43 // pred_region
          %421 = dma.done [#allocation16], 256
        $region68: #{encoder_forward.4} parent=43 // pred_fallthru
          _
        %s422 = sand.u32 %s44, 1
        %s423 = scalar_lea.sflag [#allocation7], %s422
        %s424 = sand.u32 %s44, 1
        %s425 = smul.addr %s424, 64
        %s426 = scalar_lea.vmem [#allocation6], %s425
        %p427 = pneg %p57
        %p428 = pneg %p54
        %s429 = sand.u32 %s36, 1
        %s430 = scalar_lea.sflag [#allocation10], %s429
        %s431 = sand.u32 %s72, 1
        %s432 = smul.addr %s431, 64
        %s433 = scalar_lea.vmem [#allocation9], %s432
        %p434 = pneg %p85
        %p435 = pneg %p82
        %p436 = pneg %p106
        %p437 = pneg %p103
        %p438 = pneg %p127
        %p439 = pneg %p124
        %p440 = pneg %p148
        %p441 = pneg %p145
        %p442 = pneg %p169
        %p443 = pneg %p166
        %p444 = pneg %p195
        %p445 = pneg %p192
        %s446 = sand.u32 %s182, 1
        %s447 = scalar_lea.sflag [#allocation8], %s446
        %s448 = sand.u32 %s182, 1
        %s449 = smul.addr %s448, 32
        %s450 = scalar_lea.vmem [#allocation17], %s449
        %p451 = pneg %p223
        %p452 = pneg %p220
        %s453 = sand.u32 %s36, 1
        %s454 = scalar_lea.sflag [#allocation19], %s453
        %s455 = sand.u32 %s210, 1
        %s456 = smul.addr %s455, 32
        %s457 = scalar_lea.vmem [#allocation18], %s456
        %p458 = pneg %p244
        %p459 = pneg %p241
        %p460 = pneg %p265
        %p461 = pneg %p262
        %s462 = smul.u32 4, %s36
        %s463 = ssub.s32 1, %s36
        %s464 = smul.u32 4, %s463
        %s465 = smul.u32 4, %s36
        %s466 = ssub.s32 1, %s36
        %s467 = smul.u32 4, %s466
        %p468 = scmp.eq.s32.totalorder %s36, 0
        // Predicated region
        $region69: #{encoder_forward.4} parent=43 // pred_check
          %p469 = pneg %p468
        $region70: #{encoder_forward.4} parent=43 // pred_check_branch
          %471 = sbr.rel (%p469) target = $region72
        $region71: #{encoder_forward.4} parent=43 // pred_region
          %472 = vst [vmem:[#allocation4] sm:$0xff] 0.0
          %473 = vst [vmem:[#allocation4 + $0x8] sm:$0xff] 0.0
          %474 = vst [vmem:[#allocation4 + $0x10] sm:$0xff] 0.0
          %475 = vst [vmem:[#allocation4 + $0x18] sm:$0xff] 0.0
          %476 = vst [vmem:[#allocation5] sm:$0xff] 0.0
          %477 = vst [vmem:[#allocation5 + $0x8] sm:$0xff] 0.0
          %478 = vst [vmem:[#allocation5 + $0x10] sm:$0xff] 0.0
          %479 = vst [vmem:[#allocation5 + $0x18] sm:$0xff] 0.0
        $region72: #{encoder_forward.4} parent=43 // pred_fallthru
          _
        %v480 = vld [vmem:[%s392] sm:$0xff]
        %v481 = vld [vmem:[%s392 + $0x8] sm:$0xff]
        %v482 = vld [vmem:[%s392 + $0x10] sm:$0xff]
        %v483 = vld [vmem:[%s392 + $0x18] sm:$0xff]
        %v484 = vld [vmem:[%s392 + $0x20] sm:$0xff]
        %v485 = vld [vmem:[%s392 + $0x28] sm:$0xff]
        %v486 = vld [vmem:[%s392 + $0x30] sm:$0xff]
        %v487 = vld [vmem:[%s392 + $0x38] sm:$0xff]
        %v488 = vld [vmem:[#allocation11] sm:$0xff]
        %v489 = vld [vmem:[#allocation11 + $0x8] sm:$0xff]
        %v490 = vld [vmem:[#allocation11 + $0x10] sm:$0xff]
        %v491 = vld [vmem:[#allocation11 + $0x18] sm:$0xff]
        %v492 = vld [vmem:[#allocation11 + $0x20] sm:$0xff]
        %v493 = vld [vmem:[#allocation11 + $0x28] sm:$0xff]
        %v494 = vld [vmem:[#allocation11 + $0x30] sm:$0xff]
        %v495 = vld [vmem:[#allocation11 + $0x38] sm:$0xff]
        %v496 = vld [vmem:[#allocation11 + $0x40] sm:$0xff]
        %v497 = vld [vmem:[#allocation11 + $0x48] sm:$0xff]
        %v498 = vld [vmem:[#allocation11 + $0x50] sm:$0xff]
        %v499 = vld [vmem:[#allocation11 + $0x58] sm:$0xff]
        %v500 = vld [vmem:[#allocation11 + $0x60] sm:$0xff]
        %v501 = vld [vmem:[#allocation11 + $0x68] sm:$0xff]
        %v502 = vld [vmem:[#allocation11 + $0x70] sm:$0xff]
        %v503 = vld [vmem:[#allocation11 + $0x78] sm:$0xff]
        %v504 = vld [vmem:[#allocation11 + $0x80] sm:$0xff]
        %v505 = vld [vmem:[#allocation11 + $0x88] sm:$0xff]
        %v506 = vld [vmem:[#allocation11 + $0x90] sm:$0xff]
        %v507 = vld [vmem:[#allocation11 + $0x98] sm:$0xff]
        %v508 = vld [vmem:[#allocation11 + $0xa0] sm:$0xff]
        %v509 = vld [vmem:[#allocation11 + $0xa8] sm:$0xff]
        %v510 = vld [vmem:[#allocation11 + $0xb0] sm:$0xff]
        %v511 = vld [vmem:[#allocation11 + $0xb8] sm:$0xff]
        %v512 = vld [vmem:[#allocation11 + $0xc0] sm:$0xff]
        %v513 = vld [vmem:[#allocation11 + $0xc8] sm:$0xff]
        %v514 = vld [vmem:[#allocation11 + $0xd0] sm:$0xff]
        %v515 = vld [vmem:[#allocation11 + $0xd8] sm:$0xff]
        %v516 = vld [vmem:[#allocation11 + $0xe0] sm:$0xff]
        %v517 = vld [vmem:[#allocation11 + $0xe8] sm:$0xff]
        %v518 = vld [vmem:[#allocation11 + $0xf0] sm:$0xff]
        %v519 = vld [vmem:[#allocation11 + $0xf8] sm:$0xff]
        %v520 = vld [vmem:[#allocation11 + $0x100] sm:$0xff]
        %v521 = vld [vmem:[#allocation11 + $0x108] sm:$0xff]
        %v522 = vld [vmem:[#allocation11 + $0x110] sm:$0xff]
        %v523 = vld [vmem:[#allocation11 + $0x118] sm:$0xff]
        %v524 = vld [vmem:[#allocation11 + $0x120] sm:$0xff]
        %v525 = vld [vmem:[#allocation11 + $0x128] sm:$0xff]
        %v526 = vld [vmem:[#allocation11 + $0x130] sm:$0xff]
        %v527 = vld [vmem:[#allocation11 + $0x138] sm:$0xff]
        %v528 = vld [vmem:[#allocation11 + $0x140] sm:$0xff]
        %v529 = vld [vmem:[#allocation11 + $0x148] sm:$0xff]
        %v530 = vld [vmem:[#allocation11 + $0x150] sm:$0xff]
        %v531 = vld [vmem:[#allocation11 + $0x158] sm:$0xff]
        %v532 = vld [vmem:[#allocation11 + $0x160] sm:$0xff]
        %v533 = vld [vmem:[#allocation11 + $0x168] sm:$0xff]
        %v534 = vld [vmem:[#allocation11 + $0x170] sm:$0xff]
        %v535 = vld [vmem:[#allocation11 + $0x178] sm:$0xff]
        %v536 = vld [vmem:[#allocation11 + $0x180] sm:$0xff]
        %v537 = vld [vmem:[#allocation11 + $0x188] sm:$0xff]
        %v538 = vld [vmem:[#allocation11 + $0x190] sm:$0xff]
        %v539 = vld [vmem:[#allocation11 + $0x198] sm:$0xff]
        %v540 = vld [vmem:[#allocation11 + $0x1a0] sm:$0xff]
        %v541 = vld [vmem:[#allocation11 + $0x1a8] sm:$0xff]
        %v542 = vld [vmem:[#allocation11 + $0x1b0] sm:$0xff]
        %v543 = vld [vmem:[#allocation11 + $0x1b8] sm:$0xff]
        %v544 = vld [vmem:[#allocation11 + $0x1c0] sm:$0xff]
        %v545 = vld [vmem:[#allocation11 + $0x1c8] sm:$0xff]
        %v546 = vld [vmem:[#allocation11 + $0x1d0] sm:$0xff]
        %v547 = vld [vmem:[#allocation11 + $0x1d8] sm:$0xff]
        %v548 = vld [vmem:[#allocation11 + $0x1e0] sm:$0xff]
        %v549 = vld [vmem:[#allocation11 + $0x1e8] sm:$0xff]
        %v550 = vld [vmem:[#allocation11 + $0x1f0] sm:$0xff]
        %v551 = vld [vmem:[#allocation11 + $0x1f8] sm:$0xff]
        %v552 = vld [vmem:[#allocation14] sm:$0xf]
        %v554 = vlaneseq
        %v555 = vshrl.u32 %v554, 7
        %v556 = vsub.s32 0, %v555
        %v557 = vrot.slane %v552, %v556
        %v558 = vlaneseq
        %v559 = vshrl.u32 %v558, 7
        %v560 = vsub.s32 1, %v559
        %v561 = vrot.slane %v552, %v560
        %v562 = vlaneseq
        %v563 = vshrl.u32 %v562, 7
        %v564 = vsub.s32 2, %v563
        %v565 = vrot.slane %v552, %v564
        %v566 = vlaneseq
        %v567 = vshrl.u32 %v566, 7
        %v568 = vsub.s32 3, %v567
        %v569 = vrot.slane %v552, %v568
        %v582 = vunpack.c.l.b16 %v480
        %v583 = vunpack.c.h.b16 %v480
        %v584 = vunpack.c.l.b16 %v481
        %v585 = vunpack.c.h.b16 %v481
        %v586 = vunpack.c.l.b16 %v482
        %v587 = vunpack.c.h.b16 %v482
        %v588 = vunpack.c.l.b16 %v483
        %v589 = vunpack.c.h.b16 %v483
        %v590 = vunpack.c.l.b16 %v484
        %v591 = vunpack.c.h.b16 %v484
        %v592 = vunpack.c.l.b16 %v485
        %v593 = vunpack.c.h.b16 %v485
        %v594 = vunpack.c.l.b16 %v486
        %v595 = vunpack.c.h.b16 %v486
        %v596 = vunpack.c.l.b16 %v487
        %v597 = vunpack.c.h.b16 %v487
        %v598 = vpack.c.b16 %v584, %v582
        %v599 = vpack.c.b16 %v585, %v583
        %v600 = vpack.c.b16 %v588, %v586
        %v601 = vpack.c.b16 %v589, %v587
        %v602 = vpack.c.b16 %v592, %v590
        %v603 = vpack.c.b16 %v593, %v591
        %v604 = vpack.c.b16 %v596, %v594
        %v605 = vpack.c.b16 %v597, %v595
        %v678 = vunpack.c.l.b16 %v488
        %v679 = vunpack.c.h.b16 %v488
        %v680 = vunpack.c.l.b16 %v489
        %v681 = vunpack.c.h.b16 %v489
        %v682 = vunpack.c.l.b16 %v490
        %v683 = vunpack.c.h.b16 %v490
        %v684 = vunpack.c.l.b16 %v491
        %v685 = vunpack.c.h.b16 %v491
        %v686 = vunpack.c.l.b16 %v492
        %v687 = vunpack.c.h.b16 %v492
        %v688 = vunpack.c.l.b16 %v493
        %v689 = vunpack.c.h.b16 %v493
        %v690 = vunpack.c.l.b16 %v494
        %v691 = vunpack.c.h.b16 %v494
        %v692 = vunpack.c.l.b16 %v495
        %v693 = vunpack.c.h.b16 %v495
        %v694 = vunpack.c.l.b16 %v496
        %v695 = vunpack.c.h.b16 %v496
        %v696 = vunpack.c.l.b16 %v497
        %v697 = vunpack.c.h.b16 %v497
        %v698 = vunpack.c.l.b16 %v498
        %v699 = vunpack.c.h.b16 %v498
        %v700 = vunpack.c.l.b16 %v499
        %v701 = vunpack.c.h.b16 %v499
        %v702 = vunpack.c.l.b16 %v500
        %v703 = vunpack.c.h.b16 %v500
        %v704 = vunpack.c.l.b16 %v501
        %v705 = vunpack.c.h.b16 %v501
        %v706 = vunpack.c.l.b16 %v502
        %v707 = vunpack.c.h.b16 %v502
        %v708 = vunpack.c.l.b16 %v503
        %v709 = vunpack.c.h.b16 %v503
        %v710 = vunpack.c.l.b16 %v504
        %v711 = vunpack.c.h.b16 %v504
        %v712 = vunpack.c.l.b16 %v505
        %v713 = vunpack.c.h.b16 %v505
        %v714 = vunpack.c.l.b16 %v506
        %v715 = vunpack.c.h.b16 %v506
        %v716 = vunpack.c.l.b16 %v507
        %v717 = vunpack.c.h.b16 %v507
        %v718 = vunpack.c.l.b16 %v508
        %v719 = vunpack.c.h.b16 %v508
        %v720 = vunpack.c.l.b16 %v509
        %v721 = vunpack.c.h.b16 %v509
        %v722 = vunpack.c.l.b16 %v510
        %v723 = vunpack.c.h.b16 %v510
        %v724 = vunpack.c.l.b16 %v511
        %v725 = vunpack.c.h.b16 %v511
        %v726 = vunpack.c.l.b16 %v512
        %v727 = vunpack.c.h.b16 %v512
        %v728 = vunpack.c.l.b16 %v513
        %v729 = vunpack.c.h.b16 %v513
        %v730 = vunpack.c.l.b16 %v514
        %v731 = vunpack.c.h.b16 %v514
        %v732 = vunpack.c.l.b16 %v515
        %v733 = vunpack.c.h.b16 %v515
        %v734 = vunpack.c.l.b16 %v516
        %v735 = vunpack.c.h.b16 %v516
        %v736 = vunpack.c.l.b16 %v517
        %v737 = vunpack.c.h.b16 %v517
        %v738 = vunpack.c.l.b16 %v518
        %v739 = vunpack.c.h.b16 %v518
        %v740 = vunpack.c.l.b16 %v519
        %v741 = vunpack.c.h.b16 %v519
        %v742 = vunpack.c.l.b16 %v520
        %v743 = vunpack.c.h.b16 %v520
        %v744 = vunpack.c.l.b16 %v521
        %v745 = vunpack.c.h.b16 %v521
        %v746 = vunpack.c.l.b16 %v522
        %v747 = vunpack.c.h.b16 %v522
        %v748 = vunpack.c.l.b16 %v523
        %v749 = vunpack.c.h.b16 %v523
        %v750 = vunpack.c.l.b16 %v524
        %v751 = vunpack.c.h.b16 %v524
        %v752 = vunpack.c.l.b16 %v525
        %v753 = vunpack.c.h.b16 %v525
        %v754 = vunpack.c.l.b16 %v526
        %v755 = vunpack.c.h.b16 %v526
        %v756 = vunpack.c.l.b16 %v527
        %v757 = vunpack.c.h.b16 %v527
        %v758 = vunpack.c.l.b16 %v528
        %v759 = vunpack.c.h.b16 %v528
        %v760 = vunpack.c.l.b16 %v529
        %v761 = vunpack.c.h.b16 %v529
        %v762 = vunpack.c.l.b16 %v530
        %v763 = vunpack.c.h.b16 %v530
        %v764 = vunpack.c.l.b16 %v531
        %v765 = vunpack.c.h.b16 %v531
        %v766 = vunpack.c.l.b16 %v532
        %v767 = vunpack.c.h.b16 %v532
        %v768 = vunpack.c.l.b16 %v533
        %v769 = vunpack.c.h.b16 %v533
        %v770 = vunpack.c.l.b16 %v534
        %v771 = vunpack.c.h.b16 %v534
        %v772 = vunpack.c.l.b16 %v535
        %v773 = vunpack.c.h.b16 %v535
        %v774 = vunpack.c.l.b16 %v536
        %v775 = vunpack.c.h.b16 %v536
        %v776 = vunpack.c.l.b16 %v537
        %v777 = vunpack.c.h.b16 %v537
        %v778 = vunpack.c.l.b16 %v538
        %v779 = vunpack.c.h.b16 %v538
        %v780 = vunpack.c.l.b16 %v539
        %v781 = vunpack.c.h.b16 %v539
        %v782 = vunpack.c.l.b16 %v540
        %v783 = vunpack.c.h.b16 %v540
        %v784 = vunpack.c.l.b16 %v541
        %v785 = vunpack.c.h.b16 %v541
        %v786 = vunpack.c.l.b16 %v542
        %v787 = vunpack.c.h.b16 %v542
        %v788 = vunpack.c.l.b16 %v543
        %v789 = vunpack.c.h.b16 %v543
        %v790 = vunpack.c.l.b16 %v544
        %v791 = vunpack.c.h.b16 %v544
        %v792 = vunpack.c.l.b16 %v545
        %v793 = vunpack.c.h.b16 %v545
        %v794 = vunpack.c.l.b16 %v546
        %v795 = vunpack.c.h.b16 %v546
        %v796 = vunpack.c.l.b16 %v547
        %v797 = vunpack.c.h.b16 %v547
        %v798 = vunpack.c.l.b16 %v548
        %v799 = vunpack.c.h.b16 %v548
        %v800 = vunpack.c.l.b16 %v549
        %v801 = vunpack.c.h.b16 %v549
        %v802 = vunpack.c.l.b16 %v550
        %v803 = vunpack.c.h.b16 %v550
        %v804 = vunpack.c.l.b16 %v551
        %v805 = vunpack.c.h.b16 %v551
        %v806 = vpack.c.b16 %v682, %v678
        %v807 = vpack.c.b16 %v683, %v679
        %v808 = vpack.c.b16 %v684, %v680
        %v809 = vpack.c.b16 %v685, %v681
        %v810 = vpack.c.b16 %v690, %v686
        %v811 = vpack.c.b16 %v691, %v687
        %v812 = vpack.c.b16 %v692, %v688
        %v813 = vpack.c.b16 %v693, %v689
        %v814 = vpack.c.b16 %v698, %v694
        %v815 = vpack.c.b16 %v699, %v695
        %v816 = vpack.c.b16 %v700, %v696
        %v817 = vpack.c.b16 %v701, %v697
        %v818 = vpack.c.b16 %v706, %v702
        %v819 = vpack.c.b16 %v707, %v703
        %v820 = vpack.c.b16 %v708, %v704
        %v821 = vpack.c.b16 %v709, %v705
        %v822 = vpack.c.b16 %v714, %v710
        %v823 = vpack.c.b16 %v715, %v711
        %v824 = vpack.c.b16 %v716, %v712
        %v825 = vpack.c.b16 %v717, %v713
        %v826 = vpack.c.b16 %v722, %v718
        %v827 = vpack.c.b16 %v723, %v719
        %v828 = vpack.c.b16 %v724, %v720
        %v829 = vpack.c.b16 %v725, %v721
        %v830 = vpack.c.b16 %v730, %v726
        %v831 = vpack.c.b16 %v731, %v727
        %v832 = vpack.c.b16 %v732, %v728
        %v833 = vpack.c.b16 %v733, %v729
        %v834 = vpack.c.b16 %v738, %v734
        %v835 = vpack.c.b16 %v739, %v735
        %v836 = vpack.c.b16 %v740, %v736
        %v837 = vpack.c.b16 %v741, %v737
        %v838 = vpack.c.b16 %v746, %v742
        %v839 = vpack.c.b16 %v747, %v743
        %v840 = vpack.c.b16 %v748, %v744
        %v841 = vpack.c.b16 %v749, %v745
        %v842 = vpack.c.b16 %v754, %v750
        %v843 = vpack.c.b16 %v755, %v751
        %v844 = vpack.c.b16 %v756, %v752
        %v845 = vpack.c.b16 %v757, %v753
        %v846 = vpack.c.b16 %v762, %v758
        %v847 = vpack.c.b16 %v763, %v759
        %v848 = vpack.c.b16 %v764, %v760
        %v849 = vpack.c.b16 %v765, %v761
        %v850 = vpack.c.b16 %v770, %v766
        %v851 = vpack.c.b16 %v771, %v767
        %v852 = vpack.c.b16 %v772, %v768
        %v853 = vpack.c.b16 %v773, %v769
        %v854 = vpack.c.b16 %v778, %v774
        %v855 = vpack.c.b16 %v779, %v775
        %v856 = vpack.c.b16 %v780, %v776
        %v857 = vpack.c.b16 %v781, %v777
        %v858 = vpack.c.b16 %v786, %v782
        %v859 = vpack.c.b16 %v787, %v783
        %v860 = vpack.c.b16 %v788, %v784
        %v861 = vpack.c.b16 %v789, %v785
        %v862 = vpack.c.b16 %v794, %v790
        %v863 = vpack.c.b16 %v795, %v791
        %v864 = vpack.c.b16 %v796, %v792
        %v865 = vpack.c.b16 %v797, %v793
        %v866 = vpack.c.b16 %v802, %v798
        %v867 = vpack.c.b16 %v803, %v799
        %v868 = vpack.c.b16 %v804, %v800
        %v869 = vpack.c.b16 %v805, %v801
        %934 = vmatprep.subr.bf16.mxu0 %v807
        %935 = vmatpush1.bf16.msra.mxu0 %v806
        %936 = vmatprep.subr.bf16.mxu0 %v811
        %937 = vmatpush1.bf16.msra.mxu0 %v810
        %938 = vmatprep.subr.bf16.mxu0 %v815
        %939 = vmatpush1.bf16.msra.mxu0 %v814
        %940 = vmatprep.subr.bf16.mxu0 %v819
        %941 = vmatpush1.bf16.msra.mxu0 %v818
        %942 = vmatprep.subr.bf16.mxu0 %v823
        %943 = vmatpush1.bf16.msra.mxu0 %v822
        %944 = vmatprep.subr.bf16.mxu0 %v827
        %945 = vmatpush1.bf16.msra.mxu0 %v826
        %946 = vmatprep.subr.bf16.mxu0 %v831
        %947 = vmatpush1.bf16.msra.mxu0 %v830
        %948 = vmatprep.subr.bf16.mxu0 %v835
        %949 = vmatpush1.bf16.msra.mxu0 %v834
        %950 = vmatprep.subr.bf16.mxu0 %v839
        %951 = vmatpush1.bf16.msra.mxu0 %v838
        %952 = vmatprep.subr.bf16.mxu0 %v843
        %953 = vmatpush1.bf16.msra.mxu0 %v842
        %954 = vmatprep.subr.bf16.mxu0 %v847
        %955 = vmatpush1.bf16.msra.mxu0 %v846
        %956 = vmatprep.subr.bf16.mxu0 %v851
        %957 = vmatpush1.bf16.msra.mxu0 %v850
        %958 = vmatprep.subr.bf16.mxu0 %v855
        %959 = vmatpush1.bf16.msra.mxu0 %v854
        %960 = vmatprep.subr.bf16.mxu0 %v859
        %961 = vmatpush1.bf16.msra.mxu0 %v858
        %962 = vmatprep.subr.bf16.mxu0 %v863
        %963 = vmatpush1.bf16.msra.mxu0 %v862
        %964 = vmatprep.subr.bf16.mxu0 %v867
        %965 = vmatpush1.bf16.msra.mxu0 %v866
        %966 = vmatprep.mubr.bf16.mxu0 %v599
        %967 = vmatmul.mubr.bf16.gmra.mrb[0].mxu0 %v598
        %v968 = vpop.f32.mrb[0].mxu0
        %v969 = vadd.f32 %v557, %v968
        %v970 = vpop.f32.mrb[0].mxu0
        %v971 = vadd.f32 %v561, %v970
        %v972 = vpop.f32.mrb[0].mxu0
        %v973 = vadd.f32 %v557, %v972
        %v974 = vpop.f32.mrb[0].mxu0
        %v975 = vadd.f32 %v561, %v974
        %976 = vmatprep.mubr.bf16.mxu0 %v601
        %977 = vmatmul.mubr.bf16.gmra.mrb[0].mxu0 %v600
        %v978 = vpop.f32.mrb[0].mxu0
        %v979 = vadd.f32 %v557, %v978
        %v980 = vpop.f32.mrb[0].mxu0
        %v981 = vadd.f32 %v561, %v980
        %v982 = vpop.f32.mrb[0].mxu0
        %v983 = vadd.f32 %v557, %v982
        %v984 = vpop.f32.mrb[0].mxu0
        %v985 = vadd.f32 %v561, %v984
        %986 = vmatprep.mubr.bf16.mxu0 %v603
        %987 = vmatmul.mubr.bf16.gmra.mrb[0].mxu0 %v602
        %v988 = vpop.f32.mrb[0].mxu0
        %v989 = vadd.f32 %v557, %v988
        %v990 = vpop.f32.mrb[0].mxu0
        %v991 = vadd.f32 %v561, %v990
        %v992 = vpop.f32.mrb[0].mxu0
        %v993 = vadd.f32 %v557, %v992
        %v994 = vpop.f32.mrb[0].mxu0
        %v995 = vadd.f32 %v561, %v994
        %996 = vmatprep.mubr.bf16.mxu0 %v605
        %997 = vmatmul.mubr.bf16.gmra.mrb[0].mxu0 %v604
        %v998 = vpop.f32.mrb[0].mxu0
        %v999 = vadd.f32 %v557, %v998
        %v1000 = vpop.f32.mrb[0].mxu0
        %v1001 = vadd.f32 %v561, %v1000
        %v1002 = vpop.f32.mrb[0].mxu0
        %v1003 = vadd.f32 %v557, %v1002
        %v1004 = vpop.f32.mrb[0].mxu0
        %v1005 = vadd.f32 %v561, %v1004
        %1006 = vdwg.mxu0
        %1007 = vmatprep.subr.bf16.mxu0 %v809
        %1008 = vmatpush1.bf16.msra.mxu0 %v808
        %1009 = vmatprep.subr.bf16.mxu0 %v813
        %1010 = vmatpush1.bf16.msra.mxu0 %v812
        %1011 = vmatprep.subr.bf16.mxu0 %v817
        %1012 = vmatpush1.bf16.msra.mxu0 %v816
        %1013 = vmatprep.subr.bf16.mxu0 %v821
        %1014 = vmatpush1.bf16.msra.mxu0 %v820
        %1015 = vmatprep.subr.bf16.mxu0 %v825
        %1016 = vmatpush1.bf16.msra.mxu0 %v824
        %1017 = vmatprep.subr.bf16.mxu0 %v829
        %1018 = vmatpush1.bf16.msra.mxu0 %v828
        %1019 = vmatprep.subr.bf16.mxu0 %v833
        %1020 = vmatpush1.bf16.msra.mxu0 %v832
        %1021 = vmatprep.subr.bf16.mxu0 %v837
        %1022 = vmatpush1.bf16.msra.mxu0 %v836
        %1023 = vmatprep.subr.bf16.mxu0 %v841
        %1024 = vmatpush1.bf16.msra.mxu0 %v840
        %1025 = vmatprep.subr.bf16.mxu0 %v845
        %1026 = vmatpush1.bf16.msra.mxu0 %v844
        %1027 = vmatprep.subr.bf16.mxu0 %v849
        %1028 = vmatpush1.bf16.msra.mxu0 %v848
        %1029 = vmatprep.subr.bf16.mxu0 %v853
        %1030 = vmatpush1.bf16.msra.mxu0 %v852
        %1031 = vmatprep.subr.bf16.mxu0 %v857
        %1032 = vmatpush1.bf16.msra.mxu0 %v856
        %1033 = vmatprep.subr.bf16.mxu0 %v861
        %1034 = vmatpush1.bf16.msra.mxu0 %v860
        %1035 = vmatprep.subr.bf16.mxu0 %v865
        %1036 = vmatpush1.bf16.msra.mxu0 %v864
        %1037 = vmatprep.subr.bf16.mxu0 %v869
        %1038 = vmatpush1.bf16.msra.mxu0 %v868
        %1039 = vmatprep.mubr.bf16.mxu0 %v599
        %1040 = vmatmul.mubr.bf16.gmra.mrb[0].mxu0 %v598
        %v1041 = vpop.f32.mrb[0].mxu0
        %v1042 = vadd.f32 %v565, %v1041
        %v1043 = vpop.f32.mrb[0].mxu0
        %v1044 = vadd.f32 %v569, %v1043
        %v1045 = vpop.f32.mrb[0].mxu0
        %v1046 = vadd.f32 %v565, %v1045
        %v1047 = vpop.f32.mrb[0].mxu0
        %v1048 = vadd.f32 %v569, %v1047
        %1049 = vmatprep.mubr.bf16.mxu0 %v601
        %1050 = vmatmul.mubr.bf16.gmra.mrb[0].mxu0 %v600
        %v1051 = vpop.f32.mrb[0].mxu0
        %v1052 = vadd.f32 %v565, %v1051
        %v1053 = vpop.f32.mrb[0].mxu0
        %v1054 = vadd.f32 %v569, %v1053
        %v1055 = vpop.f32.mrb[0].mxu0
        %v1056 = vadd.f32 %v565, %v1055
        %v1057 = vpop.f32.mrb[0].mxu0
        %v1058 = vadd.f32 %v569, %v1057
        %1059 = vmatprep.mubr.bf16.mxu0 %v603
        %1060 = vmatmul.mubr.bf16.gmra.mrb[0].mxu0 %v602
        %v1061 = vpop.f32.mrb[0].mxu0
        %v1062 = vadd.f32 %v565, %v1061
        %v1063 = vpop.f32.mrb[0].mxu0
        %v1064 = vadd.f32 %v569, %v1063
        %v1065 = vpop.f32.mrb[0].mxu0
        %v1066 = vadd.f32 %v565, %v1065
        %v1067 = vpop.f32.mrb[0].mxu0
        %v1068 = vadd.f32 %v569, %v1067
        %1069 = vmatprep.mubr.bf16.mxu0 %v605
        %1070 = vmatmul.mubr.bf16.gmra.mrb[0].mxu0 %v604
        %v1071 = vpop.f32.mrb[0].mxu0
        %v1072 = vadd.f32 %v565, %v1071
        %v1073 = vpop.f32.mrb[0].mxu0
        %v1074 = vadd.f32 %v569, %v1073
        %v1075 = vpop.f32.mrb[0].mxu0
        %v1076 = vadd.f32 %v565, %v1075
        %v1077 = vpop.f32.mrb[0].mxu0
        %v1078 = vadd.f32 %v569, %v1077
        %1079 = vdwg.mxu0
        %v1080 = vpack.c.bf16 %v973, %v969
        %v1081 = vpack.c.bf16 %v975, %v971
        %v1082 = vpack.c.bf16 %v1046, %v1042
        %v1083 = vpack.c.bf16 %v1048, %v1044
        %v1084 = vpack.c.bf16 %v983, %v979
        %v1085 = vpack.c.bf16 %v985, %v981
        %v1086 = vpack.c.bf16 %v1056, %v1052
        %v1087 = vpack.c.bf16 %v1058, %v1054
        %v1088 = vpack.c.bf16 %v993, %v989
        %v1089 = vpack.c.bf16 %v995, %v991
        %v1090 = vpack.c.bf16 %v1066, %v1062
        %v1091 = vpack.c.bf16 %v1068, %v1064
        %v1092 = vpack.c.bf16 %v1003, %v999
        %v1093 = vpack.c.bf16 %v1005, %v1001
        %v1094 = vpack.c.bf16 %v1076, %v1072
        %v1095 = vpack.c.bf16 %v1078, %v1074
        %1096 = vst [vmem:[#allocation2] sm:$0xff] %v1080
        %1097 = vst [vmem:[#allocation2 + $0x8] sm:$0xff] %v1081
        %1098 = vst [vmem:[#allocation2 + $0x10] sm:$0xff] %v1082
        %1099 = vst [vmem:[#allocation2 + $0x18] sm:$0xff] %v1083
        %1100 = vst [vmem:[#allocation2 + $0x20] sm:$0xff] %v1084
        %1101 = vst [vmem:[#allocation2 + $0x28] sm:$0xff] %v1085
        %1102 = vst [vmem:[#allocation2 + $0x30] sm:$0xff] %v1086
        %1103 = vst [vmem:[#allocation2 + $0x38] sm:$0xff] %v1087
        %1104 = vst [vmem:[#allocation2 + $0x40] sm:$0xff] %v1088
        %1105 = vst [vmem:[#allocation2 + $0x48] sm:$0xff] %v1089
        %1106 = vst [vmem:[#allocation2 + $0x50] sm:$0xff] %v1090
        %1107 = vst [vmem:[#allocation2 + $0x58] sm:$0xff] %v1091
        %1108 = vst [vmem:[#allocation2 + $0x60] sm:$0xff] %v1092
        %1109 = vst [vmem:[#allocation2 + $0x68] sm:$0xff] %v1093
        %1110 = vst [vmem:[#allocation2 + $0x70] sm:$0xff] %v1094
        %1111 = vst [vmem:[#allocation2 + $0x78] sm:$0xff] %v1095
        %v1112 = vld [vmem:[%s401] sm:$0xff]
        %v1113 = vld [vmem:[%s401 + $0x8] sm:$0xff]
        %v1114 = vld [vmem:[%s401 + $0x10] sm:$0xff]
        %v1115 = vld [vmem:[%s401 + $0x18] sm:$0xff]
        %v1116 = vld [vmem:[%s401 + $0x20] sm:$0xff]
        %v1117 = vld [vmem:[%s401 + $0x28] sm:$0xff]
        %v1118 = vld [vmem:[%s401 + $0x30] sm:$0xff]
        %v1119 = vld [vmem:[%s401 + $0x38] sm:$0xff]
        %s1120 = scalar_lea.vmem [#allocation11], 512
        %v1121 = vld [vmem:[%s1120] sm:$0xff]
        %v1122 = vld [vmem:[%s1120 + $0x8] sm:$0xff]
        %v1123 = vld [vmem:[%s1120 + $0x10] sm:$0xff]
        %v1124 = vld [vmem:[%s1120 + $0x18] sm:$0xff]
        %v1125 = vld [vmem:[%s1120 + $0x20] sm:$0xff]
        %v1126 = vld [vmem:[%s1120 + $0x28] sm:$0xff]
        %v1127 = vld [vmem:[%s1120 + $0x30] sm:$0xff]
        %v1128 = vld [vmem:[%s1120 + $0x38] sm:$0xff]
        %v1129 = vld [vmem:[%s1120 + $0x40] sm:$0xff]
        %v1130 = vld [vmem:[%s1120 + $0x48] sm:$0xff]
        %v1131 = vld [vmem:[%s1120 + $0x50] sm:$0xff]
        %v1132 = vld [vmem:[%s1120 + $0x58] sm:$0xff]
        %v1133 = vld [vmem:[%s1120 + $0x60] sm:$0xff]
        %v1134 = vld [vmem:[%s1120 + $0x68] sm:$0xff]
        %v1135 = vld [vmem:[%s1120 + $0x70] sm:$0xff]
        %v1136 = vld [vmem:[%s1120 + $0x78] sm:$0xff]
        %v1137 = vld [vmem:[%s1120 + $0x80] sm:$0xff]
        %v1138 = vld [vmem:[%s1120 + $0x88] sm:$0xff]
        %v1139 = vld [vmem:[%s1120 + $0x90] sm:$0xff]
        %v1140 = vld [vmem:[%s1120 + $0x98] sm:$0xff]
        %v1141 = vld [vmem:[%s1120 + $0xa0] sm:$0xff]
        %v1142 = vld [vmem:[%s1120 + $0xa8] sm:$0xff]
        %v1143 = vld [vmem:[%s1120 + $0xb0] sm:$0xff]
        %v1144 = vld [vmem:[%s1120 + $0xb8] sm:$0xff]
        %v1145 = vld [vmem:[%s1120 + $0xc0] sm:$0xff]
        %v1146 = vld [vmem:[%s1120 + $0xc8] sm:$0xff]
        %v1147 = vld [vmem:[%s1120 + $0xd0] sm:$0xff]
        %v1148 = vld [vmem:[%s1120 + $0xd8] sm:$0xff]
        %v1149 = vld [vmem:[%s1120 + $0xe0] sm:$0xff]
        %v1150 = vld [vmem:[%s1120 + $0xe8] sm:$0xff]
        %v1151 = vld [vmem:[%s1120 + $0xf0] sm:$0xff]
        %v1152 = vld [vmem:[%s1120 + $0xf8] sm:$0xff]
        %v1153 = vld [vmem:[%s1120 + $0x100] sm:$0xff]
        %v1154 = vld [vmem:[%s1120 + $0x108] sm:$0xff]
        %v1155 = vld [vmem:[%s1120 + $0x110] sm:$0xff]
        %v1156 = vld [vmem:[%s1120 + $0x118] sm:$0xff]
        %v1157 = vld [vmem:[%s1120 + $0x120] sm:$0xff]
        %v1158 = vld [vmem:[%s1120 + $0x128] sm:$0xff]
        %v1159 = vld [vmem:[%s1120 + $0x130] sm:$0xff]
        %v1160 = vld [vmem:[%s1120 + $0x138] sm:$0xff]
        %v1161 = vld [vmem:[%s1120 + $0x140] sm:$0xff]
        %v1162 = vld [vmem:[%s1120 + $0x148] sm:$0xff]
        %v1163 = vld [vmem:[%s1120 + $0x150] sm:$0xff]
        %v1164 = vld [vmem:[%s1120 + $0x158] sm:$0xff]
        %v1165 = vld [vmem:[%s1120 + $0x160] sm:$0xff]
        %v1166 = vld [vmem:[%s1120 + $0x168] sm:$0xff]
        %v1167 = vld [vmem:[%s1120 + $0x170] sm:$0xff]
        %v1168 = vld [vmem:[%s1120 + $0x178] sm:$0xff]
        %v1169 = vld [vmem:[%s1120 + $0x180] sm:$0xff]
        %v1170 = vld [vmem:[%s1120 + $0x188] sm:$0xff]
        %v1171 = vld [vmem:[%s1120 + $0x190] sm:$0xff]
        %v1172 = vld [vmem:[%s1120 + $0x198] sm:$0xff]
        %v1173 = vld [vmem:[%s1120 + $0x1a0] sm:$0xff]
        %v1174 = vld [vmem:[%s1120 + $0x1a8] sm:$0xff]
        %v1175 = vld [vmem:[%s1120 + $0x1b0] sm:$0xff]
        %v1176 = vld [vmem:[%s1120 + $0x1b8] sm:$0xff]
        %v1177 = vld [vmem:[%s1120 + $0x1c0] sm:$0xff]
        %v1178 = vld [vmem:[%s1120 + $0x1c8] sm:$0xff]
        %v1179 = vld [vmem:[%s1120 + $0x1d0] sm:$0xff]
        %v1180 = vld [vmem:[%s1120 + $0x1d8] sm:$0xff]
        %v1181 = vld [vmem:[%s1120 + $0x1e0] sm:$0xff]
        %v1182 = vld [vmem:[%s1120 + $0x1e8] sm:$0xff]
        %v1183 = vld [vmem:[%s1120 + $0x1f0] sm:$0xff]
        %v1184 = vld [vmem:[%s1120 + $0x1f8] sm:$0xff]
        %s1185 = scalar_lea.vmem [#allocation14], 4
        %v1186 = vld [vmem:[%s1185] sm:$0xf]
        %v1188 = vlaneseq
        %v1189 = vshrl.u32 %v1188, 7
        %v1190 = vsub.s32 0, %v1189
        %v1191 = vrot.slane %v1186, %v1190
        %v1192 = vlaneseq
        %v1193 = vshrl.u32 %v1192, 7
        %v1194 = vsub.s32 1, %v1193
        %v1195 = vrot.slane %v1186, %v1194
        %v1196 = vlaneseq
        %v1197 = vshrl.u32 %v1196, 7
        %v1198 = vsub.s32 2, %v1197
        %v1199 = vrot.slane %v1186, %v1198
        %v1200 = vlaneseq
        %v1201 = vshrl.u32 %v1200, 7
        %v1202 = vsub.s32 3, %v1201
        %v1203 = vrot.slane %v1186, %v1202
        %v1216 = vunpack.c.l.b16 %v1112
        %v1217 = vunpack.c.h.b16 %v1112
        %v1218 = vunpack.c.l.b16 %v1113
        %v1219 = vunpack.c.h.b16 %v1113
        %v1220 = vunpack.c.l.b16 %v1114
        %v1221 = vunpack.c.h.b16 %v1114
        %v1222 = vunpack.c.l.b16 %v1115
        %v1223 = vunpack.c.h.b16 %v1115
        %v1224 = vunpack.c.l.b16 %v1116
        %v1225 = vunpack.c.h.b16 %v1116
        %v1226 = vunpack.c.l.b16 %v1117
        %v1227 = vunpack.c.h.b16 %v1117
        %v1228 = vunpack.c.l.b16 %v1118
        %v1229 = vunpack.c.h.b16 %v1118
        %v1230 = vunpack.c.l.b16 %v1119
        %v1231 = vunpack.c.h.b16 %v1119
        %v1232 = vpack.c.b16 %v1218, %v1216
        %v1233 = vpack.c.b16 %v1219, %v1217
        %v1234 = vpack.c.b16 %v1222, %v1220
        %v1235 = vpack.c.b16 %v1223, %v1221
        %v1236 = vpack.c.b16 %v1226, %v1224
        %v1237 = vpack.c.b16 %v1227, %v1225
        %v1238 = vpack.c.b16 %v1230, %v1228
        %v1239 = vpack.c.b16 %v1231, %v1229
        %v1312 = vunpack.c.l.b16 %v1121
        %v1313 = vunpack.c.h.b16 %v1121
        %v1314 = vunpack.c.l.b16 %v1122
        %v1315 = vunpack.c.h.b16 %v1122
        %v1316 = vunpack.c.l.b16 %v1123
        %v1317 = vunpack.c.h.b16 %v1123
        %v1318 = vunpack.c.l.b16 %v1124
        %v1319 = vunpack.c.h.b16 %v1124
        %v1320 = vunpack.c.l.b16 %v1125
        %v1321 = vunpack.c.h.b16 %v1125
        %v1322 = vunpack.c.l.b16 %v1126
        %v1323 = vunpack.c.h.b16 %v1126
        %v1324 = vunpack.c.l.b16 %v1127
        %v1325 = vunpack.c.h.b16 %v1127
        %v1326 = vunpack.c.l.b16 %v1128
        %v1327 = vunpack.c.h.b16 %v1128
        %v1328 = vunpack.c.l.b16 %v1129
        %v1329 = vunpack.c.h.b16 %v1129
        %v1330 = vunpack.c.l.b16 %v1130
        %v1331 = vunpack.c.h.b16 %v1130
        %v1332 = vunpack.c.l.b16 %v1131
        %v1333 = vunpack.c.h.b16 %v1131
        %v1334 = vunpack.c.l.b16 %v1132
        %v1335 = vunpack.c.h.b16 %v1132
        %v1336 = vunpack.c.l.b16 %v1133
        %v1337 = vunpack.c.h.b16 %v1133
        %v1338 = vunpack.c.l.b16 %v1134
        %v1339 = vunpack.c.h.b16 %v1134
        %v1340 = vunpack.c.l.b16 %v1135
        %v1341 = vunpack.c.h.b16 %v1135
        %v1342 = vunpack.c.l.b16 %v1136
        %v1343 = vunpack.c.h.b16 %v1136
        %v1344 = vunpack.c.l.b16 %v1137
        %v1345 = vunpack.c.h.b16 %v1137
        %v1346 = vunpack.c.l.b16 %v1138
        %v1347 = vunpack.c.h.b16 %v1138
        %v1348 = vunpack.c.l.b16 %v1139
        %v1349 = vunpack.c.h.b16 %v1139
        %v1350 = vunpack.c.l.b16 %v1140
        %v1351 = vunpack.c.h.b16 %v1140
        %v1352 = vunpack.c.l.b16 %v1141
        %v1353 = vunpack.c.h.b16 %v1141
        %v1354 = vunpack.c.l.b16 %v1142
        %v1355 = vunpack.c.h.b16 %v1142
        %v1356 = vunpack.c.l.b16 %v1143
        %v1357 = vunpack.c.h.b16 %v1143
        %v1358 = vunpack.c.l.b16 %v1144
        %v1359 = vunpack.c.h.b16 %v1144
        %v1360 = vunpack.c.l.b16 %v1145
        %v1361 = vunpack.c.h.b16 %v1145
        %v1362 = vunpack.c.l.b16 %v1146
        %v1363 = vunpack.c.h.b16 %v1146
        %v1364 = vunpack.c.l.b16 %v1147
        %v1365 = vunpack.c.h.b16 %v1147
        %v1366 = vunpack.c.l.b16 %v1148
        %v1367 = vunpack.c.h.b16 %v1148
        %v1368 = vunpack.c.l.b16 %v1149
        %v1369 = vunpack.c.h.b16 %v1149
        %v1370 = vunpack.c.l.b16 %v1150
        %v1371 = vunpack.c.h.b16 %v1150
        %v1372 = vunpack.c.l.b16 %v1151
        %v1373 = vunpack.c.h.b16 %v1151
        %v1374 = vunpack.c.l.b16 %v1152
        %v1375 = vunpack.c.h.b16 %v1152
        %v1376 = vunpack.c.l.b16 %v1153
        %v1377 = vunpack.c.h.b16 %v1153
        %v1378 = vunpack.c.l.b16 %v1154
        %v1379 = vunpack.c.h.b16 %v1154
        %v1380 = vunpack.c.l.b16 %v1155
        %v1381 = vunpack.c.h.b16 %v1155
        %v1382 = vunpack.c.l.b16 %v1156
        %v1383 = vunpack.c.h.b16 %v1156
        %v1384 = vunpack.c.l.b16 %v1157
        %v1385 = vunpack.c.h.b16 %v1157
        %v1386 = vunpack.c.l.b16 %v1158
        %v1387 = vunpack.c.h.b16 %v1158
        %v1388 = vunpack.c.l.b16 %v1159
        %v1389 = vunpack.c.h.b16 %v1159
        %v1390 = vunpack.c.l.b16 %v1160
        %v1391 = vunpack.c.h.b16 %v1160
        %v1392 = vunpack.c.l.b16 %v1161
        %v1393 = vunpack.c.h.b16 %v1161
        %v1394 = vunpack.c.l.b16 %v1162
        %v1395 = vunpack.c.h.b16 %v1162
        %v1396 = vunpack.c.l.b16 %v1163
        %v1397 = vunpack.c.h.b16 %v1163
        %v1398 = vunpack.c.l.b16 %v1164
        %v1399 = vunpack.c.h.b16 %v1164
        %v1400 = vunpack.c.l.b16 %v1165
        %v1401 = vunpack.c.h.b16 %v1165
        %v1402 = vunpack.c.l.b16 %v1166
        %v1403 = vunpack.c.h.b16 %v1166
        %v1404 = vunpack.c.l.b16 %v1167
        %v1405 = vunpack.c.h.b16 %v1167
        %v1406 = vunpack.c.l.b16 %v1168
        %v1407 = vunpack.c.h.b16 %v1168
        %v1408 = vunpack.c.l.b16 %v1169
        %v1409 = vunpack.c.h.b16 %v1169
        %v1410 = vunpack.c.l.b16 %v1170
        %v1411 = vunpack.c.h.b16 %v1170
        %v1412 = vunpack.c.l.b16 %v1171
        %v1413 = vunpack.c.h.b16 %v1171
        %v1414 = vunpack.c.l.b16 %v1172
        %v1415 = vunpack.c.h.b16 %v1172
        %v1416 = vunpack.c.l.b16 %v1173
        %v1417 = vunpack.c.h.b16 %v1173
        %v1418 = vunpack.c.l.b16 %v1174
        %v1419 = vunpack.c.h.b16 %v1174
        %v1420 = vunpack.c.l.b16 %v1175
        %v1421 = vunpack.c.h.b16 %v1175
        %v1422 = vunpack.c.l.b16 %v1176
        %v1423 = vunpack.c.h.b16 %v1176
        %v1424 = vunpack.c.l.b16 %v1177
        %v1425 = vunpack.c.h.b16 %v1177
        %v1426 = vunpack.c.l.b16 %v1178
        %v1427 = vunpack.c.h.b16 %v1178
        %v1428 = vunpack.c.l.b16 %v1179
        %v1429 = vunpack.c.h.b16 %v1179
        %v1430 = vunpack.c.l.b16 %v1180
        %v1431 = vunpack.c.h.b16 %v1180
        %v1432 = vunpack.c.l.b16 %v1181
        %v1433 = vunpack.c.h.b16 %v1181
        %v1434 = vunpack.c.l.b16 %v1182
        %v1435 = vunpack.c.h.b16 %v1182
        %v1436 = vunpack.c.l.b16 %v1183
        %v1437 = vunpack.c.h.b16 %v1183
        %v1438 = vunpack.c.l.b16 %v1184
        %v1439 = vunpack.c.h.b16 %v1184
        %v1440 = vpack.c.b16 %v1316, %v1312
        %v1441 = vpack.c.b16 %v1317, %v1313
        %v1442 = vpack.c.b16 %v1318, %v1314
        %v1443 = vpack.c.b16 %v1319, %v1315
        %v1444 = vpack.c.b16 %v1324, %v1320
        %v1445 = vpack.c.b16 %v1325, %v1321
        %v1446 = vpack.c.b16 %v1326, %v1322
        %v1447 = vpack.c.b16 %v1327, %v1323
        %v1448 = vpack.c.b16 %v1332, %v1328
        %v1449 = vpack.c.b16 %v1333, %v1329
        %v1450 = vpack.c.b16 %v1334, %v1330
        %v1451 = vpack.c.b16 %v1335, %v1331
        %v1452 = vpack.c.b16 %v1340, %v1336
        %v1453 = vpack.c.b16 %v1341, %v1337
        %v1454 = vpack.c.b16 %v1342, %v1338
        %v1455 = vpack.c.b16 %v1343, %v1339
        %v1456 = vpack.c.b16 %v1348, %v1344
        %v1457 = vpack.c.b16 %v1349, %v1345
        %v1458 = vpack.c.b16 %v1350, %v1346
        %v1459 = vpack.c.b16 %v1351, %v1347
        %v1460 = vpack.c.b16 %v1356, %v1352
        %v1461 = vpack.c.b16 %v1357, %v1353
        %v1462 = vpack.c.b16 %v1358, %v1354
        %v1463 = vpack.c.b16 %v1359, %v1355
        %v1464 = vpack.c.b16 %v1364, %v1360
        %v1465 = vpack.c.b16 %v1365, %v1361
        %v1466 = vpack.c.b16 %v1366, %v1362
        %v1467 = vpack.c.b16 %v1367, %v1363
        %v1468 = vpack.c.b16 %v1372, %v1368
        %v1469 = vpack.c.b16 %v1373, %v1369
        %v1470 = vpack.c.b16 %v1374, %v1370
        %v1471 = vpack.c.b16 %v1375, %v1371
        %v1472 = vpack.c.b16 %v1380, %v1376
        %v1473 = vpack.c.b16 %v1381, %v1377
        %v1474 = vpack.c.b16 %v1382, %v1378
        %v1475 = vpack.c.b16 %v1383, %v1379
        %v1476 = vpack.c.b16 %v1388, %v1384
        %v1477 = vpack.c.b16 %v1389, %v1385
        %v1478 = vpack.c.b16 %v1390, %v1386
        %v1479 = vpack.c.b16 %v1391, %v1387
        %v1480 = vpack.c.b16 %v1396, %v1392
        %v1481 = vpack.c.b16 %v1397, %v1393
        %v1482 = vpack.c.b16 %v1398, %v1394
        %v1483 = vpack.c.b16 %v1399, %v1395
        %v1484 = vpack.c.b16 %v1404, %v1400
        %v1485 = vpack.c.b16 %v1405, %v1401
        %v1486 = vpack.c.b16 %v1406, %v1402
        %v1487 = vpack.c.b16 %v1407, %v1403
        %v1488 = vpack.c.b16 %v1412, %v1408
        %v1489 = vpack.c.b16 %v1413, %v1409
        %v1490 = vpack.c.b16 %v1414, %v1410
        %v1491 = vpack.c.b16 %v1415, %v1411
        %v1492 = vpack.c.b16 %v1420, %v1416
        %v1493 = vpack.c.b16 %v1421, %v1417
        %v1494 = vpack.c.b16 %v1422, %v1418
        %v1495 = vpack.c.b16 %v1423, %v1419
        %v1496 = vpack.c.b16 %v1428, %v1424
        %v1497 = vpack.c.b16 %v1429, %v1425
        %v1498 = vpack.c.b16 %v1430, %v1426
        %v1499 = vpack.c.b16 %v1431, %v1427
        %v1500 = vpack.c.b16 %v1436, %v1432
        %v1501 = vpack.c.b16 %v1437, %v1433
        %v1502 = vpack.c.b16 %v1438, %v1434
        %v1503 = vpack.c.b16 %v1439, %v1435
        %1568 = vmatprep.subr.bf16.mxu0 %v1441
        %1569 = vmatpush1.bf16.msra.mxu0 %v1440
        %1570 = vmatprep.subr.bf16.mxu0 %v1445
        %1571 = vmatpush1.bf16.msra.mxu0 %v1444
        %1572 = vmatprep.subr.bf16.mxu0 %v1449
        %1573 = vmatpush1.bf16.msra.mxu0 %v1448
        %1574 = vmatprep.subr.bf16.mxu0 %v1453
        %1575 = vmatpush1.bf16.msra.mxu0 %v1452
        %1576 = vmatprep.subr.bf16.mxu0 %v1457
        %1577 = vmatpush1.bf16.msra.mxu0 %v1456
        %1578 = vmatprep.subr.bf16.mxu0 %v1461
        %1579 = vmatpush1.bf16.msra.mxu0 %v1460
        %1580 = vmatprep.subr.bf16.mxu0 %v1465
        %1581 = vmatpush1.bf16.msra.mxu0 %v1464
        %1582 = vmatprep.subr.bf16.mxu0 %v1469
        %1583 = vmatpush1.bf16.msra.mxu0 %v1468
        %1584 = vmatprep.subr.bf16.mxu0 %v1473
        %1585 = vmatpush1.bf16.msra.mxu0 %v1472
        %1586 = vmatprep.subr.bf16.mxu0 %v1477
        %1587 = vmatpush1.bf16.msra.mxu0 %v1476
        %1588 = vmatprep.subr.bf16.mxu0 %v1481
        %1589 = vmatpush1.bf16.msra.mxu0 %v1480
        %1590 = vmatprep.subr.bf16.mxu0 %v1485
        %1591 = vmatpush1.bf16.msra.mxu0 %v1484
        %1592 = vmatprep.subr.bf16.mxu0 %v1489
        %1593 = vmatpush1.bf16.msra.mxu0 %v1488
        %1594 = vmatprep.subr.bf16.mxu0 %v1493
        %1595 = vmatpush1.bf16.msra.mxu0 %v1492
        %1596 = vmatprep.subr.bf16.mxu0 %v1497
        %1597 = vmatpush1.bf16.msra.mxu0 %v1496
        %1598 = vmatprep.subr.bf16.mxu0 %v1501
        %1599 = vmatpush1.bf16.msra.mxu0 %v1500
        %1600 = vmatprep.mubr.bf16.mxu0 %v1233
        %1601 = vmatmul.mubr.bf16.gmra.mrb[0].mxu0 %v1232
        %v1602 = vpop.f32.mrb[0].mxu0
        %v1603 = vadd.f32 %v1191, %v1602
        %v1604 = vpop.f32.mrb[0].mxu0
        %v1605 = vadd.f32 %v1195, %v1604
        %v1606 = vpop.f32.mrb[0].mxu0
        %v1607 = vadd.f32 %v1191, %v1606
        %v1608 = vpop.f32.mrb[0].mxu0
        %v1609 = vadd.f32 %v1195, %v1608
        %1610 = vmatprep.mubr.bf16.mxu0 %v1235
        %1611 = vmatmul.mubr.bf16.gmra.mrb[0].mxu0 %v1234
        %v1612 = vpop.f32.mrb[0].mxu0
        %v1613 = vadd.f32 %v1191, %v1612
        %v1614 = vpop.f32.mrb[0].mxu0
        %v1615 = vadd.f32 %v1195, %v1614
        %v1616 = vpop.f32.mrb[0].mxu0
        %v1617 = vadd.f32 %v1191, %v1616
        %v1618 = vpop.f32.mrb[0].mxu0
        %v1619 = vadd.f32 %v1195, %v1618
        %1620 = vmatprep.mubr.bf16.mxu0 %v1237
        %1621 = vmatmul.mubr.bf16.gmra.mrb[0].mxu0 %v1236
        %v1622 = vpop.f32.mrb[0].mxu0
        %v1623 = vadd.f32 %v1191, %v1622
        %v1624 = vpop.f32.mrb[0].mxu0
        %v1625 = vadd.f32 %v1195, %v1624
        %v1626 = vpop.f32.mrb[0].mxu0
        %v1627 = vadd.f32 %v1191, %v1626
        %v1628 = vpop.f32.mrb[0].mxu0
        %v1629 = vadd.f32 %v1195, %v1628
        %1630 = vmatprep.mubr.bf16.mxu0 %v1239
        %1631 = vmatmul.mubr.bf16.gmra.mrb[0].mxu0 %v1238
        %v1632 = vpop.f32.mrb[0].mxu0
        %v1633 = vadd.f32 %v1191, %v1632
        %v1634 = vpop.f32.mrb[0].mxu0
        %v1635 = vadd.f32 %v1195, %v1634
        %v1636 = vpop.f32.mrb[0].mxu0
        %v1637 = vadd.f32 %v1191, %v1636
        %v1638 = vpop.f32.mrb[0].mxu0
        %v1639 = vadd.f32 %v1195, %v1638
        %1640 = vdwg.mxu0
        %1641 = vmatprep.subr.bf16.mxu0 %v1443
        %1642 = vmatpush1.bf16.msra.mxu0 %v1442
        %1643 = vmatprep.subr.bf16.mxu0 %v1447
        %1644 = vmatpush1.bf16.msra.mxu0 %v1446
        %1645 = vmatprep.subr.bf16.mxu0 %v1451
        %1646 = vmatpush1.bf16.msra.mxu0 %v1450
        %1647 = vmatprep.subr.bf16.mxu0 %v1455
        %1648 = vmatpush1.bf16.msra.mxu0 %v1454
        %1649 = vmatprep.subr.bf16.mxu0 %v1459
        %1650 = vmatpush1.bf16.msra.mxu0 %v1458
        %1651 = vmatprep.subr.bf16.mxu0 %v1463
        %1652 = vmatpush1.bf16.msra.mxu0 %v1462
        %1653 = vmatprep.subr.bf16.mxu0 %v1467
        %1654 = vmatpush1.bf16.msra.mxu0 %v1466
        %1655 = vmatprep.subr.bf16.mxu0 %v1471
        %1656 = vmatpush1.bf16.msra.mxu0 %v1470
        %1657 = vmatprep.subr.bf16.mxu0 %v1475
        %1658 = vmatpush1.bf16.msra.mxu0 %v1474
        %1659 = vmatprep.subr.bf16.mxu0 %v1479
        %1660 = vmatpush1.bf16.msra.mxu0 %v1478
        %1661 = vmatprep.subr.bf16.mxu0 %v1483
        %1662 = vmatpush1.bf16.msra.mxu0 %v1482
        %1663 = vmatprep.subr.bf16.mxu0 %v1487
        %1664 = vmatpush1.bf16.msra.mxu0 %v1486
        %1665 = vmatprep.subr.bf16.mxu0 %v1491
        %1666 = vmatpush1.bf16.msra.mxu0 %v1490
        %1667 = vmatprep.subr.bf16.mxu0 %v1495
        %1668 = vmatpush1.bf16.msra.mxu0 %v1494
        %1669 = vmatprep.subr.bf16.mxu0 %v1499
        %1670 = vmatpush1.bf16.msra.mxu0 %v1498
        %1671 = vmatprep.subr.bf16.mxu0 %v1503
        %1672 = vmatpush1.bf16.msra.mxu0 %v1502
        %1673 = vmatprep.mubr.bf16.mxu0 %v1233
        %1674 = vmatmul.mubr.bf16.gmra.mrb[0].mxu0 %v1232
        %v1675 = vpop.f32.mrb[0].mxu0
        %v1676 = vadd.f32 %v1199, %v1675
        %v1677 = vpop.f32.mrb[0].mxu0
        %v1678 = vadd.f32 %v1203, %v1677
        %v1679 = vpop.f32.mrb[0].mxu0
        %v1680 = vadd.f32 %v1199, %v1679
        %v1681 = vpop.f32.mrb[0].mxu0
        %v1682 = vadd.f32 %v1203, %v1681
        %1683 = vmatprep.mubr.bf16.mxu0 %v1235
        %1684 = vmatmul.mubr.bf16.gmra.mrb[0].mxu0 %v1234
        %v1685 = vpop.f32.mrb[0].mxu0
        %v1686 = vadd.f32 %v1199, %v1685
        %v1687 = vpop.f32.mrb[0].mxu0
        %v1688 = vadd.f32 %v1203, %v1687
        %v1689 = vpop.f32.mrb[0].mxu0
        %v1690 = vadd.f32 %v1199, %v1689
        %v1691 = vpop.f32.mrb[0].mxu0
        %v1692 = vadd.f32 %v1203, %v1691
        %1693 = vmatprep.mubr.bf16.mxu0 %v1237
        %1694 = vmatmul.mubr.bf16.gmra.mrb[0].mxu0 %v1236
        %v1695 = vpop.f32.mrb[0].mxu0
        %v1696 = vadd.f32 %v1199, %v1695
        %v1697 = vpop.f32.mrb[0].mxu0
        %v1698 = vadd.f32 %v1203, %v1697
        %v1699 = vpop.f32.mrb[0].mxu0
        %v1700 = vadd.f32 %v1199, %v1699
        %v1701 = vpop.f32.mrb[0].mxu0
        %v1702 = vadd.f32 %v1203, %v1701
        %1703 = vmatprep.mubr.bf16.mxu0 %v1239
        %1704 = vmatmul.mubr.bf16.gmra.mrb[0].mxu0 %v1238
        %v1705 = vpop.f32.mrb[0].mxu0
        %v1706 = vadd.f32 %v1199, %v1705
        %v1707 = vpop.f32.mrb[0].mxu0
        %v1708 = vadd.f32 %v1203, %v1707
        %v1709 = vpop.f32.mrb[0].mxu0
        %v1710 = vadd.f32 %v1199, %v1709
        %v1711 = vpop.f32.mrb[0].mxu0
        %v1712 = vadd.f32 %v1203, %v1711
        %1713 = vdwg.mxu0
        %v1714 = vpack.c.bf16 %v1607, %v1603
        %v1715 = vpack.c.bf16 %v1609, %v1605
        %v1716 = vpack.c.bf16 %v1680, %v1676
        %v1717 = vpack.c.bf16 %v1682, %v1678
        %v1718 = vpack.c.bf16 %v1617, %v1613
        %v1719 = vpack.c.bf16 %v1619, %v1615
        %v1720 = vpack.c.bf16 %v1690, %v1686
        %v1721 = vpack.c.bf16 %v1692, %v1688
        %v1722 = vpack.c.bf16 %v1627, %v1623
        %v1723 = vpack.c.bf16 %v1629, %v1625
        %v1724 = vpack.c.bf16 %v1700, %v1696
        %v1725 = vpack.c.bf16 %v1702, %v1698
        %v1726 = vpack.c.bf16 %v1637, %v1633
        %v1727 = vpack.c.bf16 %v1639, %v1635
        %v1728 = vpack.c.bf16 %v1710, %v1706
        %v1729 = vpack.c.bf16 %v1712, %v1708
        %1730 = vst [vmem:[#allocation3] sm:$0xff] %v1714
        %1731 = vst [vmem:[#allocation3 + $0x8] sm:$0xff] %v1715
        %1732 = vst [vmem:[#allocation3 + $0x10] sm:$0xff] %v1716
        %1733 = vst [vmem:[#allocation3 + $0x18] sm:$0xff] %v1717
        %1734 = vst [vmem:[#allocation3 + $0x20] sm:$0xff] %v1718
        %1735 = vst [vmem:[#allocation3 + $0x28] sm:$0xff] %v1719
        %1736 = vst [vmem:[#allocation3 + $0x30] sm:$0xff] %v1720
        %1737 = vst [vmem:[#allocation3 + $0x38] sm:$0xff] %v1721
        %1738 = vst [vmem:[#allocation3 + $0x40] sm:$0xff] %v1722
        %1739 = vst [vmem:[#allocation3 + $0x48] sm:$0xff] %v1723
        %1740 = vst [vmem:[#allocation3 + $0x50] sm:$0xff] %v1724
        %1741 = vst [vmem:[#allocation3 + $0x58] sm:$0xff] %v1725
        %1742 = vst [vmem:[#allocation3 + $0x60] sm:$0xff] %v1726
        %1743 = vst [vmem:[#allocation3 + $0x68] sm:$0xff] %v1727
        %1744 = vst [vmem:[#allocation3 + $0x70] sm:$0xff] %v1728
        %1745 = vst [vmem:[#allocation3 + $0x78] sm:$0xff] %v1729
        %v1746 = vld [vmem:[#allocation12] sm:$0xff]
        %v1747 = vld [vmem:[#allocation12 + $0x8] sm:$0xff]
        %v1748 = vld [vmem:[#allocation12 + $0x10] sm:$0xff]
        %v1749 = vld [vmem:[#allocation12 + $0x18] sm:$0xff]
        %v1750 = vld [vmem:[#allocation12 + $0x20] sm:$0xff]
        %v1751 = vld [vmem:[#allocation12 + $0x28] sm:$0xff]
        %v1752 = vld [vmem:[#allocation12 + $0x30] sm:$0xff]
        %v1753 = vld [vmem:[#allocation12 + $0x38] sm:$0xff]
        %v1754 = vld [vmem:[#allocation12 + $0x40] sm:$0xff]
        %v1755 = vld [vmem:[#allocation12 + $0x48] sm:$0xff]
        %v1756 = vld [vmem:[#allocation12 + $0x50] sm:$0xff]
        %v1757 = vld [vmem:[#allocation12 + $0x58] sm:$0xff]
        %v1758 = vld [vmem:[#allocation12 + $0x60] sm:$0xff]
        %v1759 = vld [vmem:[#allocation12 + $0x68] sm:$0xff]
        %v1760 = vld [vmem:[#allocation12 + $0x70] sm:$0xff]
        %v1761 = vld [vmem:[#allocation12 + $0x78] sm:$0xff]
        %v1762 = vld [vmem:[#allocation12 + $0x80] sm:$0xff]
        %v1763 = vld [vmem:[#allocation12 + $0x88] sm:$0xff]
        %v1764 = vld [vmem:[#allocation12 + $0x90] sm:$0xff]
        %v1765 = vld [vmem:[#allocation12 + $0x98] sm:$0xff]
        %v1766 = vld [vmem:[#allocation12 + $0xa0] sm:$0xff]
        %v1767 = vld [vmem:[#allocation12 + $0xa8] sm:$0xff]
        %v1768 = vld [vmem:[#allocation12 + $0xb0] sm:$0xff]
        %v1769 = vld [vmem:[#allocation12 + $0xb8] sm:$0xff]
        %v1770 = vld [vmem:[#allocation12 + $0xc0] sm:$0xff]
        %v1771 = vld [vmem:[#allocation12 + $0xc8] sm:$0xff]
        %v1772 = vld [vmem:[#allocation12 + $0xd0] sm:$0xff]
        %v1773 = vld [vmem:[#allocation12 + $0xd8] sm:$0xff]
        %v1774 = vld [vmem:[#allocation12 + $0xe0] sm:$0xff]
        %v1775 = vld [vmem:[#allocation12 + $0xe8] sm:$0xff]
        %v1776 = vld [vmem:[#allocation12 + $0xf0] sm:$0xff]
        %v1777 = vld [vmem:[#allocation12 + $0xf8] sm:$0xff]
        %v1778 = vld [vmem:[#allocation12 + $0x100] sm:$0xff]
        %v1779 = vld [vmem:[#allocation12 + $0x108] sm:$0xff]
        %v1780 = vld [vmem:[#allocation12 + $0x110] sm:$0xff]
        %v1781 = vld [vmem:[#allocation12 + $0x118] sm:$0xff]
        %v1782 = vld [vmem:[#allocation12 + $0x120] sm:$0xff]
        %v1783 = vld [vmem:[#allocation12 + $0x128] sm:$0xff]
        %v1784 = vld [vmem:[#allocation12 + $0x130] sm:$0xff]
        %v1785 = vld [vmem:[#allocation12 + $0x138] sm:$0xff]
        %v1786 = vld [vmem:[#allocation12 + $0x140] sm:$0xff]
        %v1787 = vld [vmem:[#allocation12 + $0x148] sm:$0xff]
        %v1788 = vld [vmem:[#allocation12 + $0x150] sm:$0xff]
        %v1789 = vld [vmem:[#allocation12 + $0x158] sm:$0xff]
        %v1790 = vld [vmem:[#allocation12 + $0x160] sm:$0xff]
        %v1791 = vld [vmem:[#allocation12 + $0x168] sm:$0xff]
        %v1792 = vld [vmem:[#allocation12 + $0x170] sm:$0xff]
        %v1793 = vld [vmem:[#allocation12 + $0x178] sm:$0xff]
        %v1794 = vld [vmem:[#allocation12 + $0x180] sm:$0xff]
        %v1795 = vld [vmem:[#allocation12 + $0x188] sm:$0xff]
        %v1796 = vld [vmem:[#allocation12 + $0x190] sm:$0xff]
        %v1797 = vld [vmem:[#allocation12 + $0x198] sm:$0xff]
        %v1798 = vld [vmem:[#allocation12 + $0x1a0] sm:$0xff]
        %v1799 = vld [vmem:[#allocation12 + $0x1a8] sm:$0xff]
        %v1800 = vld [vmem:[#allocation12 + $0x1b0] sm:$0xff]
        %v1801 = vld [vmem:[#allocation12 + $0x1b8] sm:$0xff]
        %v1802 = vld [vmem:[#allocation12 + $0x1c0] sm:$0xff]
        %v1803 = vld [vmem:[#allocation12 + $0x1c8] sm:$0xff]
        %v1804 = vld [vmem:[#allocation12 + $0x1d0] sm:$0xff]
        %v1805 = vld [vmem:[#allocation12 + $0x1d8] sm:$0xff]
        %v1806 = vld [vmem:[#allocation12 + $0x1e0] sm:$0xff]
        %v1807 = vld [vmem:[#allocation12 + $0x1e8] sm:$0xff]
        %v1808 = vld [vmem:[#allocation12 + $0x1f0] sm:$0xff]
        %v1809 = vld [vmem:[#allocation12 + $0x1f8] sm:$0xff]
        %v1810 = vld [vmem:[#allocation12 + $0x200] sm:$0xff]
        %v1811 = vld [vmem:[#allocation12 + $0x208] sm:$0xff]
        %v1812 = vld [vmem:[#allocation12 + $0x210] sm:$0xff]
        %v1813 = vld [vmem:[#allocation12 + $0x218] sm:$0xff]
        %v1814 = vld [vmem:[#allocation12 + $0x220] sm:$0xff]
        %v1815 = vld [vmem:[#allocation12 + $0x228] sm:$0xff]
        %v1816 = vld [vmem:[#allocation12 + $0x230] sm:$0xff]
        %v1817 = vld [vmem:[#allocation12 + $0x238] sm:$0xff]
        %v1818 = vld [vmem:[#allocation12 + $0x240] sm:$0xff]
        %v1819 = vld [vmem:[#allocation12 + $0x248] sm:$0xff]
        %v1820 = vld [vmem:[#allocation12 + $0x250] sm:$0xff]
        %v1821 = vld [vmem:[#allocation12 + $0x258] sm:$0xff]
        %v1822 = vld [vmem:[#allocation12 + $0x260] sm:$0xff]
        %v1823 = vld [vmem:[#allocation12 + $0x268] sm:$0xff]
        %v1824 = vld [vmem:[#allocation12 + $0x270] sm:$0xff]
        %v1825 = vld [vmem:[#allocation12 + $0x278] sm:$0xff]
        %v1826 = vld [vmem:[#allocation12 + $0x280] sm:$0xff]
        %v1827 = vld [vmem:[#allocation12 + $0x288] sm:$0xff]
        %v1828 = vld [vmem:[#allocation12 + $0x290] sm:$0xff]
        %v1829 = vld [vmem:[#allocation12 + $0x298] sm:$0xff]
        %v1830 = vld [vmem:[#allocation12 + $0x2a0] sm:$0xff]
        %v1831 = vld [vmem:[#allocation12 + $0x2a8] sm:$0xff]
        %v1832 = vld [vmem:[#allocation12 + $0x2b0] sm:$0xff]
        %v1833 = vld [vmem:[#allocation12 + $0x2b8] sm:$0xff]
        %v1834 = vld [vmem:[#allocation12 + $0x2c0] sm:$0xff]
        %v1835 = vld [vmem:[#allocation12 + $0x2c8] sm:$0xff]
        %v1836 = vld [vmem:[#allocation12 + $0x2d0] sm:$0xff]
        %v1837 = vld [vmem:[#allocation12 + $0x2d8] sm:$0xff]
        %v1838 = vld [vmem:[#allocation12 + $0x2e0] sm:$0xff]
        %v1839 = vld [vmem:[#allocation12 + $0x2e8] sm:$0xff]
        %v1840 = vld [vmem:[#allocation12 + $0x2f0] sm:$0xff]
        %v1841 = vld [vmem:[#allocation12 + $0x2f8] sm:$0xff]
        %v1842 = vld [vmem:[#allocation12 + $0x300] sm:$0xff]
        %v1843 = vld [vmem:[#allocation12 + $0x308] sm:$0xff]
        %v1844 = vld [vmem:[#allocation12 + $0x310] sm:$0xff]
        %v1845 = vld [vmem:[#allocation12 + $0x318] sm:$0xff]
        %v1846 = vld [vmem:[#allocation12 + $0x320] sm:$0xff]
        %v1847 = vld [vmem:[#allocation12 + $0x328] sm:$0xff]
        %v1848 = vld [vmem:[#allocation12 + $0x330] sm:$0xff]
        %v1849 = vld [vmem:[#allocation12 + $0x338] sm:$0xff]
        %v1850 = vld [vmem:[#allocation12 + $0x340] sm:$0xff]
        %v1851 = vld [vmem:[#allocation12 + $0x348] sm:$0xff]
        %v1852 = vld [vmem:[#allocation12 + $0x350] sm:$0xff]
        %v1853 = vld [vmem:[#allocation12 + $0x358] sm:$0xff]
        %v1854 = vld [vmem:[#allocation12 + $0x360] sm:$0xff]
        %v1855 = vld [vmem:[#allocation12 + $0x368] sm:$0xff]
        %v1856 = vld [vmem:[#allocation12 + $0x370] sm:$0xff]
        %v1857 = vld [vmem:[#allocation12 + $0x378] sm:$0xff]
        %v1858 = vld [vmem:[#allocation12 + $0x380] sm:$0xff]
        %v1859 = vld [vmem:[#allocation12 + $0x388] sm:$0xff]
        %v1860 = vld [vmem:[#allocation12 + $0x390] sm:$0xff]
        %v1861 = vld [vmem:[#allocation12 + $0x398] sm:$0xff]
        %v1862 = vld [vmem:[#allocation12 + $0x3a0] sm:$0xff]
        %v1863 = vld [vmem:[#allocation12 + $0x3a8] sm:$0xff]
        %v1864 = vld [vmem:[#allocation12 + $0x3b0] sm:$0xff]
        %v1865 = vld [vmem:[#allocation12 + $0x3b8] sm:$0xff]
        %v1866 = vld [vmem:[#allocation12 + $0x3c0] sm:$0xff]
        %v1867 = vld [vmem:[#allocation12 + $0x3c8] sm:$0xff]
        %v1868 = vld [vmem:[#allocation12 + $0x3d0] sm:$0xff]
        %v1869 = vld [vmem:[#allocation12 + $0x3d8] sm:$0xff]
        %v1870 = vld [vmem:[#allocation12 + $0x3e0] sm:$0xff]
        %v1871 = vld [vmem:[#allocation12 + $0x3e8] sm:$0xff]
        %v1872 = vld [vmem:[#allocation12 + $0x3f0] sm:$0xff]
        %v1873 = vld [vmem:[#allocation12 + $0x3f8] sm:$0xff]
        %v1874 = vld [vmem:[#allocation15] sm:$0xff]
        %v1875 = vld [vmem:[#allocation15 + $0x8] sm:$0xff]
        %s1876 = smul.u32 %s36, 4
        %s1877 = ssub.s32 1, %s36
        %s1878 = smul.u32 %s1877, 4
        %v1879 = vld [vmem:[#allocation4] sm:$0xff]
        %v1880 = vld [vmem:[#allocation4 + $0x8] sm:$0xff]
        %v1881 = vld [vmem:[#allocation4 + $0x10] sm:$0xff]
        %v1882 = vld [vmem:[#allocation4 + $0x18] sm:$0xff]
        %v1883 = vld [vmem:[#allocation5] sm:$0xff]
        %v1884 = vld [vmem:[#allocation5 + $0x8] sm:$0xff]
        %v1885 = vld [vmem:[#allocation5 + $0x10] sm:$0xff]
        %v1886 = vld [vmem:[#allocation5 + $0x18] sm:$0xff]
        %v1887 = vpack.c.bf16 %v1881, %v1879
        %v1888 = vpack.c.bf16 %v1882, %v1880
        %v2017 = vunpack.c.l.b16 %v1746
        %v2018 = vunpack.c.h.b16 %v1746
        %v2019 = vunpack.c.l.b16 %v1747
        %v2020 = vunpack.c.h.b16 %v1747
        %v2021 = vunpack.c.l.b16 %v1748
        %v2022 = vunpack.c.h.b16 %v1748
        %v2023 = vunpack.c.l.b16 %v1749
        %v2024 = vunpack.c.h.b16 %v1749
        %v2025 = vunpack.c.l.b16 %v1750
        %v2026 = vunpack.c.h.b16 %v1750
        %v2027 = vunpack.c.l.b16 %v1751
        %v2028 = vunpack.c.h.b16 %v1751
        %v2029 = vunpack.c.l.b16 %v1752
        %v2030 = vunpack.c.h.b16 %v1752
        %v2031 = vunpack.c.l.b16 %v1753
        %v2032 = vunpack.c.h.b16 %v1753
        %v2033 = vunpack.c.l.b16 %v1754
        %v2034 = vunpack.c.h.b16 %v1754
        %v2035 = vunpack.c.l.b16 %v1755
        %v2036 = vunpack.c.h.b16 %v1755
        %v2037 = vunpack.c.l.b16 %v1756
        %v2038 = vunpack.c.h.b16 %v1756
        %v2039 = vunpack.c.l.b16 %v1757
        %v2040 = vunpack.c.h.b16 %v1757
        %v2041 = vunpack.c.l.b16 %v1758
        %v2042 = vunpack.c.h.b16 %v1758
        %v2043 = vunpack.c.l.b16 %v1759
        %v2044 = vunpack.c.h.b16 %v1759
        %v2045 = vunpack.c.l.b16 %v1760
        %v2046 = vunpack.c.h.b16 %v1760
        %v2047 = vunpack.c.l.b16 %v1761
        %v2048 = vunpack.c.h.b16 %v1761
        %v2049 = vunpack.c.l.b16 %v1762
        %v2050 = vunpack.c.h.b16 %v1762
        %v2051 = vunpack.c.l.b16 %v1763
        %v2052 = vunpack.c.h.b16 %v1763
        %v2053 = vunpack.c.l.b16 %v1764
        %v2054 = vunpack.c.h.b16 %v1764
        %v2055 = vunpack.c.l.b16 %v1765
        %v2056 = vunpack.c.h.b16 %v1765
        %v2057 = vunpack.c.l.b16 %v1766
        %v2058 = vunpack.c.h.b16 %v1766
        %v2059 = vunpack.c.l.b16 %v1767
        %v2060 = vunpack.c.h.b16 %v1767
        %v2061 = vunpack.c.l.b16 %v1768
        %v2062 = vunpack.c.h.b16 %v1768
        %v2063 = vunpack.c.l.b16 %v1769
        %v2064 = vunpack.c.h.b16 %v1769
        %v2065 = vunpack.c.l.b16 %v1770
        %v2066 = vunpack.c.h.b16 %v1770
        %v2067 = vunpack.c.l.b16 %v1771
        %v2068 = vunpack.c.h.b16 %v1771
        %v2069 = vunpack.c.l.b16 %v1772
        %v2070 = vunpack.c.h.b16 %v1772
        %v2071 = vunpack.c.l.b16 %v1773
        %v2072 = vunpack.c.h.b16 %v1773
        %v2073 = vunpack.c.l.b16 %v1774
        %v2074 = vunpack.c.h.b16 %v1774
        %v2075 = vunpack.c.l.b16 %v1775
        %v2076 = vunpack.c.h.b16 %v1775
        %v2077 = vunpack.c.l.b16 %v1776
        %v2078 = vunpack.c.h.b16 %v1776
        %v2079 = vunpack.c.l.b16 %v1777
        %v2080 = vunpack.c.h.b16 %v1777
        %v2081 = vunpack.c.l.b16 %v1778
        %v2082 = vunpack.c.h.b16 %v1778
        %v2083 = vunpack.c.l.b16 %v1779
        %v2084 = vunpack.c.h.b16 %v1779
        %v2085 = vunpack.c.l.b16 %v1780
        %v2086 = vunpack.c.h.b16 %v1780
        %v2087 = vunpack.c.l.b16 %v1781
        %v2088 = vunpack.c.h.b16 %v1781
        %v2089 = vunpack.c.l.b16 %v1782
        %v2090 = vunpack.c.h.b16 %v1782
        %v2091 = vunpack.c.l.b16 %v1783
        %v2092 = vunpack.c.h.b16 %v1783
        %v2093 = vunpack.c.l.b16 %v1784
        %v2094 = vunpack.c.h.b16 %v1784
        %v2095 = vunpack.c.l.b16 %v1785
        %v2096 = vunpack.c.h.b16 %v1785
        %v2097 = vunpack.c.l.b16 %v1786
        %v2098 = vunpack.c.h.b16 %v1786
        %v2099 = vunpack.c.l.b16 %v1787
        %v2100 = vunpack.c.h.b16 %v1787
        %v2101 = vunpack.c.l.b16 %v1788
        %v2102 = vunpack.c.h.b16 %v1788
        %v2103 = vunpack.c.l.b16 %v1789
        %v2104 = vunpack.c.h.b16 %v1789
        %v2105 = vunpack.c.l.b16 %v1790
        %v2106 = vunpack.c.h.b16 %v1790
        %v2107 = vunpack.c.l.b16 %v1791
        %v2108 = vunpack.c.h.b16 %v1791
        %v2109 = vunpack.c.l.b16 %v1792
        %v2110 = vunpack.c.h.b16 %v1792
        %v2111 = vunpack.c.l.b16 %v1793
        %v2112 = vunpack.c.h.b16 %v1793
        %v2113 = vunpack.c.l.b16 %v1794
        %v2114 = vunpack.c.h.b16 %v1794
        %v2115 = vunpack.c.l.b16 %v1795
        %v2116 = vunpack.c.h.b16 %v1795
        %v2117 = vunpack.c.l.b16 %v1796
        %v2118 = vunpack.c.h.b16 %v1796
        %v2119 = vunpack.c.l.b16 %v1797
        %v2120 = vunpack.c.h.b16 %v1797
        %v2121 = vunpack.c.l.b16 %v1798
        %v2122 = vunpack.c.h.b16 %v1798
        %v2123 = vunpack.c.l.b16 %v1799
        %v2124 = vunpack.c.h.b16 %v1799
        %v2125 = vunpack.c.l.b16 %v1800
        %v2126 = vunpack.c.h.b16 %v1800
        %v2127 = vunpack.c.l.b16 %v1801
        %v2128 = vunpack.c.h.b16 %v1801
        %v2129 = vunpack.c.l.b16 %v1802
        %v2130 = vunpack.c.h.b16 %v1802
        %v2131 = vunpack.c.l.b16 %v1803
        %v2132 = vunpack.c.h.b16 %v1803
        %v2133 = vunpack.c.l.b16 %v1804
        %v2134 = vunpack.c.h.b16 %v1804
        %v2135 = vunpack.c.l.b16 %v1805
        %v2136 = vunpack.c.h.b16 %v1805
        %v2137 = vunpack.c.l.b16 %v1806
        %v2138 = vunpack.c.h.b16 %v1806
        %v2139 = vunpack.c.l.b16 %v1807
        %v2140 = vunpack.c.h.b16 %v1807
        %v2141 = vunpack.c.l.b16 %v1808
        %v2142 = vunpack.c.h.b16 %v1808
        %v2143 = vunpack.c.l.b16 %v1809
        %v2144 = vunpack.c.h.b16 %v1809
        %v2145 = vunpack.c.l.b16 %v1810
        %v2146 = vunpack.c.h.b16 %v1810
        %v2147 = vunpack.c.l.b16 %v1811
        %v2148 = vunpack.c.h.b16 %v1811
        %v2149 = vunpack.c.l.b16 %v1812
        %v2150 = vunpack.c.h.b16 %v1812
        %v2151 = vunpack.c.l.b16 %v1813
        %v2152 = vunpack.c.h.b16 %v1813
        %v2153 = vunpack.c.l.b16 %v1814
        %v2154 = vunpack.c.h.b16 %v1814
        %v2155 = vunpack.c.l.b16 %v1815
        %v2156 = vunpack.c.h.b16 %v1815
        %v2157 = vunpack.c.l.b16 %v1816
        %v2158 = vunpack.c.h.b16 %v1816
        %v2159 = vunpack.c.l.b16 %v1817
        %v2160 = vunpack.c.h.b16 %v1817
        %v2161 = vunpack.c.l.b16 %v1818
        %v2162 = vunpack.c.h.b16 %v1818
        %v2163 = vunpack.c.l.b16 %v1819
        %v2164 = vunpack.c.h.b16 %v1819
        %v2165 = vunpack.c.l.b16 %v1820
        %v2166 = vunpack.c.h.b16 %v1820
        %v2167 = vunpack.c.l.b16 %v1821
        %v2168 = vunpack.c.h.b16 %v1821
        %v2169 = vunpack.c.l.b16 %v1822
        %v2170 = vunpack.c.h.b16 %v1822
        %v2171 = vunpack.c.l.b16 %v1823
        %v2172 = vunpack.c.h.b16 %v1823
        %v2173 = vunpack.c.l.b16 %v1824
        %v2174 = vunpack.c.h.b16 %v1824
        %v2175 = vunpack.c.l.b16 %v1825
        %v2176 = vunpack.c.h.b16 %v1825
        %v2177 = vunpack.c.l.b16 %v1826
        %v2178 = vunpack.c.h.b16 %v1826
        %v2179 = vunpack.c.l.b16 %v1827
        %v2180 = vunpack.c.h.b16 %v1827
        %v2181 = vunpack.c.l.b16 %v1828
        %v2182 = vunpack.c.h.b16 %v1828
        %v2183 = vunpack.c.l.b16 %v1829
        %v2184 = vunpack.c.h.b16 %v1829
        %v2185 = vunpack.c.l.b16 %v1830
        %v2186 = vunpack.c.h.b16 %v1830
        %v2187 = vunpack.c.l.b16 %v1831
        %v2188 = vunpack.c.h.b16 %v1831
        %v2189 = vunpack.c.l.b16 %v1832
        %v2190 = vunpack.c.h.b16 %v1832
        %v2191 = vunpack.c.l.b16 %v1833
        %v2192 = vunpack.c.h.b16 %v1833
        %v2193 = vunpack.c.l.b16 %v1834
        %v2194 = vunpack.c.h.b16 %v1834
        %v2195 = vunpack.c.l.b16 %v1835
        %v2196 = vunpack.c.h.b16 %v1835
        %v2197 = vunpack.c.l.b16 %v1836
        %v2198 = vunpack.c.h.b16 %v1836
        %v2199 = vunpack.c.l.b16 %v1837
        %v2200 = vunpack.c.h.b16 %v1837
        %v2201 = vunpack.c.l.b16 %v1838
        %v2202 = vunpack.c.h.b16 %v1838
        %v2203 = vunpack.c.l.b16 %v1839
        %v2204 = vunpack.c.h.b16 %v1839
        %v2205 = vunpack.c.l.b16 %v1840
        %v2206 = vunpack.c.h.b16 %v1840
        %v2207 = vunpack.c.l.b16 %v1841
        %v2208 = vunpack.c.h.b16 %v1841
        %v2209 = vunpack.c.l.b16 %v1842
        %v2210 = vunpack.c.h.b16 %v1842
        %v2211 = vunpack.c.l.b16 %v1843
        %v2212 = vunpack.c.h.b16 %v1843
        %v2213 = vunpack.c.l.b16 %v1844
        %v2214 = vunpack.c.h.b16 %v1844
        %v2215 = vunpack.c.l.b16 %v1845
        %v2216 = vunpack.c.h.b16 %v1845
        %v2217 = vunpack.c.l.b16 %v1846
        %v2218 = vunpack.c.h.b16 %v1846
        %v2219 = vunpack.c.l.b16 %v1847
        %v2220 = vunpack.c.h.b16 %v1847
        %v2221 = vunpack.c.l.b16 %v1848
        %v2222 = vunpack.c.h.b16 %v1848
        %v2223 = vunpack.c.l.b16 %v1849
        %v2224 = vunpack.c.h.b16 %v1849
        %v2225 = vunpack.c.l.b16 %v1850
        %v2226 = vunpack.c.h.b16 %v1850
        %v2227 = vunpack.c.l.b16 %v1851
        %v2228 = vunpack.c.h.b16 %v1851
        %v2229 = vunpack.c.l.b16 %v1852
        %v2230 = vunpack.c.h.b16 %v1852
        %v2231 = vunpack.c.l.b16 %v1853
        %v2232 = vunpack.c.h.b16 %v1853
        %v2233 = vunpack.c.l.b16 %v1854
        %v2234 = vunpack.c.h.b16 %v1854
        %v2235 = vunpack.c.l.b16 %v1855
        %v2236 = vunpack.c.h.b16 %v1855
        %v2237 = vunpack.c.l.b16 %v1856
        %v2238 = vunpack.c.h.b16 %v1856
        %v2239 = vunpack.c.l.b16 %v1857
        %v2240 = vunpack.c.h.b16 %v1857
        %v2241 = vunpack.c.l.b16 %v1858
        %v2242 = vunpack.c.h.b16 %v1858
        %v2243 = vunpack.c.l.b16 %v1859
        %v2244 = vunpack.c.h.b16 %v1859
        %v2245 = vunpack.c.l.b16 %v1860
        %v2246 = vunpack.c.h.b16 %v1860
        %v2247 = vunpack.c.l.b16 %v1861
        %v2248 = vunpack.c.h.b16 %v1861
        %v2249 = vunpack.c.l.b16 %v1862
        %v2250 = vunpack.c.h.b16 %v1862
        %v2251 = vunpack.c.l.b16 %v1863
        %v2252 = vunpack.c.h.b16 %v1863
        %v2253 = vunpack.c.l.b16 %v1864
        %v2254 = vunpack.c.h.b16 %v1864
        %v2255 = vunpack.c.l.b16 %v1865
        %v2256 = vunpack.c.h.b16 %v1865
        %v2257 = vunpack.c.l.b16 %v1866
        %v2258 = vunpack.c.h.b16 %v1866
        %v2259 = vunpack.c.l.b16 %v1867
        %v2260 = vunpack.c.h.b16 %v1867
        %v2261 = vunpack.c.l.b16 %v1868
        %v2262 = vunpack.c.h.b16 %v1868
        %v2263 = vunpack.c.l.b16 %v1869
        %v2264 = vunpack.c.h.b16 %v1869
        %v2265 = vunpack.c.l.b16 %v1870
        %v2266 = vunpack.c.h.b16 %v1870
        %v2267 = vunpack.c.l.b16 %v1871
        %v2268 = vunpack.c.h.b16 %v1871
        %v2269 = vunpack.c.l.b16 %v1872
        %v2270 = vunpack.c.h.b16 %v1872
        %v2271 = vunpack.c.l.b16 %v1873
        %v2272 = vunpack.c.h.b16 %v1873
        %v2273 = vpack.c.b16 %v2025, %v2017
        %v2274 = vpack.c.b16 %v2026, %v2018
        %v2275 = vpack.c.b16 %v2027, %v2019
        %v2276 = vpack.c.b16 %v2028, %v2020
        %v2277 = vpack.c.b16 %v2029, %v2021
        %v2278 = vpack.c.b16 %v2030, %v2022
        %v2279 = vpack.c.b16 %v2031, %v2023
        %v2280 = vpack.c.b16 %v2032, %v2024
        %v2281 = vpack.c.b16 %v2041, %v2033
        %v2282 = vpack.c.b16 %v2042, %v2034
        %v2283 = vpack.c.b16 %v2043, %v2035
        %v2284 = vpack.c.b16 %v2044, %v2036
        %v2285 = vpack.c.b16 %v2045, %v2037
        %v2286 = vpack.c.b16 %v2046, %v2038
        %v2287 = vpack.c.b16 %v2047, %v2039
        %v2288 = vpack.c.b16 %v2048, %v2040
        %v2289 = vpack.c.b16 %v2057, %v2049
        %v2290 = vpack.c.b16 %v2058, %v2050
        %v2291 = vpack.c.b16 %v2059, %v2051
        %v2292 = vpack.c.b16 %v2060, %v2052
        %v2293 = vpack.c.b16 %v2061, %v2053
        %v2294 = vpack.c.b16 %v2062, %v2054
        %v2295 = vpack.c.b16 %v2063, %v2055
        %v2296 = vpack.c.b16 %v2064, %v2056
        %v2297 = vpack.c.b16 %v2073, %v2065
        %v2298 = vpack.c.b16 %v2074, %v2066
        %v2299 = vpack.c.b16 %v2075, %v2067
        %v2300 = vpack.c.b16 %v2076, %v2068
        %v2301 = vpack.c.b16 %v2077, %v2069
        %v2302 = vpack.c.b16 %v2078, %v2070
        %v2303 = vpack.c.b16 %v2079, %v2071
        %v2304 = vpack.c.b16 %v2080, %v2072
        %v2305 = vpack.c.b16 %v2089, %v2081
        %v2306 = vpack.c.b16 %v2090, %v2082
        %v2307 = vpack.c.b16 %v2091, %v2083
        %v2308 = vpack.c.b16 %v2092, %v2084
        %v2309 = vpack.c.b16 %v2093, %v2085
        %v2310 = vpack.c.b16 %v2094, %v2086
        %v2311 = vpack.c.b16 %v2095, %v2087
        %v2312 = vpack.c.b16 %v2096, %v2088
        %v2313 = vpack.c.b16 %v2105, %v2097
        %v2314 = vpack.c.b16 %v2106, %v2098
        %v2315 = vpack.c.b16 %v2107, %v2099
        %v2316 = vpack.c.b16 %v2108, %v2100
        %v2317 = vpack.c.b16 %v2109, %v2101
        %v2318 = vpack.c.b16 %v2110, %v2102
        %v2319 = vpack.c.b16 %v2111, %v2103
        %v2320 = vpack.c.b16 %v2112, %v2104
        %v2321 = vpack.c.b16 %v2121, %v2113
        %v2322 = vpack.c.b16 %v2122, %v2114
        %v2323 = vpack.c.b16 %v2123, %v2115
        %v2324 = vpack.c.b16 %v2124, %v2116
        %v2325 = vpack.c.b16 %v2125, %v2117
        %v2326 = vpack.c.b16 %v2126, %v2118
        %v2327 = vpack.c.b16 %v2127, %v2119
        %v2328 = vpack.c.b16 %v2128, %v2120
        %v2329 = vpack.c.b16 %v2137, %v2129
        %v2330 = vpack.c.b16 %v2138, %v2130
        %v2331 = vpack.c.b16 %v2139, %v2131
        %v2332 = vpack.c.b16 %v2140, %v2132
        %v2333 = vpack.c.b16 %v2141, %v2133
        %v2334 = vpack.c.b16 %v2142, %v2134
        %v2335 = vpack.c.b16 %v2143, %v2135
        %v2336 = vpack.c.b16 %v2144, %v2136
        %v2337 = vpack.c.b16 %v2153, %v2145
        %v2338 = vpack.c.b16 %v2154, %v2146
        %v2339 = vpack.c.b16 %v2155, %v2147
        %v2340 = vpack.c.b16 %v2156, %v2148
        %v2341 = vpack.c.b16 %v2157, %v2149
        %v2342 = vpack.c.b16 %v2158, %v2150
        %v2343 = vpack.c.b16 %v2159, %v2151
        %v2344 = vpack.c.b16 %v2160, %v2152
        %v2345 = vpack.c.b16 %v2169, %v2161
        %v2346 = vpack.c.b16 %v2170, %v2162
        %v2347 = vpack.c.b16 %v2171, %v2163
        %v2348 = vpack.c.b16 %v2172, %v2164
        %v2349 = vpack.c.b16 %v2173, %v2165
        %v2350 = vpack.c.b16 %v2174, %v2166
        %v2351 = vpack.c.b16 %v2175, %v2167
        %v2352 = vpack.c.b16 %v2176, %v2168
        %v2353 = vpack.c.b16 %v2185, %v2177
        %v2354 = vpack.c.b16 %v2186, %v2178
        %v2355 = vpack.c.b16 %v2187, %v2179
        %v2356 = vpack.c.b16 %v2188, %v2180
        %v2357 = vpack.c.b16 %v2189, %v2181
        %v2358 = vpack.c.b16 %v2190, %v2182
        %v2359 = vpack.c.b16 %v2191, %v2183
        %v2360 = vpack.c.b16 %v2192, %v2184
        %v2361 = vpack.c.b16 %v2201, %v2193
        %v2362 = vpack.c.b16 %v2202, %v2194
        %v2363 = vpack.c.b16 %v2203, %v2195
        %v2364 = vpack.c.b16 %v2204, %v2196
        %v2365 = vpack.c.b16 %v2205, %v2197
        %v2366 = vpack.c.b16 %v2206, %v2198
        %v2367 = vpack.c.b16 %v2207, %v2199
        %v2368 = vpack.c.b16 %v2208, %v2200
        %v2369 = vpack.c.b16 %v2217, %v2209
        %v2370 = vpack.c.b16 %v2218, %v2210
        %v2371 = vpack.c.b16 %v2219, %v2211
        %v2372 = vpack.c.b16 %v2220, %v2212
        %v2373 = vpack.c.b16 %v2221, %v2213
        %v2374 = vpack.c.b16 %v2222, %v2214
        %v2375 = vpack.c.b16 %v2223, %v2215
        %v2376 = vpack.c.b16 %v2224, %v2216
        %v2377 = vpack.c.b16 %v2233, %v2225
        %v2378 = vpack.c.b16 %v2234, %v2226
        %v2379 = vpack.c.b16 %v2235, %v2227
        %v2380 = vpack.c.b16 %v2236, %v2228
        %v2381 = vpack.c.b16 %v2237, %v2229
        %v2382 = vpack.c.b16 %v2238, %v2230
        %v2383 = vpack.c.b16 %v2239, %v2231
        %v2384 = vpack.c.b16 %v2240, %v2232
        %v2385 = vpack.c.b16 %v2249, %v2241
        %v2386 = vpack.c.b16 %v2250, %v2242
        %v2387 = vpack.c.b16 %v2251, %v2243
        %v2388 = vpack.c.b16 %v2252, %v2244
        %v2389 = vpack.c.b16 %v2253, %v2245
        %v2390 = vpack.c.b16 %v2254, %v2246
        %v2391 = vpack.c.b16 %v2255, %v2247
        %v2392 = vpack.c.b16 %v2256, %v2248
        %v2393 = vpack.c.b16 %v2265, %v2257
        %v2394 = vpack.c.b16 %v2266, %v2258
        %v2395 = vpack.c.b16 %v2267, %v2259
        %v2396 = vpack.c.b16 %v2268, %v2260
        %v2397 = vpack.c.b16 %v2269, %v2261
        %v2398 = vpack.c.b16 %v2270, %v2262
        %v2399 = vpack.c.b16 %v2271, %v2263
        %v2400 = vpack.c.b16 %v2272, %v2264
        %2529 = vmatprep.subr.bf16.mxu0 %v2274
        %2530 = vmatpush1.bf16.msra.mxu0 %v2273
        %2531 = vmatprep.subr.bf16.mxu0 %v2282
        %2532 = vmatpush1.bf16.msra.mxu0 %v2281
        %2533 = vmatprep.subr.bf16.mxu0 %v2290
        %2534 = vmatpush1.bf16.msra.mxu0 %v2289
        %2535 = vmatprep.subr.bf16.mxu0 %v2298
        %2536 = vmatpush1.bf16.msra.mxu0 %v2297
        %2537 = vmatprep.subr.bf16.mxu0 %v2306
        %2538 = vmatpush1.bf16.msra.mxu0 %v2305
        %2539 = vmatprep.subr.bf16.mxu0 %v2314
        %2540 = vmatpush1.bf16.msra.mxu0 %v2313
        %2541 = vmatprep.subr.bf16.mxu0 %v2322
        %2542 = vmatpush1.bf16.msra.mxu0 %v2321
        %2543 = vmatprep.subr.bf16.mxu0 %v2330
        %2544 = vmatpush1.bf16.msra.mxu0 %v2329
        %2545 = vmatprep.subr.bf16.mxu0 %v2338
        %2546 = vmatpush1.bf16.msra.mxu0 %v2337
        %2547 = vmatprep.subr.bf16.mxu0 %v2346
        %2548 = vmatpush1.bf16.msra.mxu0 %v2345
        %2549 = vmatprep.subr.bf16.mxu0 %v2354
        %2550 = vmatpush1.bf16.msra.mxu0 %v2353
        %2551 = vmatprep.subr.bf16.mxu0 %v2362
        %2552 = vmatpush1.bf16.msra.mxu0 %v2361
        %2553 = vmatprep.subr.bf16.mxu0 %v2370
        %2554 = vmatpush1.bf16.msra.mxu0 %v2369
        %2555 = vmatprep.subr.bf16.mxu0 %v2378
        %2556 = vmatpush1.bf16.msra.mxu0 %v2377
        %2557 = vmatprep.subr.bf16.mxu0 %v2386
        %2558 = vmatpush1.bf16.msra.mxu0 %v2385
        %2559 = vmatprep.subr.bf16.mxu0 %v2394
        %2560 = vmatpush1.bf16.msra.mxu0 %v2393
        %2561 = vmatprep.mubr.bf16.mxu0 %v1888
        %2562 = vmatmul.mubr.bf16.gmra.mrb[0].mxu0 %v1887
        %v2563 = vpop.f32.mrb[0].mxu0
        %v2564 = vadd.f32 0.0, %v2563
        %v2565 = vpop.f32.mrb[0].mxu0
        %v2566 = vadd.f32 0.0, %v2565
        %v2567 = vpop.f32.mrb[0].mxu0
        %v2568 = vadd.f32 0.0, %v2567
        %v2569 = vpop.f32.mrb[0].mxu0
        %v2570 = vadd.f32 0.0, %v2569
        %2571 = vdwg.mxu0
        %2572 = vmatprep.subr.bf16.mxu0 %v2276
        %2573 = vmatpush1.bf16.msra.mxu0 %v2275
        %2574 = vmatprep.subr.bf16.mxu0 %v2284
        %2575 = vmatpush1.bf16.msra.mxu0 %v2283
        %2576 = vmatprep.subr.bf16.mxu0 %v2292
        %2577 = vmatpush1.bf16.msra.mxu0 %v2291
        %2578 = vmatprep.subr.bf16.mxu0 %v2300
        %2579 = vmatpush1.bf16.msra.mxu0 %v2299
        %2580 = vmatprep.subr.bf16.mxu0 %v2308
        %2581 = vmatpush1.bf16.msra.mxu0 %v2307
        %2582 = vmatprep.subr.bf16.mxu0 %v2316
        %2583 = vmatpush1.bf16.msra.mxu0 %v2315
        %2584 = vmatprep.subr.bf16.mxu0 %v2324
        %2585 = vmatpush1.bf16.msra.mxu0 %v2323
        %2586 = vmatprep.subr.bf16.mxu0 %v2332
        %2587 = vmatpush1.bf16.msra.mxu0 %v2331
        %2588 = vmatprep.subr.bf16.mxu0 %v2340
        %2589 = vmatpush1.bf16.msra.mxu0 %v2339
        %2590 = vmatprep.subr.bf16.mxu0 %v2348
        %2591 = vmatpush1.bf16.msra.mxu0 %v2347
        %2592 = vmatprep.subr.bf16.mxu0 %v2356
        %2593 = vmatpush1.bf16.msra.mxu0 %v2355
        %2594 = vmatprep.subr.bf16.mxu0 %v2364
        %2595 = vmatpush1.bf16.msra.mxu0 %v2363
        %2596 = vmatprep.subr.bf16.mxu0 %v2372
        %2597 = vmatpush1.bf16.msra.mxu0 %v2371
        %2598 = vmatprep.subr.bf16.mxu0 %v2380
        %2599 = vmatpush1.bf16.msra.mxu0 %v2379
        %2600 = vmatprep.subr.bf16.mxu0 %v2388
        %2601 = vmatpush1.bf16.msra.mxu0 %v2387
        %2602 = vmatprep.subr.bf16.mxu0 %v2396
        %2603 = vmatpush1.bf16.msra.mxu0 %v2395
        %2604 = vmatprep.mubr.bf16.mxu0 %v1888
        %2605 = vmatmul.mubr.bf16.gmra.mrb[0].mxu0 %v1887
        %v2606 = vpop.f32.mrb[0].mxu0
        %v2607 = vadd.f32 0.0, %v2606
        %v2608 = vpop.f32.mrb[0].mxu0
        %v2609 = vadd.f32 0.0, %v2608
        %v2610 = vpop.f32.mrb[0].mxu0
        %v2611 = vadd.f32 0.0, %v2610
        %v2612 = vpop.f32.mrb[0].mxu0
        %v2613 = vadd.f32 0.0, %v2612
        %2614 = vdwg.mxu0
        %2615 = vmatprep.subr.bf16.mxu0 %v2278
        %2616 = vmatpush1.bf16.msra.mxu0 %v2277
        %2617 = vmatprep.subr.bf16.mxu0 %v2286
        %2618 = vmatpush1.bf16.msra.mxu0 %v2285
        %2619 = vmatprep.subr.bf16.mxu0 %v2294
        %2620 = vmatpush1.bf16.msra.mxu0 %v2293
        %2621 = vmatprep.subr.bf16.mxu0 %v2302
        %2622 = vmatpush1.bf16.msra.mxu0 %v2301
        %2623 = vmatprep.subr.bf16.mxu0 %v2310
        %2624 = vmatpush1.bf16.msra.mxu0 %v2309
        %2625 = vmatprep.subr.bf16.mxu0 %v2318
        %2626 = vmatpush1.bf16.msra.mxu0 %v2317
        %2627 = vmatprep.subr.bf16.mxu0 %v2326
        %2628 = vmatpush1.bf16.msra.mxu0 %v2325
        %2629 = vmatprep.subr.bf16.mxu0 %v2334
        %2630 = vmatpush1.bf16.msra.mxu0 %v2333
        %2631 = vmatprep.subr.bf16.mxu0 %v2342
        %2632 = vmatpush1.bf16.msra.mxu0 %v2341
        %2633 = vmatprep.subr.bf16.mxu0 %v2350
        %2634 = vmatpush1.bf16.msra.mxu0 %v2349
        %2635 = vmatprep.subr.bf16.mxu0 %v2358
        %2636 = vmatpush1.bf16.msra.mxu0 %v2357
        %2637 = vmatprep.subr.bf16.mxu0 %v2366
        %2638 = vmatpush1.bf16.msra.mxu0 %v2365
        %2639 = vmatprep.subr.bf16.mxu0 %v2374
        %2640 = vmatpush1.bf16.msra.mxu0 %v2373
        %2641 = vmatprep.subr.bf16.mxu0 %v2382
        %2642 = vmatpush1.bf16.msra.mxu0 %v2381
        %2643 = vmatprep.subr.bf16.mxu0 %v2390
        %2644 = vmatpush1.bf16.msra.mxu0 %v2389
        %2645 = vmatprep.subr.bf16.mxu0 %v2398
        %2646 = vmatpush1.bf16.msra.mxu0 %v2397
        %2647 = vmatprep.mubr.bf16.mxu0 %v1888
        %2648 = vmatmul.mubr.bf16.gmra.mrb[0].mxu0 %v1887
        %v2649 = vpop.f32.mrb[0].mxu0
        %v2650 = vadd.f32 0.0, %v2649
        %v2651 = vpop.f32.mrb[0].mxu0
        %v2652 = vadd.f32 0.0, %v2651
        %v2653 = vpop.f32.mrb[0].mxu0
        %v2654 = vadd.f32 0.0, %v2653
        %v2655 = vpop.f32.mrb[0].mxu0
        %v2656 = vadd.f32 0.0, %v2655
        %2657 = vdwg.mxu0
        %2658 = vmatprep.subr.bf16.mxu0 %v2280
        %2659 = vmatpush1.bf16.msra.mxu0 %v2279
        %2660 = vmatprep.subr.bf16.mxu0 %v2288
        %2661 = vmatpush1.bf16.msra.mxu0 %v2287
        %2662 = vmatprep.subr.bf16.mxu0 %v2296
        %2663 = vmatpush1.bf16.msra.mxu0 %v2295
        %2664 = vmatprep.subr.bf16.mxu0 %v2304
        %2665 = vmatpush1.bf16.msra.mxu0 %v2303
        %2666 = vmatprep.subr.bf16.mxu0 %v2312
        %2667 = vmatpush1.bf16.msra.mxu0 %v2311
        %2668 = vmatprep.subr.bf16.mxu0 %v2320
        %2669 = vmatpush1.bf16.msra.mxu0 %v2319
        %2670 = vmatprep.subr.bf16.mxu0 %v2328
        %2671 = vmatpush1.bf16.msra.mxu0 %v2327
        %2672 = vmatprep.subr.bf16.mxu0 %v2336
        %2673 = vmatpush1.bf16.msra.mxu0 %v2335
        %2674 = vmatprep.subr.bf16.mxu0 %v2344
        %2675 = vmatpush1.bf16.msra.mxu0 %v2343
        %2676 = vmatprep.subr.bf16.mxu0 %v2352
        %2677 = vmatpush1.bf16.msra.mxu0 %v2351
        %2678 = vmatprep.subr.bf16.mxu0 %v2360
        %2679 = vmatpush1.bf16.msra.mxu0 %v2359
        %2680 = vmatprep.subr.bf16.mxu0 %v2368
        %2681 = vmatpush1.bf16.msra.mxu0 %v2367
        %2682 = vmatprep.subr.bf16.mxu0 %v2376
        %2683 = vmatpush1.bf16.msra.mxu0 %v2375
        %2684 = vmatprep.subr.bf16.mxu0 %v2384
        %2685 = vmatpush1.bf16.msra.mxu0 %v2383
        %2686 = vmatprep.subr.bf16.mxu0 %v2392
        %2687 = vmatpush1.bf16.msra.mxu0 %v2391
        %2688 = vmatprep.subr.bf16.mxu0 %v2400
        %2689 = vmatpush1.bf16.msra.mxu0 %v2399
        %2690 = vmatprep.mubr.bf16.mxu0 %v1888
        %2691 = vmatmul.mubr.bf16.gmra.mrb[0].mxu0 %v1887
        %v2692 = vpop.f32.mrb[0].mxu0
        %v2693 = vadd.f32 0.0, %v2692
        %v2694 = vpop.f32.mrb[0].mxu0
        %v2695 = vadd.f32 0.0, %v2694
        %v2696 = vpop.f32.mrb[0].mxu0
        %v2697 = vadd.f32 0.0, %v2696
        %v2698 = vpop.f32.mrb[0].mxu0
        %v2699 = vadd.f32 0.0, %v2698
        %2700 = vdwg.mxu0
        %v2701 = vld [vmem:[#allocation2] sm:$0xff]
        %v2702 = vld [vmem:[#allocation2 + $0x8] sm:$0xff]
        %v2703 = vld [vmem:[#allocation2 + $0x10] sm:$0xff]
        %v2704 = vld [vmem:[#allocation2 + $0x18] sm:$0xff]
        %v2705 = vunpack.c.l.bf16 %v2701
        %v2706 = vunpack.c.l.bf16 %v2702
        %v2707 = vunpack.c.l.bf16 %v2703
        %v2708 = vunpack.c.l.bf16 %v2704
        %v2709 = vunpack.c.h.bf16 %v2701
        %v2710 = vunpack.c.h.bf16 %v2702
        %v2711 = vunpack.c.h.bf16 %v2703
        %v2712 = vunpack.c.h.bf16 %v2704
        %v2713 = vadd.f32 %v2705, %v2564
        %v2714 = vadd.f32 %v2706, %v2566
        %v2715 = vadd.f32 %v2707, %v2607
        %v2716 = vadd.f32 %v2708, %v2609
        %v2717 = vadd.f32 %v2709, %v2568
        %v2718 = vadd.f32 %v2710, %v2570
        %v2719 = vadd.f32 %v2711, %v2611
        %v2720 = vadd.f32 %v2712, %v2613
        %v2721 = vxor.u32 %v2713, 2147483648
        %v2722 = vxor.u32 %v2717, 2147483648
        %v2723 = vmul.f32 %v2721, 1.442695
        %v2724 = vpow.pop %v2723
        %v2725 = vmul.f32 %v2722, 1.442695
        %v2726 = vpow.pop %v2725
        %v2727 = vadd.f32 %v2724, 1.0
        %v2728 = vadd.f32 %v2726, 1.0
        %v2729 = vrcp.pop %v2727
        %v2730 = vmul.f32 1.0, %v2729
        %v2731 = vrcp.pop %v2728
        %v2732 = vmul.f32 1.0, %v2731
        %v2733 = vxor.u32 %v2714, 2147483648
        %v2734 = vxor.u32 %v2718, 2147483648
        %v2735 = vmul.f32 %v2733, 1.442695
        %v2736 = vpow.pop %v2735
        %v2737 = vmul.f32 %v2734, 1.442695
        %v2738 = vpow.pop %v2737
        %v2739 = vadd.f32 %v2736, 1.0
        %v2740 = vadd.f32 %v2738, 1.0
        %v2741 = vrcp.pop %v2739
        %v2742 = vmul.f32 1.0, %v2741
        %v2743 = vrcp.pop %v2740
        %v2744 = vmul.f32 1.0, %v2743
        %v2745 = vtanh.pop %v2715
        %v2746 = vtanh.pop %v2719
        %v2747 = vxor.u32 %v2716, 2147483648
        %v2748 = vxor.u32 %v2720, 2147483648
        %v2749 = vmul.f32 %v2747, 1.442695
        %v2750 = vpow.pop %v2749
        %v2751 = vmul.f32 %v2748, 1.442695
        %v2752 = vpow.pop %v2751
        %v2753 = vadd.f32 %v2750, 1.0
        %v2754 = vadd.f32 %v2752, 1.0
        %v2755 = vrcp.pop %v2753
        %v2756 = vmul.f32 1.0, %v2755
        %v2757 = vrcp.pop %v2754
        %v2758 = vmul.f32 1.0, %v2757
        %v2759 = vmul.f32 %v2742, %v1883
        %v2760 = vmul.f32 %v2744, %v1885
        %v2761 = vmul.f32 %v2730, %v2745
        %v2762 = vmul.f32 %v2732, %v2746
        %v2763 = vadd.f32 %v2759, %v2761
        %v2764 = vadd.f32 %v2760, %v2762
        %v2765 = vtanh.pop %v2763
        %v2766 = vtanh.pop %v2764
        %v2767 = vmul.f32 %v2756, %v2765
        %v2768 = vmul.f32 %v2758, %v2766
        %v2769 = vstv %s1876
        %vm2770 = vcmp.lt.s32.totalorder %v2769, %v1874
        %vm2771 = vcmp.lt.s32.totalorder %v2769, %v1875
        %v2772 = vsel %vm2770, 1, 0
        %v2773 = vsel %vm2771, 1, 0
        %2774 = vset.pattern.permute.xlu0 0
        %2775 = vperm.xlu0 %2774, %v2772
        %v2776 = vpop.permute.xlu0 %2775
        %2777 = vset.pattern.permute.xlu0 0
        %2778 = vperm.xlu0 %2777, %v2773
        %v2779 = vpop.permute.xlu0 %2778
        %vm2780 = vcmp.eq.s32.totalorder %v2776, 1
        %vm2781 = vcmp.eq.s32.totalorder %v2779, 1
        %v2782 = vsel %vm2780, %v2767, 0.0
        %v2783 = vsel %vm2781, %v2768, 0.0
        %v2784 = vpack.c.bf16 %v2783, %v2782
        %v2786 = vunpack.c.l.b16 %v2784
        %v2787 = vunpack.c.h.b16 %v2784
        %v2788 = vpack.c.b16 %v2786, %v2786
        %v2789 = vpack.c.b16 %v2787, %v2787
        %2792 = vst [vmem:[%s450] sm:$0xf] %v2788
        %2793 = vst [vmem:[%s450 + $0x4] sm:$0xf] %v2789
        %v2794 = vsel %vm2780, %v2767, %v1879
        %v2795 = vsel %vm2781, %v2768, %v1881
        %v2796 = vsel %vm2780, %v2763, %v1883
        %v2797 = vsel %vm2781, %v2764, %v1885
        %s2798 = sadd.s32 %s1878, 3
        %s2799 = scalar_lea.vmem [#allocation3], 96
        %v2800 = vld [vmem:[%s2799] sm:$0xff]
        %v2801 = vld [vmem:[%s2799 + $0x8] sm:$0xff]
        %v2802 = vld [vmem:[%s2799 + $0x10] sm:$0xff]
        %v2803 = vld [vmem:[%s2799 + $0x18] sm:$0xff]
        %v2804 = vunpack.c.l.bf16 %v2800
        %v2805 = vunpack.c.l.bf16 %v2801
        %v2806 = vunpack.c.l.bf16 %v2802
        %v2807 = vunpack.c.l.bf16 %v2803
        %v2808 = vunpack.c.h.bf16 %v2800
        %v2809 = vunpack.c.h.bf16 %v2801
        %v2810 = vunpack.c.h.bf16 %v2802
        %v2811 = vunpack.c.h.bf16 %v2803
        %v2812 = vadd.f32 %v2804, %v2650
        %v2813 = vadd.f32 %v2805, %v2652
        %v2814 = vadd.f32 %v2806, %v2693
        %v2815 = vadd.f32 %v2807, %v2695
        %v2816 = vadd.f32 %v2808, %v2654
        %v2817 = vadd.f32 %v2809, %v2656
        %v2818 = vadd.f32 %v2810, %v2697
        %v2819 = vadd.f32 %v2811, %v2699
        %v2820 = vxor.u32 %v2812, 2147483648
        %v2821 = vxor.u32 %v2816, 2147483648
        %v2822 = vmul.f32 %v2820, 1.442695
        %v2823 = vpow.pop %v2822
        %v2824 = vmul.f32 %v2821, 1.442695
        %v2825 = vpow.pop %v2824
        %v2826 = vadd.f32 %v2823, 1.0
        %v2827 = vadd.f32 %v2825, 1.0
        %v2828 = vrcp.pop %v2826
        %v2829 = vmul.f32 1.0, %v2828
        %v2830 = vrcp.pop %v2827
        %v2831 = vmul.f32 1.0, %v2830
        %v2832 = vxor.u32 %v2813, 2147483648
        %v2833 = vxor.u32 %v2817, 2147483648
        %v2834 = vmul.f32 %v2832, 1.442695
        %v2835 = vpow.pop %v2834
        %v2836 = vmul.f32 %v2833, 1.442695
        %v2837 = vpow.pop %v2836
        %v2838 = vadd.f32 %v2835, 1.0
        %v2839 = vadd.f32 %v2837, 1.0
        %v2840 = vrcp.pop %v2838
        %v2841 = vmul.f32 1.0, %v2840
        %v2842 = vrcp.pop %v2839
        %v2843 = vmul.f32 1.0, %v2842
        %v2844 = vtanh.pop %v2814
        %v2845 = vtanh.pop %v2818
        %v2846 = vxor.u32 %v2815, 2147483648
        %v2847 = vxor.u32 %v2819, 2147483648
        %v2848 = vmul.f32 %v2846, 1.442695
        %v2849 = vpow.pop %v2848
        %v2850 = vmul.f32 %v2847, 1.442695
        %v2851 = vpow.pop %v2850
        %v2852 = vadd.f32 %v2849, 1.0
        %v2853 = vadd.f32 %v2851, 1.0
        %v2854 = vrcp.pop %v2852
        %v2855 = vmul.f32 1.0, %v2854
        %v2856 = vrcp.pop %v2853
        %v2857 = vmul.f32 1.0, %v2856
        %v2858 = vmul.f32 %v2841, %v1884
        %v2859 = vmul.f32 %v2843, %v1886
        %v2860 = vmul.f32 %v2829, %v2844
        %v2861 = vmul.f32 %v2831, %v2845
        %v2862 = vadd.f32 %v2858, %v2860
        %v2863 = vadd.f32 %v2859, %v2861
        %v2864 = vtanh.pop %v2862
        %v2865 = vtanh.pop %v2863
        %v2866 = vmul.f32 %v2855, %v2864
        %v2867 = vmul.f32 %v2857, %v2865
        %v2868 = vstv %s2798
        %vm2869 = vcmp.lt.s32.totalorder %v2868, %v1874
        %vm2870 = vcmp.lt.s32.totalorder %v2868, %v1875
        %v2871 = vsel %vm2869, 1, 0
        %v2872 = vsel %vm2870, 1, 0
        %2873 = vset.pattern.permute.xlu0 0
        %2874 = vperm.xlu0 %2873, %v2871
        %v2875 = vpop.permute.xlu0 %2874
        %2876 = vset.pattern.permute.xlu0 0
        %2877 = vperm.xlu0 %2876, %v2872
        %v2878 = vpop.permute.xlu0 %2877
        %vm2879 = vcmp.eq.s32.totalorder %v2875, 1
        %vm2880 = vcmp.eq.s32.totalorder %v2878, 1
        %v2881 = vsel %vm2879, %v2866, 0.0
        %v2882 = vsel %vm2880, %v2867, 0.0
        %v2883 = vpack.c.bf16 %v2882, %v2881
        %v2885 = vunpack.c.l.b16 %v2883
        %v2886 = vunpack.c.h.b16 %v2883
        %v2887 = vpack.c.b16 %v2885, %v2885
        %v2888 = vpack.c.b16 %v2886, %v2886
        %s2891 = scalar_lea.vmem %s457, 24 [#allocation18]
        %2892 = vst [vmem:[%s2891] sm:$0xf] %v2887
        %2893 = vst [vmem:[%s2891 + $0x4] sm:$0xf] %v2888
        %v2894 = vsel %vm2879, %v2866, %v1880
        %v2895 = vsel %vm2880, %v2867, %v1882
        %v2896 = vsel %vm2879, %v2862, %v1884
        %v2897 = vsel %vm2880, %v2863, %v1886
        %v2898 = vpack.c.bf16 %v2795, %v2794
        %v2899 = vpack.c.bf16 %v2895, %v2894
        %2900 = vmatprep.subr.bf16.mxu0 %v2274
        %2901 = vmatpush1.bf16.msra.mxu0 %v2273
        %2902 = vmatprep.subr.bf16.mxu0 %v2282
        %2903 = vmatpush1.bf16.msra.mxu0 %v2281
        %2904 = vmatprep.subr.bf16.mxu0 %v2290
        %2905 = vmatpush1.bf16.msra.mxu0 %v2289
        %2906 = vmatprep.subr.bf16.mxu0 %v2298
        %2907 = vmatpush1.bf16.msra.mxu0 %v2297
        %2908 = vmatprep.subr.bf16.mxu0 %v2306
        %2909 = vmatpush1.bf16.msra.mxu0 %v2305
        %2910 = vmatprep.subr.bf16.mxu0 %v2314
        %2911 = vmatpush1.bf16.msra.mxu0 %v2313
        %2912 = vmatprep.subr.bf16.mxu0 %v2322
        %2913 = vmatpush1.bf16.msra.mxu0 %v2321
        %2914 = vmatprep.subr.bf16.mxu0 %v2330
        %2915 = vmatpush1.bf16.msra.mxu0 %v2329
        %2916 = vmatprep.subr.bf16.mxu0 %v2338
        %2917 = vmatpush1.bf16.msra.mxu0 %v2337
        %2918 = vmatprep.subr.bf16.mxu0 %v2346
        %2919 = vmatpush1.bf16.msra.mxu0 %v2345
        %2920 = vmatprep.subr.bf16.mxu0 %v2354
        %2921 = vmatpush1.bf16.msra.mxu0 %v2353
        %2922 = vmatprep.subr.bf16.mxu0 %v2362
        %2923 = vmatpush1.bf16.msra.mxu0 %v2361
        %2924 = vmatprep.subr.bf16.mxu0 %v2370
        %2925 = vmatpush1.bf16.msra.mxu0 %v2369
        %2926 = vmatprep.subr.bf16.mxu0 %v2378
        %2927 = vmatpush1.bf16.msra.mxu0 %v2377
        %2928 = vmatprep.subr.bf16.mxu0 %v2386
        %2929 = vmatpush1.bf16.msra.mxu0 %v2385
        %2930 = vmatprep.subr.bf16.mxu0 %v2394
        %2931 = vmatpush1.bf16.msra.mxu0 %v2393
        %2932 = vmatprep.mubr.bf16.mxu0 %v2899
        %2933 = vmatmul.mubr.bf16.gmra.mrb[0].mxu0 %v2898
        %v2934 = vpop.f32.mrb[0].mxu0
        %v2935 = vadd.f32 0.0, %v2934
        %v2936 = vpop.f32.mrb[0].mxu0
        %v2937 = vadd.f32 0.0, %v2936
        %v2938 = vpop.f32.mrb[0].mxu0
        %v2939 = vadd.f32 0.0, %v2938
        %v2940 = vpop.f32.mrb[0].mxu0
        %v2941 = vadd.f32 0.0, %v2940
        %2942 = vdwg.mxu0
        %2943 = vmatprep.subr.bf16.mxu0 %v2276
        %2944 = vmatpush1.bf16.msra.mxu0 %v2275
        %2945 = vmatprep.subr.bf16.mxu0 %v2284
        %2946 = vmatpush1.bf16.msra.mxu0 %v2283
        %2947 = vmatprep.subr.bf16.mxu0 %v2292
        %2948 = vmatpush1.bf16.msra.mxu0 %v2291
        %2949 = vmatprep.subr.bf16.mxu0 %v2300
        %2950 = vmatpush1.bf16.msra.mxu0 %v2299
        %2951 = vmatprep.subr.bf16.mxu0 %v2308
        %2952 = vmatpush1.bf16.msra.mxu0 %v2307
        %2953 = vmatprep.subr.bf16.mxu0 %v2316
        %2954 = vmatpush1.bf16.msra.mxu0 %v2315
        %2955 = vmatprep.subr.bf16.mxu0 %v2324
        %2956 = vmatpush1.bf16.msra.mxu0 %v2323
        %2957 = vmatprep.subr.bf16.mxu0 %v2332
        %2958 = vmatpush1.bf16.msra.mxu0 %v2331
        %2959 = vmatprep.subr.bf16.mxu0 %v2340
        %2960 = vmatpush1.bf16.msra.mxu0 %v2339
        %2961 = vmatprep.subr.bf16.mxu0 %v2348
        %2962 = vmatpush1.bf16.msra.mxu0 %v2347
        %2963 = vmatprep.subr.bf16.mxu0 %v2356
        %2964 = vmatpush1.bf16.msra.mxu0 %v2355
        %2965 = vmatprep.subr.bf16.mxu0 %v2364
        %2966 = vmatpush1.bf16.msra.mxu0 %v2363
        %2967 = vmatprep.subr.bf16.mxu0 %v2372
        %2968 = vmatpush1.bf16.msra.mxu0 %v2371
        %2969 = vmatprep.subr.bf16.mxu0 %v2380
        %2970 = vmatpush1.bf16.msra.mxu0 %v2379
        %2971 = vmatprep.subr.bf16.mxu0 %v2388
        %2972 = vmatpush1.bf16.msra.mxu0 %v2387
        %2973 = vmatprep.subr.bf16.mxu0 %v2396
        %2974 = vmatpush1.bf16.msra.mxu0 %v2395
        %2975 = vmatprep.mubr.bf16.mxu0 %v2899
        %2976 = vmatmul.mubr.bf16.gmra.mrb[0].mxu0 %v2898
        %v2977 = vpop.f32.mrb[0].mxu0
        %v2978 = vadd.f32 0.0, %v2977
        %v2979 = vpop.f32.mrb[0].mxu0
        %v2980 = vadd.f32 0.0, %v2979
        %v2981 = vpop.f32.mrb[0].mxu0
        %v2982 = vadd.f32 0.0, %v2981
        %v2983 = vpop.f32.mrb[0].mxu0
        %v2984 = vadd.f32 0.0, %v2983
        %2985 = vdwg.mxu0
        %2986 = vmatprep.subr.bf16.mxu0 %v2278
        %2987 = vmatpush1.bf16.msra.mxu0 %v2277
        %2988 = vmatprep.subr.bf16.mxu0 %v2286
        %2989 = vmatpush1.bf16.msra.mxu0 %v2285
        %2990 = vmatprep.subr.bf16.mxu0 %v2294
        %2991 = vmatpush1.bf16.msra.mxu0 %v2293
        %2992 = vmatprep.subr.bf16.mxu0 %v2302
        %2993 = vmatpush1.bf16.msra.mxu0 %v2301
        %2994 = vmatprep.subr.bf16.mxu0 %v2310
        %2995 = vmatpush1.bf16.msra.mxu0 %v2309
        %2996 = vmatprep.subr.bf16.mxu0 %v2318
        %2997 = vmatpush1.bf16.msra.mxu0 %v2317
        %2998 = vmatprep.subr.bf16.mxu0 %v2326
        %2999 = vmatpush1.bf16.msra.mxu0 %v2325
        %3000 = vmatprep.subr.bf16.mxu0 %v2334
        %3001 = vmatpush1.bf16.msra.mxu0 %v2333
        %3002 = vmatprep.subr.bf16.mxu0 %v2342
        %3003 = vmatpush1.bf16.msra.mxu0 %v2341
        %3004 = vmatprep.subr.bf16.mxu0 %v2350
        %3005 = vmatpush1.bf16.msra.mxu0 %v2349
        %3006 = vmatprep.subr.bf16.mxu0 %v2358
        %3007 = vmatpush1.bf16.msra.mxu0 %v2357
        %3008 = vmatprep.subr.bf16.mxu0 %v2366
        %3009 = vmatpush1.bf16.msra.mxu0 %v2365
        %3010 = vmatprep.subr.bf16.mxu0 %v2374
        %3011 = vmatpush1.bf16.msra.mxu0 %v2373
        %3012 = vmatprep.subr.bf16.mxu0 %v2382
        %3013 = vmatpush1.bf16.msra.mxu0 %v2381
        %3014 = vmatprep.subr.bf16.mxu0 %v2390
        %3015 = vmatpush1.bf16.msra.mxu0 %v2389
        %3016 = vmatprep.subr.bf16.mxu0 %v2398
        %3017 = vmatpush1.bf16.msra.mxu0 %v2397
        %3018 = vmatprep.mubr.bf16.mxu0 %v2899
        %3019 = vmatmul.mubr.bf16.gmra.mrb[0].mxu0 %v2898
        %v3020 = vpop.f32.mrb[0].mxu0
        %v3021 = vadd.f32 0.0, %v3020
        %v3022 = vpop.f32.mrb[0].mxu0
        %v3023 = vadd.f32 0.0, %v3022
        %v3024 = vpop.f32.mrb[0].mxu0
        %v3025 = vadd.f32 0.0, %v3024
        %v3026 = vpop.f32.mrb[0].mxu0
        %v3027 = vadd.f32 0.0, %v3026
        %3028 = vdwg.mxu0
        %3029 = vmatprep.subr.bf16.mxu0 %v2280
        %3030 = vmatpush1.bf16.msra.mxu0 %v2279
        %3031 = vmatprep.subr.bf16.mxu0 %v2288
        %3032 = vmatpush1.bf16.msra.mxu0 %v2287
        %3033 = vmatprep.subr.bf16.mxu0 %v2296
        %3034 = vmatpush1.bf16.msra.mxu0 %v2295
        %3035 = vmatprep.subr.bf16.mxu0 %v2304
        %3036 = vmatpush1.bf16.msra.mxu0 %v2303
        %3037 = vmatprep.subr.bf16.mxu0 %v2312
        %3038 = vmatpush1.bf16.msra.mxu0 %v2311
        %3039 = vmatprep.subr.bf16.mxu0 %v2320
        %3040 = vmatpush1.bf16.msra.mxu0 %v2319
        %3041 = vmatprep.subr.bf16.mxu0 %v2328
        %3042 = vmatpush1.bf16.msra.mxu0 %v2327
        %3043 = vmatprep.subr.bf16.mxu0 %v2336
        %3044 = vmatpush1.bf16.msra.mxu0 %v2335
        %3045 = vmatprep.subr.bf16.mxu0 %v2344
        %3046 = vmatpush1.bf16.msra.mxu0 %v2343
        %3047 = vmatprep.subr.bf16.mxu0 %v2352
        %3048 = vmatpush1.bf16.msra.mxu0 %v2351
        %3049 = vmatprep.subr.bf16.mxu0 %v2360
        %3050 = vmatpush1.bf16.msra.mxu0 %v2359
        %3051 = vmatprep.subr.bf16.mxu0 %v2368
        %3052 = vmatpush1.bf16.msra.mxu0 %v2367
        %3053 = vmatprep.subr.bf16.mxu0 %v2376
        %3054 = vmatpush1.bf16.msra.mxu0 %v2375
        %3055 = vmatprep.subr.bf16.mxu0 %v2384
        %3056 = vmatpush1.bf16.msra.mxu0 %v2383
        %3057 = vmatprep.subr.bf16.mxu0 %v2392
        %3058 = vmatpush1.bf16.msra.mxu0 %v2391
        %3059 = vmatprep.subr.bf16.mxu0 %v2400
        %3060 = vmatpush1.bf16.msra.mxu0 %v2399
        %3061 = vmatprep.mubr.bf16.mxu0 %v2899
        %3062 = vmatmul.mubr.bf16.gmra.mrb[0].mxu0 %v2898
        %v3063 = vpop.f32.mrb[0].mxu0
        %v3064 = vadd.f32 0.0, %v3063
        %v3065 = vpop.f32.mrb[0].mxu0
        %v3066 = vadd.f32 0.0, %v3065
        %v3067 = vpop.f32.mrb[0].mxu0
        %v3068 = vadd.f32 0.0, %v3067
        %v3069 = vpop.f32.mrb[0].mxu0
        %v3070 = vadd.f32 0.0, %v3069
        %3071 = vdwg.mxu0
        %s3072 = sadd.s32 %s1876, 1
        %s3073 = scalar_lea.vmem [#allocation2], 32
        %v3074 = vld [vmem:[%s3073] sm:$0xff]
        %v3075 = vld [vmem:[%s3073 + $0x8] sm:$0xff]
        %v3076 = vld [vmem:[%s3073 + $0x10] sm:$0xff]
        %v3077 = vld [vmem:[%s3073 + $0x18] sm:$0xff]
        %v3078 = vunpack.c.l.bf16 %v3074
        %v3079 = vunpack.c.l.bf16 %v3075
        %v3080 = vunpack.c.l.bf16 %v3076
        %v3081 = vunpack.c.l.bf16 %v3077
        %v3082 = vunpack.c.h.bf16 %v3074
        %v3083 = vunpack.c.h.bf16 %v3075
        %v3084 = vunpack.c.h.bf16 %v3076
        %v3085 = vunpack.c.h.bf16 %v3077
        %v3086 = vadd.f32 %v3078, %v2935
        %v3087 = vadd.f32 %v3079, %v2937
        %v3088 = vadd.f32 %v3080, %v2978
        %v3089 = vadd.f32 %v3081, %v2980
        %v3090 = vadd.f32 %v3082, %v2939
        %v3091 = vadd.f32 %v3083, %v2941
        %v3092 = vadd.f32 %v3084, %v2982
        %v3093 = vadd.f32 %v3085, %v2984
        %v3094 = vxor.u32 %v3086, 2147483648
        %v3095 = vxor.u32 %v3090, 2147483648
        %v3096 = vmul.f32 %v3094, 1.442695
        %v3097 = vpow.pop %v3096
        %v3098 = vmul.f32 %v3095, 1.442695
        %v3099 = vpow.pop %v3098
        %v3100 = vadd.f32 %v3097, 1.0
        %v3101 = vadd.f32 %v3099, 1.0
        %v3102 = vrcp.pop %v3100
        %v3103 = vmul.f32 1.0, %v3102
        %v3104 = vrcp.pop %v3101
        %v3105 = vmul.f32 1.0, %v3104
        %v3106 = vxor.u32 %v3087, 2147483648
        %v3107 = vxor.u32 %v3091, 2147483648
        %v3108 = vmul.f32 %v3106, 1.442695
        %v3109 = vpow.pop %v3108
        %v3110 = vmul.f32 %v3107, 1.442695
        %v3111 = vpow.pop %v3110
        %v3112 = vadd.f32 %v3109, 1.0
        %v3113 = vadd.f32 %v3111, 1.0
        %v3114 = vrcp.pop %v3112
        %v3115 = vmul.f32 1.0, %v3114
        %v3116 = vrcp.pop %v3113
        %v3117 = vmul.f32 1.0, %v3116
        %v3118 = vtanh.pop %v3088
        %v3119 = vtanh.pop %v3092
        %v3120 = vxor.u32 %v3089, 2147483648
        %v3121 = vxor.u32 %v3093, 2147483648
        %v3122 = vmul.f32 %v3120, 1.442695
        %v3123 = vpow.pop %v3122
        %v3124 = vmul.f32 %v3121, 1.442695
        %v3125 = vpow.pop %v3124
        %v3126 = vadd.f32 %v3123, 1.0
        %v3127 = vadd.f32 %v3125, 1.0
        %v3128 = vrcp.pop %v3126
        %v3129 = vmul.f32 1.0, %v3128
        %v3130 = vrcp.pop %v3127
        %v3131 = vmul.f32 1.0, %v3130
        %v3132 = vmul.f32 %v3115, %v2796
        %v3133 = vmul.f32 %v3117, %v2797
        %v3134 = vmul.f32 %v3103, %v3118
        %v3135 = vmul.f32 %v3105, %v3119
        %v3136 = vadd.f32 %v3132, %v3134
        %v3137 = vadd.f32 %v3133, %v3135
        %v3138 = vtanh.pop %v3136
        %v3139 = vtanh.pop %v3137
        %v3140 = vmul.f32 %v3129, %v3138
        %v3141 = vmul.f32 %v3131, %v3139
        %v3142 = vstv %s3072
        %vm3143 = vcmp.lt.s32.totalorder %v3142, %v1874
        %vm3144 = vcmp.lt.s32.totalorder %v3142, %v1875
        %v3145 = vsel %vm3143, 1, 0
        %v3146 = vsel %vm3144, 1, 0
        %3147 = vset.pattern.permute.xlu0 0
        %3148 = vperm.xlu0 %3147, %v3145
        %v3149 = vpop.permute.xlu0 %3148
        %3150 = vset.pattern.permute.xlu0 0
        %3151 = vperm.xlu0 %3150, %v3146
        %v3152 = vpop.permute.xlu0 %3151
        %vm3153 = vcmp.eq.s32.totalorder %v3149, 1
        %vm3154 = vcmp.eq.s32.totalorder %v3152, 1
        %v3155 = vsel %vm3153, %v3140, 0.0
        %v3156 = vsel %vm3154, %v3141, 0.0
        %v3157 = vpack.c.bf16 %v3156, %v3155
        %v3159 = vunpack.c.l.b16 %v3157
        %v3160 = vunpack.c.h.b16 %v3157
        %v3161 = vpack.c.b16 %v3159, %v3159
        %v3162 = vpack.c.b16 %v3160, %v3160
        %s3165 = scalar_lea.vmem %s450, 8 [#allocation17]
        %3166 = vst [vmem:[%s3165] sm:$0xf] %v3161
        %3167 = vst [vmem:[%s3165 + $0x4] sm:$0xf] %v3162
        %v3168 = vsel %vm3153, %v3140, %v2794
        %v3169 = vsel %vm3154, %v3141, %v2795
        %v3170 = vsel %vm3153, %v3136, %v2796
        %v3171 = vsel %vm3154, %v3137, %v2797
        %s3172 = sadd.s32 %s1878, 2
        %s3173 = scalar_lea.vmem [#allocation3], 64
        %v3174 = vld [vmem:[%s3173] sm:$0xff]
        %v3175 = vld [vmem:[%s3173 + $0x8] sm:$0xff]
        %v3176 = vld [vmem:[%s3173 + $0x10] sm:$0xff]
        %v3177 = vld [vmem:[%s3173 + $0x18] sm:$0xff]
        %v3178 = vunpack.c.l.bf16 %v3174
        %v3179 = vunpack.c.l.bf16 %v3175
        %v3180 = vunpack.c.l.bf16 %v3176
        %v3181 = vunpack.c.l.bf16 %v3177
        %v3182 = vunpack.c.h.bf16 %v3174
        %v3183 = vunpack.c.h.bf16 %v3175
        %v3184 = vunpack.c.h.bf16 %v3176
        %v3185 = vunpack.c.h.bf16 %v3177
        %v3186 = vadd.f32 %v3178, %v3021
        %v3187 = vadd.f32 %v3179, %v3023
        %v3188 = vadd.f32 %v3180, %v3064
        %v3189 = vadd.f32 %v3181, %v3066
        %v3190 = vadd.f32 %v3182, %v3025
        %v3191 = vadd.f32 %v3183, %v3027
        %v3192 = vadd.f32 %v3184, %v3068
        %v3193 = vadd.f32 %v3185, %v3070
        %v3194 = vxor.u32 %v3186, 2147483648
        %v3195 = vxor.u32 %v3190, 2147483648
        %v3196 = vmul.f32 %v3194, 1.442695
        %v3197 = vpow.pop %v3196
        %v3198 = vmul.f32 %v3195, 1.442695
        %v3199 = vpow.pop %v3198
        %v3200 = vadd.f32 %v3197, 1.0
        %v3201 = vadd.f32 %v3199, 1.0
        %v3202 = vrcp.pop %v3200
        %v3203 = vmul.f32 1.0, %v3202
        %v3204 = vrcp.pop %v3201
        %v3205 = vmul.f32 1.0, %v3204
        %v3206 = vxor.u32 %v3187, 2147483648
        %v3207 = vxor.u32 %v3191, 2147483648
        %v3208 = vmul.f32 %v3206, 1.442695
        %v3209 = vpow.pop %v3208
        %v3210 = vmul.f32 %v3207, 1.442695
        %v3211 = vpow.pop %v3210
        %v3212 = vadd.f32 %v3209, 1.0
        %v3213 = vadd.f32 %v3211, 1.0
        %v3214 = vrcp.pop %v3212
        %v3215 = vmul.f32 1.0, %v3214
        %v3216 = vrcp.pop %v3213
        %v3217 = vmul.f32 1.0, %v3216
        %v3218 = vtanh.pop %v3188
        %v3219 = vtanh.pop %v3192
        %v3220 = vxor.u32 %v3189, 2147483648
        %v3221 = vxor.u32 %v3193, 2147483648
        %v3222 = vmul.f32 %v3220, 1.442695
        %v3223 = vpow.pop %v3222
        %v3224 = vmul.f32 %v3221, 1.442695
        %v3225 = vpow.pop %v3224
        %v3226 = vadd.f32 %v3223, 1.0
        %v3227 = vadd.f32 %v3225, 1.0
        %v3228 = vrcp.pop %v3226
        %v3229 = vmul.f32 1.0, %v3228
        %v3230 = vrcp.pop %v3227
        %v3231 = vmul.f32 1.0, %v3230
        %v3232 = vmul.f32 %v3215, %v2896
        %v3233 = vmul.f32 %v3217, %v2897
        %v3234 = vmul.f32 %v3203, %v3218
        %v3235 = vmul.f32 %v3205, %v3219
        %v3236 = vadd.f32 %v3232, %v3234
        %v3237 = vadd.f32 %v3233, %v3235
        %v3238 = vtanh.pop %v3236
        %v3239 = vtanh.pop %v3237
        %v3240 = vmul.f32 %v3229, %v3238
        %v3241 = vmul.f32 %v3231, %v3239
        %v3242 = vstv %s3172
        %vm3243 = vcmp.lt.s32.totalorder %v3242, %v1874
        %vm3244 = vcmp.lt.s32.totalorder %v3242, %v1875
        %v3245 = vsel %vm3243, 1, 0
        %v3246 = vsel %vm3244, 1, 0
        %3247 = vset.pattern.permute.xlu0 0
        %3248 = vperm.xlu0 %3247, %v3245
        %v3249 = vpop.permute.xlu0 %3248
        %3250 = vset.pattern.permute.xlu0 0
        %3251 = vperm.xlu0 %3250, %v3246
        %v3252 = vpop.permute.xlu0 %3251
        %vm3253 = vcmp.eq.s32.totalorder %v3249, 1
        %vm3254 = vcmp.eq.s32.totalorder %v3252, 1
        %v3255 = vsel %vm3253, %v3240, 0.0
        %v3256 = vsel %vm3254, %v3241, 0.0
        %v3257 = vpack.c.bf16 %v3256, %v3255
        %v3259 = vunpack.c.l.b16 %v3257
        %v3260 = vunpack.c.h.b16 %v3257
        %v3261 = vpack.c.b16 %v3259, %v3259
        %v3262 = vpack.c.b16 %v3260, %v3260
        %s3265 = scalar_lea.vmem %s457, 16 [#allocation18]
        %3266 = vst [vmem:[%s3265] sm:$0xf] %v3261
        %3267 = vst [vmem:[%s3265 + $0x4] sm:$0xf] %v3262
        %v3268 = vsel %vm3253, %v3240, %v2894
        %v3269 = vsel %vm3254, %v3241, %v2895
        %v3270 = vsel %vm3253, %v3236, %v2896
        %v3271 = vsel %vm3254, %v3237, %v2897
        %v3272 = vpack.c.bf16 %v3169, %v3168
        %v3273 = vpack.c.bf16 %v3269, %v3268
        %3274 = vmatprep.subr.bf16.mxu0 %v2274
        %3275 = vmatpush1.bf16.msra.mxu0 %v2273
        %3276 = vmatprep.subr.bf16.mxu0 %v2282
        %3277 = vmatpush1.bf16.msra.mxu0 %v2281
        %3278 = vmatprep.subr.bf16.mxu0 %v2290
        %3279 = vmatpush1.bf16.msra.mxu0 %v2289
        %3280 = vmatprep.subr.bf16.mxu0 %v2298
        %3281 = vmatpush1.bf16.msra.mxu0 %v2297
        %3282 = vmatprep.subr.bf16.mxu0 %v2306
        %3283 = vmatpush1.bf16.msra.mxu0 %v2305
        %3284 = vmatprep.subr.bf16.mxu0 %v2314
        %3285 = vmatpush1.bf16.msra.mxu0 %v2313
        %3286 = vmatprep.subr.bf16.mxu0 %v2322
        %3287 = vmatpush1.bf16.msra.mxu0 %v2321
        %3288 = vmatprep.subr.bf16.mxu0 %v2330
        %3289 = vmatpush1.bf16.msra.mxu0 %v2329
        %3290 = vmatprep.subr.bf16.mxu0 %v2338
        %3291 = vmatpush1.bf16.msra.mxu0 %v2337
        %3292 = vmatprep.subr.bf16.mxu0 %v2346
        %3293 = vmatpush1.bf16.msra.mxu0 %v2345
        %3294 = vmatprep.subr.bf16.mxu0 %v2354
        %3295 = vmatpush1.bf16.msra.mxu0 %v2353
        %3296 = vmatprep.subr.bf16.mxu0 %v2362
        %3297 = vmatpush1.bf16.msra.mxu0 %v2361
        %3298 = vmatprep.subr.bf16.mxu0 %v2370
        %3299 = vmatpush1.bf16.msra.mxu0 %v2369
        %3300 = vmatprep.subr.bf16.mxu0 %v2378
        %3301 = vmatpush1.bf16.msra.mxu0 %v2377
        %3302 = vmatprep.subr.bf16.mxu0 %v2386
        %3303 = vmatpush1.bf16.msra.mxu0 %v2385
        %3304 = vmatprep.subr.bf16.mxu0 %v2394
        %3305 = vmatpush1.bf16.msra.mxu0 %v2393
        %3306 = vmatprep.mubr.bf16.mxu0 %v3273
        %3307 = vmatmul.mubr.bf16.gmra.mrb[0].mxu0 %v3272
        %v3308 = vpop.f32.mrb[0].mxu0
        %v3309 = vadd.f32 0.0, %v3308
        %v3310 = vpop.f32.mrb[0].mxu0
        %v3311 = vadd.f32 0.0, %v3310
        %v3312 = vpop.f32.mrb[0].mxu0
        %v3313 = vadd.f32 0.0, %v3312
        %v3314 = vpop.f32.mrb[0].mxu0
        %v3315 = vadd.f32 0.0, %v3314
        %3316 = vdwg.mxu0
        %3317 = vmatprep.subr.bf16.mxu0 %v2276
        %3318 = vmatpush1.bf16.msra.mxu0 %v2275
        %3319 = vmatprep.subr.bf16.mxu0 %v2284
        %3320 = vmatpush1.bf16.msra.mxu0 %v2283
        %3321 = vmatprep.subr.bf16.mxu0 %v2292
        %3322 = vmatpush1.bf16.msra.mxu0 %v2291
        %3323 = vmatprep.subr.bf16.mxu0 %v2300
        %3324 = vmatpush1.bf16.msra.mxu0 %v2299
        %3325 = vmatprep.subr.bf16.mxu0 %v2308
        %3326 = vmatpush1.bf16.msra.mxu0 %v2307
        %3327 = vmatprep.subr.bf16.mxu0 %v2316
        %3328 = vmatpush1.bf16.msra.mxu0 %v2315
        %3329 = vmatprep.subr.bf16.mxu0 %v2324
        %3330 = vmatpush1.bf16.msra.mxu0 %v2323
        %3331 = vmatprep.subr.bf16.mxu0 %v2332
        %3332 = vmatpush1.bf16.msra.mxu0 %v2331
        %3333 = vmatprep.subr.bf16.mxu0 %v2340
        %3334 = vmatpush1.bf16.msra.mxu0 %v2339
        %3335 = vmatprep.subr.bf16.mxu0 %v2348
        %3336 = vmatpush1.bf16.msra.mxu0 %v2347
        %3337 = vmatprep.subr.bf16.mxu0 %v2356
        %3338 = vmatpush1.bf16.msra.mxu0 %v2355
        %3339 = vmatprep.subr.bf16.mxu0 %v2364
        %3340 = vmatpush1.bf16.msra.mxu0 %v2363
        %3341 = vmatprep.subr.bf16.mxu0 %v2372
        %3342 = vmatpush1.bf16.msra.mxu0 %v2371
        %3343 = vmatprep.subr.bf16.mxu0 %v2380
        %3344 = vmatpush1.bf16.msra.mxu0 %v2379
        %3345 = vmatprep.subr.bf16.mxu0 %v2388
        %3346 = vmatpush1.bf16.msra.mxu0 %v2387
        %3347 = vmatprep.subr.bf16.mxu0 %v2396
        %3348 = vmatpush1.bf16.msra.mxu0 %v2395
        %3349 = vmatprep.mubr.bf16.mxu0 %v3273
        %3350 = vmatmul.mubr.bf16.gmra.mrb[0].mxu0 %v3272
        %v3351 = vpop.f32.mrb[0].mxu0
        %v3352 = vadd.f32 0.0, %v3351
        %v3353 = vpop.f32.mrb[0].mxu0
        %v3354 = vadd.f32 0.0, %v3353
        %v3355 = vpop.f32.mrb[0].mxu0
        %v3356 = vadd.f32 0.0, %v3355
        %v3357 = vpop.f32.mrb[0].mxu0
        %v3358 = vadd.f32 0.0, %v3357
        %3359 = vdwg.mxu0
        %3360 = vmatprep.subr.bf16.mxu0 %v2278
        %3361 = vmatpush1.bf16.msra.mxu0 %v2277
        %3362 = vmatprep.subr.bf16.mxu0 %v2286
        %3363 = vmatpush1.bf16.msra.mxu0 %v2285
        %3364 = vmatprep.subr.bf16.mxu0 %v2294
        %3365 = vmatpush1.bf16.msra.mxu0 %v2293
        %3366 = vmatprep.subr.bf16.mxu0 %v2302
        %3367 = vmatpush1.bf16.msra.mxu0 %v2301
        %3368 = vmatprep.subr.bf16.mxu0 %v2310
        %3369 = vmatpush1.bf16.msra.mxu0 %v2309
        %3370 = vmatprep.subr.bf16.mxu0 %v2318
        %3371 = vmatpush1.bf16.msra.mxu0 %v2317
        %3372 = vmatprep.subr.bf16.mxu0 %v2326
        %3373 = vmatpush1.bf16.msra.mxu0 %v2325
        %3374 = vmatprep.subr.bf16.mxu0 %v2334
        %3375 = vmatpush1.bf16.msra.mxu0 %v2333
        %3376 = vmatprep.subr.bf16.mxu0 %v2342
        %3377 = vmatpush1.bf16.msra.mxu0 %v2341
        %3378 = vmatprep.subr.bf16.mxu0 %v2350
        %3379 = vmatpush1.bf16.msra.mxu0 %v2349
        %3380 = vmatprep.subr.bf16.mxu0 %v2358
        %3381 = vmatpush1.bf16.msra.mxu0 %v2357
        %3382 = vmatprep.subr.bf16.mxu0 %v2366
        %3383 = vmatpush1.bf16.msra.mxu0 %v2365
        %3384 = vmatprep.subr.bf16.mxu0 %v2374
        %3385 = vmatpush1.bf16.msra.mxu0 %v2373
        %3386 = vmatprep.subr.bf16.mxu0 %v2382
        %3387 = vmatpush1.bf16.msra.mxu0 %v2381
        %3388 = vmatprep.subr.bf16.mxu0 %v2390
        %3389 = vmatpush1.bf16.msra.mxu0 %v2389
        %3390 = vmatprep.subr.bf16.mxu0 %v2398
        %3391 = vmatpush1.bf16.msra.mxu0 %v2397
        %3392 = vmatprep.mubr.bf16.mxu0 %v3273
        %3393 = vmatmul.mubr.bf16.gmra.mrb[0].mxu0 %v3272
        %v3394 = vpop.f32.mrb[0].mxu0
        %v3395 = vadd.f32 0.0, %v3394
        %v3396 = vpop.f32.mrb[0].mxu0
        %v3397 = vadd.f32 0.0, %v3396
        %v3398 = vpop.f32.mrb[0].mxu0
        %v3399 = vadd.f32 0.0, %v3398
        %v3400 = vpop.f32.mrb[0].mxu0
        %v3401 = vadd.f32 0.0, %v3400
        %3402 = vdwg.mxu0
        %3403 = vmatprep.subr.bf16.mxu0 %v2280
        %3404 = vmatpush1.bf16.msra.mxu0 %v2279
        %3405 = vmatprep.subr.bf16.mxu0 %v2288
        %3406 = vmatpush1.bf16.msra.mxu0 %v2287
        %3407 = vmatprep.subr.bf16.mxu0 %v2296
        %3408 = vmatpush1.bf16.msra.mxu0 %v2295
        %3409 = vmatprep.subr.bf16.mxu0 %v2304
        %3410 = vmatpush1.bf16.msra.mxu0 %v2303
        %3411 = vmatprep.subr.bf16.mxu0 %v2312
        %3412 = vmatpush1.bf16.msra.mxu0 %v2311
        %3413 = vmatprep.subr.bf16.mxu0 %v2320
        %3414 = vmatpush1.bf16.msra.mxu0 %v2319
        %3415 = vmatprep.subr.bf16.mxu0 %v2328
        %3416 = vmatpush1.bf16.msra.mxu0 %v2327
        %3417 = vmatprep.subr.bf16.mxu0 %v2336
        %3418 = vmatpush1.bf16.msra.mxu0 %v2335
        %3419 = vmatprep.subr.bf16.mxu0 %v2344
        %3420 = vmatpush1.bf16.msra.mxu0 %v2343
        %3421 = vmatprep.subr.bf16.mxu0 %v2352
        %3422 = vmatpush1.bf16.msra.mxu0 %v2351
        %3423 = vmatprep.subr.bf16.mxu0 %v2360
        %3424 = vmatpush1.bf16.msra.mxu0 %v2359
        %3425 = vmatprep.subr.bf16.mxu0 %v2368
        %3426 = vmatpush1.bf16.msra.mxu0 %v2367
        %3427 = vmatprep.subr.bf16.mxu0 %v2376
        %3428 = vmatpush1.bf16.msra.mxu0 %v2375
        %3429 = vmatprep.subr.bf16.mxu0 %v2384
        %3430 = vmatpush1.bf16.msra.mxu0 %v2383
        %3431 = vmatprep.subr.bf16.mxu0 %v2392
        %3432 = vmatpush1.bf16.msra.mxu0 %v2391
        %3433 = vmatprep.subr.bf16.mxu0 %v2400
        %3434 = vmatpush1.bf16.msra.mxu0 %v2399
        %3435 = vmatprep.mubr.bf16.mxu0 %v3273
        %3436 = vmatmul.mubr.bf16.gmra.mrb[0].mxu0 %v3272
        %v3437 = vpop.f32.mrb[0].mxu0
        %v3438 = vadd.f32 0.0, %v3437
        %v3439 = vpop.f32.mrb[0].mxu0
        %v3440 = vadd.f32 0.0, %v3439
        %v3441 = vpop.f32.mrb[0].mxu0
        %v3442 = vadd.f32 0.0, %v3441
        %v3443 = vpop.f32.mrb[0].mxu0
        %v3444 = vadd.f32 0.0, %v3443
        %3445 = vdwg.mxu0
        %s3446 = sadd.s32 %s1876, 2
        %s3447 = scalar_lea.vmem [#allocation2], 64
        %v3448 = vld [vmem:[%s3447] sm:$0xff]
        %v3449 = vld [vmem:[%s3447 + $0x8] sm:$0xff]
        %v3450 = vld [vmem:[%s3447 + $0x10] sm:$0xff]
        %v3451 = vld [vmem:[%s3447 + $0x18] sm:$0xff]
        %v3452 = vunpack.c.l.bf16 %v3448
        %v3453 = vunpack.c.l.bf16 %v3449
        %v3454 = vunpack.c.l.bf16 %v3450
        %v3455 = vunpack.c.l.bf16 %v3451
        %v3456 = vunpack.c.h.bf16 %v3448
        %v3457 = vunpack.c.h.bf16 %v3449
        %v3458 = vunpack.c.h.bf16 %v3450
        %v3459 = vunpack.c.h.bf16 %v3451
        %v3460 = vadd.f32 %v3452, %v3309
        %v3461 = vadd.f32 %v3453, %v3311
        %v3462 = vadd.f32 %v3454, %v3352
        %v3463 = vadd.f32 %v3455, %v3354
        %v3464 = vadd.f32 %v3456, %v3313
        %v3465 = vadd.f32 %v3457, %v3315
        %v3466 = vadd.f32 %v3458, %v3356
        %v3467 = vadd.f32 %v3459, %v3358
        %v3468 = vxor.u32 %v3460, 2147483648
        %v3469 = vxor.u32 %v3464, 2147483648
        %v3470 = vmul.f32 %v3468, 1.442695
        %v3471 = vpow.pop %v3470
        %v3472 = vmul.f32 %v3469, 1.442695
        %v3473 = vpow.pop %v3472
        %v3474 = vadd.f32 %v3471, 1.0
        %v3475 = vadd.f32 %v3473, 1.0
        %v3476 = vrcp.pop %v3474
        %v3477 = vmul.f32 1.0, %v3476
        %v3478 = vrcp.pop %v3475
        %v3479 = vmul.f32 1.0, %v3478
        %v3480 = vxor.u32 %v3461, 2147483648
        %v3481 = vxor.u32 %v3465, 2147483648
        %v3482 = vmul.f32 %v3480, 1.442695
        %v3483 = vpow.pop %v3482
        %v3484 = vmul.f32 %v3481, 1.442695
        %v3485 = vpow.pop %v3484
        %v3486 = vadd.f32 %v3483, 1.0
        %v3487 = vadd.f32 %v3485, 1.0
        %v3488 = vrcp.pop %v3486
        %v3489 = vmul.f32 1.0, %v3488
        %v3490 = vrcp.pop %v3487
        %v3491 = vmul.f32 1.0, %v3490
        %v3492 = vtanh.pop %v3462
        %v3493 = vtanh.pop %v3466
        %v3494 = vxor.u32 %v3463, 2147483648
        %v3495 = vxor.u32 %v3467, 2147483648
        %v3496 = vmul.f32 %v3494, 1.442695
        %v3497 = vpow.pop %v3496
        %v3498 = vmul.f32 %v3495, 1.442695
        %v3499 = vpow.pop %v3498
        %v3500 = vadd.f32 %v3497, 1.0
        %v3501 = vadd.f32 %v3499, 1.0
        %v3502 = vrcp.pop %v3500
        %v3503 = vmul.f32 1.0, %v3502
        %v3504 = vrcp.pop %v3501
        %v3505 = vmul.f32 1.0, %v3504
        %v3506 = vmul.f32 %v3489, %v3170
        %v3507 = vmul.f32 %v3491, %v3171
        %v3508 = vmul.f32 %v3477, %v3492
        %v3509 = vmul.f32 %v3479, %v3493
        %v3510 = vadd.f32 %v3506, %v3508
        %v3511 = vadd.f32 %v3507, %v3509
        %v3512 = vtanh.pop %v3510
        %v3513 = vtanh.pop %v3511
        %v3514 = vmul.f32 %v3503, %v3512
        %v3515 = vmul.f32 %v3505, %v3513
        %v3516 = vstv %s3446
        %vm3517 = vcmp.lt.s32.totalorder %v3516, %v1874
        %vm3518 = vcmp.lt.s32.totalorder %v3516, %v1875
        %v3519 = vsel %vm3517, 1, 0
        %v3520 = vsel %vm3518, 1, 0
        %3521 = vset.pattern.permute.xlu0 0
        %3522 = vperm.xlu0 %3521, %v3519
        %v3523 = vpop.permute.xlu0 %3522
        %3524 = vset.pattern.permute.xlu0 0
        %3525 = vperm.xlu0 %3524, %v3520
        %v3526 = vpop.permute.xlu0 %3525
        %vm3527 = vcmp.eq.s32.totalorder %v3523, 1
        %vm3528 = vcmp.eq.s32.totalorder %v3526, 1
        %v3529 = vsel %vm3527, %v3514, 0.0
        %v3530 = vsel %vm3528, %v3515, 0.0
        %v3531 = vpack.c.bf16 %v3530, %v3529
        %v3533 = vunpack.c.l.b16 %v3531
        %v3534 = vunpack.c.h.b16 %v3531
        %v3535 = vpack.c.b16 %v3533, %v3533
        %v3536 = vpack.c.b16 %v3534, %v3534
        %s3539 = scalar_lea.vmem %s450, 16 [#allocation17]
        %3540 = vst [vmem:[%s3539] sm:$0xf] %v3535
        %3541 = vst [vmem:[%s3539 + $0x4] sm:$0xf] %v3536
        %v3542 = vsel %vm3527, %v3514, %v3168
        %v3543 = vsel %vm3528, %v3515, %v3169
        %v3544 = vsel %vm3527, %v3510, %v3170
        %v3545 = vsel %vm3528, %v3511, %v3171
        %s3546 = sadd.s32 %s1878, 1
        %s3547 = scalar_lea.vmem [#allocation3], 32
        %v3548 = vld [vmem:[%s3547] sm:$0xff]
        %v3549 = vld [vmem:[%s3547 + $0x8] sm:$0xff]
        %v3550 = vld [vmem:[%s3547 + $0x10] sm:$0xff]
        %v3551 = vld [vmem:[%s3547 + $0x18] sm:$0xff]
        %v3552 = vunpack.c.l.bf16 %v3548
        %v3553 = vunpack.c.l.bf16 %v3549
        %v3554 = vunpack.c.l.bf16 %v3550
        %v3555 = vunpack.c.l.bf16 %v3551
        %v3556 = vunpack.c.h.bf16 %v3548
        %v3557 = vunpack.c.h.bf16 %v3549
        %v3558 = vunpack.c.h.bf16 %v3550
        %v3559 = vunpack.c.h.bf16 %v3551
        %v3560 = vadd.f32 %v3552, %v3395
        %v3561 = vadd.f32 %v3553, %v3397
        %v3562 = vadd.f32 %v3554, %v3438
        %v3563 = vadd.f32 %v3555, %v3440
        %v3564 = vadd.f32 %v3556, %v3399
        %v3565 = vadd.f32 %v3557, %v3401
        %v3566 = vadd.f32 %v3558, %v3442
        %v3567 = vadd.f32 %v3559, %v3444
        %v3568 = vxor.u32 %v3560, 2147483648
        %v3569 = vxor.u32 %v3564, 2147483648
        %v3570 = vmul.f32 %v3568, 1.442695
        %v3571 = vpow.pop %v3570
        %v3572 = vmul.f32 %v3569, 1.442695
        %v3573 = vpow.pop %v3572
        %v3574 = vadd.f32 %v3571, 1.0
        %v3575 = vadd.f32 %v3573, 1.0
        %v3576 = vrcp.pop %v3574
        %v3577 = vmul.f32 1.0, %v3576
        %v3578 = vrcp.pop %v3575
        %v3579 = vmul.f32 1.0, %v3578
        %v3580 = vxor.u32 %v3561, 2147483648
        %v3581 = vxor.u32 %v3565, 2147483648
        %v3582 = vmul.f32 %v3580, 1.442695
        %v3583 = vpow.pop %v3582
        %v3584 = vmul.f32 %v3581, 1.442695
        %v3585 = vpow.pop %v3584
        %v3586 = vadd.f32 %v3583, 1.0
        %v3587 = vadd.f32 %v3585, 1.0
        %v3588 = vrcp.pop %v3586
        %v3589 = vmul.f32 1.0, %v3588
        %v3590 = vrcp.pop %v3587
        %v3591 = vmul.f32 1.0, %v3590
        %v3592 = vtanh.pop %v3562
        %v3593 = vtanh.pop %v3566
        %v3594 = vxor.u32 %v3563, 2147483648
        %v3595 = vxor.u32 %v3567, 2147483648
        %v3596 = vmul.f32 %v3594, 1.442695
        %v3597 = vpow.pop %v3596
        %v3598 = vmul.f32 %v3595, 1.442695
        %v3599 = vpow.pop %v3598
        %v3600 = vadd.f32 %v3597, 1.0
        %v3601 = vadd.f32 %v3599, 1.0
        %v3602 = vrcp.pop %v3600
        %v3603 = vmul.f32 1.0, %v3602
        %v3604 = vrcp.pop %v3601
        %v3605 = vmul.f32 1.0, %v3604
        %v3606 = vmul.f32 %v3589, %v3270
        %v3607 = vmul.f32 %v3591, %v3271
        %v3608 = vmul.f32 %v3577, %v3592
        %v3609 = vmul.f32 %v3579, %v3593
        %v3610 = vadd.f32 %v3606, %v3608
        %v3611 = vadd.f32 %v3607, %v3609
        %v3612 = vtanh.pop %v3610
        %v3613 = vtanh.pop %v3611
        %v3614 = vmul.f32 %v3603, %v3612
        %v3615 = vmul.f32 %v3605, %v3613
        %v3616 = vstv %s3546
        %vm3617 = vcmp.lt.s32.totalorder %v3616, %v1874
        %vm3618 = vcmp.lt.s32.totalorder %v3616, %v1875
        %v3619 = vsel %vm3617, 1, 0
        %v3620 = vsel %vm3618, 1, 0
        %3621 = vset.pattern.permute.xlu0 0
        %3622 = vperm.xlu0 %3621, %v3619
        %v3623 = vpop.permute.xlu0 %3622
        %3624 = vset.pattern.permute.xlu0 0
        %3625 = vperm.xlu0 %3624, %v3620
        %v3626 = vpop.permute.xlu0 %3625
        %vm3627 = vcmp.eq.s32.totalorder %v3623, 1
        %vm3628 = vcmp.eq.s32.totalorder %v3626, 1
        %v3629 = vsel %vm3627, %v3614, 0.0
        %v3630 = vsel %vm3628, %v3615, 0.0
        %v3631 = vpack.c.bf16 %v3630, %v3629
        %v3633 = vunpack.c.l.b16 %v3631
        %v3634 = vunpack.c.h.b16 %v3631
        %v3635 = vpack.c.b16 %v3633, %v3633
        %v3636 = vpack.c.b16 %v3634, %v3634
        %s3639 = scalar_lea.vmem %s457, 8 [#allocation18]
        %3640 = vst [vmem:[%s3639] sm:$0xf] %v3635
        %3641 = vst [vmem:[%s3639 + $0x4] sm:$0xf] %v3636
        %v3642 = vsel %vm3627, %v3614, %v3268
        %v3643 = vsel %vm3628, %v3615, %v3269
        %v3644 = vsel %vm3627, %v3610, %v3270
        %v3645 = vsel %vm3628, %v3611, %v3271
        %v3646 = vpack.c.bf16 %v3543, %v3542
        %v3647 = vpack.c.bf16 %v3643, %v3642
        %3648 = vmatprep.subr.bf16.mxu0 %v2274
        %3649 = vmatpush1.bf16.msra.mxu0 %v2273
        %3650 = vmatprep.subr.bf16.mxu0 %v2282
        %3651 = vmatpush1.bf16.msra.mxu0 %v2281
        %3652 = vmatprep.subr.bf16.mxu0 %v2290
        %3653 = vmatpush1.bf16.msra.mxu0 %v2289
        %3654 = vmatprep.subr.bf16.mxu0 %v2298
        %3655 = vmatpush1.bf16.msra.mxu0 %v2297
        %3656 = vmatprep.subr.bf16.mxu0 %v2306
        %3657 = vmatpush1.bf16.msra.mxu0 %v2305
        %3658 = vmatprep.subr.bf16.mxu0 %v2314
        %3659 = vmatpush1.bf16.msra.mxu0 %v2313
        %3660 = vmatprep.subr.bf16.mxu0 %v2322
        %3661 = vmatpush1.bf16.msra.mxu0 %v2321
        %3662 = vmatprep.subr.bf16.mxu0 %v2330
        %3663 = vmatpush1.bf16.msra.mxu0 %v2329
        %3664 = vmatprep.subr.bf16.mxu0 %v2338
        %3665 = vmatpush1.bf16.msra.mxu0 %v2337
        %3666 = vmatprep.subr.bf16.mxu0 %v2346
        %3667 = vmatpush1.bf16.msra.mxu0 %v2345
        %3668 = vmatprep.subr.bf16.mxu0 %v2354
        %3669 = vmatpush1.bf16.msra.mxu0 %v2353
        %3670 = vmatprep.subr.bf16.mxu0 %v2362
        %3671 = vmatpush1.bf16.msra.mxu0 %v2361
        %3672 = vmatprep.subr.bf16.mxu0 %v2370
        %3673 = vmatpush1.bf16.msra.mxu0 %v2369
        %3674 = vmatprep.subr.bf16.mxu0 %v2378
        %3675 = vmatpush1.bf16.msra.mxu0 %v2377
        %3676 = vmatprep.subr.bf16.mxu0 %v2386
        %3677 = vmatpush1.bf16.msra.mxu0 %v2385
        %3678 = vmatprep.subr.bf16.mxu0 %v2394
        %3679 = vmatpush1.bf16.msra.mxu0 %v2393
        %3680 = vmatprep.mubr.bf16.mxu0 %v3647
        %3681 = vmatmul.mubr.bf16.gmra.mrb[0].mxu0 %v3646
        %v3682 = vpop.f32.mrb[0].mxu0
        %v3683 = vadd.f32 0.0, %v3682
        %v3684 = vpop.f32.mrb[0].mxu0
        %v3685 = vadd.f32 0.0, %v3684
        %v3686 = vpop.f32.mrb[0].mxu0
        %v3687 = vadd.f32 0.0, %v3686
        %v3688 = vpop.f32.mrb[0].mxu0
        %v3689 = vadd.f32 0.0, %v3688
        %3690 = vdwg.mxu0
        %3691 = vmatprep.subr.bf16.mxu0 %v2276
        %3692 = vmatpush1.bf16.msra.mxu0 %v2275
        %3693 = vmatprep.subr.bf16.mxu0 %v2284
        %3694 = vmatpush1.bf16.msra.mxu0 %v2283
        %3695 = vmatprep.subr.bf16.mxu0 %v2292
        %3696 = vmatpush1.bf16.msra.mxu0 %v2291
        %3697 = vmatprep.subr.bf16.mxu0 %v2300
        %3698 = vmatpush1.bf16.msra.mxu0 %v2299
        %3699 = vmatprep.subr.bf16.mxu0 %v2308
        %3700 = vmatpush1.bf16.msra.mxu0 %v2307
        %3701 = vmatprep.subr.bf16.mxu0 %v2316
        %3702 = vmatpush1.bf16.msra.mxu0 %v2315
        %3703 = vmatprep.subr.bf16.mxu0 %v2324
        %3704 = vmatpush1.bf16.msra.mxu0 %v2323
        %3705 = vmatprep.subr.bf16.mxu0 %v2332
        %3706 = vmatpush1.bf16.msra.mxu0 %v2331
        %3707 = vmatprep.subr.bf16.mxu0 %v2340
        %3708 = vmatpush1.bf16.msra.mxu0 %v2339
        %3709 = vmatprep.subr.bf16.mxu0 %v2348
        %3710 = vmatpush1.bf16.msra.mxu0 %v2347
        %3711 = vmatprep.subr.bf16.mxu0 %v2356
        %3712 = vmatpush1.bf16.msra.mxu0 %v2355
        %3713 = vmatprep.subr.bf16.mxu0 %v2364
        %3714 = vmatpush1.bf16.msra.mxu0 %v2363
        %3715 = vmatprep.subr.bf16.mxu0 %v2372
        %3716 = vmatpush1.bf16.msra.mxu0 %v2371
        %3717 = vmatprep.subr.bf16.mxu0 %v2380
        %3718 = vmatpush1.bf16.msra.mxu0 %v2379
        %3719 = vmatprep.subr.bf16.mxu0 %v2388
        %3720 = vmatpush1.bf16.msra.mxu0 %v2387
        %3721 = vmatprep.subr.bf16.mxu0 %v2396
        %3722 = vmatpush1.bf16.msra.mxu0 %v2395
        %3723 = vmatprep.mubr.bf16.mxu0 %v3647
        %3724 = vmatmul.mubr.bf16.gmra.mrb[0].mxu0 %v3646
        %v3725 = vpop.f32.mrb[0].mxu0
        %v3726 = vadd.f32 0.0, %v3725
        %v3727 = vpop.f32.mrb[0].mxu0
        %v3728 = vadd.f32 0.0, %v3727
        %v3729 = vpop.f32.mrb[0].mxu0
        %v3730 = vadd.f32 0.0, %v3729
        %v3731 = vpop.f32.mrb[0].mxu0
        %v3732 = vadd.f32 0.0, %v3731
        %3733 = vdwg.mxu0
        %3734 = vmatprep.subr.bf16.mxu0 %v2278
        %3735 = vmatpush1.bf16.msra.mxu0 %v2277
        %3736 = vmatprep.subr.bf16.mxu0 %v2286
        %3737 = vmatpush1.bf16.msra.mxu0 %v2285
        %3738 = vmatprep.subr.bf16.mxu0 %v2294
        %3739 = vmatpush1.bf16.msra.mxu0 %v2293
        %3740 = vmatprep.subr.bf16.mxu0 %v2302
        %3741 = vmatpush1.bf16.msra.mxu0 %v2301
        %3742 = vmatprep.subr.bf16.mxu0 %v2310
        %3743 = vmatpush1.bf16.msra.mxu0 %v2309
        %3744 = vmatprep.subr.bf16.mxu0 %v2318
        %3745 = vmatpush1.bf16.msra.mxu0 %v2317
        %3746 = vmatprep.subr.bf16.mxu0 %v2326
        %3747 = vmatpush1.bf16.msra.mxu0 %v2325
        %3748 = vmatprep.subr.bf16.mxu0 %v2334
        %3749 = vmatpush1.bf16.msra.mxu0 %v2333
        %3750 = vmatprep.subr.bf16.mxu0 %v2342
        %3751 = vmatpush1.bf16.msra.mxu0 %v2341
        %3752 = vmatprep.subr.bf16.mxu0 %v2350
        %3753 = vmatpush1.bf16.msra.mxu0 %v2349
        %3754 = vmatprep.subr.bf16.mxu0 %v2358
        %3755 = vmatpush1.bf16.msra.mxu0 %v2357
        %3756 = vmatprep.subr.bf16.mxu0 %v2366
        %3757 = vmatpush1.bf16.msra.mxu0 %v2365
        %3758 = vmatprep.subr.bf16.mxu0 %v2374
        %3759 = vmatpush1.bf16.msra.mxu0 %v2373
        %3760 = vmatprep.subr.bf16.mxu0 %v2382
        %3761 = vmatpush1.bf16.msra.mxu0 %v2381
        %3762 = vmatprep.subr.bf16.mxu0 %v2390
        %3763 = vmatpush1.bf16.msra.mxu0 %v2389
        %3764 = vmatprep.subr.bf16.mxu0 %v2398
        %3765 = vmatpush1.bf16.msra.mxu0 %v2397
        %3766 = vmatprep.mubr.bf16.mxu0 %v3647
        %3767 = vmatmul.mubr.bf16.gmra.mrb[0].mxu0 %v3646
        %v3768 = vpop.f32.mrb[0].mxu0
        %v3769 = vadd.f32 0.0, %v3768
        %v3770 = vpop.f32.mrb[0].mxu0
        %v3771 = vadd.f32 0.0, %v3770
        %v3772 = vpop.f32.mrb[0].mxu0
        %v3773 = vadd.f32 0.0, %v3772
        %v3774 = vpop.f32.mrb[0].mxu0
        %v3775 = vadd.f32 0.0, %v3774
        %3776 = vdwg.mxu0
        %3777 = vmatprep.subr.bf16.mxu0 %v2280
        %3778 = vmatpush1.bf16.msra.mxu0 %v2279
        %3779 = vmatprep.subr.bf16.mxu0 %v2288
        %3780 = vmatpush1.bf16.msra.mxu0 %v2287
        %3781 = vmatprep.subr.bf16.mxu0 %v2296
        %3782 = vmatpush1.bf16.msra.mxu0 %v2295
        %3783 = vmatprep.subr.bf16.mxu0 %v2304
        %3784 = vmatpush1.bf16.msra.mxu0 %v2303
        %3785 = vmatprep.subr.bf16.mxu0 %v2312
        %3786 = vmatpush1.bf16.msra.mxu0 %v2311
        %3787 = vmatprep.subr.bf16.mxu0 %v2320
        %3788 = vmatpush1.bf16.msra.mxu0 %v2319
        %3789 = vmatprep.subr.bf16.mxu0 %v2328
        %3790 = vmatpush1.bf16.msra.mxu0 %v2327
        %3791 = vmatprep.subr.bf16.mxu0 %v2336
        %3792 = vmatpush1.bf16.msra.mxu0 %v2335
        %3793 = vmatprep.subr.bf16.mxu0 %v2344
        %3794 = vmatpush1.bf16.msra.mxu0 %v2343
        %3795 = vmatprep.subr.bf16.mxu0 %v2352
        %3796 = vmatpush1.bf16.msra.mxu0 %v2351
        %3797 = vmatprep.subr.bf16.mxu0 %v2360
        %3798 = vmatpush1.bf16.msra.mxu0 %v2359
        %3799 = vmatprep.subr.bf16.mxu0 %v2368
        %3800 = vmatpush1.bf16.msra.mxu0 %v2367
        %3801 = vmatprep.subr.bf16.mxu0 %v2376
        %3802 = vmatpush1.bf16.msra.mxu0 %v2375
        %3803 = vmatprep.subr.bf16.mxu0 %v2384
        %3804 = vmatpush1.bf16.msra.mxu0 %v2383
        %3805 = vmatprep.subr.bf16.mxu0 %v2392
        %3806 = vmatpush1.bf16.msra.mxu0 %v2391
        %3807 = vmatprep.subr.bf16.mxu0 %v2400
        %3808 = vmatpush1.bf16.msra.mxu0 %v2399
        %3809 = vmatprep.mubr.bf16.mxu0 %v3647
        %3810 = vmatmul.mubr.bf16.gmra.mrb[0].mxu0 %v3646
        %v3811 = vpop.f32.mrb[0].mxu0
        %v3812 = vadd.f32 0.0, %v3811
        %v3813 = vpop.f32.mrb[0].mxu0
        %v3814 = vadd.f32 0.0, %v3813
        %v3815 = vpop.f32.mrb[0].mxu0
        %v3816 = vadd.f32 0.0, %v3815
        %v3817 = vpop.f32.mrb[0].mxu0
        %v3818 = vadd.f32 0.0, %v3817
        %3819 = vdwg.mxu0
        %s3820 = sadd.s32 %s1876, 3
        %s3821 = scalar_lea.vmem [#allocation2], 96
        %v3822 = vld [vmem:[%s3821] sm:$0xff]
        %v3823 = vld [vmem:[%s3821 + $0x8] sm:$0xff]
        %v3824 = vld [vmem:[%s3821 + $0x10] sm:$0xff]
        %v3825 = vld [vmem:[%s3821 + $0x18] sm:$0xff]
        %v3826 = vunpack.c.l.bf16 %v3822
        %v3827 = vunpack.c.l.bf16 %v3823
        %v3828 = vunpack.c.l.bf16 %v3824
        %v3829 = vunpack.c.l.bf16 %v3825
        %v3830 = vunpack.c.h.bf16 %v3822
        %v3831 = vunpack.c.h.bf16 %v3823
        %v3832 = vunpack.c.h.bf16 %v3824
        %v3833 = vunpack.c.h.bf16 %v3825
        %v3834 = vadd.f32 %v3826, %v3683
        %v3835 = vadd.f32 %v3827, %v3685
        %v3836 = vadd.f32 %v3828, %v3726
        %v3837 = vadd.f32 %v3829, %v3728
        %v3838 = vadd.f32 %v3830, %v3687
        %v3839 = vadd.f32 %v3831, %v3689
        %v3840 = vadd.f32 %v3832, %v3730
        %v3841 = vadd.f32 %v3833, %v3732
        %v3842 = vxor.u32 %v3834, 2147483648
        %v3843 = vxor.u32 %v3838, 2147483648
        %v3844 = vmul.f32 %v3842, 1.442695
        %v3845 = vpow.pop %v3844
        %v3846 = vmul.f32 %v3843, 1.442695
        %v3847 = vpow.pop %v3846
        %v3848 = vadd.f32 %v3845, 1.0
        %v3849 = vadd.f32 %v3847, 1.0
        %v3850 = vrcp.pop %v3848
        %v3851 = vmul.f32 1.0, %v3850
        %v3852 = vrcp.pop %v3849
        %v3853 = vmul.f32 1.0, %v3852
        %v3854 = vxor.u32 %v3835, 2147483648
        %v3855 = vxor.u32 %v3839, 2147483648
        %v3856 = vmul.f32 %v3854, 1.442695
        %v3857 = vpow.pop %v3856
        %v3858 = vmul.f32 %v3855, 1.442695
        %v3859 = vpow.pop %v3858
        %v3860 = vadd.f32 %v3857, 1.0
        %v3861 = vadd.f32 %v3859, 1.0
        %v3862 = vrcp.pop %v3860
        %v3863 = vmul.f32 1.0, %v3862
        %v3864 = vrcp.pop %v3861
        %v3865 = vmul.f32 1.0, %v3864
        %v3866 = vtanh.pop %v3836
        %v3867 = vtanh.pop %v3840
        %v3868 = vxor.u32 %v3837, 2147483648
        %v3869 = vxor.u32 %v3841, 2147483648
        %v3870 = vmul.f32 %v3868, 1.442695
        %v3871 = vpow.pop %v3870
        %v3872 = vmul.f32 %v3869, 1.442695
        %v3873 = vpow.pop %v3872
        %v3874 = vadd.f32 %v3871, 1.0
        %v3875 = vadd.f32 %v3873, 1.0
        %v3876 = vrcp.pop %v3874
        %v3877 = vmul.f32 1.0, %v3876
        %v3878 = vrcp.pop %v3875
        %v3879 = vmul.f32 1.0, %v3878
        %v3880 = vmul.f32 %v3863, %v3544
        %v3881 = vmul.f32 %v3865, %v3545
        %v3882 = vmul.f32 %v3851, %v3866
        %v3883 = vmul.f32 %v3853, %v3867
        %v3884 = vadd.f32 %v3880, %v3882
        %v3885 = vadd.f32 %v3881, %v3883
        %v3886 = vtanh.pop %v3884
        %v3887 = vtanh.pop %v3885
        %v3888 = vmul.f32 %v3877, %v3886
        %v3889 = vmul.f32 %v3879, %v3887
        %v3890 = vstv %s3820
        %vm3891 = vcmp.lt.s32.totalorder %v3890, %v1874
        %vm3892 = vcmp.lt.s32.totalorder %v3890, %v1875
        %v3893 = vsel %vm3891, 1, 0
        %v3894 = vsel %vm3892, 1, 0
        %3895 = vset.pattern.permute.xlu0 0
        %3896 = vperm.xlu0 %3895, %v3893
        %v3897 = vpop.permute.xlu0 %3896
        %3898 = vset.pattern.permute.xlu0 0
        %3899 = vperm.xlu0 %3898, %v3894
        %v3900 = vpop.permute.xlu0 %3899
        %vm3901 = vcmp.eq.s32.totalorder %v3897, 1
        %vm3902 = vcmp.eq.s32.totalorder %v3900, 1
        %v3903 = vsel %vm3901, %v3888, 0.0
        %v3904 = vsel %vm3902, %v3889, 0.0
        %v3905 = vpack.c.bf16 %v3904, %v3903
        %v3907 = vunpack.c.l.b16 %v3905
        %v3908 = vunpack.c.h.b16 %v3905
        %v3909 = vpack.c.b16 %v3907, %v3907
        %v3910 = vpack.c.b16 %v3908, %v3908
        %s3913 = scalar_lea.vmem %s450, 24 [#allocation17]
        %3914 = vst [vmem:[%s3913] sm:$0xf] %v3909
        %3915 = vst [vmem:[%s3913 + $0x4] sm:$0xf] %v3910
        %v3916 = vsel %vm3901, %v3888, %v3542
        %v3917 = vsel %vm3902, %v3889, %v3543
        %v3918 = vsel %vm3901, %v3884, %v3544
        %v3919 = vsel %vm3902, %v3885, %v3545
        %v3920 = vld [vmem:[#allocation3] sm:$0xff]
        %v3921 = vld [vmem:[#allocation3 + $0x8] sm:$0xff]
        %v3922 = vld [vmem:[#allocation3 + $0x10] sm:$0xff]
        %v3923 = vld [vmem:[#allocation3 + $0x18] sm:$0xff]
        %v3924 = vunpack.c.l.bf16 %v3920
        %v3925 = vunpack.c.l.bf16 %v3921
        %v3926 = vunpack.c.l.bf16 %v3922
        %v3927 = vunpack.c.l.bf16 %v3923
        %v3928 = vunpack.c.h.bf16 %v3920
        %v3929 = vunpack.c.h.bf16 %v3921
        %v3930 = vunpack.c.h.bf16 %v3922
        %v3931 = vunpack.c.h.bf16 %v3923
        %v3932 = vadd.f32 %v3924, %v3769
        %v3933 = vadd.f32 %v3925, %v3771
        %v3934 = vadd.f32 %v3926, %v3812
        %v3935 = vadd.f32 %v3927, %v3814
        %v3936 = vadd.f32 %v3928, %v3773
        %v3937 = vadd.f32 %v3929, %v3775
        %v3938 = vadd.f32 %v3930, %v3816
        %v3939 = vadd.f32 %v3931, %v3818
        %v3940 = vxor.u32 %v3932, 2147483648
        %v3941 = vxor.u32 %v3936, 2147483648
        %v3942 = vmul.f32 %v3940, 1.442695
        %v3943 = vpow.pop %v3942
        %v3944 = vmul.f32 %v3941, 1.442695
        %v3945 = vpow.pop %v3944
        %v3946 = vadd.f32 %v3943, 1.0
        %v3947 = vadd.f32 %v3945, 1.0
        %v3948 = vrcp.pop %v3946
        %v3949 = vmul.f32 1.0, %v3948
        %v3950 = vrcp.pop %v3947
        %v3951 = vmul.f32 1.0, %v3950
        %v3952 = vxor.u32 %v3933, 2147483648
        %v3953 = vxor.u32 %v3937, 2147483648
        %v3954 = vmul.f32 %v3952, 1.442695
        %v3955 = vpow.pop %v3954
        %v3956 = vmul.f32 %v3953, 1.442695
        %v3957 = vpow.pop %v3956
        %v3958 = vadd.f32 %v3955, 1.0
        %v3959 = vadd.f32 %v3957, 1.0
        %v3960 = vrcp.pop %v3958
        %v3961 = vmul.f32 1.0, %v3960
        %v3962 = vrcp.pop %v3959
        %v3963 = vmul.f32 1.0, %v3962
        %v3964 = vtanh.pop %v3934
        %v3965 = vtanh.pop %v3938
        %v3966 = vxor.u32 %v3935, 2147483648
        %v3967 = vxor.u32 %v3939, 2147483648
        %v3968 = vmul.f32 %v3966, 1.442695
        %v3969 = vpow.pop %v3968
        %v3970 = vmul.f32 %v3967, 1.442695
        %v3971 = vpow.pop %v3970
        %v3972 = vadd.f32 %v3969, 1.0
        %v3973 = vadd.f32 %v3971, 1.0
        %v3974 = vrcp.pop %v3972
        %v3975 = vmul.f32 1.0, %v3974
        %v3976 = vrcp.pop %v3973
        %v3977 = vmul.f32 1.0, %v3976
        %v3978 = vmul.f32 %v3961, %v3644
        %v3979 = vmul.f32 %v3963, %v3645
        %v3980 = vmul.f32 %v3949, %v3964
        %v3981 = vmul.f32 %v3951, %v3965
        %v3982 = vadd.f32 %v3978, %v3980
        %v3983 = vadd.f32 %v3979, %v3981
        %v3984 = vtanh.pop %v3982
        %v3985 = vtanh.pop %v3983
        %v3986 = vmul.f32 %v3975, %v3984
        %v3987 = vmul.f32 %v3977, %v3985
        %v3988 = vstv %s1878
        %vm3989 = vcmp.lt.s32.totalorder %v3988, %v1874
        %vm3990 = vcmp.lt.s32.totalorder %v3988, %v1875
        %v3991 = vsel %vm3989, 1, 0
        %v3992 = vsel %vm3990, 1, 0
        %3993 = vset.pattern.permute.xlu0 0
        %3994 = vperm.xlu0 %3993, %v3991
        %v3995 = vpop.permute.xlu0 %3994
        %3996 = vset.pattern.permute.xlu0 0
        %3997 = vperm.xlu0 %3996, %v3992
        %v3998 = vpop.permute.xlu0 %3997
        %vm3999 = vcmp.eq.s32.totalorder %v3995, 1
        %vm4000 = vcmp.eq.s32.totalorder %v3998, 1
        %v4001 = vsel %vm3999, %v3986, 0.0
        %v4002 = vsel %vm4000, %v3987, 0.0
        %v4003 = vpack.c.bf16 %v4002, %v4001
        %v4005 = vunpack.c.l.b16 %v4003
        %v4006 = vunpack.c.h.b16 %v4003
        %v4007 = vpack.c.b16 %v4005, %v4005
        %v4008 = vpack.c.b16 %v4006, %v4006
        %4011 = vst [vmem:[%s457] sm:$0xf] %v4007
        %4012 = vst [vmem:[%s457 + $0x4] sm:$0xf] %v4008
        %v4013 = vsel %vm3999, %v3986, %v3642
        %v4014 = vsel %vm4000, %v3987, %v3643
        %v4015 = vsel %vm3999, %v3982, %v3644
        %v4016 = vsel %vm4000, %v3983, %v3645
        %4017 = vst [vmem:[#allocation4] sm:$0xff] %v3916
        %4018 = vst [vmem:[#allocation4 + $0x8] sm:$0xff] %v4013
        %4019 = vst [vmem:[#allocation4 + $0x10] sm:$0xff] %v3917
        %4020 = vst [vmem:[#allocation4 + $0x18] sm:$0xff] %v4014
        %4021 = vst [vmem:[#allocation5] sm:$0xff] %v3918
        %4022 = vst [vmem:[#allocation5 + $0x8] sm:$0xff] %v4015
        %4023 = vst [vmem:[#allocation5 + $0x10] sm:$0xff] %v3919
        %4024 = vst [vmem:[#allocation5 + $0x18] sm:$0xff] %v4016
        %p4025 = scmp.eq.s32.totalorder %s36, 1
        // Predicated region
        $region73: #{encoder_forward.4} parent=43 // pred_check
          %p4026 = pneg %p4025
        $region74: #{encoder_forward.4} parent=43 // pred_check_branch
          %4028 = sbr.rel (%p4026) target = $region76
        $region75: #{encoder_forward.4} parent=43 // pred_region
          %4029 = vst [vmem:[#allocation20] sm:$0xff] %v3916
          %4030 = vst [vmem:[#allocation20 + $0x8] sm:$0xff] %v4013
          %4031 = vst [vmem:[#allocation20 + $0x10] sm:$0xff] %v3917
          %4032 = vst [vmem:[#allocation20 + $0x18] sm:$0xff] %v4014
          %4033 = vst [vmem:[#allocation21] sm:$0xff] %v3918
          %4034 = vst [vmem:[#allocation21 + $0x8] sm:$0xff] %v4015
          %4035 = vst [vmem:[#allocation21 + $0x10] sm:$0xff] %v3919
          %4036 = vst [vmem:[#allocation21 + $0x18] sm:$0xff] %v4016
        $region76: #{encoder_forward.4} parent=43 // pred_fallthru
          _
        %s4037 = sand.u32 %s182, 1
        %s4038 = scalar_lea.sflag [#allocation8], %s4037
        %s4039 = sand.u32 %s182, 1
        %s4040 = smul.addr %s4039, 32
        %s4041 = scalar_lea.vmem [#allocation17], %s4040
        %s4042 = sand.u32 %s36, 1
        %s4043 = scalar_lea.sflag [#allocation19], %s4042
        %s4044 = sand.u32 %s210, 1
        %s4045 = smul.addr %s4044, 32
        %s4046 = scalar_lea.vmem [#allocation18], %s4045
        // Predicated region
        $region77: #{encoder_forward.4} parent=43 // pred_check
          %p4047 = pneg %p192
        $region78: #{encoder_forward.4} parent=43 // pred_check_branch
          %4049 = sbr.rel (%p4047) target = $region80
        $region79: #{encoder_forward.4} parent=43 // pred_region
          %s4050 = smul.u32 4, %s36
          %s4052 = ssub.s32 512, 512
          %4053 = vsyncadd %s4038, %s4052
          %s4054 = smul.addr %s4050, 2
          %s4055 = smul.addr %s4054, 64
          %s4056 = scalar_lea.hbm %s6, %s4055
          %s4057 = sshll.u32 %s4041, 4
          %s4058 = int_to_ptr.vmem [resolvable:$true] %s4057
          %4063 = dma.vmem_to_hbm [thread:$0]  %s4058, 512, %s4056, %s4038, 64, 64, 4
        $region80: #{encoder_forward.4} parent=43 // pred_fallthru
          _
        // Predicated region
        $region81: #{encoder_forward.4} parent=43 // pred_check
          %p4064 = pneg %p220
        $region82: #{encoder_forward.4} parent=43 // pred_check_branch
          %4066 = sbr.rel (%p4064) target = $region84
        $region83: #{encoder_forward.4} parent=43 // pred_region
          %s4067 = ssub.s32 1, %s36
          %s4068 = smul.u32 4, %s4067
          %s4070 = ssub.s32 512, 512
          %4071 = vsyncadd %s4043, %s4070
          %s4072 = smul.addr %s4068, 2
          %s4073 = smul.addr %s4072, 64
          %s4074 = scalar_lea.hbm %s7, %s4073
          %s4075 = sshll.u32 %s4046, 4
          %s4076 = int_to_ptr.vmem [resolvable:$true] %s4075
          %4081 = dma.vmem_to_hbm [thread:$0]  %s4076, 512, %s4074, %s4043, 64, 64, 4
        $region84: #{encoder_forward.4} parent=43 // pred_fallthru
          _
        // Predicated region
        $region85: #{encoder_forward.4} parent=43 // pred_check
          %p4082 = pneg %p241
        $region86: #{encoder_forward.4} parent=43 // pred_check_branch
          %4084 = sbr.rel (%p4082) target = $region88
        $region87: #{encoder_forward.4} parent=43 // pred_region
          %s4086 = ssub.s32 512, 512
          %4087 = vsyncadd [#allocation19], %s4086
          %s4088 = sshll.u32 [#allocation20], 4
          %s4089 = int_to_ptr.vmem [resolvable:$true] %s4088
          %4094 = dma.vmem_to_hbm [thread:$0]  %s4089, 512, %s8, [#allocation19], 256, 256, 16
        $region88: #{encoder_forward.4} parent=43 // pred_fallthru
          _
        // Predicated region
        $region89: #{encoder_forward.4} parent=43 // pred_check
          %p4095 = pneg %p262
        $region90: #{encoder_forward.4} parent=43 // pred_check_branch
          %4097 = sbr.rel (%p4095) target = $region92
        $region91: #{encoder_forward.4} parent=43 // pred_region
          %s4099 = ssub.s32 512, 512
          %4100 = vsyncadd [#allocation22], %s4099
          %s4101 = sshll.u32 [#allocation21], 4
          %s4102 = int_to_ptr.vmem [resolvable:$true] %s4101
          %4107 = dma.vmem_to_hbm [thread:$0]  %s4102, 512, %s9, [#allocation22], 256, 256, 16
        $region92: #{encoder_forward.4} parent=43 // pred_fallthru
          _
        // Predicated region
        $region93: #{encoder_forward.4} parent=43 // pred_check
          %p4108 = pneg %p241
        $region94: #{encoder_forward.4} parent=43 // pred_check_branch
          %4110 = sbr.rel (%p4108) target = $region96
        $region95: #{encoder_forward.4} parent=43 // pred_region
          %4111 = dma.done [#allocation19], 512
        $region96: #{encoder_forward.4} parent=43 // pred_fallthru
          _
        // Predicated region
        $region97: #{encoder_forward.4} parent=43 // pred_check
          %p4112 = pneg %p262
        $region98: #{encoder_forward.4} parent=43 // pred_check_branch
          %4114 = sbr.rel (%p4112) target = $region100
        $region99: #{encoder_forward.4} parent=43 // pred_region
          %4115 = dma.done [#allocation22], 512
        $region100: #{encoder_forward.4} parent=43 // pred_fallthru
          _
      $region44: #{encoder_forward.4} parent=5 // pred_fallthru
        _
      %p4116 = scmp.le.s32.totalorder 2, %s31
      // Predicated region
      $region101: #{encoder_forward.4} parent=5 // pred_check
        %p4117 = pneg %p4116
      $region102: #{encoder_forward.4} parent=5 // pred_check_branch
        %4119 = sbr.rel (%p4117) target = $region104
      $region103: #{encoder_forward.4} parent=5 // pred_region
        %s4120 = ssub.s32 %s31, 2
        // Predicated region
        $region105: #{encoder_forward.4} parent=103 // pred_check
          %p4121 = pneg %p198
        $region106: #{encoder_forward.4} parent=103 // pred_check_branch
          %4123 = sbr.rel (%p4121) target = $region108
        $region107: #{encoder_forward.4} parent=103 // pred_region
          %s4124 = sand.u32 %s183, 1
          %s4125 = scalar_lea.sflag [#allocation8], %s4124
          %s4126 = sand.u32 %s183, 1
          %s4127 = smul.addr %s4126, 32
          %s4128 = scalar_lea.vmem [#allocation17], %s4127
          %4129 = dma.done %s4125, 512
        $region108: #{encoder_forward.4} parent=103 // pred_fallthru
          _
        // Predicated region
        $region109: #{encoder_forward.4} parent=103 // pred_check
          %p4130 = pneg %p226
        $region110: #{encoder_forward.4} parent=103 // pred_check_branch
          %4132 = sbr.rel (%p4130) target = $region112
        $region111: #{encoder_forward.4} parent=103 // pred_region
          %s4133 = sand.u32 %s37, 1
          %s4134 = scalar_lea.sflag [#allocation19], %s4133
          %s4135 = sand.u32 %s211, 1
          %s4136 = smul.addr %s4135, 32
          %s4137 = scalar_lea.vmem [#allocation18], %s4136
          %4138 = dma.done %s4134, 512
        $region112: #{encoder_forward.4} parent=103 // pred_fallthru
          _
      $region104: #{encoder_forward.4} parent=5 // pred_fallthru
        _
    $region6: #{encoder_forward.4} parent=1 // loop_footer
      %s35 = sadd.s32 1, %s31
    $region7: #{encoder_forward.4} parent=1 // loop_footer_branch
      %30 = sbr.rel target = $region3
    $region8: #{encoder_forward.4} parent=1 // loop_exit
      _
    %4139 = vsyncpa [#allocation7], 1
    %s4140 = scalar_lea.sflag [#allocation7], 1
    %4141 = vsyncpa %s4140, 1
    %4142 = vsyncpa [#allocation10], 1
    %s4143 = scalar_lea.sflag [#allocation10], 1
    %4144 = vsyncpa %s4143, 1
    %4145 = vsyncpa [#allocation13], 1
    %4146 = vsyncpa [#allocation16], 1
    %4147 = vsyncpa [#allocation8], 1
    %s4148 = scalar_lea.sflag [#allocation8], 1
    %4149 = vsyncpa %s4148, 1
    %4150 = vsyncpa [#allocation19], 1
    %s4151 = scalar_lea.sflag [#allocation19], 1
    %4152 = vsyncpa %s4151, 1
    %4153 = vsyncpa [#allocation22], 1

</llo_original>
